<compile_context>
chip_gen: v7x
topology: tpu7x:2x2x1
jax: 0.10.0
libtpu: 0.0.40
codegen_flags: <defaults>
</compile_context>

<pallas_src>
from functools import partial

import jax
import jax.numpy as jnp
from jax.experimental import pallas as pl
from jax.experimental.pallas import tpu as pltpu


# ----------------------------------------------------------------------------
# helpers for lane/sublane-friendly padding
# ----------------------------------------------------------------------------
def _round_up(n, m):
    return ((n + m - 1) // m) * m


def _pad_gate_cols(w, H, Hp):
    """(..., 4H) -> (..., 4Hp): zero-pad each PyTorch gate segment (i,f,g,o)."""
    lead = w.shape[:-1]
    w4 = w.reshape(lead + (4, H))
    pad = [(0, 0)] * (len(lead) + 1) + [(0, Hp - H)]
    return jnp.pad(w4, pad).reshape(lead + (4 * Hp,))


def _pad_rows_grouped(w, groups, H, Hp):
    """(groups*H, N) -> (groups*Hp, N): zero-pad each H-row group up to Hp."""
    N = w.shape[-1]
    w3 = w.reshape(groups, H, N)
    w3 = jnp.pad(w3, ((0, 0), (0, Hp - H), (0, 0)))
    return w3.reshape(groups * Hp, N)


# ----------------------------------------------------------------------------
# Pallas kernel: fused bidirectional LSTM recurrence, TT timesteps per step.
#   gx_f_ref : (TT, Bp, 4Hp) bf16  precomputed x@W_ih+b, fwd direction, block t
#   gx_b_ref : (TT, Bp, 4Hp) bf16  same array, bwd direction, block nb-1-t
#   len_ref  : (Bp, 1) int32       sequence lengths (resident)
#   whh_ref  : (2, Hp, 4Hp) bf16   recurrent weights [fwd, bwd]
#   out_f/out_b : (TT, Bp, Hp) f32 per-direction outputs
#   hn/cn    : (2, Bp, Hp) f32     final states, written on last grid step
#   h_scr    : (2, Bp, Hp) bf16, c_scr : (2, Bp, Hp) f32
# ----------------------------------------------------------------------------
def _bilstm_kernel(gx_f_ref, gx_b_ref, len_ref, whh_ref,
                   out_f_ref, out_b_ref, hn_ref, cn_ref,
                   h_scr, c_scr, *, hidden, tt):
    Hp = hidden
    t = pl.program_id(0)
    nb = pl.num_programs(0)

    @pl.when(t == 0)
    def _():
        # hidden=None in the PyTorch module -> zero-initialized (h0, c0)
        h_scr[...] = jnp.zeros_like(h_scr)
        c_scr[...] = jnp.zeros_like(c_scr)

    w_f = whh_ref[0]                 # (Hp, 4Hp) bf16
    w_b = whh_ref[1]
    lens = len_ref[...]              # (Bp, 1) int32
    base_f = t * tt                  # first global time of the fwd block
    base_b = (nb - 1 - t) * tt       # first global time of the bwd block

    def sigmoid(x):
        # single EUP pass (tanh) instead of exp + divide
        return 0.5 * jnp.tanh(0.5 * x) + 0.5

    def cell(gx, h_bf16, c, w):
        gates = gx.astype(jnp.float32) + jnp.dot(
            h_bf16, w, preferred_element_type=jnp.float32)
        i_g = sigmoid(gates[:, 0 * Hp:1 * Hp])
        f_g = sigmoid(gates[:, 1 * Hp:2 * Hp])
        g_g = jnp.tanh(gates[:, 2 * Hp:3 * Hp])
        o_g = sigmoid(gates[:, 3 * Hp:4 * Hp])
        c_new = f_g * c + i_g * g_g
        h_new = o_g * jnp.tanh(c_new)
        return h_new, c_new

    def step(s, carry):
        h_f, c_f, h_b, c_b = carry
        # ---- forward direction: global time base_f + s ----
        valid_f = (base_f + s) < lens                       # (Bp, 1) bool
        hf_new, cf_new = cell(gx_f_ref[s], h_f, c_f, w_f)
        h_f = jnp.where(valid_f, hf_new.astype(jnp.bfloat16), h_f)  # freeze on pad
        c_f = jnp.where(valid_f, cf_new, c_f)
        out_f_ref[s] = jnp.where(valid_f, hf_new, 0.0)      # pad -> zero output
        # ---- backward direction: global time base_b + (tt-1-s) ----
        sb = tt - 1 - s
        valid_b = (base_b + sb) < lens
        hb_new, cb_new = cell(gx_b_ref[sb], h_b, c_b, w_b)
        h_b = jnp.where(valid_b, hb_new.astype(jnp.bfloat16), h_b)
        c_b = jnp.where(valid_b, cb_new, c_b)
        out_b_ref[sb] = jnp.where(valid_b, hb_new, 0.0)
        return h_f, c_f, h_b, c_b

    carry0 = (h_scr[0], c_scr[0], h_scr[1], c_scr[1])
    h_f, c_f, h_b, c_b = jax.lax.fori_loop(0, tt, step, carry0, unroll=True)
    h_scr[0] = h_f
    c_scr[0] = c_f
    h_scr[1] = h_b
    c_scr[1] = c_b

    @pl.when(t == nb - 1)
    def _():
        hn_ref[0] = h_f.astype(jnp.float32)
        hn_ref[1] = h_b.astype(jnp.float32)
        cn_ref[0] = c_f
        cn_ref[1] = c_b


def _bilstm_layer(gates_x, len_col, w_hh_pair, *, tt):
    """gates_x: (2, Tp, Bp, 4Hp) bf16 precomputed input projection (dir-major).
    len_col: (Bp, 1) int32. w_hh_pair: (2, Hp, 4Hp) bf16."""
    _, Tp, Bp, four_hp = gates_x.shape
    Hp = four_hp // 4
    nb = Tp // tt
    kernel = partial(_bilstm_kernel, hidden=Hp, tt=tt)

    # VMEM working-set estimate -> vmem_limit_bytes (with headroom)
    est = (2 * 2 * (tt * Bp * 4 * Hp * 2)        # two gx blocks, 2 buffers, bf16
           + 2 * 2 * (tt * Bp * Hp * 4)          # two output blocks, 2 buffers
           + 2 * (2 * Hp * 4 * Hp * 2)           # W_hh
           + 2 * (Bp * 4)                        # lengths
           + 2 * 2 * (2 * Bp * Hp * 4)           # hn / cn
           + (2 * Bp * Hp * 2) + (2 * Bp * Hp * 4))  # h/c scratch
    vmem_limit = int(min(max(4 * est, 32 * 1024 * 1024), 100 * 1024 * 1024))

    out_f, out_b, h_n, c_n = pl.pallas_call(
        kernel,
        out_shape=(jax.ShapeDtypeStruct((Tp, Bp, Hp), jnp.float32),
                   jax.ShapeDtypeStruct((Tp, Bp, Hp), jnp.float32),
                   jax.ShapeDtypeStruct((2, Bp, Hp), jnp.float32),
                   jax.ShapeDtypeStruct((2, Bp, Hp), jnp.float32)),
        grid_spec=pltpu.PrefetchScalarGridSpec(
            num_scalar_prefetch=0,
            grid=(nb,),
            in_specs=[
                # forward gate block (direction 0), contiguous DMA
                pl.BlockSpec((None, tt, Bp, 4 * Hp), lambda t: (0, t, 0, 0)),
                # backward gate block (direction 1), reversed time traversal
                pl.BlockSpec((None, tt, Bp, 4 * Hp),
                             lambda t, nb=nb: (1, nb - 1 - t, 0, 0)),
                pl.BlockSpec((Bp, 1), lambda t: (0, 0)),
                pl.BlockSpec((2, Hp, 4 * Hp), lambda t: (0, 0, 0)),
            ],
            out_specs=[
                pl.BlockSpec((tt, Bp, Hp), lambda t: (t, 0, 0)),
                pl.BlockSpec((tt, Bp, Hp), lambda t, nb=nb: (nb - 1 - t, 0, 0)),
                pl.BlockSpec((2, Bp, Hp), lambda t: (0, 0, 0)),
                pl.BlockSpec((2, Bp, Hp), lambda t: (0, 0, 0)),
            ],
            scratch_shapes=[pltpu.VMEM((2, Bp, Hp), jnp.bfloat16),   # h state
                            pltpu.VMEM((2, Bp, Hp), jnp.float32)]),  # c state
        compiler_params=pltpu.CompilerParams(
            dimension_semantics=("arbitrary",),   # time recurrence
            vmem_limit_bytes=vmem_limit),
    )(gates_x, gates_x, len_col, w_hh_pair)
    return out_f, out_b, h_n, c_n


# ----------------------------------------------------------------------------
# Full encoder forward (Pallas path).
# ----------------------------------------------------------------------------
@partial(jax.jit, static_argnames=("hidden_size", "n_layers", "tt"))
def encoder_lstm_forward(input_seq, input_lengths, params, hidden_size,
                         n_layers=2, tt=16):
    """input_seq: (T, B) int32 token ids (time-major); input_lengths: (B,).
    Returns (outputs (T,B,H), (h_n, c_n) each (n_layers*2, B, H))."""
    T, B = input_seq.shape
    H = hidden_size
    Hp = _round_up(H, 128)          # lane-dense hidden
    Bp = _round_up(B, 8)            # fill sublanes
    Tp = _round_up(T, tt)           # whole blocks per grid step

    # pad tokens / lengths (extra rows/steps have length 0 -> fully masked)
    seq_p = jnp.zeros((Tp, Bp), input_seq.dtype).at[:T, :B].set(input_seq)
    len_p = jnp.zeros((Bp,), jnp.int32).at[:B].set(input_lengths.astype(jnp.int32))
    len_col = len_p.reshape(Bp, 1)

    emb_p = jnp.pad(params["embedding"], ((0, 0), (0, Hp - H)))
    layer_in = emb_p[seq_p]                                   # (Tp, Bp, Hp)

    h_list, c_list = [], []
    out_f = out_b = None
    for layer in range(n_layers):
        groups = 1 if layer == 0 else 2                       # input = H or 2H
        Ip = groups * Hp
        w_ih_p, w_hh_p, b_p = [], [], []
        for d in range(2):
            w_ih = params[f"w_ih_l{layer}_d{d}"]              # (groups*H, 4H)
            w_hh = params[f"w_hh_l{layer}_d{d}"]              # (H, 4H)
            b = params[f"b_l{layer}_d{d}"]                    # (1, 4H) = b_ih+b_hh
            w_ih_p.append(_pad_gate_cols(
                _pad_rows_grouped(w_ih, groups, H, Hp), H, Hp))
            w_hh_p.append(_pad_gate_cols(
                _pad_rows_grouped(w_hh, 1, H, Hp), H, Hp))
            b_p.append(_pad_gate_cols(b, H, Hp))

        # hoisted, fused fwd+bwd input projection: one (Tp*Bp, Ip)@(Ip, 8Hp) GEMM
        w_ih_both = jnp.concatenate(w_ih_p, axis=1).astype(jnp.bfloat16)
        b_both = jnp.concatenate(b_p, axis=1)
        gx = jnp.dot(layer_in.reshape(Tp * Bp, Ip).astype(jnp.bfloat16),
                     w_ih_both, preferred_element_type=jnp.float32)
        gx = (gx + b_both).astype(jnp.bfloat16)               # bf16 stream to kernel
        # direction-major layout (2, Tp, Bp, 4Hp) -> contiguous per-block DMA
        gx = jnp.transpose(gx.reshape(Tp, Bp, 2, 4 * Hp), (2, 0, 1, 3))

        w_hh_pair = jnp.stack(w_hh_p, axis=0).astype(jnp.bfloat16)  # (2,Hp,4Hp)

        out_f, out_b, h_n2, c_n2 = _bilstm_layer(gx, len_col, w_hh_pair, tt=tt)

        h_list += [h_n2[0], h_n2[1]]
        c_list += [c_n2[0], c_n2[1]]
        layer_in = jnp.concatenate([out_f, out_b], axis=-1)   # (Tp, Bp, 2Hp)
        # TODO(synk): inter-layer dropout omitted (eval/inference -> no-op)

    outputs = (out_f + out_b)[:T, :B, :H]                     # sum fwd+bwd (top layer)
    h_n = jnp.stack(h_list, axis=0)[:, :B, :H]
    c_n = jnp.stack(c_list, axis=0)[:, :B, :H]
    return outputs, (h_n, c_n)


# ----------------------------------------------------------------------------
# Pure-JAX reference (lax.scan + per-sequence reversal) for correctness check.
# Mirrors the kernel's numerics (bf16 GEMMs, bf16-rounded gx) for a tight check.
# ----------------------------------------------------------------------------
def _lstm_dir_ref(x, mask, w_ih, w_hh, b):
    T, B, I = x.shape
    H = w_hh.shape[0]
    w_ih_b = w_ih.astype(jnp.bfloat16)
    w_hh_b = w_hh.astype(jnp.bfloat16)
    gx = jnp.dot(x.reshape(T * B, I).astype(jnp.bfloat16), w_ih_b,
                 preferred_element_type=jnp.float32) + b
    gx = gx.astype(jnp.bfloat16).astype(jnp.float32).reshape(T, B, 4 * H)

    def step(carry, inp):
        h, c = carry
        gx_t, m_t = inp
        gates = gx_t + jnp.dot(h.astype(jnp.bfloat16), w_hh_b,
                               preferred_element_type=jnp.float32)
        i_g = jax.nn.sigmoid(gates[:, :H])
        f_g = jax.nn.sigmoid(gates[:, H:2 * H])
        g_g = jnp.tanh(gates[:, 2 * H:3 * H])
        o_g = jax.nn.sigmoid(gates[:, 3 * H:])
        c_new = f_g * c + i_g * g_g
        h_new = o_g * jnp.tanh(c_new)
        valid = m_t > 0
        h2 = jnp.where(valid, h_new, h)
        c2 = jnp.where(valid, c_new, c)
        return (h2, c2), jnp.where(valid, h_new, 0.0)

    init = (jnp.zeros((B, H), jnp.float32), jnp.zeros((B, H), jnp.float32))
    (hN, cN), out = jax.lax.scan(step, init, (gx, mask))
    return out, hN, cN


def _reverse_within_lengths(x, lengths):
    T = x.shape[0]
    t_idx = jnp.arange(T, dtype=jnp.int32)[:, None]
    L = lengths[None, :].astype(jnp.int32)
    rev = jnp.where(t_idx < L, L - 1 - t_idx, t_idx)
    idx = jnp.broadcast_to(rev[:, :, None], x.shape)
    return jnp.take_along_axis(x, idx, axis=0)


def encoder_lstm_forward_ref(input_seq, input_lengths, params, hidden_size,
                             n_layers=2):
    H = hidden_size
    T, B = input_seq.shape
    emb = params["embedding"][input_seq]
    mask = (jnp.arange(T)[:, None] < input_lengths[None, :]).astype(jnp.float32)
    mask = mask[:, :, None]
    layer_in = emb
    h_list, c_list = [], []
    outs = None
    for layer in range(n_layers):
        outs = []
        for d in range(2):
            w_ih = params[f"w_ih_l{layer}_d{d}"]
            w_hh = params[f"w_hh_l{layer}_d{d}"]
            b = params[f"b_l{layer}_d{d}"]
            if d == 0:
                out, hN, cN = _lstm_dir_ref(layer_in, mask, w_ih, w_hh, b)
            else:
                x_rev = _reverse_within_lengths(layer_in, input_lengths)
                out_rev, hN, cN = _lstm_dir_ref(x_rev, mask, w_ih, w_hh, b)
                out = _reverse_within_lengths(out_rev, input_lengths)
            outs.append(out)
            h_list.append(hN)
            c_list.append(cN)
        layer_in = jnp.concatenate(outs, axis=-1)
    outputs = outs[0] + outs[1]
    return outputs, (jnp.stack(h_list, 0), jnp.stack(c_list, 0))


# ----------------------------------------------------------------------------
# Deterministic parameter init (shapes mirror nn.LSTM(H, H, 2, bidirectional)).
# ----------------------------------------------------------------------------
def init_params(key, vocab, hidden_size, n_layers=2):
    H = hidden_size
    params = {}
    key, sub = jax.random.split(key)
    params["embedding"] = 0.1 * jax.random.normal(sub, (vocab, H), jnp.float32)
    s = float(1.0 / (H ** 0.5))
    for layer in range(n_layers):
        I = H if layer == 0 else 2 * H
        for d in range(2):
            key, k1, k2, k3 = jax.random.split(key, 4)
            params[f"w_ih_l{layer}_d{d}"] = jax.random.uniform(
                k1, (I, 4 * H), jnp.float32, -s, s)
            params[f"w_hh_l{layer}_d{d}"] = jax.random.uniform(
                k2, (H, 4 * H), jnp.float32, -s, s)
            # combined b_ih + b_hh
            params[f"b_l{layer}_d{d}"] = jax.random.uniform(
                k3, (1, 4 * H), jnp.float32, -s, s)
    return params


if __name__ == "__main__":
    T, B, H, VOCAB, N_LAYERS = 12, 4, 32, 16, 2

    key = jax.random.PRNGKey(0)
    key, k_seq = jax.random.split(key)
    input_seq = jax.random.randint(k_seq, (T, B), 0, VOCAB, dtype=jnp.int32)
    # pack_padded_sequence(enforce_sorted=True) expects descending lengths
    input_lengths = jnp.array([12, 9, 7, 4], dtype=jnp.int32)

    params = init_params(jax.random.PRNGKey(0), VOCAB, H, N_LAYERS)

    outputs, (h_n, c_n) = encoder_lstm_forward(
        input_seq, input_lengths, params, hidden_size=H, n_layers=N_LAYERS)
    jax.block_until_ready((outputs, h_n, c_n))

    ref_out, (ref_h, ref_c) = encoder_lstm_forward_ref(
        input_seq, input_lengths, params, H, N_LAYERS)
    jax.block_until_ready((ref_out, ref_h, ref_c))

    assert outputs.shape == (T, B, H)
    assert h_n.shape == (N_LAYERS * 2, B, H) and c_n.shape == (N_LAYERS * 2, B, H)
    assert jnp.allclose(outputs, ref_out, atol=2e-2, rtol=2e-2), \
        float(jnp.abs(outputs - ref_out).max())
    assert jnp.allclose(h_n, ref_h, atol=2e-2, rtol=2e-2)
    assert jnp.allclose(c_n, ref_c, atol=2e-2, rtol=2e-2)

    print("KERNEL_OK")
</pallas_src>

<mosaic_0001>
module attributes {stable_mosaic.version = 11 : i64} {
  func.func @_bilstm_kernel(%arg0: i32, %arg1: memref<1x16x8x512xbf16, #tpu.memory_space<vmem>>, %arg2: memref<1x16x8x512xbf16, #tpu.memory_space<vmem>>, %arg3: memref<8x1xi32, #tpu.memory_space<vmem>>, %arg4: memref<2x128x512xbf16, #tpu.memory_space<vmem>>, %arg5: memref<16x8x128xf32, #tpu.memory_space<vmem>>, %arg6: memref<16x8x128xf32, #tpu.memory_space<vmem>>, %arg7: memref<2x8x128xf32, #tpu.memory_space<vmem>>, %arg8: memref<2x8x128xf32, #tpu.memory_space<vmem>>, %arg9: memref<2x8x128xbf16, #tpu.memory_space<vmem>>, %arg10: memref<2x8x128xf32, #tpu.memory_space<vmem>>) attributes {dimension_semantics = [#tpu.dimension_semantics<arbitrary>], iteration_bounds = array<i64: 1>, scalar_prefetch = 0 : i64, scratch_operands = 2 : i64, tpu.core_type = #tpu.core_type<tc>, window_params = [{transform_indices = @transform_0, window_bounds = array<i64: 1, 16, 8, 512>}, {transform_indices = @transform_1, window_bounds = array<i64: 1, 16, 8, 512>}, {pipeline_mode = #tpu.pipeline_mode<synchronous>, transform_indices = @transform_2, window_bounds = array<i64: 8, 1>}, {pipeline_mode = #tpu.pipeline_mode<synchronous>, transform_indices = @transform_3, window_bounds = array<i64: 2, 128, 512>}, {transform_indices = @transform_4, window_bounds = array<i64: 16, 8, 128>}, {transform_indices = @transform_5, window_bounds = array<i64: 16, 8, 128>}, {pipeline_mode = #tpu.pipeline_mode<synchronous>, transform_indices = @transform_6, window_bounds = array<i64: 2, 8, 128>}, {pipeline_mode = #tpu.pipeline_mode<synchronous>, transform_indices = @transform_7, window_bounds = array<i64: 2, 8, 128>}]} {
    %c0_i32 = arith.constant 0 : i32
    %0 = arith.cmpi eq, %arg0, %c0_i32 : i32
    %1 = arith.extui %0 : i1 to i32
    %c0_i32_0 = arith.constant 0 : i32
    %2 = arith.cmpi ne, %1, %c0_i32_0 : i32
    scf.if %2 {
      %cst_564 = arith.constant 0.000000e+00 : bf16
      %1810 = vector.broadcast %cst_564 : bf16 to vector<2x8x128xbf16>
      %c0_565 = arith.constant 0 : index
      %c0_566 = arith.constant 0 : index
      %c0_567 = arith.constant 0 : index
      %1811 = vector.load %arg9[%c0_565, %c0_566, %c0_567] : memref<2x8x128xbf16, #tpu.memory_space<vmem>>, vector<2x8x128xbf16>
      tpu.vector_store %arg9[%c0_565, %c0_566, %c0_567], %1810 {strides = array<i32>} : memref<2x8x128xbf16, #tpu.memory_space<vmem>>, vector<2x8x128xbf16>,
      %cst_568 = arith.constant 0.000000e+00 : f32
      %1812 = vector.broadcast %cst_568 : f32 to vector<2x8x128xf32>
      %c0_569 = arith.constant 0 : index
      %c0_570 = arith.constant 0 : index
      %c0_571 = arith.constant 0 : index
      %1813 = vector.load %arg10[%c0_569, %c0_570, %c0_571] : memref<2x8x128xf32, #tpu.memory_space<vmem>>, vector<2x8x128xf32>
      tpu.vector_store %arg10[%c0_569, %c0_570, %c0_571], %1812 {strides = array<i32>} : memref<2x8x128xf32, #tpu.memory_space<vmem>>, vector<2x8x128xf32>,
    } else {
    }
    %c0 = arith.constant 0 : index
    %c0_1 = arith.constant 0 : index
    %c0_2 = arith.constant 0 : index
    %3 = vector.load %arg4[%c0, %c0_1, %c0_2] : memref<2x128x512xbf16, #tpu.memory_space<vmem>>, vector<1x128x512xbf16>
    %4 = vector.shape_cast %3 : vector<1x128x512xbf16> to vector<128x512xbf16>
    %c1 = arith.constant 1 : index
    %c0_3 = arith.constant 0 : index
    %c0_4 = arith.constant 0 : index
    %5 = vector.load %arg4[%c1, %c0_3, %c0_4] : memref<2x128x512xbf16, #tpu.memory_space<vmem>>, vector<1x128x512xbf16>
    %6 = vector.shape_cast %5 : vector<1x128x512xbf16> to vector<128x512xbf16>
    %c0_5 = arith.constant 0 : index
    %c0_6 = arith.constant 0 : index
    %7 = vector.load %arg3[%c0_5, %c0_6] : memref<8x1xi32, #tpu.memory_space<vmem>>, vector<8x1xi32>
    %c16_i32 = arith.constant 16 : i32
    %8 = arith.muli %arg0, %c16_i32 : i32
    %c0_i32_7 = arith.constant 0 : i32
    %9 = arith.subi %c0_i32_7, %arg0 : i32
    %c16_i32_8 = arith.constant 16 : i32
    %10 = arith.muli %9, %c16_i32_8 : i32
    %c0_9 = arith.constant 0 : index
    %c0_10 = arith.constant 0 : index
    %c0_11 = arith.constant 0 : index
    %11 = vector.load %arg9[%c0_9, %c0_10, %c0_11] : memref<2x8x128xbf16, #tpu.memory_space<vmem>>, vector<1x8x128xbf16>
    %12 = vector.shape_cast %11 : vector<1x8x128xbf16> to vector<8x128xbf16>
    %c0_12 = arith.constant 0 : index
    %c0_13 = arith.constant 0 : index
    %c0_14 = arith.constant 0 : index
    %13 = vector.load %arg10[%c0_12, %c0_13, %c0_14] : memref<2x8x128xf32, #tpu.memory_space<vmem>>, vector<1x8x128xf32>
    %14 = vector.shape_cast %13 : vector<1x8x128xf32> to vector<8x128xf32>
    %c1_15 = arith.constant 1 : index
    %c0_16 = arith.constant 0 : index
    %c0_17 = arith.constant 0 : index
    %15 = vector.load %arg9[%c1_15, %c0_16, %c0_17] : memref<2x8x128xbf16, #tpu.memory_space<vmem>>, vector<1x8x128xbf16>
    %16 = vector.shape_cast %15 : vector<1x8x128xbf16> to vector<8x128xbf16>
    %c1_18 = arith.constant 1 : index
    %c0_19 = arith.constant 0 : index
    %c0_20 = arith.constant 0 : index
    %17 = vector.load %arg10[%c1_18, %c0_19, %c0_20] : memref<2x8x128xf32, #tpu.memory_space<vmem>>, vector<1x8x128xf32>
    %18 = vector.shape_cast %17 : vector<1x8x128xf32> to vector<8x128xf32>
    %c0_i32_21 = arith.constant 0 : i32
    %19 = arith.addi %8, %c0_i32_21 : i32
    %20 = vector.broadcast %19 : i32 to vector<8x1xi32>
    %21 = arith.cmpi slt, %20, %7 : vector<8x1xi32>
    %c0_22 = arith.constant 0 : index
    %22 = arith.index_cast %c0_i32_21 : i32 to index
    %c0_23 = arith.constant 0 : index
    %c0_24 = arith.constant 0 : index
    %23 = vector.load %arg1[%c0_22, %22, %c0_23, %c0_24] : memref<1x16x8x512xbf16, #tpu.memory_space<vmem>>, vector<1x1x8x512xbf16>
    %24 = vector.shape_cast %23 : vector<1x1x8x512xbf16> to vector<8x512xbf16>
    %25 = arith.extf %24 : vector<8x512xbf16> to vector<8x512xf32>
    %cst = arith.constant dense<0.000000e+00> : vector<8x512xf32>
    %26 = tpu.matmul %12, %4, %cst {dimension_numbers = #tpu.dot_dimension_numbers<[1], [0], [0], [1], [0, 0, 1, 1], [], []>} : vector<8x128xbf16>, vector<128x512xbf16>, vector<8x512xf32> -> vector<8x512xf32>
    %27 = arith.addf %25, %26 : vector<8x512xf32>
    %28 = vector.extract_strided_slice %27 {offsets = [0, 0], sizes = [8, 128], strides = [1, 1]} : vector<8x512xf32> to vector<8x128xf32>
    %cst_25 = arith.constant 5.000000e-01 : f32
    %29 = vector.broadcast %cst_25 : f32 to vector<8x128xf32>
    %30 = arith.mulf %29, %28 : vector<8x128xf32>
    %31 = math.tanh %30 : vector<8x128xf32>
    %cst_26 = arith.constant 5.000000e-01 : f32
    %32 = vector.broadcast %cst_26 : f32 to vector<8x128xf32>
    %33 = arith.mulf %32, %31 : vector<8x128xf32>
    %cst_27 = arith.constant 5.000000e-01 : f32
    %34 = vector.broadcast %cst_27 : f32 to vector<8x128xf32>
    %35 = arith.addf %33, %34 : vector<8x128xf32>
    %36 = vector.extract_strided_slice %27 {offsets = [0, 128], sizes = [8, 128], strides = [1, 1]} : vector<8x512xf32> to vector<8x128xf32>
    %cst_28 = arith.constant 5.000000e-01 : f32
    %37 = vector.broadcast %cst_28 : f32 to vector<8x128xf32>
    %38 = arith.mulf %37, %36 : vector<8x128xf32>
    %39 = math.tanh %38 : vector<8x128xf32>
    %cst_29 = arith.constant 5.000000e-01 : f32
    %40 = vector.broadcast %cst_29 : f32 to vector<8x128xf32>
    %41 = arith.mulf %40, %39 : vector<8x128xf32>
    %cst_30 = arith.constant 5.000000e-01 : f32
    %42 = vector.broadcast %cst_30 : f32 to vector<8x128xf32>
    %43 = arith.addf %41, %42 : vector<8x128xf32>
    %44 = vector.extract_strided_slice %27 {offsets = [0, 256], sizes = [8, 128], strides = [1, 1]} : vector<8x512xf32> to vector<8x128xf32>
    %45 = math.tanh %44 : vector<8x128xf32>
    %46 = vector.extract_strided_slice %27 {offsets = [0, 384], sizes = [8, 128], strides = [1, 1]} : vector<8x512xf32> to vector<8x128xf32>
    %cst_31 = arith.constant 5.000000e-01 : f32
    %47 = vector.broadcast %cst_31 : f32 to vector<8x128xf32>
    %48 = arith.mulf %47, %46 : vector<8x128xf32>
    %49 = math.tanh %48 : vector<8x128xf32>
    %cst_32 = arith.constant 5.000000e-01 : f32
    %50 = vector.broadcast %cst_32 : f32 to vector<8x128xf32>
    %51 = arith.mulf %50, %49 : vector<8x128xf32>
    %cst_33 = arith.constant 5.000000e-01 : f32
    %52 = vector.broadcast %cst_33 : f32 to vector<8x128xf32>
    %53 = arith.addf %51, %52 : vector<8x128xf32>
    %54 = arith.mulf %43, %14 : vector<8x128xf32>
    %55 = arith.mulf %35, %45 : vector<8x128xf32>
    %56 = arith.addf %54, %55 : vector<8x128xf32>
    %57 = math.tanh %56 : vector<8x128xf32>
    %58 = arith.mulf %53, %57 : vector<8x128xf32>
    %59 = arith.truncf %58 : vector<8x128xf32> to vector<8x128xbf16>
    %60 = vector.shape_cast %21 : vector<8x1xi1> to vector<8x1xi1>
    %61 = vector.broadcast %60 : vector<8x1xi1> to vector<8x128xi1>
    %62 = arith.select %61, %59, %12 : vector<8x128xi1>, vector<8x128xbf16>
    %63 = vector.shape_cast %21 : vector<8x1xi1> to vector<8x1xi1>
    %64 = vector.broadcast %63 : vector<8x1xi1> to vector<8x128xi1>
    %65 = arith.select %64, %56, %14 : vector<8x128xi1>, vector<8x128xf32>
    %cst_34 = arith.constant 0.000000e+00 : f32
    %66 = vector.shape_cast %21 : vector<8x1xi1> to vector<8x1xi1>
    %67 = vector.broadcast %66 : vector<8x1xi1> to vector<8x128xi1>
    %68 = vector.broadcast %cst_34 : f32 to vector<8x128xf32>
    %69 = arith.select %67, %58, %68 : vector<8x128xi1>, vector<8x128xf32>
    %70 = arith.index_cast %c0_i32_21 : i32 to index
    %c0_35 = arith.constant 0 : index
    %c0_36 = arith.constant 0 : index
    %71 = vector.load %arg5[%70, %c0_35, %c0_36] : memref<16x8x128xf32, #tpu.memory_space<vmem>>, vector<1x8x128xf32>
    %72 = vector.shape_cast %71 : vector<1x8x128xf32> to vector<8x128xf32>
    %73 = vector.shape_cast %69 : vector<8x128xf32> to vector<1x8x128xf32>
    tpu.vector_store %arg5[%70, %c0_35, %c0_36], %73 {strides = array<i32>} : memref<16x8x128xf32, #tpu.memory_space<vmem>>, vector<1x8x128xf32>,
    %c15_i32 = arith.constant 15 : i32
    %74 = arith.subi %c15_i32, %c0_i32_21 : i32
    %75 = arith.addi %10, %74 : i32
    %76 = vector.broadcast %75 : i32 to vector<8x1xi32>
    %77 = arith.cmpi slt, %76, %7 : vector<8x1xi32>
    %c0_37 = arith.constant 0 : index
    %78 = arith.index_cast %74 : i32 to index
    %c0_38 = arith.constant 0 : index
    %c0_39 = arith.constant 0 : index
    %79 = vector.load %arg2[%c0_37, %78, %c0_38, %c0_39] : memref<1x16x8x512xbf16, #tpu.memory_space<vmem>>, vector<1x1x8x512xbf16>
    %80 = vector.shape_cast %79 : vector<1x1x8x512xbf16> to vector<8x512xbf16>
    %81 = arith.extf %80 : vector<8x512xbf16> to vector<8x512xf32>
    %cst_40 = arith.constant dense<0.000000e+00> : vector<8x512xf32>
    %82 = tpu.matmul %16, %6, %cst_40 {dimension_numbers = #tpu.dot_dimension_numbers<[1], [0], [0], [1], [0, 0, 1, 1], [], []>} : vector<8x128xbf16>, vector<128x512xbf16>, vector<8x512xf32> -> vector<8x512xf32>
    %83 = arith.addf %81, %82 : vector<8x512xf32>
    %84 = vector.extract_strided_slice %83 {offsets = [0, 0], sizes = [8, 128], strides = [1, 1]} : vector<8x512xf32> to vector<8x128xf32>
    %cst_41 = arith.constant 5.000000e-01 : f32
    %85 = vector.broadcast %cst_41 : f32 to vector<8x128xf32>
    %86 = arith.mulf %85, %84 : vector<8x128xf32>
    %87 = math.tanh %86 : vector<8x128xf32>
    %cst_42 = arith.constant 5.000000e-01 : f32
    %88 = vector.broadcast %cst_42 : f32 to vector<8x128xf32>
    %89 = arith.mulf %88, %87 : vector<8x128xf32>
    %cst_43 = arith.constant 5.000000e-01 : f32
    %90 = vector.broadcast %cst_43 : f32 to vector<8x128xf32>
    %91 = arith.addf %89, %90 : vector<8x128xf32>
    %92 = vector.extract_strided_slice %83 {offsets = [0, 128], sizes = [8, 128], strides = [1, 1]} : vector<8x512xf32> to vector<8x128xf32>
    %cst_44 = arith.constant 5.000000e-01 : f32
    %93 = vector.broadcast %cst_44 : f32 to vector<8x128xf32>
    %94 = arith.mulf %93, %92 : vector<8x128xf32>
    %95 = math.tanh %94 : vector<8x128xf32>
    %cst_45 = arith.constant 5.000000e-01 : f32
    %96 = vector.broadcast %cst_45 : f32 to vector<8x128xf32>
    %97 = arith.mulf %96, %95 : vector<8x128xf32>
    %cst_46 = arith.constant 5.000000e-01 : f32
    %98 = vector.broadcast %cst_46 : f32 to vector<8x128xf32>
    %99 = arith.addf %97, %98 : vector<8x128xf32>
    %100 = vector.extract_strided_slice %83 {offsets = [0, 256], sizes = [8, 128], strides = [1, 1]} : vector<8x512xf32> to vector<8x128xf32>
    %101 = math.tanh %100 : vector<8x128xf32>
    %102 = vector.extract_strided_slice %83 {offsets = [0, 384], sizes = [8, 128], strides = [1, 1]} : vector<8x512xf32> to vector<8x128xf32>
    %cst_47 = arith.constant 5.000000e-01 : f32
    %103 = vector.broadcast %cst_47 : f32 to vector<8x128xf32>
    %104 = arith.mulf %103, %102 : vector<8x128xf32>
    %105 = math.tanh %104 : vector<8x128xf32>
    %cst_48 = arith.constant 5.000000e-01 : f32
    %106 = vector.broadcast %cst_48 : f32 to vector<8x128xf32>
    %107 = arith.mulf %106, %105 : vector<8x128xf32>
    %cst_49 = arith.constant 5.000000e-01 : f32
    %108 = vector.broadcast %cst_49 : f32 to vector<8x128xf32>
    %109 = arith.addf %107, %108 : vector<8x128xf32>
    %110 = arith.mulf %99, %18 : vector<8x128xf32>
    %111 = arith.mulf %91, %101 : vector<8x128xf32>
    %112 = arith.addf %110, %111 : vector<8x128xf32>
    %113 = math.tanh %112 : vector<8x128xf32>
    %114 = arith.mulf %109, %113 : vector<8x128xf32>
    %115 = arith.truncf %114 : vector<8x128xf32> to vector<8x128xbf16>
    %116 = vector.shape_cast %77 : vector<8x1xi1> to vector<8x1xi1>
    %117 = vector.broadcast %116 : vector<8x1xi1> to vector<8x128xi1>
    %118 = arith.select %117, %115, %16 : vector<8x128xi1>, vector<8x128xbf16>
    %119 = vector.shape_cast %77 : vector<8x1xi1> to vector<8x1xi1>
    %120 = vector.broadcast %119 : vector<8x1xi1> to vector<8x128xi1>
    %121 = arith.select %120, %112, %18 : vector<8x128xi1>, vector<8x128xf32>
    %cst_50 = arith.constant 0.000000e+00 : f32
    %122 = vector.shape_cast %77 : vector<8x1xi1> to vector<8x1xi1>
    %123 = vector.broadcast %122 : vector<8x1xi1> to vector<8x128xi1>
    %124 = vector.broadcast %cst_50 : f32 to vector<8x128xf32>
    %125 = arith.select %123, %114, %124 : vector<8x128xi1>, vector<8x128xf32>
    %126 = arith.index_cast %74 : i32 to index
    %c0_51 = arith.constant 0 : index
    %c0_52 = arith.constant 0 : index
    %127 = vector.load %arg6[%126, %c0_51, %c0_52] : memref<16x8x128xf32, #tpu.memory_space<vmem>>, vector<1x8x128xf32>
    %128 = vector.shape_cast %127 : vector<1x8x128xf32> to vector<8x128xf32>
    %129 = vector.shape_cast %125 : vector<8x128xf32> to vector<1x8x128xf32>
    tpu.vector_store %arg6[%126, %c0_51, %c0_52], %129 {strides = array<i32>} : memref<16x8x128xf32, #tpu.memory_space<vmem>>, vector<1x8x128xf32>,
    %c1_i32 = arith.constant 1 : i32
    %130 = arith.addi %8, %c1_i32 : i32
    %131 = vector.broadcast %130 : i32 to vector<8x1xi32>
    %132 = arith.cmpi slt, %131, %7 : vector<8x1xi32>
    %c0_53 = arith.constant 0 : index
    %133 = arith.index_cast %c1_i32 : i32 to index
    %c0_54 = arith.constant 0 : index
    %c0_55 = arith.constant 0 : index
    %134 = vector.load %arg1[%c0_53, %133, %c0_54, %c0_55] : memref<1x16x8x512xbf16, #tpu.memory_space<vmem>>, vector<1x1x8x512xbf16>
    %135 = vector.shape_cast %134 : vector<1x1x8x512xbf16> to vector<8x512xbf16>
    %136 = arith.extf %135 : vector<8x512xbf16> to vector<8x512xf32>
    %cst_56 = arith.constant dense<0.000000e+00> : vector<8x512xf32>
    %137 = tpu.matmul %62, %4, %cst_56 {dimension_numbers = #tpu.dot_dimension_numbers<[1], [0], [0], [1], [0, 0, 1, 1], [], []>} : vector<8x128xbf16>, vector<128x512xbf16>, vector<8x512xf32> -> vector<8x512xf32>
    %138 = arith.addf %136, %137 : vector<8x512xf32>
    %139 = vector.extract_strided_slice %138 {offsets = [0, 0], sizes = [8, 128], strides = [1, 1]} : vector<8x512xf32> to vector<8x128xf32>
    %cst_57 = arith.constant 5.000000e-01 : f32
    %140 = vector.broadcast %cst_57 : f32 to vector<8x128xf32>
    %141 = arith.mulf %140, %139 : vector<8x128xf32>
    %142 = math.tanh %141 : vector<8x128xf32>
    %cst_58 = arith.constant 5.000000e-01 : f32
    %143 = vector.broadcast %cst_58 : f32 to vector<8x128xf32>
    %144 = arith.mulf %143, %142 : vector<8x128xf32>
    %cst_59 = arith.constant 5.000000e-01 : f32
    %145 = vector.broadcast %cst_59 : f32 to vector<8x128xf32>
    %146 = arith.addf %144, %145 : vector<8x128xf32>
    %147 = vector.extract_strided_slice %138 {offsets = [0, 128], sizes = [8, 128], strides = [1, 1]} : vector<8x512xf32> to vector<8x128xf32>
    %cst_60 = arith.constant 5.000000e-01 : f32
    %148 = vector.broadcast %cst_60 : f32 to vector<8x128xf32>
    %149 = arith.mulf %148, %147 : vector<8x128xf32>
    %150 = math.tanh %149 : vector<8x128xf32>
    %cst_61 = arith.constant 5.000000e-01 : f32
    %151 = vector.broadcast %cst_61 : f32 to vector<8x128xf32>
    %152 = arith.mulf %151, %150 : vector<8x128xf32>
    %cst_62 = arith.constant 5.000000e-01 : f32
    %153 = vector.broadcast %cst_62 : f32 to vector<8x128xf32>
    %154 = arith.addf %152, %153 : vector<8x128xf32>
    %155 = vector.extract_strided_slice %138 {offsets = [0, 256], sizes = [8, 128], strides = [1, 1]} : vector<8x512xf32> to vector<8x128xf32>
    %156 = math.tanh %155 : vector<8x128xf32>
    %157 = vector.extract_strided_slice %138 {offsets = [0, 384], sizes = [8, 128], strides = [1, 1]} : vector<8x512xf32> to vector<8x128xf32>
    %cst_63 = arith.constant 5.000000e-01 : f32
    %158 = vector.broadcast %cst_63 : f32 to vector<8x128xf32>
    %159 = arith.mulf %158, %157 : vector<8x128xf32>
    %160 = math.tanh %159 : vector<8x128xf32>
    %cst_64 = arith.constant 5.000000e-01 : f32
    %161 = vector.broadcast %cst_64 : f32 to vector<8x128xf32>
    %162 = arith.mulf %161, %160 : vector<8x128xf32>
    %cst_65 = arith.constant 5.000000e-01 : f32
    %163 = vector.broadcast %cst_65 : f32 to vector<8x128xf32>
    %164 = arith.addf %162, %163 : vector<8x128xf32>
    %165 = arith.mulf %154, %65 : vector<8x128xf32>
    %166 = arith.mulf %146, %156 : vector<8x128xf32>
    %167 = arith.addf %165, %166 : vector<8x128xf32>
    %168 = math.tanh %167 : vector<8x128xf32>
    %169 = arith.mulf %164, %168 : vector<8x128xf32>
    %170 = arith.truncf %169 : vector<8x128xf32> to vector<8x128xbf16>
    %171 = vector.shape_cast %132 : vector<8x1xi1> to vector<8x1xi1>
    %172 = vector.broadcast %171 : vector<8x1xi1> to vector<8x128xi1>
    %173 = arith.select %172, %170, %62 : vector<8x128xi1>, vector<8x128xbf16>
    %174 = vector.shape_cast %132 : vector<8x1xi1> to vector<8x1xi1>
    %175 = vector.broadcast %174 : vector<8x1xi1> to vector<8x128xi1>
    %176 = arith.select %175, %167, %65 : vector<8x128xi1>, vector<8x128xf32>
    %cst_66 = arith.constant 0.000000e+00 : f32
    %177 = vector.shape_cast %132 : vector<8x1xi1> to vector<8x1xi1>
    %178 = vector.broadcast %177 : vector<8x1xi1> to vector<8x128xi1>
    %179 = vector.broadcast %cst_66 : f32 to vector<8x128xf32>
    %180 = arith.select %178, %169, %179 : vector<8x128xi1>, vector<8x128xf32>
    %181 = arith.index_cast %c1_i32 : i32 to index
    %c0_67 = arith.constant 0 : index
    %c0_68 = arith.constant 0 : index
    %182 = vector.load %arg5[%181, %c0_67, %c0_68] : memref<16x8x128xf32, #tpu.memory_space<vmem>>, vector<1x8x128xf32>
    %183 = vector.shape_cast %182 : vector<1x8x128xf32> to vector<8x128xf32>
    %184 = vector.shape_cast %180 : vector<8x128xf32> to vector<1x8x128xf32>
    tpu.vector_store %arg5[%181, %c0_67, %c0_68], %184 {strides = array<i32>} : memref<16x8x128xf32, #tpu.memory_space<vmem>>, vector<1x8x128xf32>,
    %c15_i32_69 = arith.constant 15 : i32
    %185 = arith.subi %c15_i32_69, %c1_i32 : i32
    %186 = arith.addi %10, %185 : i32
    %187 = vector.broadcast %186 : i32 to vector<8x1xi32>
    %188 = arith.cmpi slt, %187, %7 : vector<8x1xi32>
    %c0_70 = arith.constant 0 : index
    %189 = arith.index_cast %185 : i32 to index
    %c0_71 = arith.constant 0 : index
    %c0_72 = arith.constant 0 : index
    %190 = vector.load %arg2[%c0_70, %189, %c0_71, %c0_72] : memref<1x16x8x512xbf16, #tpu.memory_space<vmem>>, vector<1x1x8x512xbf16>
    %191 = vector.shape_cast %190 : vector<1x1x8x512xbf16> to vector<8x512xbf16>
    %192 = arith.extf %191 : vector<8x512xbf16> to vector<8x512xf32>
    %cst_73 = arith.constant dense<0.000000e+00> : vector<8x512xf32>
    %193 = tpu.matmul %118, %6, %cst_73 {dimension_numbers = #tpu.dot_dimension_numbers<[1], [0], [0], [1], [0, 0, 1, 1], [], []>} : vector<8x128xbf16>, vector<128x512xbf16>, vector<8x512xf32> -> vector<8x512xf32>
    %194 = arith.addf %192, %193 : vector<8x512xf32>
    %195 = vector.extract_strided_slice %194 {offsets = [0, 0], sizes = [8, 128], strides = [1, 1]} : vector<8x512xf32> to vector<8x128xf32>
    %cst_74 = arith.constant 5.000000e-01 : f32
    %196 = vector.broadcast %cst_74 : f32 to vector<8x128xf32>
    %197 = arith.mulf %196, %195 : vector<8x128xf32>
    %198 = math.tanh %197 : vector<8x128xf32>
    %cst_75 = arith.constant 5.000000e-01 : f32
    %199 = vector.broadcast %cst_75 : f32 to vector<8x128xf32>
    %200 = arith.mulf %199, %198 : vector<8x128xf32>
    %cst_76 = arith.constant 5.000000e-01 : f32
    %201 = vector.broadcast %cst_76 : f32 to vector<8x128xf32>
    %202 = arith.addf %200, %201 : vector<8x128xf32>
    %203 = vector.extract_strided_slice %194 {offsets = [0, 128], sizes = [8, 128], strides = [1, 1]} : vector<8x512xf32> to vector<8x128xf32>
    %cst_77 = arith.constant 5.000000e-01 : f32
    %204 = vector.broadcast %cst_77 : f32 to vector<8x128xf32>
    %205 = arith.mulf %204, %203 : vector<8x128xf32>
    %206 = math.tanh %205 : vector<8x128xf32>
    %cst_78 = arith.constant 5.000000e-01 : f32
    %207 = vector.broadcast %cst_78 : f32 to vector<8x128xf32>
    %208 = arith.mulf %207, %206 : vector<8x128xf32>
    %cst_79 = arith.constant 5.000000e-01 : f32
    %209 = vector.broadcast %cst_79 : f32 to vector<8x128xf32>
    %210 = arith.addf %208, %209 : vector<8x128xf32>
    %211 = vector.extract_strided_slice %194 {offsets = [0, 256], sizes = [8, 128], strides = [1, 1]} : vector<8x512xf32> to vector<8x128xf32>
    %212 = math.tanh %211 : vector<8x128xf32>
    %213 = vector.extract_strided_slice %194 {offsets = [0, 384], sizes = [8, 128], strides = [1, 1]} : vector<8x512xf32> to vector<8x128xf32>
    %cst_80 = arith.constant 5.000000e-01 : f32
    %214 = vector.broadcast %cst_80 : f32 to vector<8x128xf32>
    %215 = arith.mulf %214, %213 : vector<8x128xf32>
    %216 = math.tanh %215 : vector<8x128xf32>
    %cst_81 = arith.constant 5.000000e-01 : f32
    %217 = vector.broadcast %cst_81 : f32 to vector<8x128xf32>
    %218 = arith.mulf %217, %216 : vector<8x128xf32>
    %cst_82 = arith.constant 5.000000e-01 : f32
    %219 = vector.broadcast %cst_82 : f32 to vector<8x128xf32>
    %220 = arith.addf %218, %219 : vector<8x128xf32>
    %221 = arith.mulf %210, %121 : vector<8x128xf32>
    %222 = arith.mulf %202, %212 : vector<8x128xf32>
    %223 = arith.addf %221, %222 : vector<8x128xf32>
    %224 = math.tanh %223 : vector<8x128xf32>
    %225 = arith.mulf %220, %224 : vector<8x128xf32>
    %226 = arith.truncf %225 : vector<8x128xf32> to vector<8x128xbf16>
    %227 = vector.shape_cast %188 : vector<8x1xi1> to vector<8x1xi1>
    %228 = vector.broadcast %227 : vector<8x1xi1> to vector<8x128xi1>
    %229 = arith.select %228, %226, %118 : vector<8x128xi1>, vector<8x128xbf16>
    %230 = vector.shape_cast %188 : vector<8x1xi1> to vector<8x1xi1>
    %231 = vector.broadcast %230 : vector<8x1xi1> to vector<8x128xi1>
    %232 = arith.select %231, %223, %121 : vector<8x128xi1>, vector<8x128xf32>
    %cst_83 = arith.constant 0.000000e+00 : f32
    %233 = vector.shape_cast %188 : vector<8x1xi1> to vector<8x1xi1>
    %234 = vector.broadcast %233 : vector<8x1xi1> to vector<8x128xi1>
    %235 = vector.broadcast %cst_83 : f32 to vector<8x128xf32>
    %236 = arith.select %234, %225, %235 : vector<8x128xi1>, vector<8x128xf32>
    %237 = arith.index_cast %185 : i32 to index
    %c0_84 = arith.constant 0 : index
    %c0_85 = arith.constant 0 : index
    %238 = vector.load %arg6[%237, %c0_84, %c0_85] : memref<16x8x128xf32, #tpu.memory_space<vmem>>, vector<1x8x128xf32>
    %239 = vector.shape_cast %238 : vector<1x8x128xf32> to vector<8x128xf32>
    %240 = vector.shape_cast %236 : vector<8x128xf32> to vector<1x8x128xf32>
    tpu.vector_store %arg6[%237, %c0_84, %c0_85], %240 {strides = array<i32>} : memref<16x8x128xf32, #tpu.memory_space<vmem>>, vector<1x8x128xf32>,
    %c2_i32 = arith.constant 2 : i32
    %241 = arith.addi %8, %c2_i32 : i32
    %242 = vector.broadcast %241 : i32 to vector<8x1xi32>
    %243 = arith.cmpi slt, %242, %7 : vector<8x1xi32>
    %c0_86 = arith.constant 0 : index
    %244 = arith.index_cast %c2_i32 : i32 to index
    %c0_87 = arith.constant 0 : index
    %c0_88 = arith.constant 0 : index
    %245 = vector.load %arg1[%c0_86, %244, %c0_87, %c0_88] : memref<1x16x8x512xbf16, #tpu.memory_space<vmem>>, vector<1x1x8x512xbf16>
    %246 = vector.shape_cast %245 : vector<1x1x8x512xbf16> to vector<8x512xbf16>
    %247 = arith.extf %246 : vector<8x512xbf16> to vector<8x512xf32>
    %cst_89 = arith.constant dense<0.000000e+00> : vector<8x512xf32>
    %248 = tpu.matmul %173, %4, %cst_89 {dimension_numbers = #tpu.dot_dimension_numbers<[1], [0], [0], [1], [0, 0, 1, 1], [], []>} : vector<8x128xbf16>, vector<128x512xbf16>, vector<8x512xf32> -> vector<8x512xf32>
    %249 = arith.addf %247, %248 : vector<8x512xf32>
    %250 = vector.extract_strided_slice %249 {offsets = [0, 0], sizes = [8, 128], strides = [1, 1]} : vector<8x512xf32> to vector<8x128xf32>
    %cst_90 = arith.constant 5.000000e-01 : f32
    %251 = vector.broadcast %cst_90 : f32 to vector<8x128xf32>
    %252 = arith.mulf %251, %250 : vector<8x128xf32>
    %253 = math.tanh %252 : vector<8x128xf32>
    %cst_91 = arith.constant 5.000000e-01 : f32
    %254 = vector.broadcast %cst_91 : f32 to vector<8x128xf32>
    %255 = arith.mulf %254, %253 : vector<8x128xf32>
    %cst_92 = arith.constant 5.000000e-01 : f32
    %256 = vector.broadcast %cst_92 : f32 to vector<8x128xf32>
    %257 = arith.addf %255, %256 : vector<8x128xf32>
    %258 = vector.extract_strided_slice %249 {offsets = [0, 128], sizes = [8, 128], strides = [1, 1]} : vector<8x512xf32> to vector<8x128xf32>
    %cst_93 = arith.constant 5.000000e-01 : f32
    %259 = vector.broadcast %cst_93 : f32 to vector<8x128xf32>
    %260 = arith.mulf %259, %258 : vector<8x128xf32>
    %261 = math.tanh %260 : vector<8x128xf32>
    %cst_94 = arith.constant 5.000000e-01 : f32
    %262 = vector.broadcast %cst_94 : f32 to vector<8x128xf32>
    %263 = arith.mulf %262, %261 : vector<8x128xf32>
    %cst_95 = arith.constant 5.000000e-01 : f32
    %264 = vector.broadcast %cst_95 : f32 to vector<8x128xf32>
    %265 = arith.addf %263, %264 : vector<8x128xf32>
    %266 = vector.extract_strided_slice %249 {offsets = [0, 256], sizes = [8, 128], strides = [1, 1]} : vector<8x512xf32> to vector<8x128xf32>
    %267 = math.tanh %266 : vector<8x128xf32>
    %268 = vector.extract_strided_slice %249 {offsets = [0, 384], sizes = [8, 128], strides = [1, 1]} : vector<8x512xf32> to vector<8x128xf32>
    %cst_96 = arith.constant 5.000000e-01 : f32
    %269 = vector.broadcast %cst_96 : f32 to vector<8x128xf32>
    %270 = arith.mulf %269, %268 : vector<8x128xf32>
    %271 = math.tanh %270 : vector<8x128xf32>
    %cst_97 = arith.constant 5.000000e-01 : f32
    %272 = vector.broadcast %cst_97 : f32 to vector<8x128xf32>
    %273 = arith.mulf %272, %271 : vector<8x128xf32>
    %cst_98 = arith.constant 5.000000e-01 : f32
    %274 = vector.broadcast %cst_98 : f32 to vector<8x128xf32>
    %275 = arith.addf %273, %274 : vector<8x128xf32>
    %276 = arith.mulf %265, %176 : vector<8x128xf32>
    %277 = arith.mulf %257, %267 : vector<8x128xf32>
    %278 = arith.addf %276, %277 : vector<8x128xf32>
    %279 = math.tanh %278 : vector<8x128xf32>
    %280 = arith.mulf %275, %279 : vector<8x128xf32>
    %281 = arith.truncf %280 : vector<8x128xf32> to vector<8x128xbf16>
    %282 = vector.shape_cast %243 : vector<8x1xi1> to vector<8x1xi1>
    %283 = vector.broadcast %282 : vector<8x1xi1> to vector<8x128xi1>
    %284 = arith.select %283, %281, %173 : vector<8x128xi1>, vector<8x128xbf16>
    %285 = vector.shape_cast %243 : vector<8x1xi1> to vector<8x1xi1>
    %286 = vector.broadcast %285 : vector<8x1xi1> to vector<8x128xi1>
    %287 = arith.select %286, %278, %176 : vector<8x128xi1>, vector<8x128xf32>
    %cst_99 = arith.constant 0.000000e+00 : f32
    %288 = vector.shape_cast %243 : vector<8x1xi1> to vector<8x1xi1>
    %289 = vector.broadcast %288 : vector<8x1xi1> to vector<8x128xi1>
    %290 = vector.broadcast %cst_99 : f32 to vector<8x128xf32>
    %291 = arith.select %289, %280, %290 : vector<8x128xi1>, vector<8x128xf32>
    %292 = arith.index_cast %c2_i32 : i32 to index
    %c0_100 = arith.constant 0 : index
    %c0_101 = arith.constant 0 : index
    %293 = vector.load %arg5[%292, %c0_100, %c0_101] : memref<16x8x128xf32, #tpu.memory_space<vmem>>, vector<1x8x128xf32>
    %294 = vector.shape_cast %293 : vector<1x8x128xf32> to vector<8x128xf32>
    %295 = vector.shape_cast %291 : vector<8x128xf32> to vector<1x8x128xf32>
    tpu.vector_store %arg5[%292, %c0_100, %c0_101], %295 {strides = array<i32>} : memref<16x8x128xf32, #tpu.memory_space<vmem>>, vector<1x8x128xf32>,
    %c15_i32_102 = arith.constant 15 : i32
    %296 = arith.subi %c15_i32_102, %c2_i32 : i32
    %297 = arith.addi %10, %296 : i32
    %298 = vector.broadcast %297 : i32 to vector<8x1xi32>
    %299 = arith.cmpi slt, %298, %7 : vector<8x1xi32>
    %c0_103 = arith.constant 0 : index
    %300 = arith.index_cast %296 : i32 to index
    %c0_104 = arith.constant 0 : index
    %c0_105 = arith.constant 0 : index
    %301 = vector.load %arg2[%c0_103, %300, %c0_104, %c0_105] : memref<1x16x8x512xbf16, #tpu.memory_space<vmem>>, vector<1x1x8x512xbf16>
    %302 = vector.shape_cast %301 : vector<1x1x8x512xbf16> to vector<8x512xbf16>
    %303 = arith.extf %302 : vector<8x512xbf16> to vector<8x512xf32>
    %cst_106 = arith.constant dense<0.000000e+00> : vector<8x512xf32>
    %304 = tpu.matmul %229, %6, %cst_106 {dimension_numbers = #tpu.dot_dimension_numbers<[1], [0], [0], [1], [0, 0, 1, 1], [], []>} : vector<8x128xbf16>, vector<128x512xbf16>, vector<8x512xf32> -> vector<8x512xf32>
    %305 = arith.addf %303, %304 : vector<8x512xf32>
    %306 = vector.extract_strided_slice %305 {offsets = [0, 0], sizes = [8, 128], strides = [1, 1]} : vector<8x512xf32> to vector<8x128xf32>
    %cst_107 = arith.constant 5.000000e-01 : f32
    %307 = vector.broadcast %cst_107 : f32 to vector<8x128xf32>
    %308 = arith.mulf %307, %306 : vector<8x128xf32>
    %309 = math.tanh %308 : vector<8x128xf32>
    %cst_108 = arith.constant 5.000000e-01 : f32
    %310 = vector.broadcast %cst_108 : f32 to vector<8x128xf32>
    %311 = arith.mulf %310, %309 : vector<8x128xf32>
    %cst_109 = arith.constant 5.000000e-01 : f32
    %312 = vector.broadcast %cst_109 : f32 to vector<8x128xf32>
    %313 = arith.addf %311, %312 : vector<8x128xf32>
    %314 = vector.extract_strided_slice %305 {offsets = [0, 128], sizes = [8, 128], strides = [1, 1]} : vector<8x512xf32> to vector<8x128xf32>
    %cst_110 = arith.constant 5.000000e-01 : f32
    %315 = vector.broadcast %cst_110 : f32 to vector<8x128xf32>
    %316 = arith.mulf %315, %314 : vector<8x128xf32>
    %317 = math.tanh %316 : vector<8x128xf32>
    %cst_111 = arith.constant 5.000000e-01 : f32
    %318 = vector.broadcast %cst_111 : f32 to vector<8x128xf32>
    %319 = arith.mulf %318, %317 : vector<8x128xf32>
    %cst_112 = arith.constant 5.000000e-01 : f32
    %320 = vector.broadcast %cst_112 : f32 to vector<8x128xf32>
    %321 = arith.addf %319, %320 : vector<8x128xf32>
    %322 = vector.extract_strided_slice %305 {offsets = [0, 256], sizes = [8, 128], strides = [1, 1]} : vector<8x512xf32> to vector<8x128xf32>
    %323 = math.tanh %322 : vector<8x128xf32>
    %324 = vector.extract_strided_slice %305 {offsets = [0, 384], sizes = [8, 128], strides = [1, 1]} : vector<8x512xf32> to vector<8x128xf32>
    %cst_113 = arith.constant 5.000000e-01 : f32
    %325 = vector.broadcast %cst_113 : f32 to vector<8x128xf32>
    %326 = arith.mulf %325, %324 : vector<8x128xf32>
    %327 = math.tanh %326 : vector<8x128xf32>
    %cst_114 = arith.constant 5.000000e-01 : f32
    %328 = vector.broadcast %cst_114 : f32 to vector<8x128xf32>
    %329 = arith.mulf %328, %327 : vector<8x128xf32>
    %cst_115 = arith.constant 5.000000e-01 : f32
    %330 = vector.broadcast %cst_115 : f32 to vector<8x128xf32>
    %331 = arith.addf %329, %330 : vector<8x128xf32>
    %332 = arith.mulf %321, %232 : vector<8x128xf32>
    %333 = arith.mulf %313, %323 : vector<8x128xf32>
    %334 = arith.addf %332, %333 : vector<8x128xf32>
    %335 = math.tanh %334 : vector<8x128xf32>
    %336 = arith.mulf %331, %335 : vector<8x128xf32>
    %337 = arith.truncf %336 : vector<8x128xf32> to vector<8x128xbf16>
    %338 = vector.shape_cast %299 : vector<8x1xi1> to vector<8x1xi1>
    %339 = vector.broadcast %338 : vector<8x1xi1> to vector<8x128xi1>
    %340 = arith.select %339, %337, %229 : vector<8x128xi1>, vector<8x128xbf16>
    %341 = vector.shape_cast %299 : vector<8x1xi1> to vector<8x1xi1>
    %342 = vector.broadcast %341 : vector<8x1xi1> to vector<8x128xi1>
    %343 = arith.select %342, %334, %232 : vector<8x128xi1>, vector<8x128xf32>
    %cst_116 = arith.constant 0.000000e+00 : f32
    %344 = vector.shape_cast %299 : vector<8x1xi1> to vector<8x1xi1>
    %345 = vector.broadcast %344 : vector<8x1xi1> to vector<8x128xi1>
    %346 = vector.broadcast %cst_116 : f32 to vector<8x128xf32>
    %347 = arith.select %345, %336, %346 : vector<8x128xi1>, vector<8x128xf32>
    %348 = arith.index_cast %296 : i32 to index
    %c0_117 = arith.constant 0 : index
    %c0_118 = arith.constant 0 : index
    %349 = vector.load %arg6[%348, %c0_117, %c0_118] : memref<16x8x128xf32, #tpu.memory_space<vmem>>, vector<1x8x128xf32>
    %350 = vector.shape_cast %349 : vector<1x8x128xf32> to vector<8x128xf32>
    %351 = vector.shape_cast %347 : vector<8x128xf32> to vector<1x8x128xf32>
    tpu.vector_store %arg6[%348, %c0_117, %c0_118], %351 {strides = array<i32>} : memref<16x8x128xf32, #tpu.memory_space<vmem>>, vector<1x8x128xf32>,
    %c3_i32 = arith.constant 3 : i32
    %352 = arith.addi %8, %c3_i32 : i32
    %353 = vector.broadcast %352 : i32 to vector<8x1xi32>
    %354 = arith.cmpi slt, %353, %7 : vector<8x1xi32>
    %c0_119 = arith.constant 0 : index
    %355 = arith.index_cast %c3_i32 : i32 to index
    %c0_120 = arith.constant 0 : index
    %c0_121 = arith.constant 0 : index
    %356 = vector.load %arg1[%c0_119, %355, %c0_120, %c0_121] : memref<1x16x8x512xbf16, #tpu.memory_space<vmem>>, vector<1x1x8x512xbf16>
    %357 = vector.shape_cast %356 : vector<1x1x8x512xbf16> to vector<8x512xbf16>
    %358 = arith.extf %357 : vector<8x512xbf16> to vector<8x512xf32>
    %cst_122 = arith.constant dense<0.000000e+00> : vector<8x512xf32>
    %359 = tpu.matmul %284, %4, %cst_122 {dimension_numbers = #tpu.dot_dimension_numbers<[1], [0], [0], [1], [0, 0, 1, 1], [], []>} : vector<8x128xbf16>, vector<128x512xbf16>, vector<8x512xf32> -> vector<8x512xf32>
    %360 = arith.addf %358, %359 : vector<8x512xf32>
    %361 = vector.extract_strided_slice %360 {offsets = [0, 0], sizes = [8, 128], strides = [1, 1]} : vector<8x512xf32> to vector<8x128xf32>
    %cst_123 = arith.constant 5.000000e-01 : f32
    %362 = vector.broadcast %cst_123 : f32 to vector<8x128xf32>
    %363 = arith.mulf %362, %361 : vector<8x128xf32>
    %364 = math.tanh %363 : vector<8x128xf32>
    %cst_124 = arith.constant 5.000000e-01 : f32
    %365 = vector.broadcast %cst_124 : f32 to vector<8x128xf32>
    %366 = arith.mulf %365, %364 : vector<8x128xf32>
    %cst_125 = arith.constant 5.000000e-01 : f32
    %367 = vector.broadcast %cst_125 : f32 to vector<8x128xf32>
    %368 = arith.addf %366, %367 : vector<8x128xf32>
    %369 = vector.extract_strided_slice %360 {offsets = [0, 128], sizes = [8, 128], strides = [1, 1]} : vector<8x512xf32> to vector<8x128xf32>
    %cst_126 = arith.constant 5.000000e-01 : f32
    %370 = vector.broadcast %cst_126 : f32 to vector<8x128xf32>
    %371 = arith.mulf %370, %369 : vector<8x128xf32>
    %372 = math.tanh %371 : vector<8x128xf32>
    %cst_127 = arith.constant 5.000000e-01 : f32
    %373 = vector.broadcast %cst_127 : f32 to vector<8x128xf32>
    %374 = arith.mulf %373, %372 : vector<8x128xf32>
    %cst_128 = arith.constant 5.000000e-01 : f32
    %375 = vector.broadcast %cst_128 : f32 to vector<8x128xf32>
    %376 = arith.addf %374, %375 : vector<8x128xf32>
    %377 = vector.extract_strided_slice %360 {offsets = [0, 256], sizes = [8, 128], strides = [1, 1]} : vector<8x512xf32> to vector<8x128xf32>
    %378 = math.tanh %377 : vector<8x128xf32>
    %379 = vector.extract_strided_slice %360 {offsets = [0, 384], sizes = [8, 128], strides = [1, 1]} : vector<8x512xf32> to vector<8x128xf32>
    %cst_129 = arith.constant 5.000000e-01 : f32
    %380 = vector.broadcast %cst_129 : f32 to vector<8x128xf32>
    %381 = arith.mulf %380, %379 : vector<8x128xf32>
    %382 = math.tanh %381 : vector<8x128xf32>
    %cst_130 = arith.constant 5.000000e-01 : f32
    %383 = vector.broadcast %cst_130 : f32 to vector<8x128xf32>
    %384 = arith.mulf %383, %382 : vector<8x128xf32>
    %cst_131 = arith.constant 5.000000e-01 : f32
    %385 = vector.broadcast %cst_131 : f32 to vector<8x128xf32>
    %386 = arith.addf %384, %385 : vector<8x128xf32>
    %387 = arith.mulf %376, %287 : vector<8x128xf32>
    %388 = arith.mulf %368, %378 : vector<8x128xf32>
    %389 = arith.addf %387, %388 : vector<8x128xf32>
    %390 = math.tanh %389 : vector<8x128xf32>
    %391 = arith.mulf %386, %390 : vector<8x128xf32>
    %392 = arith.truncf %391 : vector<8x128xf32> to vector<8x128xbf16>
    %393 = vector.shape_cast %354 : vector<8x1xi1> to vector<8x1xi1>
    %394 = vector.broadcast %393 : vector<8x1xi1> to vector<8x128xi1>
    %395 = arith.select %394, %392, %284 : vector<8x128xi1>, vector<8x128xbf16>
    %396 = vector.shape_cast %354 : vector<8x1xi1> to vector<8x1xi1>
    %397 = vector.broadcast %396 : vector<8x1xi1> to vector<8x128xi1>
    %398 = arith.select %397, %389, %287 : vector<8x128xi1>, vector<8x128xf32>
    %cst_132 = arith.constant 0.000000e+00 : f32
    %399 = vector.shape_cast %354 : vector<8x1xi1> to vector<8x1xi1>
    %400 = vector.broadcast %399 : vector<8x1xi1> to vector<8x128xi1>
    %401 = vector.broadcast %cst_132 : f32 to vector<8x128xf32>
    %402 = arith.select %400, %391, %401 : vector<8x128xi1>, vector<8x128xf32>
    %403 = arith.index_cast %c3_i32 : i32 to index
    %c0_133 = arith.constant 0 : index
    %c0_134 = arith.constant 0 : index
    %404 = vector.load %arg5[%403, %c0_133, %c0_134] : memref<16x8x128xf32, #tpu.memory_space<vmem>>, vector<1x8x128xf32>
    %405 = vector.shape_cast %404 : vector<1x8x128xf32> to vector<8x128xf32>
    %406 = vector.shape_cast %402 : vector<8x128xf32> to vector<1x8x128xf32>
    tpu.vector_store %arg5[%403, %c0_133, %c0_134], %406 {strides = array<i32>} : memref<16x8x128xf32, #tpu.memory_space<vmem>>, vector<1x8x128xf32>,
    %c15_i32_135 = arith.constant 15 : i32
    %407 = arith.subi %c15_i32_135, %c3_i32 : i32
    %408 = arith.addi %10, %407 : i32
    %409 = vector.broadcast %408 : i32 to vector<8x1xi32>
    %410 = arith.cmpi slt, %409, %7 : vector<8x1xi32>
    %c0_136 = arith.constant 0 : index
    %411 = arith.index_cast %407 : i32 to index
    %c0_137 = arith.constant 0 : index
    %c0_138 = arith.constant 0 : index
    %412 = vector.load %arg2[%c0_136, %411, %c0_137, %c0_138] : memref<1x16x8x512xbf16, #tpu.memory_space<vmem>>, vector<1x1x8x512xbf16>
    %413 = vector.shape_cast %412 : vector<1x1x8x512xbf16> to vector<8x512xbf16>
    %414 = arith.extf %413 : vector<8x512xbf16> to vector<8x512xf32>
    %cst_139 = arith.constant dense<0.000000e+00> : vector<8x512xf32>
    %415 = tpu.matmul %340, %6, %cst_139 {dimension_numbers = #tpu.dot_dimension_numbers<[1], [0], [0], [1], [0, 0, 1, 1], [], []>} : vector<8x128xbf16>, vector<128x512xbf16>, vector<8x512xf32> -> vector<8x512xf32>
    %416 = arith.addf %414, %415 : vector<8x512xf32>
    %417 = vector.extract_strided_slice %416 {offsets = [0, 0], sizes = [8, 128], strides = [1, 1]} : vector<8x512xf32> to vector<8x128xf32>
    %cst_140 = arith.constant 5.000000e-01 : f32
    %418 = vector.broadcast %cst_140 : f32 to vector<8x128xf32>
    %419 = arith.mulf %418, %417 : vector<8x128xf32>
    %420 = math.tanh %419 : vector<8x128xf32>
    %cst_141 = arith.constant 5.000000e-01 : f32
    %421 = vector.broadcast %cst_141 : f32 to vector<8x128xf32>
    %422 = arith.mulf %421, %420 : vector<8x128xf32>
    %cst_142 = arith.constant 5.000000e-01 : f32
    %423 = vector.broadcast %cst_142 : f32 to vector<8x128xf32>
    %424 = arith.addf %422, %423 : vector<8x128xf32>
    %425 = vector.extract_strided_slice %416 {offsets = [0, 128], sizes = [8, 128], strides = [1, 1]} : vector<8x512xf32> to vector<8x128xf32>
    %cst_143 = arith.constant 5.000000e-01 : f32
    %426 = vector.broadcast %cst_143 : f32 to vector<8x128xf32>
    %427 = arith.mulf %426, %425 : vector<8x128xf32>
    %428 = math.tanh %427 : vector<8x128xf32>
    %cst_144 = arith.constant 5.000000e-01 : f32
    %429 = vector.broadcast %cst_144 : f32 to vector<8x128xf32>
    %430 = arith.mulf %429, %428 : vector<8x128xf32>
    %cst_145 = arith.constant 5.000000e-01 : f32
    %431 = vector.broadcast %cst_145 : f32 to vector<8x128xf32>
    %432 = arith.addf %430, %431 : vector<8x128xf32>
    %433 = vector.extract_strided_slice %416 {offsets = [0, 256], sizes = [8, 128], strides = [1, 1]} : vector<8x512xf32> to vector<8x128xf32>
    %434 = math.tanh %433 : vector<8x128xf32>
    %435 = vector.extract_strided_slice %416 {offsets = [0, 384], sizes = [8, 128], strides = [1, 1]} : vector<8x512xf32> to vector<8x128xf32>
    %cst_146 = arith.constant 5.000000e-01 : f32
    %436 = vector.broadcast %cst_146 : f32 to vector<8x128xf32>
    %437 = arith.mulf %436, %435 : vector<8x128xf32>
    %438 = math.tanh %437 : vector<8x128xf32>
    %cst_147 = arith.constant 5.000000e-01 : f32
    %439 = vector.broadcast %cst_147 : f32 to vector<8x128xf32>
    %440 = arith.mulf %439, %438 : vector<8x128xf32>
    %cst_148 = arith.constant 5.000000e-01 : f32
    %441 = vector.broadcast %cst_148 : f32 to vector<8x128xf32>
    %442 = arith.addf %440, %441 : vector<8x128xf32>
    %443 = arith.mulf %432, %343 : vector<8x128xf32>
    %444 = arith.mulf %424, %434 : vector<8x128xf32>
    %445 = arith.addf %443, %444 : vector<8x128xf32>
    %446 = math.tanh %445 : vector<8x128xf32>
    %447 = arith.mulf %442, %446 : vector<8x128xf32>
    %448 = arith.truncf %447 : vector<8x128xf32> to vector<8x128xbf16>
    %449 = vector.shape_cast %410 : vector<8x1xi1> to vector<8x1xi1>
    %450 = vector.broadcast %449 : vector<8x1xi1> to vector<8x128xi1>
    %451 = arith.select %450, %448, %340 : vector<8x128xi1>, vector<8x128xbf16>
    %452 = vector.shape_cast %410 : vector<8x1xi1> to vector<8x1xi1>
    %453 = vector.broadcast %452 : vector<8x1xi1> to vector<8x128xi1>
    %454 = arith.select %453, %445, %343 : vector<8x128xi1>, vector<8x128xf32>
    %cst_149 = arith.constant 0.000000e+00 : f32
    %455 = vector.shape_cast %410 : vector<8x1xi1> to vector<8x1xi1>
    %456 = vector.broadcast %455 : vector<8x1xi1> to vector<8x128xi1>
    %457 = vector.broadcast %cst_149 : f32 to vector<8x128xf32>
    %458 = arith.select %456, %447, %457 : vector<8x128xi1>, vector<8x128xf32>
    %459 = arith.index_cast %407 : i32 to index
    %c0_150 = arith.constant 0 : index
    %c0_151 = arith.constant 0 : index
    %460 = vector.load %arg6[%459, %c0_150, %c0_151] : memref<16x8x128xf32, #tpu.memory_space<vmem>>, vector<1x8x128xf32>
    %461 = vector.shape_cast %460 : vector<1x8x128xf32> to vector<8x128xf32>
    %462 = vector.shape_cast %458 : vector<8x128xf32> to vector<1x8x128xf32>
    tpu.vector_store %arg6[%459, %c0_150, %c0_151], %462 {strides = array<i32>} : memref<16x8x128xf32, #tpu.memory_space<vmem>>, vector<1x8x128xf32>,
    %c4_i32 = arith.constant 4 : i32
    %463 = arith.addi %8, %c4_i32 : i32
    %464 = vector.broadcast %463 : i32 to vector<8x1xi32>
    %465 = arith.cmpi slt, %464, %7 : vector<8x1xi32>
    %c0_152 = arith.constant 0 : index
    %466 = arith.index_cast %c4_i32 : i32 to index
    %c0_153 = arith.constant 0 : index
    %c0_154 = arith.constant 0 : index
    %467 = vector.load %arg1[%c0_152, %466, %c0_153, %c0_154] : memref<1x16x8x512xbf16, #tpu.memory_space<vmem>>, vector<1x1x8x512xbf16>
    %468 = vector.shape_cast %467 : vector<1x1x8x512xbf16> to vector<8x512xbf16>
    %469 = arith.extf %468 : vector<8x512xbf16> to vector<8x512xf32>
    %cst_155 = arith.constant dense<0.000000e+00> : vector<8x512xf32>
    %470 = tpu.matmul %395, %4, %cst_155 {dimension_numbers = #tpu.dot_dimension_numbers<[1], [0], [0], [1], [0, 0, 1, 1], [], []>} : vector<8x128xbf16>, vector<128x512xbf16>, vector<8x512xf32> -> vector<8x512xf32>
    %471 = arith.addf %469, %470 : vector<8x512xf32>
    %472 = vector.extract_strided_slice %471 {offsets = [0, 0], sizes = [8, 128], strides = [1, 1]} : vector<8x512xf32> to vector<8x128xf32>
    %cst_156 = arith.constant 5.000000e-01 : f32
    %473 = vector.broadcast %cst_156 : f32 to vector<8x128xf32>
    %474 = arith.mulf %473, %472 : vector<8x128xf32>
    %475 = math.tanh %474 : vector<8x128xf32>
    %cst_157 = arith.constant 5.000000e-01 : f32
    %476 = vector.broadcast %cst_157 : f32 to vector<8x128xf32>
    %477 = arith.mulf %476, %475 : vector<8x128xf32>
    %cst_158 = arith.constant 5.000000e-01 : f32
    %478 = vector.broadcast %cst_158 : f32 to vector<8x128xf32>
    %479 = arith.addf %477, %478 : vector<8x128xf32>
    %480 = vector.extract_strided_slice %471 {offsets = [0, 128], sizes = [8, 128], strides = [1, 1]} : vector<8x512xf32> to vector<8x128xf32>
    %cst_159 = arith.constant 5.000000e-01 : f32
    %481 = vector.broadcast %cst_159 : f32 to vector<8x128xf32>
    %482 = arith.mulf %481, %480 : vector<8x128xf32>
    %483 = math.tanh %482 : vector<8x128xf32>
    %cst_160 = arith.constant 5.000000e-01 : f32
    %484 = vector.broadcast %cst_160 : f32 to vector<8x128xf32>
    %485 = arith.mulf %484, %483 : vector<8x128xf32>
    %cst_161 = arith.constant 5.000000e-01 : f32
    %486 = vector.broadcast %cst_161 : f32 to vector<8x128xf32>
    %487 = arith.addf %485, %486 : vector<8x128xf32>
    %488 = vector.extract_strided_slice %471 {offsets = [0, 256], sizes = [8, 128], strides = [1, 1]} : vector<8x512xf32> to vector<8x128xf32>
    %489 = math.tanh %488 : vector<8x128xf32>
    %490 = vector.extract_strided_slice %471 {offsets = [0, 384], sizes = [8, 128], strides = [1, 1]} : vector<8x512xf32> to vector<8x128xf32>
    %cst_162 = arith.constant 5.000000e-01 : f32
    %491 = vector.broadcast %cst_162 : f32 to vector<8x128xf32>
    %492 = arith.mulf %491, %490 : vector<8x128xf32>
    %493 = math.tanh %492 : vector<8x128xf32>
    %cst_163 = arith.constant 5.000000e-01 : f32
    %494 = vector.broadcast %cst_163 : f32 to vector<8x128xf32>
    %495 = arith.mulf %494, %493 : vector<8x128xf32>
    %cst_164 = arith.constant 5.000000e-01 : f32
    %496 = vector.broadcast %cst_164 : f32 to vector<8x128xf32>
    %497 = arith.addf %495, %496 : vector<8x128xf32>
    %498 = arith.mulf %487, %398 : vector<8x128xf32>
    %499 = arith.mulf %479, %489 : vector<8x128xf32>
    %500 = arith.addf %498, %499 : vector<8x128xf32>
    %501 = math.tanh %500 : vector<8x128xf32>
    %502 = arith.mulf %497, %501 : vector<8x128xf32>
    %503 = arith.truncf %502 : vector<8x128xf32> to vector<8x128xbf16>
    %504 = vector.shape_cast %465 : vector<8x1xi1> to vector<8x1xi1>
    %505 = vector.broadcast %504 : vector<8x1xi1> to vector<8x128xi1>
    %506 = arith.select %505, %503, %395 : vector<8x128xi1>, vector<8x128xbf16>
    %507 = vector.shape_cast %465 : vector<8x1xi1> to vector<8x1xi1>
    %508 = vector.broadcast %507 : vector<8x1xi1> to vector<8x128xi1>
    %509 = arith.select %508, %500, %398 : vector<8x128xi1>, vector<8x128xf32>
    %cst_165 = arith.constant 0.000000e+00 : f32
    %510 = vector.shape_cast %465 : vector<8x1xi1> to vector<8x1xi1>
    %511 = vector.broadcast %510 : vector<8x1xi1> to vector<8x128xi1>
    %512 = vector.broadcast %cst_165 : f32 to vector<8x128xf32>
    %513 = arith.select %511, %502, %512 : vector<8x128xi1>, vector<8x128xf32>
    %514 = arith.index_cast %c4_i32 : i32 to index
    %c0_166 = arith.constant 0 : index
    %c0_167 = arith.constant 0 : index
    %515 = vector.load %arg5[%514, %c0_166, %c0_167] : memref<16x8x128xf32, #tpu.memory_space<vmem>>, vector<1x8x128xf32>
    %516 = vector.shape_cast %515 : vector<1x8x128xf32> to vector<8x128xf32>
    %517 = vector.shape_cast %513 : vector<8x128xf32> to vector<1x8x128xf32>
    tpu.vector_store %arg5[%514, %c0_166, %c0_167], %517 {strides = array<i32>} : memref<16x8x128xf32, #tpu.memory_space<vmem>>, vector<1x8x128xf32>,
    %c15_i32_168 = arith.constant 15 : i32
    %518 = arith.subi %c15_i32_168, %c4_i32 : i32
    %519 = arith.addi %10, %518 : i32
    %520 = vector.broadcast %519 : i32 to vector<8x1xi32>
    %521 = arith.cmpi slt, %520, %7 : vector<8x1xi32>
    %c0_169 = arith.constant 0 : index
    %522 = arith.index_cast %518 : i32 to index
    %c0_170 = arith.constant 0 : index
    %c0_171 = arith.constant 0 : index
    %523 = vector.load %arg2[%c0_169, %522, %c0_170, %c0_171] : memref<1x16x8x512xbf16, #tpu.memory_space<vmem>>, vector<1x1x8x512xbf16>
    %524 = vector.shape_cast %523 : vector<1x1x8x512xbf16> to vector<8x512xbf16>
    %525 = arith.extf %524 : vector<8x512xbf16> to vector<8x512xf32>
    %cst_172 = arith.constant dense<0.000000e+00> : vector<8x512xf32>
    %526 = tpu.matmul %451, %6, %cst_172 {dimension_numbers = #tpu.dot_dimension_numbers<[1], [0], [0], [1], [0, 0, 1, 1], [], []>} : vector<8x128xbf16>, vector<128x512xbf16>, vector<8x512xf32> -> vector<8x512xf32>
    %527 = arith.addf %525, %526 : vector<8x512xf32>
    %528 = vector.extract_strided_slice %527 {offsets = [0, 0], sizes = [8, 128], strides = [1, 1]} : vector<8x512xf32> to vector<8x128xf32>
    %cst_173 = arith.constant 5.000000e-01 : f32
    %529 = vector.broadcast %cst_173 : f32 to vector<8x128xf32>
    %530 = arith.mulf %529, %528 : vector<8x128xf32>
    %531 = math.tanh %530 : vector<8x128xf32>
    %cst_174 = arith.constant 5.000000e-01 : f32
    %532 = vector.broadcast %cst_174 : f32 to vector<8x128xf32>
    %533 = arith.mulf %532, %531 : vector<8x128xf32>
    %cst_175 = arith.constant 5.000000e-01 : f32
    %534 = vector.broadcast %cst_175 : f32 to vector<8x128xf32>
    %535 = arith.addf %533, %534 : vector<8x128xf32>
    %536 = vector.extract_strided_slice %527 {offsets = [0, 128], sizes = [8, 128], strides = [1, 1]} : vector<8x512xf32> to vector<8x128xf32>
    %cst_176 = arith.constant 5.000000e-01 : f32
    %537 = vector.broadcast %cst_176 : f32 to vector<8x128xf32>
    %538 = arith.mulf %537, %536 : vector<8x128xf32>
    %539 = math.tanh %538 : vector<8x128xf32>
    %cst_177 = arith.constant 5.000000e-01 : f32
    %540 = vector.broadcast %cst_177 : f32 to vector<8x128xf32>
    %541 = arith.mulf %540, %539 : vector<8x128xf32>
    %cst_178 = arith.constant 5.000000e-01 : f32
    %542 = vector.broadcast %cst_178 : f32 to vector<8x128xf32>
    %543 = arith.addf %541, %542 : vector<8x128xf32>
    %544 = vector.extract_strided_slice %527 {offsets = [0, 256], sizes = [8, 128], strides = [1, 1]} : vector<8x512xf32> to vector<8x128xf32>
    %545 = math.tanh %544 : vector<8x128xf32>
    %546 = vector.extract_strided_slice %527 {offsets = [0, 384], sizes = [8, 128], strides = [1, 1]} : vector<8x512xf32> to vector<8x128xf32>
    %cst_179 = arith.constant 5.000000e-01 : f32
    %547 = vector.broadcast %cst_179 : f32 to vector<8x128xf32>
    %548 = arith.mulf %547, %546 : vector<8x128xf32>
    %549 = math.tanh %548 : vector<8x128xf32>
    %cst_180 = arith.constant 5.000000e-01 : f32
    %550 = vector.broadcast %cst_180 : f32 to vector<8x128xf32>
    %551 = arith.mulf %550, %549 : vector<8x128xf32>
    %cst_181 = arith.constant 5.000000e-01 : f32
    %552 = vector.broadcast %cst_181 : f32 to vector<8x128xf32>
    %553 = arith.addf %551, %552 : vector<8x128xf32>
    %554 = arith.mulf %543, %454 : vector<8x128xf32>
    %555 = arith.mulf %535, %545 : vector<8x128xf32>
    %556 = arith.addf %554, %555 : vector<8x128xf32>
    %557 = math.tanh %556 : vector<8x128xf32>
    %558 = arith.mulf %553, %557 : vector<8x128xf32>
    %559 = arith.truncf %558 : vector<8x128xf32> to vector<8x128xbf16>
    %560 = vector.shape_cast %521 : vector<8x1xi1> to vector<8x1xi1>
    %561 = vector.broadcast %560 : vector<8x1xi1> to vector<8x128xi1>
    %562 = arith.select %561, %559, %451 : vector<8x128xi1>, vector<8x128xbf16>
    %563 = vector.shape_cast %521 : vector<8x1xi1> to vector<8x1xi1>
    %564 = vector.broadcast %563 : vector<8x1xi1> to vector<8x128xi1>
    %565 = arith.select %564, %556, %454 : vector<8x128xi1>, vector<8x128xf32>
    %cst_182 = arith.constant 0.000000e+00 : f32
    %566 = vector.shape_cast %521 : vector<8x1xi1> to vector<8x1xi1>
    %567 = vector.broadcast %566 : vector<8x1xi1> to vector<8x128xi1>
    %568 = vector.broadcast %cst_182 : f32 to vector<8x128xf32>
    %569 = arith.select %567, %558, %568 : vector<8x128xi1>, vector<8x128xf32>
    %570 = arith.index_cast %518 : i32 to index
    %c0_183 = arith.constant 0 : index
    %c0_184 = arith.constant 0 : index
    %571 = vector.load %arg6[%570, %c0_183, %c0_184] : memref<16x8x128xf32, #tpu.memory_space<vmem>>, vector<1x8x128xf32>
    %572 = vector.shape_cast %571 : vector<1x8x128xf32> to vector<8x128xf32>
    %573 = vector.shape_cast %569 : vector<8x128xf32> to vector<1x8x128xf32>
    tpu.vector_store %arg6[%570, %c0_183, %c0_184], %573 {strides = array<i32>} : memref<16x8x128xf32, #tpu.memory_space<vmem>>, vector<1x8x128xf32>,
    %c5_i32 = arith.constant 5 : i32
    %574 = arith.addi %8, %c5_i32 : i32
    %575 = vector.broadcast %574 : i32 to vector<8x1xi32>
    %576 = arith.cmpi slt, %575, %7 : vector<8x1xi32>
    %c0_185 = arith.constant 0 : index
    %577 = arith.index_cast %c5_i32 : i32 to index
    %c0_186 = arith.constant 0 : index
    %c0_187 = arith.constant 0 : index
    %578 = vector.load %arg1[%c0_185, %577, %c0_186, %c0_187] : memref<1x16x8x512xbf16, #tpu.memory_space<vmem>>, vector<1x1x8x512xbf16>
    %579 = vector.shape_cast %578 : vector<1x1x8x512xbf16> to vector<8x512xbf16>
    %580 = arith.extf %579 : vector<8x512xbf16> to vector<8x512xf32>
    %cst_188 = arith.constant dense<0.000000e+00> : vector<8x512xf32>
    %581 = tpu.matmul %506, %4, %cst_188 {dimension_numbers = #tpu.dot_dimension_numbers<[1], [0], [0], [1], [0, 0, 1, 1], [], []>} : vector<8x128xbf16>, vector<128x512xbf16>, vector<8x512xf32> -> vector<8x512xf32>
    %582 = arith.addf %580, %581 : vector<8x512xf32>
    %583 = vector.extract_strided_slice %582 {offsets = [0, 0], sizes = [8, 128], strides = [1, 1]} : vector<8x512xf32> to vector<8x128xf32>
    %cst_189 = arith.constant 5.000000e-01 : f32
    %584 = vector.broadcast %cst_189 : f32 to vector<8x128xf32>
    %585 = arith.mulf %584, %583 : vector<8x128xf32>
    %586 = math.tanh %585 : vector<8x128xf32>
    %cst_190 = arith.constant 5.000000e-01 : f32
    %587 = vector.broadcast %cst_190 : f32 to vector<8x128xf32>
    %588 = arith.mulf %587, %586 : vector<8x128xf32>
    %cst_191 = arith.constant 5.000000e-01 : f32
    %589 = vector.broadcast %cst_191 : f32 to vector<8x128xf32>
    %590 = arith.addf %588, %589 : vector<8x128xf32>
    %591 = vector.extract_strided_slice %582 {offsets = [0, 128], sizes = [8, 128], strides = [1, 1]} : vector<8x512xf32> to vector<8x128xf32>
    %cst_192 = arith.constant 5.000000e-01 : f32
    %592 = vector.broadcast %cst_192 : f32 to vector<8x128xf32>
    %593 = arith.mulf %592, %591 : vector<8x128xf32>
    %594 = math.tanh %593 : vector<8x128xf32>
    %cst_193 = arith.constant 5.000000e-01 : f32
    %595 = vector.broadcast %cst_193 : f32 to vector<8x128xf32>
    %596 = arith.mulf %595, %594 : vector<8x128xf32>
    %cst_194 = arith.constant 5.000000e-01 : f32
    %597 = vector.broadcast %cst_194 : f32 to vector<8x128xf32>
    %598 = arith.addf %596, %597 : vector<8x128xf32>
    %599 = vector.extract_strided_slice %582 {offsets = [0, 256], sizes = [8, 128], strides = [1, 1]} : vector<8x512xf32> to vector<8x128xf32>
    %600 = math.tanh %599 : vector<8x128xf32>
    %601 = vector.extract_strided_slice %582 {offsets = [0, 384], sizes = [8, 128], strides = [1, 1]} : vector<8x512xf32> to vector<8x128xf32>
    %cst_195 = arith.constant 5.000000e-01 : f32
    %602 = vector.broadcast %cst_195 : f32 to vector<8x128xf32>
    %603 = arith.mulf %602, %601 : vector<8x128xf32>
    %604 = math.tanh %603 : vector<8x128xf32>
    %cst_196 = arith.constant 5.000000e-01 : f32
    %605 = vector.broadcast %cst_196 : f32 to vector<8x128xf32>
    %606 = arith.mulf %605, %604 : vector<8x128xf32>
    %cst_197 = arith.constant 5.000000e-01 : f32
    %607 = vector.broadcast %cst_197 : f32 to vector<8x128xf32>
    %608 = arith.addf %606, %607 : vector<8x128xf32>
    %609 = arith.mulf %598, %509 : vector<8x128xf32>
    %610 = arith.mulf %590, %600 : vector<8x128xf32>
    %611 = arith.addf %609, %610 : vector<8x128xf32>
    %612 = math.tanh %611 : vector<8x128xf32>
    %613 = arith.mulf %608, %612 : vector<8x128xf32>
    %614 = arith.truncf %613 : vector<8x128xf32> to vector<8x128xbf16>
    %615 = vector.shape_cast %576 : vector<8x1xi1> to vector<8x1xi1>
    %616 = vector.broadcast %615 : vector<8x1xi1> to vector<8x128xi1>
    %617 = arith.select %616, %614, %506 : vector<8x128xi1>, vector<8x128xbf16>
    %618 = vector.shape_cast %576 : vector<8x1xi1> to vector<8x1xi1>
    %619 = vector.broadcast %618 : vector<8x1xi1> to vector<8x128xi1>
    %620 = arith.select %619, %611, %509 : vector<8x128xi1>, vector<8x128xf32>
    %cst_198 = arith.constant 0.000000e+00 : f32
    %621 = vector.shape_cast %576 : vector<8x1xi1> to vector<8x1xi1>
    %622 = vector.broadcast %621 : vector<8x1xi1> to vector<8x128xi1>
    %623 = vector.broadcast %cst_198 : f32 to vector<8x128xf32>
    %624 = arith.select %622, %613, %623 : vector<8x128xi1>, vector<8x128xf32>
    %625 = arith.index_cast %c5_i32 : i32 to index
    %c0_199 = arith.constant 0 : index
    %c0_200 = arith.constant 0 : index
    %626 = vector.load %arg5[%625, %c0_199, %c0_200] : memref<16x8x128xf32, #tpu.memory_space<vmem>>, vector<1x8x128xf32>
    %627 = vector.shape_cast %626 : vector<1x8x128xf32> to vector<8x128xf32>
    %628 = vector.shape_cast %624 : vector<8x128xf32> to vector<1x8x128xf32>
    tpu.vector_store %arg5[%625, %c0_199, %c0_200], %628 {strides = array<i32>} : memref<16x8x128xf32, #tpu.memory_space<vmem>>, vector<1x8x128xf32>,
    %c15_i32_201 = arith.constant 15 : i32
    %629 = arith.subi %c15_i32_201, %c5_i32 : i32
    %630 = arith.addi %10, %629 : i32
    %631 = vector.broadcast %630 : i32 to vector<8x1xi32>
    %632 = arith.cmpi slt, %631, %7 : vector<8x1xi32>
    %c0_202 = arith.constant 0 : index
    %633 = arith.index_cast %629 : i32 to index
    %c0_203 = arith.constant 0 : index
    %c0_204 = arith.constant 0 : index
    %634 = vector.load %arg2[%c0_202, %633, %c0_203, %c0_204] : memref<1x16x8x512xbf16, #tpu.memory_space<vmem>>, vector<1x1x8x512xbf16>
    %635 = vector.shape_cast %634 : vector<1x1x8x512xbf16> to vector<8x512xbf16>
    %636 = arith.extf %635 : vector<8x512xbf16> to vector<8x512xf32>
    %cst_205 = arith.constant dense<0.000000e+00> : vector<8x512xf32>
    %637 = tpu.matmul %562, %6, %cst_205 {dimension_numbers = #tpu.dot_dimension_numbers<[1], [0], [0], [1], [0, 0, 1, 1], [], []>} : vector<8x128xbf16>, vector<128x512xbf16>, vector<8x512xf32> -> vector<8x512xf32>
    %638 = arith.addf %636, %637 : vector<8x512xf32>
    %639 = vector.extract_strided_slice %638 {offsets = [0, 0], sizes = [8, 128], strides = [1, 1]} : vector<8x512xf32> to vector<8x128xf32>
    %cst_206 = arith.constant 5.000000e-01 : f32
    %640 = vector.broadcast %cst_206 : f32 to vector<8x128xf32>
    %641 = arith.mulf %640, %639 : vector<8x128xf32>
    %642 = math.tanh %641 : vector<8x128xf32>
    %cst_207 = arith.constant 5.000000e-01 : f32
    %643 = vector.broadcast %cst_207 : f32 to vector<8x128xf32>
    %644 = arith.mulf %643, %642 : vector<8x128xf32>
    %cst_208 = arith.constant 5.000000e-01 : f32
    %645 = vector.broadcast %cst_208 : f32 to vector<8x128xf32>
    %646 = arith.addf %644, %645 : vector<8x128xf32>
    %647 = vector.extract_strided_slice %638 {offsets = [0, 128], sizes = [8, 128], strides = [1, 1]} : vector<8x512xf32> to vector<8x128xf32>
    %cst_209 = arith.constant 5.000000e-01 : f32
    %648 = vector.broadcast %cst_209 : f32 to vector<8x128xf32>
    %649 = arith.mulf %648, %647 : vector<8x128xf32>
    %650 = math.tanh %649 : vector<8x128xf32>
    %cst_210 = arith.constant 5.000000e-01 : f32
    %651 = vector.broadcast %cst_210 : f32 to vector<8x128xf32>
    %652 = arith.mulf %651, %650 : vector<8x128xf32>
    %cst_211 = arith.constant 5.000000e-01 : f32
    %653 = vector.broadcast %cst_211 : f32 to vector<8x128xf32>
    %654 = arith.addf %652, %653 : vector<8x128xf32>
    %655 = vector.extract_strided_slice %638 {offsets = [0, 256], sizes = [8, 128], strides = [1, 1]} : vector<8x512xf32> to vector<8x128xf32>
    %656 = math.tanh %655 : vector<8x128xf32>
    %657 = vector.extract_strided_slice %638 {offsets = [0, 384], sizes = [8, 128], strides = [1, 1]} : vector<8x512xf32> to vector<8x128xf32>
    %cst_212 = arith.constant 5.000000e-01 : f32
    %658 = vector.broadcast %cst_212 : f32 to vector<8x128xf32>
    %659 = arith.mulf %658, %657 : vector<8x128xf32>
    %660 = math.tanh %659 : vector<8x128xf32>
    %cst_213 = arith.constant 5.000000e-01 : f32
    %661 = vector.broadcast %cst_213 : f32 to vector<8x128xf32>
    %662 = arith.mulf %661, %660 : vector<8x128xf32>
    %cst_214 = arith.constant 5.000000e-01 : f32
    %663 = vector.broadcast %cst_214 : f32 to vector<8x128xf32>
    %664 = arith.addf %662, %663 : vector<8x128xf32>
    %665 = arith.mulf %654, %565 : vector<8x128xf32>
    %666 = arith.mulf %646, %656 : vector<8x128xf32>
    %667 = arith.addf %665, %666 : vector<8x128xf32>
    %668 = math.tanh %667 : vector<8x128xf32>
    %669 = arith.mulf %664, %668 : vector<8x128xf32>
    %670 = arith.truncf %669 : vector<8x128xf32> to vector<8x128xbf16>
    %671 = vector.shape_cast %632 : vector<8x1xi1> to vector<8x1xi1>
    %672 = vector.broadcast %671 : vector<8x1xi1> to vector<8x128xi1>
    %673 = arith.select %672, %670, %562 : vector<8x128xi1>, vector<8x128xbf16>
    %674 = vector.shape_cast %632 : vector<8x1xi1> to vector<8x1xi1>
    %675 = vector.broadcast %674 : vector<8x1xi1> to vector<8x128xi1>
    %676 = arith.select %675, %667, %565 : vector<8x128xi1>, vector<8x128xf32>
    %cst_215 = arith.constant 0.000000e+00 : f32
    %677 = vector.shape_cast %632 : vector<8x1xi1> to vector<8x1xi1>
    %678 = vector.broadcast %677 : vector<8x1xi1> to vector<8x128xi1>
    %679 = vector.broadcast %cst_215 : f32 to vector<8x128xf32>
    %680 = arith.select %678, %669, %679 : vector<8x128xi1>, vector<8x128xf32>
    %681 = arith.index_cast %629 : i32 to index
    %c0_216 = arith.constant 0 : index
    %c0_217 = arith.constant 0 : index
    %682 = vector.load %arg6[%681, %c0_216, %c0_217] : memref<16x8x128xf32, #tpu.memory_space<vmem>>, vector<1x8x128xf32>
    %683 = vector.shape_cast %682 : vector<1x8x128xf32> to vector<8x128xf32>
    %684 = vector.shape_cast %680 : vector<8x128xf32> to vector<1x8x128xf32>
    tpu.vector_store %arg6[%681, %c0_216, %c0_217], %684 {strides = array<i32>} : memref<16x8x128xf32, #tpu.memory_space<vmem>>, vector<1x8x128xf32>,
    %c6_i32 = arith.constant 6 : i32
    %685 = arith.addi %8, %c6_i32 : i32
    %686 = vector.broadcast %685 : i32 to vector<8x1xi32>
    %687 = arith.cmpi slt, %686, %7 : vector<8x1xi32>
    %c0_218 = arith.constant 0 : index
    %688 = arith.index_cast %c6_i32 : i32 to index
    %c0_219 = arith.constant 0 : index
    %c0_220 = arith.constant 0 : index
    %689 = vector.load %arg1[%c0_218, %688, %c0_219, %c0_220] : memref<1x16x8x512xbf16, #tpu.memory_space<vmem>>, vector<1x1x8x512xbf16>
    %690 = vector.shape_cast %689 : vector<1x1x8x512xbf16> to vector<8x512xbf16>
    %691 = arith.extf %690 : vector<8x512xbf16> to vector<8x512xf32>
    %cst_221 = arith.constant dense<0.000000e+00> : vector<8x512xf32>
    %692 = tpu.matmul %617, %4, %cst_221 {dimension_numbers = #tpu.dot_dimension_numbers<[1], [0], [0], [1], [0, 0, 1, 1], [], []>} : vector<8x128xbf16>, vector<128x512xbf16>, vector<8x512xf32> -> vector<8x512xf32>
    %693 = arith.addf %691, %692 : vector<8x512xf32>
    %694 = vector.extract_strided_slice %693 {offsets = [0, 0], sizes = [8, 128], strides = [1, 1]} : vector<8x512xf32> to vector<8x128xf32>
    %cst_222 = arith.constant 5.000000e-01 : f32
    %695 = vector.broadcast %cst_222 : f32 to vector<8x128xf32>
    %696 = arith.mulf %695, %694 : vector<8x128xf32>
    %697 = math.tanh %696 : vector<8x128xf32>
    %cst_223 = arith.constant 5.000000e-01 : f32
    %698 = vector.broadcast %cst_223 : f32 to vector<8x128xf32>
    %699 = arith.mulf %698, %697 : vector<8x128xf32>
    %cst_224 = arith.constant 5.000000e-01 : f32
    %700 = vector.broadcast %cst_224 : f32 to vector<8x128xf32>
    %701 = arith.addf %699, %700 : vector<8x128xf32>
    %702 = vector.extract_strided_slice %693 {offsets = [0, 128], sizes = [8, 128], strides = [1, 1]} : vector<8x512xf32> to vector<8x128xf32>
    %cst_225 = arith.constant 5.000000e-01 : f32
    %703 = vector.broadcast %cst_225 : f32 to vector<8x128xf32>
    %704 = arith.mulf %703, %702 : vector<8x128xf32>
    %705 = math.tanh %704 : vector<8x128xf32>
    %cst_226 = arith.constant 5.000000e-01 : f32
    %706 = vector.broadcast %cst_226 : f32 to vector<8x128xf32>
    %707 = arith.mulf %706, %705 : vector<8x128xf32>
    %cst_227 = arith.constant 5.000000e-01 : f32
    %708 = vector.broadcast %cst_227 : f32 to vector<8x128xf32>
    %709 = arith.addf %707, %708 : vector<8x128xf32>
    %710 = vector.extract_strided_slice %693 {offsets = [0, 256], sizes = [8, 128], strides = [1, 1]} : vector<8x512xf32> to vector<8x128xf32>
    %711 = math.tanh %710 : vector<8x128xf32>
    %712 = vector.extract_strided_slice %693 {offsets = [0, 384], sizes = [8, 128], strides = [1, 1]} : vector<8x512xf32> to vector<8x128xf32>
    %cst_228 = arith.constant 5.000000e-01 : f32
    %713 = vector.broadcast %cst_228 : f32 to vector<8x128xf32>
    %714 = arith.mulf %713, %712 : vector<8x128xf32>
    %715 = math.tanh %714 : vector<8x128xf32>
    %cst_229 = arith.constant 5.000000e-01 : f32
    %716 = vector.broadcast %cst_229 : f32 to vector<8x128xf32>
    %717 = arith.mulf %716, %715 : vector<8x128xf32>
    %cst_230 = arith.constant 5.000000e-01 : f32
    %718 = vector.broadcast %cst_230 : f32 to vector<8x128xf32>
    %719 = arith.addf %717, %718 : vector<8x128xf32>
    %720 = arith.mulf %709, %620 : vector<8x128xf32>
    %721 = arith.mulf %701, %711 : vector<8x128xf32>
    %722 = arith.addf %720, %721 : vector<8x128xf32>
    %723 = math.tanh %722 : vector<8x128xf32>
    %724 = arith.mulf %719, %723 : vector<8x128xf32>
    %725 = arith.truncf %724 : vector<8x128xf32> to vector<8x128xbf16>
    %726 = vector.shape_cast %687 : vector<8x1xi1> to vector<8x1xi1>
    %727 = vector.broadcast %726 : vector<8x1xi1> to vector<8x128xi1>
    %728 = arith.select %727, %725, %617 : vector<8x128xi1>, vector<8x128xbf16>
    %729 = vector.shape_cast %687 : vector<8x1xi1> to vector<8x1xi1>
    %730 = vector.broadcast %729 : vector<8x1xi1> to vector<8x128xi1>
    %731 = arith.select %730, %722, %620 : vector<8x128xi1>, vector<8x128xf32>
    %cst_231 = arith.constant 0.000000e+00 : f32
    %732 = vector.shape_cast %687 : vector<8x1xi1> to vector<8x1xi1>
    %733 = vector.broadcast %732 : vector<8x1xi1> to vector<8x128xi1>
    %734 = vector.broadcast %cst_231 : f32 to vector<8x128xf32>
    %735 = arith.select %733, %724, %734 : vector<8x128xi1>, vector<8x128xf32>
    %736 = arith.index_cast %c6_i32 : i32 to index
    %c0_232 = arith.constant 0 : index
    %c0_233 = arith.constant 0 : index
    %737 = vector.load %arg5[%736, %c0_232, %c0_233] : memref<16x8x128xf32, #tpu.memory_space<vmem>>, vector<1x8x128xf32>
    %738 = vector.shape_cast %737 : vector<1x8x128xf32> to vector<8x128xf32>
    %739 = vector.shape_cast %735 : vector<8x128xf32> to vector<1x8x128xf32>
    tpu.vector_store %arg5[%736, %c0_232, %c0_233], %739 {strides = array<i32>} : memref<16x8x128xf32, #tpu.memory_space<vmem>>, vector<1x8x128xf32>,
    %c15_i32_234 = arith.constant 15 : i32
    %740 = arith.subi %c15_i32_234, %c6_i32 : i32
    %741 = arith.addi %10, %740 : i32
    %742 = vector.broadcast %741 : i32 to vector<8x1xi32>
    %743 = arith.cmpi slt, %742, %7 : vector<8x1xi32>
    %c0_235 = arith.constant 0 : index
    %744 = arith.index_cast %740 : i32 to index
    %c0_236 = arith.constant 0 : index
    %c0_237 = arith.constant 0 : index
    %745 = vector.load %arg2[%c0_235, %744, %c0_236, %c0_237] : memref<1x16x8x512xbf16, #tpu.memory_space<vmem>>, vector<1x1x8x512xbf16>
    %746 = vector.shape_cast %745 : vector<1x1x8x512xbf16> to vector<8x512xbf16>
    %747 = arith.extf %746 : vector<8x512xbf16> to vector<8x512xf32>
    %cst_238 = arith.constant dense<0.000000e+00> : vector<8x512xf32>
    %748 = tpu.matmul %673, %6, %cst_238 {dimension_numbers = #tpu.dot_dimension_numbers<[1], [0], [0], [1], [0, 0, 1, 1], [], []>} : vector<8x128xbf16>, vector<128x512xbf16>, vector<8x512xf32> -> vector<8x512xf32>
    %749 = arith.addf %747, %748 : vector<8x512xf32>
    %750 = vector.extract_strided_slice %749 {offsets = [0, 0], sizes = [8, 128], strides = [1, 1]} : vector<8x512xf32> to vector<8x128xf32>
    %cst_239 = arith.constant 5.000000e-01 : f32
    %751 = vector.broadcast %cst_239 : f32 to vector<8x128xf32>
    %752 = arith.mulf %751, %750 : vector<8x128xf32>
    %753 = math.tanh %752 : vector<8x128xf32>
    %cst_240 = arith.constant 5.000000e-01 : f32
    %754 = vector.broadcast %cst_240 : f32 to vector<8x128xf32>
    %755 = arith.mulf %754, %753 : vector<8x128xf32>
    %cst_241 = arith.constant 5.000000e-01 : f32
    %756 = vector.broadcast %cst_241 : f32 to vector<8x128xf32>
    %757 = arith.addf %755, %756 : vector<8x128xf32>
    %758 = vector.extract_strided_slice %749 {offsets = [0, 128], sizes = [8, 128], strides = [1, 1]} : vector<8x512xf32> to vector<8x128xf32>
    %cst_242 = arith.constant 5.000000e-01 : f32
    %759 = vector.broadcast %cst_242 : f32 to vector<8x128xf32>
    %760 = arith.mulf %759, %758 : vector<8x128xf32>
    %761 = math.tanh %760 : vector<8x128xf32>
    %cst_243 = arith.constant 5.000000e-01 : f32
    %762 = vector.broadcast %cst_243 : f32 to vector<8x128xf32>
    %763 = arith.mulf %762, %761 : vector<8x128xf32>
    %cst_244 = arith.constant 5.000000e-01 : f32
    %764 = vector.broadcast %cst_244 : f32 to vector<8x128xf32>
    %765 = arith.addf %763, %764 : vector<8x128xf32>
    %766 = vector.extract_strided_slice %749 {offsets = [0, 256], sizes = [8, 128], strides = [1, 1]} : vector<8x512xf32> to vector<8x128xf32>
    %767 = math.tanh %766 : vector<8x128xf32>
    %768 = vector.extract_strided_slice %749 {offsets = [0, 384], sizes = [8, 128], strides = [1, 1]} : vector<8x512xf32> to vector<8x128xf32>
    %cst_245 = arith.constant 5.000000e-01 : f32
    %769 = vector.broadcast %cst_245 : f32 to vector<8x128xf32>
    %770 = arith.mulf %769, %768 : vector<8x128xf32>
    %771 = math.tanh %770 : vector<8x128xf32>
    %cst_246 = arith.constant 5.000000e-01 : f32
    %772 = vector.broadcast %cst_246 : f32 to vector<8x128xf32>
    %773 = arith.mulf %772, %771 : vector<8x128xf32>
    %cst_247 = arith.constant 5.000000e-01 : f32
    %774 = vector.broadcast %cst_247 : f32 to vector<8x128xf32>
    %775 = arith.addf %773, %774 : vector<8x128xf32>
    %776 = arith.mulf %765, %676 : vector<8x128xf32>
    %777 = arith.mulf %757, %767 : vector<8x128xf32>
    %778 = arith.addf %776, %777 : vector<8x128xf32>
    %779 = math.tanh %778 : vector<8x128xf32>
    %780 = arith.mulf %775, %779 : vector<8x128xf32>
    %781 = arith.truncf %780 : vector<8x128xf32> to vector<8x128xbf16>
    %782 = vector.shape_cast %743 : vector<8x1xi1> to vector<8x1xi1>
    %783 = vector.broadcast %782 : vector<8x1xi1> to vector<8x128xi1>
    %784 = arith.select %783, %781, %673 : vector<8x128xi1>, vector<8x128xbf16>
    %785 = vector.shape_cast %743 : vector<8x1xi1> to vector<8x1xi1>
    %786 = vector.broadcast %785 : vector<8x1xi1> to vector<8x128xi1>
    %787 = arith.select %786, %778, %676 : vector<8x128xi1>, vector<8x128xf32>
    %cst_248 = arith.constant 0.000000e+00 : f32
    %788 = vector.shape_cast %743 : vector<8x1xi1> to vector<8x1xi1>
    %789 = vector.broadcast %788 : vector<8x1xi1> to vector<8x128xi1>
    %790 = vector.broadcast %cst_248 : f32 to vector<8x128xf32>
    %791 = arith.select %789, %780, %790 : vector<8x128xi1>, vector<8x128xf32>
    %792 = arith.index_cast %740 : i32 to index
    %c0_249 = arith.constant 0 : index
    %c0_250 = arith.constant 0 : index
    %793 = vector.load %arg6[%792, %c0_249, %c0_250] : memref<16x8x128xf32, #tpu.memory_space<vmem>>, vector<1x8x128xf32>
    %794 = vector.shape_cast %793 : vector<1x8x128xf32> to vector<8x128xf32>
    %795 = vector.shape_cast %791 : vector<8x128xf32> to vector<1x8x128xf32>
    tpu.vector_store %arg6[%792, %c0_249, %c0_250], %795 {strides = array<i32>} : memref<16x8x128xf32, #tpu.memory_space<vmem>>, vector<1x8x128xf32>,
    %c7_i32 = arith.constant 7 : i32
    %796 = arith.addi %8, %c7_i32 : i32
    %797 = vector.broadcast %796 : i32 to vector<8x1xi32>
    %798 = arith.cmpi slt, %797, %7 : vector<8x1xi32>
    %c0_251 = arith.constant 0 : index
    %799 = arith.index_cast %c7_i32 : i32 to index
    %c0_252 = arith.constant 0 : index
    %c0_253 = arith.constant 0 : index
    %800 = vector.load %arg1[%c0_251, %799, %c0_252, %c0_253] : memref<1x16x8x512xbf16, #tpu.memory_space<vmem>>, vector<1x1x8x512xbf16>
    %801 = vector.shape_cast %800 : vector<1x1x8x512xbf16> to vector<8x512xbf16>
    %802 = arith.extf %801 : vector<8x512xbf16> to vector<8x512xf32>
    %cst_254 = arith.constant dense<0.000000e+00> : vector<8x512xf32>
    %803 = tpu.matmul %728, %4, %cst_254 {dimension_numbers = #tpu.dot_dimension_numbers<[1], [0], [0], [1], [0, 0, 1, 1], [], []>} : vector<8x128xbf16>, vector<128x512xbf16>, vector<8x512xf32> -> vector<8x512xf32>
    %804 = arith.addf %802, %803 : vector<8x512xf32>
    %805 = vector.extract_strided_slice %804 {offsets = [0, 0], sizes = [8, 128], strides = [1, 1]} : vector<8x512xf32> to vector<8x128xf32>
    %cst_255 = arith.constant 5.000000e-01 : f32
    %806 = vector.broadcast %cst_255 : f32 to vector<8x128xf32>
    %807 = arith.mulf %806, %805 : vector<8x128xf32>
    %808 = math.tanh %807 : vector<8x128xf32>
    %cst_256 = arith.constant 5.000000e-01 : f32
    %809 = vector.broadcast %cst_256 : f32 to vector<8x128xf32>
    %810 = arith.mulf %809, %808 : vector<8x128xf32>
    %cst_257 = arith.constant 5.000000e-01 : f32
    %811 = vector.broadcast %cst_257 : f32 to vector<8x128xf32>
    %812 = arith.addf %810, %811 : vector<8x128xf32>
    %813 = vector.extract_strided_slice %804 {offsets = [0, 128], sizes = [8, 128], strides = [1, 1]} : vector<8x512xf32> to vector<8x128xf32>
    %cst_258 = arith.constant 5.000000e-01 : f32
    %814 = vector.broadcast %cst_258 : f32 to vector<8x128xf32>
    %815 = arith.mulf %814, %813 : vector<8x128xf32>
    %816 = math.tanh %815 : vector<8x128xf32>
    %cst_259 = arith.constant 5.000000e-01 : f32
    %817 = vector.broadcast %cst_259 : f32 to vector<8x128xf32>
    %818 = arith.mulf %817, %816 : vector<8x128xf32>
    %cst_260 = arith.constant 5.000000e-01 : f32
    %819 = vector.broadcast %cst_260 : f32 to vector<8x128xf32>
    %820 = arith.addf %818, %819 : vector<8x128xf32>
    %821 = vector.extract_strided_slice %804 {offsets = [0, 256], sizes = [8, 128], strides = [1, 1]} : vector<8x512xf32> to vector<8x128xf32>
    %822 = math.tanh %821 : vector<8x128xf32>
    %823 = vector.extract_strided_slice %804 {offsets = [0, 384], sizes = [8, 128], strides = [1, 1]} : vector<8x512xf32> to vector<8x128xf32>
    %cst_261 = arith.constant 5.000000e-01 : f32
    %824 = vector.broadcast %cst_261 : f32 to vector<8x128xf32>
    %825 = arith.mulf %824, %823 : vector<8x128xf32>
    %826 = math.tanh %825 : vector<8x128xf32>
    %cst_262 = arith.constant 5.000000e-01 : f32
    %827 = vector.broadcast %cst_262 : f32 to vector<8x128xf32>
    %828 = arith.mulf %827, %826 : vector<8x128xf32>
    %cst_263 = arith.constant 5.000000e-01 : f32
    %829 = vector.broadcast %cst_263 : f32 to vector<8x128xf32>
    %830 = arith.addf %828, %829 : vector<8x128xf32>
    %831 = arith.mulf %820, %731 : vector<8x128xf32>
    %832 = arith.mulf %812, %822 : vector<8x128xf32>
    %833 = arith.addf %831, %832 : vector<8x128xf32>
    %834 = math.tanh %833 : vector<8x128xf32>
    %835 = arith.mulf %830, %834 : vector<8x128xf32>
    %836 = arith.truncf %835 : vector<8x128xf32> to vector<8x128xbf16>
    %837 = vector.shape_cast %798 : vector<8x1xi1> to vector<8x1xi1>
    %838 = vector.broadcast %837 : vector<8x1xi1> to vector<8x128xi1>
    %839 = arith.select %838, %836, %728 : vector<8x128xi1>, vector<8x128xbf16>
    %840 = vector.shape_cast %798 : vector<8x1xi1> to vector<8x1xi1>
    %841 = vector.broadcast %840 : vector<8x1xi1> to vector<8x128xi1>
    %842 = arith.select %841, %833, %731 : vector<8x128xi1>, vector<8x128xf32>
    %cst_264 = arith.constant 0.000000e+00 : f32
    %843 = vector.shape_cast %798 : vector<8x1xi1> to vector<8x1xi1>
    %844 = vector.broadcast %843 : vector<8x1xi1> to vector<8x128xi1>
    %845 = vector.broadcast %cst_264 : f32 to vector<8x128xf32>
    %846 = arith.select %844, %835, %845 : vector<8x128xi1>, vector<8x128xf32>
    %847 = arith.index_cast %c7_i32 : i32 to index
    %c0_265 = arith.constant 0 : index
    %c0_266 = arith.constant 0 : index
    %848 = vector.load %arg5[%847, %c0_265, %c0_266] : memref<16x8x128xf32, #tpu.memory_space<vmem>>, vector<1x8x128xf32>
    %849 = vector.shape_cast %848 : vector<1x8x128xf32> to vector<8x128xf32>
    %850 = vector.shape_cast %846 : vector<8x128xf32> to vector<1x8x128xf32>
    tpu.vector_store %arg5[%847, %c0_265, %c0_266], %850 {strides = array<i32>} : memref<16x8x128xf32, #tpu.memory_space<vmem>>, vector<1x8x128xf32>,
    %c15_i32_267 = arith.constant 15 : i32
    %851 = arith.subi %c15_i32_267, %c7_i32 : i32
    %852 = arith.addi %10, %851 : i32
    %853 = vector.broadcast %852 : i32 to vector<8x1xi32>
    %854 = arith.cmpi slt, %853, %7 : vector<8x1xi32>
    %c0_268 = arith.constant 0 : index
    %855 = arith.index_cast %851 : i32 to index
    %c0_269 = arith.constant 0 : index
    %c0_270 = arith.constant 0 : index
    %856 = vector.load %arg2[%c0_268, %855, %c0_269, %c0_270] : memref<1x16x8x512xbf16, #tpu.memory_space<vmem>>, vector<1x1x8x512xbf16>
    %857 = vector.shape_cast %856 : vector<1x1x8x512xbf16> to vector<8x512xbf16>
    %858 = arith.extf %857 : vector<8x512xbf16> to vector<8x512xf32>
    %cst_271 = arith.constant dense<0.000000e+00> : vector<8x512xf32>
    %859 = tpu.matmul %784, %6, %cst_271 {dimension_numbers = #tpu.dot_dimension_numbers<[1], [0], [0], [1], [0, 0, 1, 1], [], []>} : vector<8x128xbf16>, vector<128x512xbf16>, vector<8x512xf32> -> vector<8x512xf32>
    %860 = arith.addf %858, %859 : vector<8x512xf32>
    %861 = vector.extract_strided_slice %860 {offsets = [0, 0], sizes = [8, 128], strides = [1, 1]} : vector<8x512xf32> to vector<8x128xf32>
    %cst_272 = arith.constant 5.000000e-01 : f32
    %862 = vector.broadcast %cst_272 : f32 to vector<8x128xf32>
    %863 = arith.mulf %862, %861 : vector<8x128xf32>
    %864 = math.tanh %863 : vector<8x128xf32>
    %cst_273 = arith.constant 5.000000e-01 : f32
    %865 = vector.broadcast %cst_273 : f32 to vector<8x128xf32>
    %866 = arith.mulf %865, %864 : vector<8x128xf32>
    %cst_274 = arith.constant 5.000000e-01 : f32
    %867 = vector.broadcast %cst_274 : f32 to vector<8x128xf32>
    %868 = arith.addf %866, %867 : vector<8x128xf32>
    %869 = vector.extract_strided_slice %860 {offsets = [0, 128], sizes = [8, 128], strides = [1, 1]} : vector<8x512xf32> to vector<8x128xf32>
    %cst_275 = arith.constant 5.000000e-01 : f32
    %870 = vector.broadcast %cst_275 : f32 to vector<8x128xf32>
    %871 = arith.mulf %870, %869 : vector<8x128xf32>
    %872 = math.tanh %871 : vector<8x128xf32>
    %cst_276 = arith.constant 5.000000e-01 : f32
    %873 = vector.broadcast %cst_276 : f32 to vector<8x128xf32>
    %874 = arith.mulf %873, %872 : vector<8x128xf32>
    %cst_277 = arith.constant 5.000000e-01 : f32
    %875 = vector.broadcast %cst_277 : f32 to vector<8x128xf32>
    %876 = arith.addf %874, %875 : vector<8x128xf32>
    %877 = vector.extract_strided_slice %860 {offsets = [0, 256], sizes = [8, 128], strides = [1, 1]} : vector<8x512xf32> to vector<8x128xf32>
    %878 = math.tanh %877 : vector<8x128xf32>
    %879 = vector.extract_strided_slice %860 {offsets = [0, 384], sizes = [8, 128], strides = [1, 1]} : vector<8x512xf32> to vector<8x128xf32>
    %cst_278 = arith.constant 5.000000e-01 : f32
    %880 = vector.broadcast %cst_278 : f32 to vector<8x128xf32>
    %881 = arith.mulf %880, %879 : vector<8x128xf32>
    %882 = math.tanh %881 : vector<8x128xf32>
    %cst_279 = arith.constant 5.000000e-01 : f32
    %883 = vector.broadcast %cst_279 : f32 to vector<8x128xf32>
    %884 = arith.mulf %883, %882 : vector<8x128xf32>
    %cst_280 = arith.constant 5.000000e-01 : f32
    %885 = vector.broadcast %cst_280 : f32 to vector<8x128xf32>
    %886 = arith.addf %884, %885 : vector<8x128xf32>
    %887 = arith.mulf %876, %787 : vector<8x128xf32>
    %888 = arith.mulf %868, %878 : vector<8x128xf32>
    %889 = arith.addf %887, %888 : vector<8x128xf32>
    %890 = math.tanh %889 : vector<8x128xf32>
    %891 = arith.mulf %886, %890 : vector<8x128xf32>
    %892 = arith.truncf %891 : vector<8x128xf32> to vector<8x128xbf16>
    %893 = vector.shape_cast %854 : vector<8x1xi1> to vector<8x1xi1>
    %894 = vector.broadcast %893 : vector<8x1xi1> to vector<8x128xi1>
    %895 = arith.select %894, %892, %784 : vector<8x128xi1>, vector<8x128xbf16>
    %896 = vector.shape_cast %854 : vector<8x1xi1> to vector<8x1xi1>
    %897 = vector.broadcast %896 : vector<8x1xi1> to vector<8x128xi1>
    %898 = arith.select %897, %889, %787 : vector<8x128xi1>, vector<8x128xf32>
    %cst_281 = arith.constant 0.000000e+00 : f32
    %899 = vector.shape_cast %854 : vector<8x1xi1> to vector<8x1xi1>
    %900 = vector.broadcast %899 : vector<8x1xi1> to vector<8x128xi1>
    %901 = vector.broadcast %cst_281 : f32 to vector<8x128xf32>
    %902 = arith.select %900, %891, %901 : vector<8x128xi1>, vector<8x128xf32>
    %903 = arith.index_cast %851 : i32 to index
    %c0_282 = arith.constant 0 : index
    %c0_283 = arith.constant 0 : index
    %904 = vector.load %arg6[%903, %c0_282, %c0_283] : memref<16x8x128xf32, #tpu.memory_space<vmem>>, vector<1x8x128xf32>
    %905 = vector.shape_cast %904 : vector<1x8x128xf32> to vector<8x128xf32>
    %906 = vector.shape_cast %902 : vector<8x128xf32> to vector<1x8x128xf32>
    tpu.vector_store %arg6[%903, %c0_282, %c0_283], %906 {strides = array<i32>} : memref<16x8x128xf32, #tpu.memory_space<vmem>>, vector<1x8x128xf32>,
    %c8_i32 = arith.constant 8 : i32
    %907 = arith.addi %8, %c8_i32 : i32
    %908 = vector.broadcast %907 : i32 to vector<8x1xi32>
    %909 = arith.cmpi slt, %908, %7 : vector<8x1xi32>
    %c0_284 = arith.constant 0 : index
    %910 = arith.index_cast %c8_i32 : i32 to index
    %c0_285 = arith.constant 0 : index
    %c0_286 = arith.constant 0 : index
    %911 = vector.load %arg1[%c0_284, %910, %c0_285, %c0_286] : memref<1x16x8x512xbf16, #tpu.memory_space<vmem>>, vector<1x1x8x512xbf16>
    %912 = vector.shape_cast %911 : vector<1x1x8x512xbf16> to vector<8x512xbf16>
    %913 = arith.extf %912 : vector<8x512xbf16> to vector<8x512xf32>
    %cst_287 = arith.constant dense<0.000000e+00> : vector<8x512xf32>
    %914 = tpu.matmul %839, %4, %cst_287 {dimension_numbers = #tpu.dot_dimension_numbers<[1], [0], [0], [1], [0, 0, 1, 1], [], []>} : vector<8x128xbf16>, vector<128x512xbf16>, vector<8x512xf32> -> vector<8x512xf32>
    %915 = arith.addf %913, %914 : vector<8x512xf32>
    %916 = vector.extract_strided_slice %915 {offsets = [0, 0], sizes = [8, 128], strides = [1, 1]} : vector<8x512xf32> to vector<8x128xf32>
    %cst_288 = arith.constant 5.000000e-01 : f32
    %917 = vector.broadcast %cst_288 : f32 to vector<8x128xf32>
    %918 = arith.mulf %917, %916 : vector<8x128xf32>
    %919 = math.tanh %918 : vector<8x128xf32>
    %cst_289 = arith.constant 5.000000e-01 : f32
    %920 = vector.broadcast %cst_289 : f32 to vector<8x128xf32>
    %921 = arith.mulf %920, %919 : vector<8x128xf32>
    %cst_290 = arith.constant 5.000000e-01 : f32
    %922 = vector.broadcast %cst_290 : f32 to vector<8x128xf32>
    %923 = arith.addf %921, %922 : vector<8x128xf32>
    %924 = vector.extract_strided_slice %915 {offsets = [0, 128], sizes = [8, 128], strides = [1, 1]} : vector<8x512xf32> to vector<8x128xf32>
    %cst_291 = arith.constant 5.000000e-01 : f32
    %925 = vector.broadcast %cst_291 : f32 to vector<8x128xf32>
    %926 = arith.mulf %925, %924 : vector<8x128xf32>
    %927 = math.tanh %926 : vector<8x128xf32>
    %cst_292 = arith.constant 5.000000e-01 : f32
    %928 = vector.broadcast %cst_292 : f32 to vector<8x128xf32>
    %929 = arith.mulf %928, %927 : vector<8x128xf32>
    %cst_293 = arith.constant 5.000000e-01 : f32
    %930 = vector.broadcast %cst_293 : f32 to vector<8x128xf32>
    %931 = arith.addf %929, %930 : vector<8x128xf32>
    %932 = vector.extract_strided_slice %915 {offsets = [0, 256], sizes = [8, 128], strides = [1, 1]} : vector<8x512xf32> to vector<8x128xf32>
    %933 = math.tanh %932 : vector<8x128xf32>
    %934 = vector.extract_strided_slice %915 {offsets = [0, 384], sizes = [8, 128], strides = [1, 1]} : vector<8x512xf32> to vector<8x128xf32>
    %cst_294 = arith.constant 5.000000e-01 : f32
    %935 = vector.broadcast %cst_294 : f32 to vector<8x128xf32>
    %936 = arith.mulf %935, %934 : vector<8x128xf32>
    %937 = math.tanh %936 : vector<8x128xf32>
    %cst_295 = arith.constant 5.000000e-01 : f32
    %938 = vector.broadcast %cst_295 : f32 to vector<8x128xf32>
    %939 = arith.mulf %938, %937 : vector<8x128xf32>
    %cst_296 = arith.constant 5.000000e-01 : f32
    %940 = vector.broadcast %cst_296 : f32 to vector<8x128xf32>
    %941 = arith.addf %939, %940 : vector<8x128xf32>
    %942 = arith.mulf %931, %842 : vector<8x128xf32>
    %943 = arith.mulf %923, %933 : vector<8x128xf32>
    %944 = arith.addf %942, %943 : vector<8x128xf32>
    %945 = math.tanh %944 : vector<8x128xf32>
    %946 = arith.mulf %941, %945 : vector<8x128xf32>
    %947 = arith.truncf %946 : vector<8x128xf32> to vector<8x128xbf16>
    %948 = vector.shape_cast %909 : vector<8x1xi1> to vector<8x1xi1>
    %949 = vector.broadcast %948 : vector<8x1xi1> to vector<8x128xi1>
    %950 = arith.select %949, %947, %839 : vector<8x128xi1>, vector<8x128xbf16>
    %951 = vector.shape_cast %909 : vector<8x1xi1> to vector<8x1xi1>
    %952 = vector.broadcast %951 : vector<8x1xi1> to vector<8x128xi1>
    %953 = arith.select %952, %944, %842 : vector<8x128xi1>, vector<8x128xf32>
    %cst_297 = arith.constant 0.000000e+00 : f32
    %954 = vector.shape_cast %909 : vector<8x1xi1> to vector<8x1xi1>
    %955 = vector.broadcast %954 : vector<8x1xi1> to vector<8x128xi1>
    %956 = vector.broadcast %cst_297 : f32 to vector<8x128xf32>
    %957 = arith.select %955, %946, %956 : vector<8x128xi1>, vector<8x128xf32>
    %958 = arith.index_cast %c8_i32 : i32 to index
    %c0_298 = arith.constant 0 : index
    %c0_299 = arith.constant 0 : index
    %959 = vector.load %arg5[%958, %c0_298, %c0_299] : memref<16x8x128xf32, #tpu.memory_space<vmem>>, vector<1x8x128xf32>
    %960 = vector.shape_cast %959 : vector<1x8x128xf32> to vector<8x128xf32>
    %961 = vector.shape_cast %957 : vector<8x128xf32> to vector<1x8x128xf32>
    tpu.vector_store %arg5[%958, %c0_298, %c0_299], %961 {strides = array<i32>} : memref<16x8x128xf32, #tpu.memory_space<vmem>>, vector<1x8x128xf32>,
    %c15_i32_300 = arith.constant 15 : i32
    %962 = arith.subi %c15_i32_300, %c8_i32 : i32
    %963 = arith.addi %10, %962 : i32
    %964 = vector.broadcast %963 : i32 to vector<8x1xi32>
    %965 = arith.cmpi slt, %964, %7 : vector<8x1xi32>
    %c0_301 = arith.constant 0 : index
    %966 = arith.index_cast %962 : i32 to index
    %c0_302 = arith.constant 0 : index
    %c0_303 = arith.constant 0 : index
    %967 = vector.load %arg2[%c0_301, %966, %c0_302, %c0_303] : memref<1x16x8x512xbf16, #tpu.memory_space<vmem>>, vector<1x1x8x512xbf16>
    %968 = vector.shape_cast %967 : vector<1x1x8x512xbf16> to vector<8x512xbf16>
    %969 = arith.extf %968 : vector<8x512xbf16> to vector<8x512xf32>
    %cst_304 = arith.constant dense<0.000000e+00> : vector<8x512xf32>
    %970 = tpu.matmul %895, %6, %cst_304 {dimension_numbers = #tpu.dot_dimension_numbers<[1], [0], [0], [1], [0, 0, 1, 1], [], []>} : vector<8x128xbf16>, vector<128x512xbf16>, vector<8x512xf32> -> vector<8x512xf32>
    %971 = arith.addf %969, %970 : vector<8x512xf32>
    %972 = vector.extract_strided_slice %971 {offsets = [0, 0], sizes = [8, 128], strides = [1, 1]} : vector<8x512xf32> to vector<8x128xf32>
    %cst_305 = arith.constant 5.000000e-01 : f32
    %973 = vector.broadcast %cst_305 : f32 to vector<8x128xf32>
    %974 = arith.mulf %973, %972 : vector<8x128xf32>
    %975 = math.tanh %974 : vector<8x128xf32>
    %cst_306 = arith.constant 5.000000e-01 : f32
    %976 = vector.broadcast %cst_306 : f32 to vector<8x128xf32>
    %977 = arith.mulf %976, %975 : vector<8x128xf32>
    %cst_307 = arith.constant 5.000000e-01 : f32
    %978 = vector.broadcast %cst_307 : f32 to vector<8x128xf32>
    %979 = arith.addf %977, %978 : vector<8x128xf32>
    %980 = vector.extract_strided_slice %971 {offsets = [0, 128], sizes = [8, 128], strides = [1, 1]} : vector<8x512xf32> to vector<8x128xf32>
    %cst_308 = arith.constant 5.000000e-01 : f32
    %981 = vector.broadcast %cst_308 : f32 to vector<8x128xf32>
    %982 = arith.mulf %981, %980 : vector<8x128xf32>
    %983 = math.tanh %982 : vector<8x128xf32>
    %cst_309 = arith.constant 5.000000e-01 : f32
    %984 = vector.broadcast %cst_309 : f32 to vector<8x128xf32>
    %985 = arith.mulf %984, %983 : vector<8x128xf32>
    %cst_310 = arith.constant 5.000000e-01 : f32
    %986 = vector.broadcast %cst_310 : f32 to vector<8x128xf32>
    %987 = arith.addf %985, %986 : vector<8x128xf32>
    %988 = vector.extract_strided_slice %971 {offsets = [0, 256], sizes = [8, 128], strides = [1, 1]} : vector<8x512xf32> to vector<8x128xf32>
    %989 = math.tanh %988 : vector<8x128xf32>
    %990 = vector.extract_strided_slice %971 {offsets = [0, 384], sizes = [8, 128], strides = [1, 1]} : vector<8x512xf32> to vector<8x128xf32>
    %cst_311 = arith.constant 5.000000e-01 : f32
    %991 = vector.broadcast %cst_311 : f32 to vector<8x128xf32>
    %992 = arith.mulf %991, %990 : vector<8x128xf32>
    %993 = math.tanh %992 : vector<8x128xf32>
    %cst_312 = arith.constant 5.000000e-01 : f32
    %994 = vector.broadcast %cst_312 : f32 to vector<8x128xf32>
    %995 = arith.mulf %994, %993 : vector<8x128xf32>
    %cst_313 = arith.constant 5.000000e-01 : f32
    %996 = vector.broadcast %cst_313 : f32 to vector<8x128xf32>
    %997 = arith.addf %995, %996 : vector<8x128xf32>
    %998 = arith.mulf %987, %898 : vector<8x128xf32>
    %999 = arith.mulf %979, %989 : vector<8x128xf32>
    %1000 = arith.addf %998, %999 : vector<8x128xf32>
    %1001 = math.tanh %1000 : vector<8x128xf32>
    %1002 = arith.mulf %997, %1001 : vector<8x128xf32>
    %1003 = arith.truncf %1002 : vector<8x128xf32> to vector<8x128xbf16>
    %1004 = vector.shape_cast %965 : vector<8x1xi1> to vector<8x1xi1>
    %1005 = vector.broadcast %1004 : vector<8x1xi1> to vector<8x128xi1>
    %1006 = arith.select %1005, %1003, %895 : vector<8x128xi1>, vector<8x128xbf16>
    %1007 = vector.shape_cast %965 : vector<8x1xi1> to vector<8x1xi1>
    %1008 = vector.broadcast %1007 : vector<8x1xi1> to vector<8x128xi1>
    %1009 = arith.select %1008, %1000, %898 : vector<8x128xi1>, vector<8x128xf32>
    %cst_314 = arith.constant 0.000000e+00 : f32
    %1010 = vector.shape_cast %965 : vector<8x1xi1> to vector<8x1xi1>
    %1011 = vector.broadcast %1010 : vector<8x1xi1> to vector<8x128xi1>
    %1012 = vector.broadcast %cst_314 : f32 to vector<8x128xf32>
    %1013 = arith.select %1011, %1002, %1012 : vector<8x128xi1>, vector<8x128xf32>
    %1014 = arith.index_cast %962 : i32 to index
    %c0_315 = arith.constant 0 : index
    %c0_316 = arith.constant 0 : index
    %1015 = vector.load %arg6[%1014, %c0_315, %c0_316] : memref<16x8x128xf32, #tpu.memory_space<vmem>>, vector<1x8x128xf32>
    %1016 = vector.shape_cast %1015 : vector<1x8x128xf32> to vector<8x128xf32>
    %1017 = vector.shape_cast %1013 : vector<8x128xf32> to vector<1x8x128xf32>
    tpu.vector_store %arg6[%1014, %c0_315, %c0_316], %1017 {strides = array<i32>} : memref<16x8x128xf32, #tpu.memory_space<vmem>>, vector<1x8x128xf32>,
    %c9_i32 = arith.constant 9 : i32
    %1018 = arith.addi %8, %c9_i32 : i32
    %1019 = vector.broadcast %1018 : i32 to vector<8x1xi32>
    %1020 = arith.cmpi slt, %1019, %7 : vector<8x1xi32>
    %c0_317 = arith.constant 0 : index
    %1021 = arith.index_cast %c9_i32 : i32 to index
    %c0_318 = arith.constant 0 : index
    %c0_319 = arith.constant 0 : index
    %1022 = vector.load %arg1[%c0_317, %1021, %c0_318, %c0_319] : memref<1x16x8x512xbf16, #tpu.memory_space<vmem>>, vector<1x1x8x512xbf16>
    %1023 = vector.shape_cast %1022 : vector<1x1x8x512xbf16> to vector<8x512xbf16>
    %1024 = arith.extf %1023 : vector<8x512xbf16> to vector<8x512xf32>
    %cst_320 = arith.constant dense<0.000000e+00> : vector<8x512xf32>
    %1025 = tpu.matmul %950, %4, %cst_320 {dimension_numbers = #tpu.dot_dimension_numbers<[1], [0], [0], [1], [0, 0, 1, 1], [], []>} : vector<8x128xbf16>, vector<128x512xbf16>, vector<8x512xf32> -> vector<8x512xf32>
    %1026 = arith.addf %1024, %1025 : vector<8x512xf32>
    %1027 = vector.extract_strided_slice %1026 {offsets = [0, 0], sizes = [8, 128], strides = [1, 1]} : vector<8x512xf32> to vector<8x128xf32>
    %cst_321 = arith.constant 5.000000e-01 : f32
    %1028 = vector.broadcast %cst_321 : f32 to vector<8x128xf32>
    %1029 = arith.mulf %1028, %1027 : vector<8x128xf32>
    %1030 = math.tanh %1029 : vector<8x128xf32>
    %cst_322 = arith.constant 5.000000e-01 : f32
    %1031 = vector.broadcast %cst_322 : f32 to vector<8x128xf32>
    %1032 = arith.mulf %1031, %1030 : vector<8x128xf32>
    %cst_323 = arith.constant 5.000000e-01 : f32
    %1033 = vector.broadcast %cst_323 : f32 to vector<8x128xf32>
    %1034 = arith.addf %1032, %1033 : vector<8x128xf32>
    %1035 = vector.extract_strided_slice %1026 {offsets = [0, 128], sizes = [8, 128], strides = [1, 1]} : vector<8x512xf32> to vector<8x128xf32>
    %cst_324 = arith.constant 5.000000e-01 : f32
    %1036 = vector.broadcast %cst_324 : f32 to vector<8x128xf32>
    %1037 = arith.mulf %1036, %1035 : vector<8x128xf32>
    %1038 = math.tanh %1037 : vector<8x128xf32>
    %cst_325 = arith.constant 5.000000e-01 : f32
    %1039 = vector.broadcast %cst_325 : f32 to vector<8x128xf32>
    %1040 = arith.mulf %1039, %1038 : vector<8x128xf32>
    %cst_326 = arith.constant 5.000000e-01 : f32
    %1041 = vector.broadcast %cst_326 : f32 to vector<8x128xf32>
    %1042 = arith.addf %1040, %1041 : vector<8x128xf32>
    %1043 = vector.extract_strided_slice %1026 {offsets = [0, 256], sizes = [8, 128], strides = [1, 1]} : vector<8x512xf32> to vector<8x128xf32>
    %1044 = math.tanh %1043 : vector<8x128xf32>
    %1045 = vector.extract_strided_slice %1026 {offsets = [0, 384], sizes = [8, 128], strides = [1, 1]} : vector<8x512xf32> to vector<8x128xf32>
    %cst_327 = arith.constant 5.000000e-01 : f32
    %1046 = vector.broadcast %cst_327 : f32 to vector<8x128xf32>
    %1047 = arith.mulf %1046, %1045 : vector<8x128xf32>
    %1048 = math.tanh %1047 : vector<8x128xf32>
    %cst_328 = arith.constant 5.000000e-01 : f32
    %1049 = vector.broadcast %cst_328 : f32 to vector<8x128xf32>
    %1050 = arith.mulf %1049, %1048 : vector<8x128xf32>
    %cst_329 = arith.constant 5.000000e-01 : f32
    %1051 = vector.broadcast %cst_329 : f32 to vector<8x128xf32>
    %1052 = arith.addf %1050, %1051 : vector<8x128xf32>
    %1053 = arith.mulf %1042, %953 : vector<8x128xf32>
    %1054 = arith.mulf %1034, %1044 : vector<8x128xf32>
    %1055 = arith.addf %1053, %1054 : vector<8x128xf32>
    %1056 = math.tanh %1055 : vector<8x128xf32>
    %1057 = arith.mulf %1052, %1056 : vector<8x128xf32>
    %1058 = arith.truncf %1057 : vector<8x128xf32> to vector<8x128xbf16>
    %1059 = vector.shape_cast %1020 : vector<8x1xi1> to vector<8x1xi1>
    %1060 = vector.broadcast %1059 : vector<8x1xi1> to vector<8x128xi1>
    %1061 = arith.select %1060, %1058, %950 : vector<8x128xi1>, vector<8x128xbf16>
    %1062 = vector.shape_cast %1020 : vector<8x1xi1> to vector<8x1xi1>
    %1063 = vector.broadcast %1062 : vector<8x1xi1> to vector<8x128xi1>
    %1064 = arith.select %1063, %1055, %953 : vector<8x128xi1>, vector<8x128xf32>
    %cst_330 = arith.constant 0.000000e+00 : f32
    %1065 = vector.shape_cast %1020 : vector<8x1xi1> to vector<8x1xi1>
    %1066 = vector.broadcast %1065 : vector<8x1xi1> to vector<8x128xi1>
    %1067 = vector.broadcast %cst_330 : f32 to vector<8x128xf32>
    %1068 = arith.select %1066, %1057, %1067 : vector<8x128xi1>, vector<8x128xf32>
    %1069 = arith.index_cast %c9_i32 : i32 to index
    %c0_331 = arith.constant 0 : index
    %c0_332 = arith.constant 0 : index
    %1070 = vector.load %arg5[%1069, %c0_331, %c0_332] : memref<16x8x128xf32, #tpu.memory_space<vmem>>, vector<1x8x128xf32>
    %1071 = vector.shape_cast %1070 : vector<1x8x128xf32> to vector<8x128xf32>
    %1072 = vector.shape_cast %1068 : vector<8x128xf32> to vector<1x8x128xf32>
    tpu.vector_store %arg5[%1069, %c0_331, %c0_332], %1072 {strides = array<i32>} : memref<16x8x128xf32, #tpu.memory_space<vmem>>, vector<1x8x128xf32>,
    %c15_i32_333 = arith.constant 15 : i32
    %1073 = arith.subi %c15_i32_333, %c9_i32 : i32
    %1074 = arith.addi %10, %1073 : i32
    %1075 = vector.broadcast %1074 : i32 to vector<8x1xi32>
    %1076 = arith.cmpi slt, %1075, %7 : vector<8x1xi32>
    %c0_334 = arith.constant 0 : index
    %1077 = arith.index_cast %1073 : i32 to index
    %c0_335 = arith.constant 0 : index
    %c0_336 = arith.constant 0 : index
    %1078 = vector.load %arg2[%c0_334, %1077, %c0_335, %c0_336] : memref<1x16x8x512xbf16, #tpu.memory_space<vmem>>, vector<1x1x8x512xbf16>
    %1079 = vector.shape_cast %1078 : vector<1x1x8x512xbf16> to vector<8x512xbf16>
    %1080 = arith.extf %1079 : vector<8x512xbf16> to vector<8x512xf32>
    %cst_337 = arith.constant dense<0.000000e+00> : vector<8x512xf32>
    %1081 = tpu.matmul %1006, %6, %cst_337 {dimension_numbers = #tpu.dot_dimension_numbers<[1], [0], [0], [1], [0, 0, 1, 1], [], []>} : vector<8x128xbf16>, vector<128x512xbf16>, vector<8x512xf32> -> vector<8x512xf32>
    %1082 = arith.addf %1080, %1081 : vector<8x512xf32>
    %1083 = vector.extract_strided_slice %1082 {offsets = [0, 0], sizes = [8, 128], strides = [1, 1]} : vector<8x512xf32> to vector<8x128xf32>
    %cst_338 = arith.constant 5.000000e-01 : f32
    %1084 = vector.broadcast %cst_338 : f32 to vector<8x128xf32>
    %1085 = arith.mulf %1084, %1083 : vector<8x128xf32>
    %1086 = math.tanh %1085 : vector<8x128xf32>
    %cst_339 = arith.constant 5.000000e-01 : f32
    %1087 = vector.broadcast %cst_339 : f32 to vector<8x128xf32>
    %1088 = arith.mulf %1087, %1086 : vector<8x128xf32>
    %cst_340 = arith.constant 5.000000e-01 : f32
    %1089 = vector.broadcast %cst_340 : f32 to vector<8x128xf32>
    %1090 = arith.addf %1088, %1089 : vector<8x128xf32>
    %1091 = vector.extract_strided_slice %1082 {offsets = [0, 128], sizes = [8, 128], strides = [1, 1]} : vector<8x512xf32> to vector<8x128xf32>
    %cst_341 = arith.constant 5.000000e-01 : f32
    %1092 = vector.broadcast %cst_341 : f32 to vector<8x128xf32>
    %1093 = arith.mulf %1092, %1091 : vector<8x128xf32>
    %1094 = math.tanh %1093 : vector<8x128xf32>
    %cst_342 = arith.constant 5.000000e-01 : f32
    %1095 = vector.broadcast %cst_342 : f32 to vector<8x128xf32>
    %1096 = arith.mulf %1095, %1094 : vector<8x128xf32>
    %cst_343 = arith.constant 5.000000e-01 : f32
    %1097 = vector.broadcast %cst_343 : f32 to vector<8x128xf32>
    %1098 = arith.addf %1096, %1097 : vector<8x128xf32>
    %1099 = vector.extract_strided_slice %1082 {offsets = [0, 256], sizes = [8, 128], strides = [1, 1]} : vector<8x512xf32> to vector<8x128xf32>
    %1100 = math.tanh %1099 : vector<8x128xf32>
    %1101 = vector.extract_strided_slice %1082 {offsets = [0, 384], sizes = [8, 128], strides = [1, 1]} : vector<8x512xf32> to vector<8x128xf32>
    %cst_344 = arith.constant 5.000000e-01 : f32
    %1102 = vector.broadcast %cst_344 : f32 to vector<8x128xf32>
    %1103 = arith.mulf %1102, %1101 : vector<8x128xf32>
    %1104 = math.tanh %1103 : vector<8x128xf32>
    %cst_345 = arith.constant 5.000000e-01 : f32
    %1105 = vector.broadcast %cst_345 : f32 to vector<8x128xf32>
    %1106 = arith.mulf %1105, %1104 : vector<8x128xf32>
    %cst_346 = arith.constant 5.000000e-01 : f32
    %1107 = vector.broadcast %cst_346 : f32 to vector<8x128xf32>
    %1108 = arith.addf %1106, %1107 : vector<8x128xf32>
    %1109 = arith.mulf %1098, %1009 : vector<8x128xf32>
    %1110 = arith.mulf %1090, %1100 : vector<8x128xf32>
    %1111 = arith.addf %1109, %1110 : vector<8x128xf32>
    %1112 = math.tanh %1111 : vector<8x128xf32>
    %1113 = arith.mulf %1108, %1112 : vector<8x128xf32>
    %1114 = arith.truncf %1113 : vector<8x128xf32> to vector<8x128xbf16>
    %1115 = vector.shape_cast %1076 : vector<8x1xi1> to vector<8x1xi1>
    %1116 = vector.broadcast %1115 : vector<8x1xi1> to vector<8x128xi1>
    %1117 = arith.select %1116, %1114, %1006 : vector<8x128xi1>, vector<8x128xbf16>
    %1118 = vector.shape_cast %1076 : vector<8x1xi1> to vector<8x1xi1>
    %1119 = vector.broadcast %1118 : vector<8x1xi1> to vector<8x128xi1>
    %1120 = arith.select %1119, %1111, %1009 : vector<8x128xi1>, vector<8x128xf32>
    %cst_347 = arith.constant 0.000000e+00 : f32
    %1121 = vector.shape_cast %1076 : vector<8x1xi1> to vector<8x1xi1>
    %1122 = vector.broadcast %1121 : vector<8x1xi1> to vector<8x128xi1>
    %1123 = vector.broadcast %cst_347 : f32 to vector<8x128xf32>
    %1124 = arith.select %1122, %1113, %1123 : vector<8x128xi1>, vector<8x128xf32>
    %1125 = arith.index_cast %1073 : i32 to index
    %c0_348 = arith.constant 0 : index
    %c0_349 = arith.constant 0 : index
    %1126 = vector.load %arg6[%1125, %c0_348, %c0_349] : memref<16x8x128xf32, #tpu.memory_space<vmem>>, vector<1x8x128xf32>
    %1127 = vector.shape_cast %1126 : vector<1x8x128xf32> to vector<8x128xf32>
    %1128 = vector.shape_cast %1124 : vector<8x128xf32> to vector<1x8x128xf32>
    tpu.vector_store %arg6[%1125, %c0_348, %c0_349], %1128 {strides = array<i32>} : memref<16x8x128xf32, #tpu.memory_space<vmem>>, vector<1x8x128xf32>,
    %c10_i32 = arith.constant 10 : i32
    %1129 = arith.addi %8, %c10_i32 : i32
    %1130 = vector.broadcast %1129 : i32 to vector<8x1xi32>
    %1131 = arith.cmpi slt, %1130, %7 : vector<8x1xi32>
    %c0_350 = arith.constant 0 : index
    %1132 = arith.index_cast %c10_i32 : i32 to index
    %c0_351 = arith.constant 0 : index
    %c0_352 = arith.constant 0 : index
    %1133 = vector.load %arg1[%c0_350, %1132, %c0_351, %c0_352] : memref<1x16x8x512xbf16, #tpu.memory_space<vmem>>, vector<1x1x8x512xbf16>
    %1134 = vector.shape_cast %1133 : vector<1x1x8x512xbf16> to vector<8x512xbf16>
    %1135 = arith.extf %1134 : vector<8x512xbf16> to vector<8x512xf32>
    %cst_353 = arith.constant dense<0.000000e+00> : vector<8x512xf32>
    %1136 = tpu.matmul %1061, %4, %cst_353 {dimension_numbers = #tpu.dot_dimension_numbers<[1], [0], [0], [1], [0, 0, 1, 1], [], []>} : vector<8x128xbf16>, vector<128x512xbf16>, vector<8x512xf32> -> vector<8x512xf32>
    %1137 = arith.addf %1135, %1136 : vector<8x512xf32>
    %1138 = vector.extract_strided_slice %1137 {offsets = [0, 0], sizes = [8, 128], strides = [1, 1]} : vector<8x512xf32> to vector<8x128xf32>
    %cst_354 = arith.constant 5.000000e-01 : f32
    %1139 = vector.broadcast %cst_354 : f32 to vector<8x128xf32>
    %1140 = arith.mulf %1139, %1138 : vector<8x128xf32>
    %1141 = math.tanh %1140 : vector<8x128xf32>
    %cst_355 = arith.constant 5.000000e-01 : f32
    %1142 = vector.broadcast %cst_355 : f32 to vector<8x128xf32>
    %1143 = arith.mulf %1142, %1141 : vector<8x128xf32>
    %cst_356 = arith.constant 5.000000e-01 : f32
    %1144 = vector.broadcast %cst_356 : f32 to vector<8x128xf32>
    %1145 = arith.addf %1143, %1144 : vector<8x128xf32>
    %1146 = vector.extract_strided_slice %1137 {offsets = [0, 128], sizes = [8, 128], strides = [1, 1]} : vector<8x512xf32> to vector<8x128xf32>
    %cst_357 = arith.constant 5.000000e-01 : f32
    %1147 = vector.broadcast %cst_357 : f32 to vector<8x128xf32>
    %1148 = arith.mulf %1147, %1146 : vector<8x128xf32>
    %1149 = math.tanh %1148 : vector<8x128xf32>
    %cst_358 = arith.constant 5.000000e-01 : f32
    %1150 = vector.broadcast %cst_358 : f32 to vector<8x128xf32>
    %1151 = arith.mulf %1150, %1149 : vector<8x128xf32>
    %cst_359 = arith.constant 5.000000e-01 : f32
    %1152 = vector.broadcast %cst_359 : f32 to vector<8x128xf32>
    %1153 = arith.addf %1151, %1152 : vector<8x128xf32>
    %1154 = vector.extract_strided_slice %1137 {offsets = [0, 256], sizes = [8, 128], strides = [1, 1]} : vector<8x512xf32> to vector<8x128xf32>
    %1155 = math.tanh %1154 : vector<8x128xf32>
    %1156 = vector.extract_strided_slice %1137 {offsets = [0, 384], sizes = [8, 128], strides = [1, 1]} : vector<8x512xf32> to vector<8x128xf32>
    %cst_360 = arith.constant 5.000000e-01 : f32
    %1157 = vector.broadcast %cst_360 : f32 to vector<8x128xf32>
    %1158 = arith.mulf %1157, %1156 : vector<8x128xf32>
    %1159 = math.tanh %1158 : vector<8x128xf32>
    %cst_361 = arith.constant 5.000000e-01 : f32
    %1160 = vector.broadcast %cst_361 : f32 to vector<8x128xf32>
    %1161 = arith.mulf %1160, %1159 : vector<8x128xf32>
    %cst_362 = arith.constant 5.000000e-01 : f32
    %1162 = vector.broadcast %cst_362 : f32 to vector<8x128xf32>
    %1163 = arith.addf %1161, %1162 : vector<8x128xf32>
    %1164 = arith.mulf %1153, %1064 : vector<8x128xf32>
    %1165 = arith.mulf %1145, %1155 : vector<8x128xf32>
    %1166 = arith.addf %1164, %1165 : vector<8x128xf32>
    %1167 = math.tanh %1166 : vector<8x128xf32>
    %1168 = arith.mulf %1163, %1167 : vector<8x128xf32>
    %1169 = arith.truncf %1168 : vector<8x128xf32> to vector<8x128xbf16>
    %1170 = vector.shape_cast %1131 : vector<8x1xi1> to vector<8x1xi1>
    %1171 = vector.broadcast %1170 : vector<8x1xi1> to vector<8x128xi1>
    %1172 = arith.select %1171, %1169, %1061 : vector<8x128xi1>, vector<8x128xbf16>
    %1173 = vector.shape_cast %1131 : vector<8x1xi1> to vector<8x1xi1>
    %1174 = vector.broadcast %1173 : vector<8x1xi1> to vector<8x128xi1>
    %1175 = arith.select %1174, %1166, %1064 : vector<8x128xi1>, vector<8x128xf32>
    %cst_363 = arith.constant 0.000000e+00 : f32
    %1176 = vector.shape_cast %1131 : vector<8x1xi1> to vector<8x1xi1>
    %1177 = vector.broadcast %1176 : vector<8x1xi1> to vector<8x128xi1>
    %1178 = vector.broadcast %cst_363 : f32 to vector<8x128xf32>
    %1179 = arith.select %1177, %1168, %1178 : vector<8x128xi1>, vector<8x128xf32>
    %1180 = arith.index_cast %c10_i32 : i32 to index
    %c0_364 = arith.constant 0 : index
    %c0_365 = arith.constant 0 : index
    %1181 = vector.load %arg5[%1180, %c0_364, %c0_365] : memref<16x8x128xf32, #tpu.memory_space<vmem>>, vector<1x8x128xf32>
    %1182 = vector.shape_cast %1181 : vector<1x8x128xf32> to vector<8x128xf32>
    %1183 = vector.shape_cast %1179 : vector<8x128xf32> to vector<1x8x128xf32>
    tpu.vector_store %arg5[%1180, %c0_364, %c0_365], %1183 {strides = array<i32>} : memref<16x8x128xf32, #tpu.memory_space<vmem>>, vector<1x8x128xf32>,
    %c15_i32_366 = arith.constant 15 : i32
    %1184 = arith.subi %c15_i32_366, %c10_i32 : i32
    %1185 = arith.addi %10, %1184 : i32
    %1186 = vector.broadcast %1185 : i32 to vector<8x1xi32>
    %1187 = arith.cmpi slt, %1186, %7 : vector<8x1xi32>
    %c0_367 = arith.constant 0 : index
    %1188 = arith.index_cast %1184 : i32 to index
    %c0_368 = arith.constant 0 : index
    %c0_369 = arith.constant 0 : index
    %1189 = vector.load %arg2[%c0_367, %1188, %c0_368, %c0_369] : memref<1x16x8x512xbf16, #tpu.memory_space<vmem>>, vector<1x1x8x512xbf16>
    %1190 = vector.shape_cast %1189 : vector<1x1x8x512xbf16> to vector<8x512xbf16>
    %1191 = arith.extf %1190 : vector<8x512xbf16> to vector<8x512xf32>
    %cst_370 = arith.constant dense<0.000000e+00> : vector<8x512xf32>
    %1192 = tpu.matmul %1117, %6, %cst_370 {dimension_numbers = #tpu.dot_dimension_numbers<[1], [0], [0], [1], [0, 0, 1, 1], [], []>} : vector<8x128xbf16>, vector<128x512xbf16>, vector<8x512xf32> -> vector<8x512xf32>
    %1193 = arith.addf %1191, %1192 : vector<8x512xf32>
    %1194 = vector.extract_strided_slice %1193 {offsets = [0, 0], sizes = [8, 128], strides = [1, 1]} : vector<8x512xf32> to vector<8x128xf32>
    %cst_371 = arith.constant 5.000000e-01 : f32
    %1195 = vector.broadcast %cst_371 : f32 to vector<8x128xf32>
    %1196 = arith.mulf %1195, %1194 : vector<8x128xf32>
    %1197 = math.tanh %1196 : vector<8x128xf32>
    %cst_372 = arith.constant 5.000000e-01 : f32
    %1198 = vector.broadcast %cst_372 : f32 to vector<8x128xf32>
    %1199 = arith.mulf %1198, %1197 : vector<8x128xf32>
    %cst_373 = arith.constant 5.000000e-01 : f32
    %1200 = vector.broadcast %cst_373 : f32 to vector<8x128xf32>
    %1201 = arith.addf %1199, %1200 : vector<8x128xf32>
    %1202 = vector.extract_strided_slice %1193 {offsets = [0, 128], sizes = [8, 128], strides = [1, 1]} : vector<8x512xf32> to vector<8x128xf32>
    %cst_374 = arith.constant 5.000000e-01 : f32
    %1203 = vector.broadcast %cst_374 : f32 to vector<8x128xf32>
    %1204 = arith.mulf %1203, %1202 : vector<8x128xf32>
    %1205 = math.tanh %1204 : vector<8x128xf32>
    %cst_375 = arith.constant 5.000000e-01 : f32
    %1206 = vector.broadcast %cst_375 : f32 to vector<8x128xf32>
    %1207 = arith.mulf %1206, %1205 : vector<8x128xf32>
    %cst_376 = arith.constant 5.000000e-01 : f32
    %1208 = vector.broadcast %cst_376 : f32 to vector<8x128xf32>
    %1209 = arith.addf %1207, %1208 : vector<8x128xf32>
    %1210 = vector.extract_strided_slice %1193 {offsets = [0, 256], sizes = [8, 128], strides = [1, 1]} : vector<8x512xf32> to vector<8x128xf32>
    %1211 = math.tanh %1210 : vector<8x128xf32>
    %1212 = vector.extract_strided_slice %1193 {offsets = [0, 384], sizes = [8, 128], strides = [1, 1]} : vector<8x512xf32> to vector<8x128xf32>
    %cst_377 = arith.constant 5.000000e-01 : f32
    %1213 = vector.broadcast %cst_377 : f32 to vector<8x128xf32>
    %1214 = arith.mulf %1213, %1212 : vector<8x128xf32>
    %1215 = math.tanh %1214 : vector<8x128xf32>
    %cst_378 = arith.constant 5.000000e-01 : f32
    %1216 = vector.broadcast %cst_378 : f32 to vector<8x128xf32>
    %1217 = arith.mulf %1216, %1215 : vector<8x128xf32>
    %cst_379 = arith.constant 5.000000e-01 : f32
    %1218 = vector.broadcast %cst_379 : f32 to vector<8x128xf32>
    %1219 = arith.addf %1217, %1218 : vector<8x128xf32>
    %1220 = arith.mulf %1209, %1120 : vector<8x128xf32>
    %1221 = arith.mulf %1201, %1211 : vector<8x128xf32>
    %1222 = arith.addf %1220, %1221 : vector<8x128xf32>
    %1223 = math.tanh %1222 : vector<8x128xf32>
    %1224 = arith.mulf %1219, %1223 : vector<8x128xf32>
    %1225 = arith.truncf %1224 : vector<8x128xf32> to vector<8x128xbf16>
    %1226 = vector.shape_cast %1187 : vector<8x1xi1> to vector<8x1xi1>
    %1227 = vector.broadcast %1226 : vector<8x1xi1> to vector<8x128xi1>
    %1228 = arith.select %1227, %1225, %1117 : vector<8x128xi1>, vector<8x128xbf16>
    %1229 = vector.shape_cast %1187 : vector<8x1xi1> to vector<8x1xi1>
    %1230 = vector.broadcast %1229 : vector<8x1xi1> to vector<8x128xi1>
    %1231 = arith.select %1230, %1222, %1120 : vector<8x128xi1>, vector<8x128xf32>
    %cst_380 = arith.constant 0.000000e+00 : f32
    %1232 = vector.shape_cast %1187 : vector<8x1xi1> to vector<8x1xi1>
    %1233 = vector.broadcast %1232 : vector<8x1xi1> to vector<8x128xi1>
    %1234 = vector.broadcast %cst_380 : f32 to vector<8x128xf32>
    %1235 = arith.select %1233, %1224, %1234 : vector<8x128xi1>, vector<8x128xf32>
    %1236 = arith.index_cast %1184 : i32 to index
    %c0_381 = arith.constant 0 : index
    %c0_382 = arith.constant 0 : index
    %1237 = vector.load %arg6[%1236, %c0_381, %c0_382] : memref<16x8x128xf32, #tpu.memory_space<vmem>>, vector<1x8x128xf32>
    %1238 = vector.shape_cast %1237 : vector<1x8x128xf32> to vector<8x128xf32>
    %1239 = vector.shape_cast %1235 : vector<8x128xf32> to vector<1x8x128xf32>
    tpu.vector_store %arg6[%1236, %c0_381, %c0_382], %1239 {strides = array<i32>} : memref<16x8x128xf32, #tpu.memory_space<vmem>>, vector<1x8x128xf32>,
    %c11_i32 = arith.constant 11 : i32
    %1240 = arith.addi %8, %c11_i32 : i32
    %1241 = vector.broadcast %1240 : i32 to vector<8x1xi32>
    %1242 = arith.cmpi slt, %1241, %7 : vector<8x1xi32>
    %c0_383 = arith.constant 0 : index
    %1243 = arith.index_cast %c11_i32 : i32 to index
    %c0_384 = arith.constant 0 : index
    %c0_385 = arith.constant 0 : index
    %1244 = vector.load %arg1[%c0_383, %1243, %c0_384, %c0_385] : memref<1x16x8x512xbf16, #tpu.memory_space<vmem>>, vector<1x1x8x512xbf16>
    %1245 = vector.shape_cast %1244 : vector<1x1x8x512xbf16> to vector<8x512xbf16>
    %1246 = arith.extf %1245 : vector<8x512xbf16> to vector<8x512xf32>
    %cst_386 = arith.constant dense<0.000000e+00> : vector<8x512xf32>
    %1247 = tpu.matmul %1172, %4, %cst_386 {dimension_numbers = #tpu.dot_dimension_numbers<[1], [0], [0], [1], [0, 0, 1, 1], [], []>} : vector<8x128xbf16>, vector<128x512xbf16>, vector<8x512xf32> -> vector<8x512xf32>
    %1248 = arith.addf %1246, %1247 : vector<8x512xf32>
    %1249 = vector.extract_strided_slice %1248 {offsets = [0, 0], sizes = [8, 128], strides = [1, 1]} : vector<8x512xf32> to vector<8x128xf32>
    %cst_387 = arith.constant 5.000000e-01 : f32
    %1250 = vector.broadcast %cst_387 : f32 to vector<8x128xf32>
    %1251 = arith.mulf %1250, %1249 : vector<8x128xf32>
    %1252 = math.tanh %1251 : vector<8x128xf32>
    %cst_388 = arith.constant 5.000000e-01 : f32
    %1253 = vector.broadcast %cst_388 : f32 to vector<8x128xf32>
    %1254 = arith.mulf %1253, %1252 : vector<8x128xf32>
    %cst_389 = arith.constant 5.000000e-01 : f32
    %1255 = vector.broadcast %cst_389 : f32 to vector<8x128xf32>
    %1256 = arith.addf %1254, %1255 : vector<8x128xf32>
    %1257 = vector.extract_strided_slice %1248 {offsets = [0, 128], sizes = [8, 128], strides = [1, 1]} : vector<8x512xf32> to vector<8x128xf32>
    %cst_390 = arith.constant 5.000000e-01 : f32
    %1258 = vector.broadcast %cst_390 : f32 to vector<8x128xf32>
    %1259 = arith.mulf %1258, %1257 : vector<8x128xf32>
    %1260 = math.tanh %1259 : vector<8x128xf32>
    %cst_391 = arith.constant 5.000000e-01 : f32
    %1261 = vector.broadcast %cst_391 : f32 to vector<8x128xf32>
    %1262 = arith.mulf %1261, %1260 : vector<8x128xf32>
    %cst_392 = arith.constant 5.000000e-01 : f32
    %1263 = vector.broadcast %cst_392 : f32 to vector<8x128xf32>
    %1264 = arith.addf %1262, %1263 : vector<8x128xf32>
    %1265 = vector.extract_strided_slice %1248 {offsets = [0, 256], sizes = [8, 128], strides = [1, 1]} : vector<8x512xf32> to vector<8x128xf32>
    %1266 = math.tanh %1265 : vector<8x128xf32>
    %1267 = vector.extract_strided_slice %1248 {offsets = [0, 384], sizes = [8, 128], strides = [1, 1]} : vector<8x512xf32> to vector<8x128xf32>
    %cst_393 = arith.constant 5.000000e-01 : f32
    %1268 = vector.broadcast %cst_393 : f32 to vector<8x128xf32>
    %1269 = arith.mulf %1268, %1267 : vector<8x128xf32>
    %1270 = math.tanh %1269 : vector<8x128xf32>
    %cst_394 = arith.constant 5.000000e-01 : f32
    %1271 = vector.broadcast %cst_394 : f32 to vector<8x128xf32>
    %1272 = arith.mulf %1271, %1270 : vector<8x128xf32>
    %cst_395 = arith.constant 5.000000e-01 : f32
    %1273 = vector.broadcast %cst_395 : f32 to vector<8x128xf32>
    %1274 = arith.addf %1272, %1273 : vector<8x128xf32>
    %1275 = arith.mulf %1264, %1175 : vector<8x128xf32>
    %1276 = arith.mulf %1256, %1266 : vector<8x128xf32>
    %1277 = arith.addf %1275, %1276 : vector<8x128xf32>
    %1278 = math.tanh %1277 : vector<8x128xf32>
    %1279 = arith.mulf %1274, %1278 : vector<8x128xf32>
    %1280 = arith.truncf %1279 : vector<8x128xf32> to vector<8x128xbf16>
    %1281 = vector.shape_cast %1242 : vector<8x1xi1> to vector<8x1xi1>
    %1282 = vector.broadcast %1281 : vector<8x1xi1> to vector<8x128xi1>
    %1283 = arith.select %1282, %1280, %1172 : vector<8x128xi1>, vector<8x128xbf16>
    %1284 = vector.shape_cast %1242 : vector<8x1xi1> to vector<8x1xi1>
    %1285 = vector.broadcast %1284 : vector<8x1xi1> to vector<8x128xi1>
    %1286 = arith.select %1285, %1277, %1175 : vector<8x128xi1>, vector<8x128xf32>
    %cst_396 = arith.constant 0.000000e+00 : f32
    %1287 = vector.shape_cast %1242 : vector<8x1xi1> to vector<8x1xi1>
    %1288 = vector.broadcast %1287 : vector<8x1xi1> to vector<8x128xi1>
    %1289 = vector.broadcast %cst_396 : f32 to vector<8x128xf32>
    %1290 = arith.select %1288, %1279, %1289 : vector<8x128xi1>, vector<8x128xf32>
    %1291 = arith.index_cast %c11_i32 : i32 to index
    %c0_397 = arith.constant 0 : index
    %c0_398 = arith.constant 0 : index
    %1292 = vector.load %arg5[%1291, %c0_397, %c0_398] : memref<16x8x128xf32, #tpu.memory_space<vmem>>, vector<1x8x128xf32>
    %1293 = vector.shape_cast %1292 : vector<1x8x128xf32> to vector<8x128xf32>
    %1294 = vector.shape_cast %1290 : vector<8x128xf32> to vector<1x8x128xf32>
    tpu.vector_store %arg5[%1291, %c0_397, %c0_398], %1294 {strides = array<i32>} : memref<16x8x128xf32, #tpu.memory_space<vmem>>, vector<1x8x128xf32>,
    %c15_i32_399 = arith.constant 15 : i32
    %1295 = arith.subi %c15_i32_399, %c11_i32 : i32
    %1296 = arith.addi %10, %1295 : i32
    %1297 = vector.broadcast %1296 : i32 to vector<8x1xi32>
    %1298 = arith.cmpi slt, %1297, %7 : vector<8x1xi32>
    %c0_400 = arith.constant 0 : index
    %1299 = arith.index_cast %1295 : i32 to index
    %c0_401 = arith.constant 0 : index
    %c0_402 = arith.constant 0 : index
    %1300 = vector.load %arg2[%c0_400, %1299, %c0_401, %c0_402] : memref<1x16x8x512xbf16, #tpu.memory_space<vmem>>, vector<1x1x8x512xbf16>
    %1301 = vector.shape_cast %1300 : vector<1x1x8x512xbf16> to vector<8x512xbf16>
    %1302 = arith.extf %1301 : vector<8x512xbf16> to vector<8x512xf32>
    %cst_403 = arith.constant dense<0.000000e+00> : vector<8x512xf32>
    %1303 = tpu.matmul %1228, %6, %cst_403 {dimension_numbers = #tpu.dot_dimension_numbers<[1], [0], [0], [1], [0, 0, 1, 1], [], []>} : vector<8x128xbf16>, vector<128x512xbf16>, vector<8x512xf32> -> vector<8x512xf32>
    %1304 = arith.addf %1302, %1303 : vector<8x512xf32>
    %1305 = vector.extract_strided_slice %1304 {offsets = [0, 0], sizes = [8, 128], strides = [1, 1]} : vector<8x512xf32> to vector<8x128xf32>
    %cst_404 = arith.constant 5.000000e-01 : f32
    %1306 = vector.broadcast %cst_404 : f32 to vector<8x128xf32>
    %1307 = arith.mulf %1306, %1305 : vector<8x128xf32>
    %1308 = math.tanh %1307 : vector<8x128xf32>
    %cst_405 = arith.constant 5.000000e-01 : f32
    %1309 = vector.broadcast %cst_405 : f32 to vector<8x128xf32>
    %1310 = arith.mulf %1309, %1308 : vector<8x128xf32>
    %cst_406 = arith.constant 5.000000e-01 : f32
    %1311 = vector.broadcast %cst_406 : f32 to vector<8x128xf32>
    %1312 = arith.addf %1310, %1311 : vector<8x128xf32>
    %1313 = vector.extract_strided_slice %1304 {offsets = [0, 128], sizes = [8, 128], strides = [1, 1]} : vector<8x512xf32> to vector<8x128xf32>
    %cst_407 = arith.constant 5.000000e-01 : f32
    %1314 = vector.broadcast %cst_407 : f32 to vector<8x128xf32>
    %1315 = arith.mulf %1314, %1313 : vector<8x128xf32>
    %1316 = math.tanh %1315 : vector<8x128xf32>
    %cst_408 = arith.constant 5.000000e-01 : f32
    %1317 = vector.broadcast %cst_408 : f32 to vector<8x128xf32>
    %1318 = arith.mulf %1317, %1316 : vector<8x128xf32>
    %cst_409 = arith.constant 5.000000e-01 : f32
    %1319 = vector.broadcast %cst_409 : f32 to vector<8x128xf32>
    %1320 = arith.addf %1318, %1319 : vector<8x128xf32>
    %1321 = vector.extract_strided_slice %1304 {offsets = [0, 256], sizes = [8, 128], strides = [1, 1]} : vector<8x512xf32> to vector<8x128xf32>
    %1322 = math.tanh %1321 : vector<8x128xf32>
    %1323 = vector.extract_strided_slice %1304 {offsets = [0, 384], sizes = [8, 128], strides = [1, 1]} : vector<8x512xf32> to vector<8x128xf32>
    %cst_410 = arith.constant 5.000000e-01 : f32
    %1324 = vector.broadcast %cst_410 : f32 to vector<8x128xf32>
    %1325 = arith.mulf %1324, %1323 : vector<8x128xf32>
    %1326 = math.tanh %1325 : vector<8x128xf32>
    %cst_411 = arith.constant 5.000000e-01 : f32
    %1327 = vector.broadcast %cst_411 : f32 to vector<8x128xf32>
    %1328 = arith.mulf %1327, %1326 : vector<8x128xf32>
    %cst_412 = arith.constant 5.000000e-01 : f32
    %1329 = vector.broadcast %cst_412 : f32 to vector<8x128xf32>
    %1330 = arith.addf %1328, %1329 : vector<8x128xf32>
    %1331 = arith.mulf %1320, %1231 : vector<8x128xf32>
    %1332 = arith.mulf %1312, %1322 : vector<8x128xf32>
    %1333 = arith.addf %1331, %1332 : vector<8x128xf32>
    %1334 = math.tanh %1333 : vector<8x128xf32>
    %1335 = arith.mulf %1330, %1334 : vector<8x128xf32>
    %1336 = arith.truncf %1335 : vector<8x128xf32> to vector<8x128xbf16>
    %1337 = vector.shape_cast %1298 : vector<8x1xi1> to vector<8x1xi1>
    %1338 = vector.broadcast %1337 : vector<8x1xi1> to vector<8x128xi1>
    %1339 = arith.select %1338, %1336, %1228 : vector<8x128xi1>, vector<8x128xbf16>
    %1340 = vector.shape_cast %1298 : vector<8x1xi1> to vector<8x1xi1>
    %1341 = vector.broadcast %1340 : vector<8x1xi1> to vector<8x128xi1>
    %1342 = arith.select %1341, %1333, %1231 : vector<8x128xi1>, vector<8x128xf32>
    %cst_413 = arith.constant 0.000000e+00 : f32
    %1343 = vector.shape_cast %1298 : vector<8x1xi1> to vector<8x1xi1>
    %1344 = vector.broadcast %1343 : vector<8x1xi1> to vector<8x128xi1>
    %1345 = vector.broadcast %cst_413 : f32 to vector<8x128xf32>
    %1346 = arith.select %1344, %1335, %1345 : vector<8x128xi1>, vector<8x128xf32>
    %1347 = arith.index_cast %1295 : i32 to index
    %c0_414 = arith.constant 0 : index
    %c0_415 = arith.constant 0 : index
    %1348 = vector.load %arg6[%1347, %c0_414, %c0_415] : memref<16x8x128xf32, #tpu.memory_space<vmem>>, vector<1x8x128xf32>
    %1349 = vector.shape_cast %1348 : vector<1x8x128xf32> to vector<8x128xf32>
    %1350 = vector.shape_cast %1346 : vector<8x128xf32> to vector<1x8x128xf32>
    tpu.vector_store %arg6[%1347, %c0_414, %c0_415], %1350 {strides = array<i32>} : memref<16x8x128xf32, #tpu.memory_space<vmem>>, vector<1x8x128xf32>,
    %c12_i32 = arith.constant 12 : i32
    %1351 = arith.addi %8, %c12_i32 : i32
    %1352 = vector.broadcast %1351 : i32 to vector<8x1xi32>
    %1353 = arith.cmpi slt, %1352, %7 : vector<8x1xi32>
    %c0_416 = arith.constant 0 : index
    %1354 = arith.index_cast %c12_i32 : i32 to index
    %c0_417 = arith.constant 0 : index
    %c0_418 = arith.constant 0 : index
    %1355 = vector.load %arg1[%c0_416, %1354, %c0_417, %c0_418] : memref<1x16x8x512xbf16, #tpu.memory_space<vmem>>, vector<1x1x8x512xbf16>
    %1356 = vector.shape_cast %1355 : vector<1x1x8x512xbf16> to vector<8x512xbf16>
    %1357 = arith.extf %1356 : vector<8x512xbf16> to vector<8x512xf32>
    %cst_419 = arith.constant dense<0.000000e+00> : vector<8x512xf32>
    %1358 = tpu.matmul %1283, %4, %cst_419 {dimension_numbers = #tpu.dot_dimension_numbers<[1], [0], [0], [1], [0, 0, 1, 1], [], []>} : vector<8x128xbf16>, vector<128x512xbf16>, vector<8x512xf32> -> vector<8x512xf32>
    %1359 = arith.addf %1357, %1358 : vector<8x512xf32>
    %1360 = vector.extract_strided_slice %1359 {offsets = [0, 0], sizes = [8, 128], strides = [1, 1]} : vector<8x512xf32> to vector<8x128xf32>
    %cst_420 = arith.constant 5.000000e-01 : f32
    %1361 = vector.broadcast %cst_420 : f32 to vector<8x128xf32>
    %1362 = arith.mulf %1361, %1360 : vector<8x128xf32>
    %1363 = math.tanh %1362 : vector<8x128xf32>
    %cst_421 = arith.constant 5.000000e-01 : f32
    %1364 = vector.broadcast %cst_421 : f32 to vector<8x128xf32>
    %1365 = arith.mulf %1364, %1363 : vector<8x128xf32>
    %cst_422 = arith.constant 5.000000e-01 : f32
    %1366 = vector.broadcast %cst_422 : f32 to vector<8x128xf32>
    %1367 = arith.addf %1365, %1366 : vector<8x128xf32>
    %1368 = vector.extract_strided_slice %1359 {offsets = [0, 128], sizes = [8, 128], strides = [1, 1]} : vector<8x512xf32> to vector<8x128xf32>
    %cst_423 = arith.constant 5.000000e-01 : f32
    %1369 = vector.broadcast %cst_423 : f32 to vector<8x128xf32>
    %1370 = arith.mulf %1369, %1368 : vector<8x128xf32>
    %1371 = math.tanh %1370 : vector<8x128xf32>
    %cst_424 = arith.constant 5.000000e-01 : f32
    %1372 = vector.broadcast %cst_424 : f32 to vector<8x128xf32>
    %1373 = arith.mulf %1372, %1371 : vector<8x128xf32>
    %cst_425 = arith.constant 5.000000e-01 : f32
    %1374 = vector.broadcast %cst_425 : f32 to vector<8x128xf32>
    %1375 = arith.addf %1373, %1374 : vector<8x128xf32>
    %1376 = vector.extract_strided_slice %1359 {offsets = [0, 256], sizes = [8, 128], strides = [1, 1]} : vector<8x512xf32> to vector<8x128xf32>
    %1377 = math.tanh %1376 : vector<8x128xf32>
    %1378 = vector.extract_strided_slice %1359 {offsets = [0, 384], sizes = [8, 128], strides = [1, 1]} : vector<8x512xf32> to vector<8x128xf32>
    %cst_426 = arith.constant 5.000000e-01 : f32
    %1379 = vector.broadcast %cst_426 : f32 to vector<8x128xf32>
    %1380 = arith.mulf %1379, %1378 : vector<8x128xf32>
    %1381 = math.tanh %1380 : vector<8x128xf32>
    %cst_427 = arith.constant 5.000000e-01 : f32
    %1382 = vector.broadcast %cst_427 : f32 to vector<8x128xf32>
    %1383 = arith.mulf %1382, %1381 : vector<8x128xf32>
    %cst_428 = arith.constant 5.000000e-01 : f32
    %1384 = vector.broadcast %cst_428 : f32 to vector<8x128xf32>
    %1385 = arith.addf %1383, %1384 : vector<8x128xf32>
    %1386 = arith.mulf %1375, %1286 : vector<8x128xf32>
    %1387 = arith.mulf %1367, %1377 : vector<8x128xf32>
    %1388 = arith.addf %1386, %1387 : vector<8x128xf32>
    %1389 = math.tanh %1388 : vector<8x128xf32>
    %1390 = arith.mulf %1385, %1389 : vector<8x128xf32>
    %1391 = arith.truncf %1390 : vector<8x128xf32> to vector<8x128xbf16>
    %1392 = vector.shape_cast %1353 : vector<8x1xi1> to vector<8x1xi1>
    %1393 = vector.broadcast %1392 : vector<8x1xi1> to vector<8x128xi1>
    %1394 = arith.select %1393, %1391, %1283 : vector<8x128xi1>, vector<8x128xbf16>
    %1395 = vector.shape_cast %1353 : vector<8x1xi1> to vector<8x1xi1>
    %1396 = vector.broadcast %1395 : vector<8x1xi1> to vector<8x128xi1>
    %1397 = arith.select %1396, %1388, %1286 : vector<8x128xi1>, vector<8x128xf32>
    %cst_429 = arith.constant 0.000000e+00 : f32
    %1398 = vector.shape_cast %1353 : vector<8x1xi1> to vector<8x1xi1>
    %1399 = vector.broadcast %1398 : vector<8x1xi1> to vector<8x128xi1>
    %1400 = vector.broadcast %cst_429 : f32 to vector<8x128xf32>
    %1401 = arith.select %1399, %1390, %1400 : vector<8x128xi1>, vector<8x128xf32>
    %1402 = arith.index_cast %c12_i32 : i32 to index
    %c0_430 = arith.constant 0 : index
    %c0_431 = arith.constant 0 : index
    %1403 = vector.load %arg5[%1402, %c0_430, %c0_431] : memref<16x8x128xf32, #tpu.memory_space<vmem>>, vector<1x8x128xf32>
    %1404 = vector.shape_cast %1403 : vector<1x8x128xf32> to vector<8x128xf32>
    %1405 = vector.shape_cast %1401 : vector<8x128xf32> to vector<1x8x128xf32>
    tpu.vector_store %arg5[%1402, %c0_430, %c0_431], %1405 {strides = array<i32>} : memref<16x8x128xf32, #tpu.memory_space<vmem>>, vector<1x8x128xf32>,
    %c15_i32_432 = arith.constant 15 : i32
    %1406 = arith.subi %c15_i32_432, %c12_i32 : i32
    %1407 = arith.addi %10, %1406 : i32
    %1408 = vector.broadcast %1407 : i32 to vector<8x1xi32>
    %1409 = arith.cmpi slt, %1408, %7 : vector<8x1xi32>
    %c0_433 = arith.constant 0 : index
    %1410 = arith.index_cast %1406 : i32 to index
    %c0_434 = arith.constant 0 : index
    %c0_435 = arith.constant 0 : index
    %1411 = vector.load %arg2[%c0_433, %1410, %c0_434, %c0_435] : memref<1x16x8x512xbf16, #tpu.memory_space<vmem>>, vector<1x1x8x512xbf16>
    %1412 = vector.shape_cast %1411 : vector<1x1x8x512xbf16> to vector<8x512xbf16>
    %1413 = arith.extf %1412 : vector<8x512xbf16> to vector<8x512xf32>
    %cst_436 = arith.constant dense<0.000000e+00> : vector<8x512xf32>
    %1414 = tpu.matmul %1339, %6, %cst_436 {dimension_numbers = #tpu.dot_dimension_numbers<[1], [0], [0], [1], [0, 0, 1, 1], [], []>} : vector<8x128xbf16>, vector<128x512xbf16>, vector<8x512xf32> -> vector<8x512xf32>
    %1415 = arith.addf %1413, %1414 : vector<8x512xf32>
    %1416 = vector.extract_strided_slice %1415 {offsets = [0, 0], sizes = [8, 128], strides = [1, 1]} : vector<8x512xf32> to vector<8x128xf32>
    %cst_437 = arith.constant 5.000000e-01 : f32
    %1417 = vector.broadcast %cst_437 : f32 to vector<8x128xf32>
    %1418 = arith.mulf %1417, %1416 : vector<8x128xf32>
    %1419 = math.tanh %1418 : vector<8x128xf32>
    %cst_438 = arith.constant 5.000000e-01 : f32
    %1420 = vector.broadcast %cst_438 : f32 to vector<8x128xf32>
    %1421 = arith.mulf %1420, %1419 : vector<8x128xf32>
    %cst_439 = arith.constant 5.000000e-01 : f32
    %1422 = vector.broadcast %cst_439 : f32 to vector<8x128xf32>
    %1423 = arith.addf %1421, %1422 : vector<8x128xf32>
    %1424 = vector.extract_strided_slice %1415 {offsets = [0, 128], sizes = [8, 128], strides = [1, 1]} : vector<8x512xf32> to vector<8x128xf32>
    %cst_440 = arith.constant 5.000000e-01 : f32
    %1425 = vector.broadcast %cst_440 : f32 to vector<8x128xf32>
    %1426 = arith.mulf %1425, %1424 : vector<8x128xf32>
    %1427 = math.tanh %1426 : vector<8x128xf32>
    %cst_441 = arith.constant 5.000000e-01 : f32
    %1428 = vector.broadcast %cst_441 : f32 to vector<8x128xf32>
    %1429 = arith.mulf %1428, %1427 : vector<8x128xf32>
    %cst_442 = arith.constant 5.000000e-01 : f32
    %1430 = vector.broadcast %cst_442 : f32 to vector<8x128xf32>
    %1431 = arith.addf %1429, %1430 : vector<8x128xf32>
    %1432 = vector.extract_strided_slice %1415 {offsets = [0, 256], sizes = [8, 128], strides = [1, 1]} : vector<8x512xf32> to vector<8x128xf32>
    %1433 = math.tanh %1432 : vector<8x128xf32>
    %1434 = vector.extract_strided_slice %1415 {offsets = [0, 384], sizes = [8, 128], strides = [1, 1]} : vector<8x512xf32> to vector<8x128xf32>
    %cst_443 = arith.constant 5.000000e-01 : f32
    %1435 = vector.broadcast %cst_443 : f32 to vector<8x128xf32>
    %1436 = arith.mulf %1435, %1434 : vector<8x128xf32>
    %1437 = math.tanh %1436 : vector<8x128xf32>
    %cst_444 = arith.constant 5.000000e-01 : f32
    %1438 = vector.broadcast %cst_444 : f32 to vector<8x128xf32>
    %1439 = arith.mulf %1438, %1437 : vector<8x128xf32>
    %cst_445 = arith.constant 5.000000e-01 : f32
    %1440 = vector.broadcast %cst_445 : f32 to vector<8x128xf32>
    %1441 = arith.addf %1439, %1440 : vector<8x128xf32>
    %1442 = arith.mulf %1431, %1342 : vector<8x128xf32>
    %1443 = arith.mulf %1423, %1433 : vector<8x128xf32>
    %1444 = arith.addf %1442, %1443 : vector<8x128xf32>
    %1445 = math.tanh %1444 : vector<8x128xf32>
    %1446 = arith.mulf %1441, %1445 : vector<8x128xf32>
    %1447 = arith.truncf %1446 : vector<8x128xf32> to vector<8x128xbf16>
    %1448 = vector.shape_cast %1409 : vector<8x1xi1> to vector<8x1xi1>
    %1449 = vector.broadcast %1448 : vector<8x1xi1> to vector<8x128xi1>
    %1450 = arith.select %1449, %1447, %1339 : vector<8x128xi1>, vector<8x128xbf16>
    %1451 = vector.shape_cast %1409 : vector<8x1xi1> to vector<8x1xi1>
    %1452 = vector.broadcast %1451 : vector<8x1xi1> to vector<8x128xi1>
    %1453 = arith.select %1452, %1444, %1342 : vector<8x128xi1>, vector<8x128xf32>
    %cst_446 = arith.constant 0.000000e+00 : f32
    %1454 = vector.shape_cast %1409 : vector<8x1xi1> to vector<8x1xi1>
    %1455 = vector.broadcast %1454 : vector<8x1xi1> to vector<8x128xi1>
    %1456 = vector.broadcast %cst_446 : f32 to vector<8x128xf32>
    %1457 = arith.select %1455, %1446, %1456 : vector<8x128xi1>, vector<8x128xf32>
    %1458 = arith.index_cast %1406 : i32 to index
    %c0_447 = arith.constant 0 : index
    %c0_448 = arith.constant 0 : index
    %1459 = vector.load %arg6[%1458, %c0_447, %c0_448] : memref<16x8x128xf32, #tpu.memory_space<vmem>>, vector<1x8x128xf32>
    %1460 = vector.shape_cast %1459 : vector<1x8x128xf32> to vector<8x128xf32>
    %1461 = vector.shape_cast %1457 : vector<8x128xf32> to vector<1x8x128xf32>
    tpu.vector_store %arg6[%1458, %c0_447, %c0_448], %1461 {strides = array<i32>} : memref<16x8x128xf32, #tpu.memory_space<vmem>>, vector<1x8x128xf32>,
    %c13_i32 = arith.constant 13 : i32
    %1462 = arith.addi %8, %c13_i32 : i32
    %1463 = vector.broadcast %1462 : i32 to vector<8x1xi32>
    %1464 = arith.cmpi slt, %1463, %7 : vector<8x1xi32>
    %c0_449 = arith.constant 0 : index
    %1465 = arith.index_cast %c13_i32 : i32 to index
    %c0_450 = arith.constant 0 : index
    %c0_451 = arith.constant 0 : index
    %1466 = vector.load %arg1[%c0_449, %1465, %c0_450, %c0_451] : memref<1x16x8x512xbf16, #tpu.memory_space<vmem>>, vector<1x1x8x512xbf16>
    %1467 = vector.shape_cast %1466 : vector<1x1x8x512xbf16> to vector<8x512xbf16>
    %1468 = arith.extf %1467 : vector<8x512xbf16> to vector<8x512xf32>
    %cst_452 = arith.constant dense<0.000000e+00> : vector<8x512xf32>
    %1469 = tpu.matmul %1394, %4, %cst_452 {dimension_numbers = #tpu.dot_dimension_numbers<[1], [0], [0], [1], [0, 0, 1, 1], [], []>} : vector<8x128xbf16>, vector<128x512xbf16>, vector<8x512xf32> -> vector<8x512xf32>
    %1470 = arith.addf %1468, %1469 : vector<8x512xf32>
    %1471 = vector.extract_strided_slice %1470 {offsets = [0, 0], sizes = [8, 128], strides = [1, 1]} : vector<8x512xf32> to vector<8x128xf32>
    %cst_453 = arith.constant 5.000000e-01 : f32
    %1472 = vector.broadcast %cst_453 : f32 to vector<8x128xf32>
    %1473 = arith.mulf %1472, %1471 : vector<8x128xf32>
    %1474 = math.tanh %1473 : vector<8x128xf32>
    %cst_454 = arith.constant 5.000000e-01 : f32
    %1475 = vector.broadcast %cst_454 : f32 to vector<8x128xf32>
    %1476 = arith.mulf %1475, %1474 : vector<8x128xf32>
    %cst_455 = arith.constant 5.000000e-01 : f32
    %1477 = vector.broadcast %cst_455 : f32 to vector<8x128xf32>
    %1478 = arith.addf %1476, %1477 : vector<8x128xf32>
    %1479 = vector.extract_strided_slice %1470 {offsets = [0, 128], sizes = [8, 128], strides = [1, 1]} : vector<8x512xf32> to vector<8x128xf32>
    %cst_456 = arith.constant 5.000000e-01 : f32
    %1480 = vector.broadcast %cst_456 : f32 to vector<8x128xf32>
    %1481 = arith.mulf %1480, %1479 : vector<8x128xf32>
    %1482 = math.tanh %1481 : vector<8x128xf32>
    %cst_457 = arith.constant 5.000000e-01 : f32
    %1483 = vector.broadcast %cst_457 : f32 to vector<8x128xf32>
    %1484 = arith.mulf %1483, %1482 : vector<8x128xf32>
    %cst_458 = arith.constant 5.000000e-01 : f32
    %1485 = vector.broadcast %cst_458 : f32 to vector<8x128xf32>
    %1486 = arith.addf %1484, %1485 : vector<8x128xf32>
    %1487 = vector.extract_strided_slice %1470 {offsets = [0, 256], sizes = [8, 128], strides = [1, 1]} : vector<8x512xf32> to vector<8x128xf32>
    %1488 = math.tanh %1487 : vector<8x128xf32>
    %1489 = vector.extract_strided_slice %1470 {offsets = [0, 384], sizes = [8, 128], strides = [1, 1]} : vector<8x512xf32> to vector<8x128xf32>
    %cst_459 = arith.constant 5.000000e-01 : f32
    %1490 = vector.broadcast %cst_459 : f32 to vector<8x128xf32>
    %1491 = arith.mulf %1490, %1489 : vector<8x128xf32>
    %1492 = math.tanh %1491 : vector<8x128xf32>
    %cst_460 = arith.constant 5.000000e-01 : f32
    %1493 = vector.broadcast %cst_460 : f32 to vector<8x128xf32>
    %1494 = arith.mulf %1493, %1492 : vector<8x128xf32>
    %cst_461 = arith.constant 5.000000e-01 : f32
    %1495 = vector.broadcast %cst_461 : f32 to vector<8x128xf32>
    %1496 = arith.addf %1494, %1495 : vector<8x128xf32>
    %1497 = arith.mulf %1486, %1397 : vector<8x128xf32>
    %1498 = arith.mulf %1478, %1488 : vector<8x128xf32>
    %1499 = arith.addf %1497, %1498 : vector<8x128xf32>
    %1500 = math.tanh %1499 : vector<8x128xf32>
    %1501 = arith.mulf %1496, %1500 : vector<8x128xf32>
    %1502 = arith.truncf %1501 : vector<8x128xf32> to vector<8x128xbf16>
    %1503 = vector.shape_cast %1464 : vector<8x1xi1> to vector<8x1xi1>
    %1504 = vector.broadcast %1503 : vector<8x1xi1> to vector<8x128xi1>
    %1505 = arith.select %1504, %1502, %1394 : vector<8x128xi1>, vector<8x128xbf16>
    %1506 = vector.shape_cast %1464 : vector<8x1xi1> to vector<8x1xi1>
    %1507 = vector.broadcast %1506 : vector<8x1xi1> to vector<8x128xi1>
    %1508 = arith.select %1507, %1499, %1397 : vector<8x128xi1>, vector<8x128xf32>
    %cst_462 = arith.constant 0.000000e+00 : f32
    %1509 = vector.shape_cast %1464 : vector<8x1xi1> to vector<8x1xi1>
    %1510 = vector.broadcast %1509 : vector<8x1xi1> to vector<8x128xi1>
    %1511 = vector.broadcast %cst_462 : f32 to vector<8x128xf32>
    %1512 = arith.select %1510, %1501, %1511 : vector<8x128xi1>, vector<8x128xf32>
    %1513 = arith.index_cast %c13_i32 : i32 to index
    %c0_463 = arith.constant 0 : index
    %c0_464 = arith.constant 0 : index
    %1514 = vector.load %arg5[%1513, %c0_463, %c0_464] : memref<16x8x128xf32, #tpu.memory_space<vmem>>, vector<1x8x128xf32>
    %1515 = vector.shape_cast %1514 : vector<1x8x128xf32> to vector<8x128xf32>
    %1516 = vector.shape_cast %1512 : vector<8x128xf32> to vector<1x8x128xf32>
    tpu.vector_store %arg5[%1513, %c0_463, %c0_464], %1516 {strides = array<i32>} : memref<16x8x128xf32, #tpu.memory_space<vmem>>, vector<1x8x128xf32>,
    %c15_i32_465 = arith.constant 15 : i32
    %1517 = arith.subi %c15_i32_465, %c13_i32 : i32
    %1518 = arith.addi %10, %1517 : i32
    %1519 = vector.broadcast %1518 : i32 to vector<8x1xi32>
    %1520 = arith.cmpi slt, %1519, %7 : vector<8x1xi32>
    %c0_466 = arith.constant 0 : index
    %1521 = arith.index_cast %1517 : i32 to index
    %c0_467 = arith.constant 0 : index
    %c0_468 = arith.constant 0 : index
    %1522 = vector.load %arg2[%c0_466, %1521, %c0_467, %c0_468] : memref<1x16x8x512xbf16, #tpu.memory_space<vmem>>, vector<1x1x8x512xbf16>
    %1523 = vector.shape_cast %1522 : vector<1x1x8x512xbf16> to vector<8x512xbf16>
    %1524 = arith.extf %1523 : vector<8x512xbf16> to vector<8x512xf32>
    %cst_469 = arith.constant dense<0.000000e+00> : vector<8x512xf32>
    %1525 = tpu.matmul %1450, %6, %cst_469 {dimension_numbers = #tpu.dot_dimension_numbers<[1], [0], [0], [1], [0, 0, 1, 1], [], []>} : vector<8x128xbf16>, vector<128x512xbf16>, vector<8x512xf32> -> vector<8x512xf32>
    %1526 = arith.addf %1524, %1525 : vector<8x512xf32>
    %1527 = vector.extract_strided_slice %1526 {offsets = [0, 0], sizes = [8, 128], strides = [1, 1]} : vector<8x512xf32> to vector<8x128xf32>
    %cst_470 = arith.constant 5.000000e-01 : f32
    %1528 = vector.broadcast %cst_470 : f32 to vector<8x128xf32>
    %1529 = arith.mulf %1528, %1527 : vector<8x128xf32>
    %1530 = math.tanh %1529 : vector<8x128xf32>
    %cst_471 = arith.constant 5.000000e-01 : f32
    %1531 = vector.broadcast %cst_471 : f32 to vector<8x128xf32>
    %1532 = arith.mulf %1531, %1530 : vector<8x128xf32>
    %cst_472 = arith.constant 5.000000e-01 : f32
    %1533 = vector.broadcast %cst_472 : f32 to vector<8x128xf32>
    %1534 = arith.addf %1532, %1533 : vector<8x128xf32>
    %1535 = vector.extract_strided_slice %1526 {offsets = [0, 128], sizes = [8, 128], strides = [1, 1]} : vector<8x512xf32> to vector<8x128xf32>
    %cst_473 = arith.constant 5.000000e-01 : f32
    %1536 = vector.broadcast %cst_473 : f32 to vector<8x128xf32>
    %1537 = arith.mulf %1536, %1535 : vector<8x128xf32>
    %1538 = math.tanh %1537 : vector<8x128xf32>
    %cst_474 = arith.constant 5.000000e-01 : f32
    %1539 = vector.broadcast %cst_474 : f32 to vector<8x128xf32>
    %1540 = arith.mulf %1539, %1538 : vector<8x128xf32>
    %cst_475 = arith.constant 5.000000e-01 : f32
    %1541 = vector.broadcast %cst_475 : f32 to vector<8x128xf32>
    %1542 = arith.addf %1540, %1541 : vector<8x128xf32>
    %1543 = vector.extract_strided_slice %1526 {offsets = [0, 256], sizes = [8, 128], strides = [1, 1]} : vector<8x512xf32> to vector<8x128xf32>
    %1544 = math.tanh %1543 : vector<8x128xf32>
    %1545 = vector.extract_strided_slice %1526 {offsets = [0, 384], sizes = [8, 128], strides = [1, 1]} : vector<8x512xf32> to vector<8x128xf32>
    %cst_476 = arith.constant 5.000000e-01 : f32
    %1546 = vector.broadcast %cst_476 : f32 to vector<8x128xf32>
    %1547 = arith.mulf %1546, %1545 : vector<8x128xf32>
    %1548 = math.tanh %1547 : vector<8x128xf32>
    %cst_477 = arith.constant 5.000000e-01 : f32
    %1549 = vector.broadcast %cst_477 : f32 to vector<8x128xf32>
    %1550 = arith.mulf %1549, %1548 : vector<8x128xf32>
    %cst_478 = arith.constant 5.000000e-01 : f32
    %1551 = vector.broadcast %cst_478 : f32 to vector<8x128xf32>
    %1552 = arith.addf %1550, %1551 : vector<8x128xf32>
    %1553 = arith.mulf %1542, %1453 : vector<8x128xf32>
    %1554 = arith.mulf %1534, %1544 : vector<8x128xf32>
    %1555 = arith.addf %1553, %1554 : vector<8x128xf32>
    %1556 = math.tanh %1555 : vector<8x128xf32>
    %1557 = arith.mulf %1552, %1556 : vector<8x128xf32>
    %1558 = arith.truncf %1557 : vector<8x128xf32> to vector<8x128xbf16>
    %1559 = vector.shape_cast %1520 : vector<8x1xi1> to vector<8x1xi1>
    %1560 = vector.broadcast %1559 : vector<8x1xi1> to vector<8x128xi1>
    %1561 = arith.select %1560, %1558, %1450 : vector<8x128xi1>, vector<8x128xbf16>
    %1562 = vector.shape_cast %1520 : vector<8x1xi1> to vector<8x1xi1>
    %1563 = vector.broadcast %1562 : vector<8x1xi1> to vector<8x128xi1>
    %1564 = arith.select %1563, %1555, %1453 : vector<8x128xi1>, vector<8x128xf32>
    %cst_479 = arith.constant 0.000000e+00 : f32
    %1565 = vector.shape_cast %1520 : vector<8x1xi1> to vector<8x1xi1>
    %1566 = vector.broadcast %1565 : vector<8x1xi1> to vector<8x128xi1>
    %1567 = vector.broadcast %cst_479 : f32 to vector<8x128xf32>
    %1568 = arith.select %1566, %1557, %1567 : vector<8x128xi1>, vector<8x128xf32>
    %1569 = arith.index_cast %1517 : i32 to index
    %c0_480 = arith.constant 0 : index
    %c0_481 = arith.constant 0 : index
    %1570 = vector.load %arg6[%1569, %c0_480, %c0_481] : memref<16x8x128xf32, #tpu.memory_space<vmem>>, vector<1x8x128xf32>
    %1571 = vector.shape_cast %1570 : vector<1x8x128xf32> to vector<8x128xf32>
    %1572 = vector.shape_cast %1568 : vector<8x128xf32> to vector<1x8x128xf32>
    tpu.vector_store %arg6[%1569, %c0_480, %c0_481], %1572 {strides = array<i32>} : memref<16x8x128xf32, #tpu.memory_space<vmem>>, vector<1x8x128xf32>,
    %c14_i32 = arith.constant 14 : i32
    %1573 = arith.addi %8, %c14_i32 : i32
    %1574 = vector.broadcast %1573 : i32 to vector<8x1xi32>
    %1575 = arith.cmpi slt, %1574, %7 : vector<8x1xi32>
    %c0_482 = arith.constant 0 : index
    %1576 = arith.index_cast %c14_i32 : i32 to index
    %c0_483 = arith.constant 0 : index
    %c0_484 = arith.constant 0 : index
    %1577 = vector.load %arg1[%c0_482, %1576, %c0_483, %c0_484] : memref<1x16x8x512xbf16, #tpu.memory_space<vmem>>, vector<1x1x8x512xbf16>
    %1578 = vector.shape_cast %1577 : vector<1x1x8x512xbf16> to vector<8x512xbf16>
    %1579 = arith.extf %1578 : vector<8x512xbf16> to vector<8x512xf32>
    %cst_485 = arith.constant dense<0.000000e+00> : vector<8x512xf32>
    %1580 = tpu.matmul %1505, %4, %cst_485 {dimension_numbers = #tpu.dot_dimension_numbers<[1], [0], [0], [1], [0, 0, 1, 1], [], []>} : vector<8x128xbf16>, vector<128x512xbf16>, vector<8x512xf32> -> vector<8x512xf32>
    %1581 = arith.addf %1579, %1580 : vector<8x512xf32>
    %1582 = vector.extract_strided_slice %1581 {offsets = [0, 0], sizes = [8, 128], strides = [1, 1]} : vector<8x512xf32> to vector<8x128xf32>
    %cst_486 = arith.constant 5.000000e-01 : f32
    %1583 = vector.broadcast %cst_486 : f32 to vector<8x128xf32>
    %1584 = arith.mulf %1583, %1582 : vector<8x128xf32>
    %1585 = math.tanh %1584 : vector<8x128xf32>
    %cst_487 = arith.constant 5.000000e-01 : f32
    %1586 = vector.broadcast %cst_487 : f32 to vector<8x128xf32>
    %1587 = arith.mulf %1586, %1585 : vector<8x128xf32>
    %cst_488 = arith.constant 5.000000e-01 : f32
    %1588 = vector.broadcast %cst_488 : f32 to vector<8x128xf32>
    %1589 = arith.addf %1587, %1588 : vector<8x128xf32>
    %1590 = vector.extract_strided_slice %1581 {offsets = [0, 128], sizes = [8, 128], strides = [1, 1]} : vector<8x512xf32> to vector<8x128xf32>
    %cst_489 = arith.constant 5.000000e-01 : f32
    %1591 = vector.broadcast %cst_489 : f32 to vector<8x128xf32>
    %1592 = arith.mulf %1591, %1590 : vector<8x128xf32>
    %1593 = math.tanh %1592 : vector<8x128xf32>
    %cst_490 = arith.constant 5.000000e-01 : f32
    %1594 = vector.broadcast %cst_490 : f32 to vector<8x128xf32>
    %1595 = arith.mulf %1594, %1593 : vector<8x128xf32>
    %cst_491 = arith.constant 5.000000e-01 : f32
    %1596 = vector.broadcast %cst_491 : f32 to vector<8x128xf32>
    %1597 = arith.addf %1595, %1596 : vector<8x128xf32>
    %1598 = vector.extract_strided_slice %1581 {offsets = [0, 256], sizes = [8, 128], strides = [1, 1]} : vector<8x512xf32> to vector<8x128xf32>
    %1599 = math.tanh %1598 : vector<8x128xf32>
    %1600 = vector.extract_strided_slice %1581 {offsets = [0, 384], sizes = [8, 128], strides = [1, 1]} : vector<8x512xf32> to vector<8x128xf32>
    %cst_492 = arith.constant 5.000000e-01 : f32
    %1601 = vector.broadcast %cst_492 : f32 to vector<8x128xf32>
    %1602 = arith.mulf %1601, %1600 : vector<8x128xf32>
    %1603 = math.tanh %1602 : vector<8x128xf32>
    %cst_493 = arith.constant 5.000000e-01 : f32
    %1604 = vector.broadcast %cst_493 : f32 to vector<8x128xf32>
    %1605 = arith.mulf %1604, %1603 : vector<8x128xf32>
    %cst_494 = arith.constant 5.000000e-01 : f32
    %1606 = vector.broadcast %cst_494 : f32 to vector<8x128xf32>
    %1607 = arith.addf %1605, %1606 : vector<8x128xf32>
    %1608 = arith.mulf %1597, %1508 : vector<8x128xf32>
    %1609 = arith.mulf %1589, %1599 : vector<8x128xf32>
    %1610 = arith.addf %1608, %1609 : vector<8x128xf32>
    %1611 = math.tanh %1610 : vector<8x128xf32>
    %1612 = arith.mulf %1607, %1611 : vector<8x128xf32>
    %1613 = arith.truncf %1612 : vector<8x128xf32> to vector<8x128xbf16>
    %1614 = vector.shape_cast %1575 : vector<8x1xi1> to vector<8x1xi1>
    %1615 = vector.broadcast %1614 : vector<8x1xi1> to vector<8x128xi1>
    %1616 = arith.select %1615, %1613, %1505 : vector<8x128xi1>, vector<8x128xbf16>
    %1617 = vector.shape_cast %1575 : vector<8x1xi1> to vector<8x1xi1>
    %1618 = vector.broadcast %1617 : vector<8x1xi1> to vector<8x128xi1>
    %1619 = arith.select %1618, %1610, %1508 : vector<8x128xi1>, vector<8x128xf32>
    %cst_495 = arith.constant 0.000000e+00 : f32
    %1620 = vector.shape_cast %1575 : vector<8x1xi1> to vector<8x1xi1>
    %1621 = vector.broadcast %1620 : vector<8x1xi1> to vector<8x128xi1>
    %1622 = vector.broadcast %cst_495 : f32 to vector<8x128xf32>
    %1623 = arith.select %1621, %1612, %1622 : vector<8x128xi1>, vector<8x128xf32>
    %1624 = arith.index_cast %c14_i32 : i32 to index
    %c0_496 = arith.constant 0 : index
    %c0_497 = arith.constant 0 : index
    %1625 = vector.load %arg5[%1624, %c0_496, %c0_497] : memref<16x8x128xf32, #tpu.memory_space<vmem>>, vector<1x8x128xf32>
    %1626 = vector.shape_cast %1625 : vector<1x8x128xf32> to vector<8x128xf32>
    %1627 = vector.shape_cast %1623 : vector<8x128xf32> to vector<1x8x128xf32>
    tpu.vector_store %arg5[%1624, %c0_496, %c0_497], %1627 {strides = array<i32>} : memref<16x8x128xf32, #tpu.memory_space<vmem>>, vector<1x8x128xf32>,
    %c15_i32_498 = arith.constant 15 : i32
    %1628 = arith.subi %c15_i32_498, %c14_i32 : i32
    %1629 = arith.addi %10, %1628 : i32
    %1630 = vector.broadcast %1629 : i32 to vector<8x1xi32>
    %1631 = arith.cmpi slt, %1630, %7 : vector<8x1xi32>
    %c0_499 = arith.constant 0 : index
    %1632 = arith.index_cast %1628 : i32 to index
    %c0_500 = arith.constant 0 : index
    %c0_501 = arith.constant 0 : index
    %1633 = vector.load %arg2[%c0_499, %1632, %c0_500, %c0_501] : memref<1x16x8x512xbf16, #tpu.memory_space<vmem>>, vector<1x1x8x512xbf16>
    %1634 = vector.shape_cast %1633 : vector<1x1x8x512xbf16> to vector<8x512xbf16>
    %1635 = arith.extf %1634 : vector<8x512xbf16> to vector<8x512xf32>
    %cst_502 = arith.constant dense<0.000000e+00> : vector<8x512xf32>
    %1636 = tpu.matmul %1561, %6, %cst_502 {dimension_numbers = #tpu.dot_dimension_numbers<[1], [0], [0], [1], [0, 0, 1, 1], [], []>} : vector<8x128xbf16>, vector<128x512xbf16>, vector<8x512xf32> -> vector<8x512xf32>
    %1637 = arith.addf %1635, %1636 : vector<8x512xf32>
    %1638 = vector.extract_strided_slice %1637 {offsets = [0, 0], sizes = [8, 128], strides = [1, 1]} : vector<8x512xf32> to vector<8x128xf32>
    %cst_503 = arith.constant 5.000000e-01 : f32
    %1639 = vector.broadcast %cst_503 : f32 to vector<8x128xf32>
    %1640 = arith.mulf %1639, %1638 : vector<8x128xf32>
    %1641 = math.tanh %1640 : vector<8x128xf32>
    %cst_504 = arith.constant 5.000000e-01 : f32
    %1642 = vector.broadcast %cst_504 : f32 to vector<8x128xf32>
    %1643 = arith.mulf %1642, %1641 : vector<8x128xf32>
    %cst_505 = arith.constant 5.000000e-01 : f32
    %1644 = vector.broadcast %cst_505 : f32 to vector<8x128xf32>
    %1645 = arith.addf %1643, %1644 : vector<8x128xf32>
    %1646 = vector.extract_strided_slice %1637 {offsets = [0, 128], sizes = [8, 128], strides = [1, 1]} : vector<8x512xf32> to vector<8x128xf32>
    %cst_506 = arith.constant 5.000000e-01 : f32
    %1647 = vector.broadcast %cst_506 : f32 to vector<8x128xf32>
    %1648 = arith.mulf %1647, %1646 : vector<8x128xf32>
    %1649 = math.tanh %1648 : vector<8x128xf32>
    %cst_507 = arith.constant 5.000000e-01 : f32
    %1650 = vector.broadcast %cst_507 : f32 to vector<8x128xf32>
    %1651 = arith.mulf %1650, %1649 : vector<8x128xf32>
    %cst_508 = arith.constant 5.000000e-01 : f32
    %1652 = vector.broadcast %cst_508 : f32 to vector<8x128xf32>
    %1653 = arith.addf %1651, %1652 : vector<8x128xf32>
    %1654 = vector.extract_strided_slice %1637 {offsets = [0, 256], sizes = [8, 128], strides = [1, 1]} : vector<8x512xf32> to vector<8x128xf32>
    %1655 = math.tanh %1654 : vector<8x128xf32>
    %1656 = vector.extract_strided_slice %1637 {offsets = [0, 384], sizes = [8, 128], strides = [1, 1]} : vector<8x512xf32> to vector<8x128xf32>
    %cst_509 = arith.constant 5.000000e-01 : f32
    %1657 = vector.broadcast %cst_509 : f32 to vector<8x128xf32>
    %1658 = arith.mulf %1657, %1656 : vector<8x128xf32>
    %1659 = math.tanh %1658 : vector<8x128xf32>
    %cst_510 = arith.constant 5.000000e-01 : f32
    %1660 = vector.broadcast %cst_510 : f32 to vector<8x128xf32>
    %1661 = arith.mulf %1660, %1659 : vector<8x128xf32>
    %cst_511 = arith.constant 5.000000e-01 : f32
    %1662 = vector.broadcast %cst_511 : f32 to vector<8x128xf32>
    %1663 = arith.addf %1661, %1662 : vector<8x128xf32>
    %1664 = arith.mulf %1653, %1564 : vector<8x128xf32>
    %1665 = arith.mulf %1645, %1655 : vector<8x128xf32>
    %1666 = arith.addf %1664, %1665 : vector<8x128xf32>
    %1667 = math.tanh %1666 : vector<8x128xf32>
    %1668 = arith.mulf %1663, %1667 : vector<8x128xf32>
    %1669 = arith.truncf %1668 : vector<8x128xf32> to vector<8x128xbf16>
    %1670 = vector.shape_cast %1631 : vector<8x1xi1> to vector<8x1xi1>
    %1671 = vector.broadcast %1670 : vector<8x1xi1> to vector<8x128xi1>
    %1672 = arith.select %1671, %1669, %1561 : vector<8x128xi1>, vector<8x128xbf16>
    %1673 = vector.shape_cast %1631 : vector<8x1xi1> to vector<8x1xi1>
    %1674 = vector.broadcast %1673 : vector<8x1xi1> to vector<8x128xi1>
    %1675 = arith.select %1674, %1666, %1564 : vector<8x128xi1>, vector<8x128xf32>
    %cst_512 = arith.constant 0.000000e+00 : f32
    %1676 = vector.shape_cast %1631 : vector<8x1xi1> to vector<8x1xi1>
    %1677 = vector.broadcast %1676 : vector<8x1xi1> to vector<8x128xi1>
    %1678 = vector.broadcast %cst_512 : f32 to vector<8x128xf32>
    %1679 = arith.select %1677, %1668, %1678 : vector<8x128xi1>, vector<8x128xf32>
    %1680 = arith.index_cast %1628 : i32 to index
    %c0_513 = arith.constant 0 : index
    %c0_514 = arith.constant 0 : index
    %1681 = vector.load %arg6[%1680, %c0_513, %c0_514] : memref<16x8x128xf32, #tpu.memory_space<vmem>>, vector<1x8x128xf32>
    %1682 = vector.shape_cast %1681 : vector<1x8x128xf32> to vector<8x128xf32>
    %1683 = vector.shape_cast %1679 : vector<8x128xf32> to vector<1x8x128xf32>
    tpu.vector_store %arg6[%1680, %c0_513, %c0_514], %1683 {strides = array<i32>} : memref<16x8x128xf32, #tpu.memory_space<vmem>>, vector<1x8x128xf32>,
    %c15_i32_515 = arith.constant 15 : i32
    %1684 = arith.addi %8, %c15_i32_515 : i32
    %1685 = vector.broadcast %1684 : i32 to vector<8x1xi32>
    %1686 = arith.cmpi slt, %1685, %7 : vector<8x1xi32>
    %c0_516 = arith.constant 0 : index
    %1687 = arith.index_cast %c15_i32_515 : i32 to index
    %c0_517 = arith.constant 0 : index
    %c0_518 = arith.constant 0 : index
    %1688 = vector.load %arg1[%c0_516, %1687, %c0_517, %c0_518] : memref<1x16x8x512xbf16, #tpu.memory_space<vmem>>, vector<1x1x8x512xbf16>
    %1689 = vector.shape_cast %1688 : vector<1x1x8x512xbf16> to vector<8x512xbf16>
    %1690 = arith.extf %1689 : vector<8x512xbf16> to vector<8x512xf32>
    %cst_519 = arith.constant dense<0.000000e+00> : vector<8x512xf32>
    %1691 = tpu.matmul %1616, %4, %cst_519 {dimension_numbers = #tpu.dot_dimension_numbers<[1], [0], [0], [1], [0, 0, 1, 1], [], []>} : vector<8x128xbf16>, vector<128x512xbf16>, vector<8x512xf32> -> vector<8x512xf32>
    %1692 = arith.addf %1690, %1691 : vector<8x512xf32>
    %1693 = vector.extract_strided_slice %1692 {offsets = [0, 0], sizes = [8, 128], strides = [1, 1]} : vector<8x512xf32> to vector<8x128xf32>
    %cst_520 = arith.constant 5.000000e-01 : f32
    %1694 = vector.broadcast %cst_520 : f32 to vector<8x128xf32>
    %1695 = arith.mulf %1694, %1693 : vector<8x128xf32>
    %1696 = math.tanh %1695 : vector<8x128xf32>
    %cst_521 = arith.constant 5.000000e-01 : f32
    %1697 = vector.broadcast %cst_521 : f32 to vector<8x128xf32>
    %1698 = arith.mulf %1697, %1696 : vector<8x128xf32>
    %cst_522 = arith.constant 5.000000e-01 : f32
    %1699 = vector.broadcast %cst_522 : f32 to vector<8x128xf32>
    %1700 = arith.addf %1698, %1699 : vector<8x128xf32>
    %1701 = vector.extract_strided_slice %1692 {offsets = [0, 128], sizes = [8, 128], strides = [1, 1]} : vector<8x512xf32> to vector<8x128xf32>
    %cst_523 = arith.constant 5.000000e-01 : f32
    %1702 = vector.broadcast %cst_523 : f32 to vector<8x128xf32>
    %1703 = arith.mulf %1702, %1701 : vector<8x128xf32>
    %1704 = math.tanh %1703 : vector<8x128xf32>
    %cst_524 = arith.constant 5.000000e-01 : f32
    %1705 = vector.broadcast %cst_524 : f32 to vector<8x128xf32>
    %1706 = arith.mulf %1705, %1704 : vector<8x128xf32>
    %cst_525 = arith.constant 5.000000e-01 : f32
    %1707 = vector.broadcast %cst_525 : f32 to vector<8x128xf32>
    %1708 = arith.addf %1706, %1707 : vector<8x128xf32>
    %1709 = vector.extract_strided_slice %1692 {offsets = [0, 256], sizes = [8, 128], strides = [1, 1]} : vector<8x512xf32> to vector<8x128xf32>
    %1710 = math.tanh %1709 : vector<8x128xf32>
    %1711 = vector.extract_strided_slice %1692 {offsets = [0, 384], sizes = [8, 128], strides = [1, 1]} : vector<8x512xf32> to vector<8x128xf32>
    %cst_526 = arith.constant 5.000000e-01 : f32
    %1712 = vector.broadcast %cst_526 : f32 to vector<8x128xf32>
    %1713 = arith.mulf %1712, %1711 : vector<8x128xf32>
    %1714 = math.tanh %1713 : vector<8x128xf32>
    %cst_527 = arith.constant 5.000000e-01 : f32
    %1715 = vector.broadcast %cst_527 : f32 to vector<8x128xf32>
    %1716 = arith.mulf %1715, %1714 : vector<8x128xf32>
    %cst_528 = arith.constant 5.000000e-01 : f32
    %1717 = vector.broadcast %cst_528 : f32 to vector<8x128xf32>
    %1718 = arith.addf %1716, %1717 : vector<8x128xf32>
    %1719 = arith.mulf %1708, %1619 : vector<8x128xf32>
    %1720 = arith.mulf %1700, %1710 : vector<8x128xf32>
    %1721 = arith.addf %1719, %1720 : vector<8x128xf32>
    %1722 = math.tanh %1721 : vector<8x128xf32>
    %1723 = arith.mulf %1718, %1722 : vector<8x128xf32>
    %1724 = arith.truncf %1723 : vector<8x128xf32> to vector<8x128xbf16>
    %1725 = vector.shape_cast %1686 : vector<8x1xi1> to vector<8x1xi1>
    %1726 = vector.broadcast %1725 : vector<8x1xi1> to vector<8x128xi1>
    %1727 = arith.select %1726, %1724, %1616 : vector<8x128xi1>, vector<8x128xbf16>
    %1728 = vector.shape_cast %1686 : vector<8x1xi1> to vector<8x1xi1>
    %1729 = vector.broadcast %1728 : vector<8x1xi1> to vector<8x128xi1>
    %1730 = arith.select %1729, %1721, %1619 : vector<8x128xi1>, vector<8x128xf32>
    %cst_529 = arith.constant 0.000000e+00 : f32
    %1731 = vector.shape_cast %1686 : vector<8x1xi1> to vector<8x1xi1>
    %1732 = vector.broadcast %1731 : vector<8x1xi1> to vector<8x128xi1>
    %1733 = vector.broadcast %cst_529 : f32 to vector<8x128xf32>
    %1734 = arith.select %1732, %1723, %1733 : vector<8x128xi1>, vector<8x128xf32>
    %1735 = arith.index_cast %c15_i32_515 : i32 to index
    %c0_530 = arith.constant 0 : index
    %c0_531 = arith.constant 0 : index
    %1736 = vector.load %arg5[%1735, %c0_530, %c0_531] : memref<16x8x128xf32, #tpu.memory_space<vmem>>, vector<1x8x128xf32>
    %1737 = vector.shape_cast %1736 : vector<1x8x128xf32> to vector<8x128xf32>
    %1738 = vector.shape_cast %1734 : vector<8x128xf32> to vector<1x8x128xf32>
    tpu.vector_store %arg5[%1735, %c0_530, %c0_531], %1738 {strides = array<i32>} : memref<16x8x128xf32, #tpu.memory_space<vmem>>, vector<1x8x128xf32>,
    %c15_i32_532 = arith.constant 15 : i32
    %1739 = arith.subi %c15_i32_532, %c15_i32_515 : i32
    %1740 = arith.addi %10, %1739 : i32
    %1741 = vector.broadcast %1740 : i32 to vector<8x1xi32>
    %1742 = arith.cmpi slt, %1741, %7 : vector<8x1xi32>
    %c0_533 = arith.constant 0 : index
    %1743 = arith.index_cast %1739 : i32 to index
    %c0_534 = arith.constant 0 : index
    %c0_535 = arith.constant 0 : index
    %1744 = vector.load %arg2[%c0_533, %1743, %c0_534, %c0_535] : memref<1x16x8x512xbf16, #tpu.memory_space<vmem>>, vector<1x1x8x512xbf16>
    %1745 = vector.shape_cast %1744 : vector<1x1x8x512xbf16> to vector<8x512xbf16>
    %1746 = arith.extf %1745 : vector<8x512xbf16> to vector<8x512xf32>
    %cst_536 = arith.constant dense<0.000000e+00> : vector<8x512xf32>
    %1747 = tpu.matmul %1672, %6, %cst_536 {dimension_numbers = #tpu.dot_dimension_numbers<[1], [0], [0], [1], [0, 0, 1, 1], [], []>} : vector<8x128xbf16>, vector<128x512xbf16>, vector<8x512xf32> -> vector<8x512xf32>
    %1748 = arith.addf %1746, %1747 : vector<8x512xf32>
    %1749 = vector.extract_strided_slice %1748 {offsets = [0, 0], sizes = [8, 128], strides = [1, 1]} : vector<8x512xf32> to vector<8x128xf32>
    %cst_537 = arith.constant 5.000000e-01 : f32
    %1750 = vector.broadcast %cst_537 : f32 to vector<8x128xf32>
    %1751 = arith.mulf %1750, %1749 : vector<8x128xf32>
    %1752 = math.tanh %1751 : vector<8x128xf32>
    %cst_538 = arith.constant 5.000000e-01 : f32
    %1753 = vector.broadcast %cst_538 : f32 to vector<8x128xf32>
    %1754 = arith.mulf %1753, %1752 : vector<8x128xf32>
    %cst_539 = arith.constant 5.000000e-01 : f32
    %1755 = vector.broadcast %cst_539 : f32 to vector<8x128xf32>
    %1756 = arith.addf %1754, %1755 : vector<8x128xf32>
    %1757 = vector.extract_strided_slice %1748 {offsets = [0, 128], sizes = [8, 128], strides = [1, 1]} : vector<8x512xf32> to vector<8x128xf32>
    %cst_540 = arith.constant 5.000000e-01 : f32
    %1758 = vector.broadcast %cst_540 : f32 to vector<8x128xf32>
    %1759 = arith.mulf %1758, %1757 : vector<8x128xf32>
    %1760 = math.tanh %1759 : vector<8x128xf32>
    %cst_541 = arith.constant 5.000000e-01 : f32
    %1761 = vector.broadcast %cst_541 : f32 to vector<8x128xf32>
    %1762 = arith.mulf %1761, %1760 : vector<8x128xf32>
    %cst_542 = arith.constant 5.000000e-01 : f32
    %1763 = vector.broadcast %cst_542 : f32 to vector<8x128xf32>
    %1764 = arith.addf %1762, %1763 : vector<8x128xf32>
    %1765 = vector.extract_strided_slice %1748 {offsets = [0, 256], sizes = [8, 128], strides = [1, 1]} : vector<8x512xf32> to vector<8x128xf32>
    %1766 = math.tanh %1765 : vector<8x128xf32>
    %1767 = vector.extract_strided_slice %1748 {offsets = [0, 384], sizes = [8, 128], strides = [1, 1]} : vector<8x512xf32> to vector<8x128xf32>
    %cst_543 = arith.constant 5.000000e-01 : f32
    %1768 = vector.broadcast %cst_543 : f32 to vector<8x128xf32>
    %1769 = arith.mulf %1768, %1767 : vector<8x128xf32>
    %1770 = math.tanh %1769 : vector<8x128xf32>
    %cst_544 = arith.constant 5.000000e-01 : f32
    %1771 = vector.broadcast %cst_544 : f32 to vector<8x128xf32>
    %1772 = arith.mulf %1771, %1770 : vector<8x128xf32>
    %cst_545 = arith.constant 5.000000e-01 : f32
    %1773 = vector.broadcast %cst_545 : f32 to vector<8x128xf32>
    %1774 = arith.addf %1772, %1773 : vector<8x128xf32>
    %1775 = arith.mulf %1764, %1675 : vector<8x128xf32>
    %1776 = arith.mulf %1756, %1766 : vector<8x128xf32>
    %1777 = arith.addf %1775, %1776 : vector<8x128xf32>
    %1778 = math.tanh %1777 : vector<8x128xf32>
    %1779 = arith.mulf %1774, %1778 : vector<8x128xf32>
    %1780 = arith.truncf %1779 : vector<8x128xf32> to vector<8x128xbf16>
    %1781 = vector.shape_cast %1742 : vector<8x1xi1> to vector<8x1xi1>
    %1782 = vector.broadcast %1781 : vector<8x1xi1> to vector<8x128xi1>
    %1783 = arith.select %1782, %1780, %1672 : vector<8x128xi1>, vector<8x128xbf16>
    %1784 = vector.shape_cast %1742 : vector<8x1xi1> to vector<8x1xi1>
    %1785 = vector.broadcast %1784 : vector<8x1xi1> to vector<8x128xi1>
    %1786 = arith.select %1785, %1777, %1675 : vector<8x128xi1>, vector<8x128xf32>
    %cst_546 = arith.constant 0.000000e+00 : f32
    %1787 = vector.shape_cast %1742 : vector<8x1xi1> to vector<8x1xi1>
    %1788 = vector.broadcast %1787 : vector<8x1xi1> to vector<8x128xi1>
    %1789 = vector.broadcast %cst_546 : f32 to vector<8x128xf32>
    %1790 = arith.select %1788, %1779, %1789 : vector<8x128xi1>, vector<8x128xf32>
    %1791 = arith.index_cast %1739 : i32 to index
    %c0_547 = arith.constant 0 : index
    %c0_548 = arith.constant 0 : index
    %1792 = vector.load %arg6[%1791, %c0_547, %c0_548] : memref<16x8x128xf32, #tpu.memory_space<vmem>>, vector<1x8x128xf32>
    %1793 = vector.shape_cast %1792 : vector<1x8x128xf32> to vector<8x128xf32>
    %1794 = vector.shape_cast %1790 : vector<8x128xf32> to vector<1x8x128xf32>
    tpu.vector_store %arg6[%1791, %c0_547, %c0_548], %1794 {strides = array<i32>} : memref<16x8x128xf32, #tpu.memory_space<vmem>>, vector<1x8x128xf32>,
    %c16_i32_549 = arith.constant 16 : i32
    %c0_550 = arith.constant 0 : index
    %c0_551 = arith.constant 0 : index
    %c0_552 = arith.constant 0 : index
    %1795 = vector.load %arg9[%c0_550, %c0_551, %c0_552] : memref<2x8x128xbf16, #tpu.memory_space<vmem>>, vector<1x8x128xbf16>
    %1796 = vector.shape_cast %1795 : vector<1x8x128xbf16> to vector<8x128xbf16>
    %1797 = vector.shape_cast %1727 : vector<8x128xbf16> to vector<1x8x128xbf16>
    tpu.vector_store %arg9[%c0_550, %c0_551, %c0_552], %1797 {strides = array<i32>} : memref<2x8x128xbf16, #tpu.memory_space<vmem>>, vector<1x8x128xbf16>,
    %c0_553 = arith.constant 0 : index
    %c0_554 = arith.constant 0 : index
    %c0_555 = arith.constant 0 : index
    %1798 = vector.load %arg10[%c0_553, %c0_554, %c0_555] : memref<2x8x128xf32, #tpu.memory_space<vmem>>, vector<1x8x128xf32>
    %1799 = vector.shape_cast %1798 : vector<1x8x128xf32> to vector<8x128xf32>
    %1800 = vector.shape_cast %1730 : vector<8x128xf32> to vector<1x8x128xf32>
    tpu.vector_store %arg10[%c0_553, %c0_554, %c0_555], %1800 {strides = array<i32>} : memref<2x8x128xf32, #tpu.memory_space<vmem>>, vector<1x8x128xf32>,
    %c1_556 = arith.constant 1 : index
    %c0_557 = arith.constant 0 : index
    %c0_558 = arith.constant 0 : index
    %1801 = vector.load %arg9[%c1_556, %c0_557, %c0_558] : memref<2x8x128xbf16, #tpu.memory_space<vmem>>, vector<1x8x128xbf16>
    %1802 = vector.shape_cast %1801 : vector<1x8x128xbf16> to vector<8x128xbf16>
    %1803 = vector.shape_cast %1783 : vector<8x128xbf16> to vector<1x8x128xbf16>
    tpu.vector_store %arg9[%c1_556, %c0_557, %c0_558], %1803 {strides = array<i32>} : memref<2x8x128xbf16, #tpu.memory_space<vmem>>, vector<1x8x128xbf16>,
    %c1_559 = arith.constant 1 : index
    %c0_560 = arith.constant 0 : index
    %c0_561 = arith.constant 0 : index
    %1804 = vector.load %arg10[%c1_559, %c0_560, %c0_561] : memref<2x8x128xf32, #tpu.memory_space<vmem>>, vector<1x8x128xf32>
    %1805 = vector.shape_cast %1804 : vector<1x8x128xf32> to vector<8x128xf32>
    %1806 = vector.shape_cast %1786 : vector<8x128xf32> to vector<1x8x128xf32>
    tpu.vector_store %arg10[%c1_559, %c0_560, %c0_561], %1806 {strides = array<i32>} : memref<2x8x128xf32, #tpu.memory_space<vmem>>, vector<1x8x128xf32>,
    %c0_i32_562 = arith.constant 0 : i32
    %1807 = arith.cmpi eq, %arg0, %c0_i32_562 : i32
    %1808 = arith.extui %1807 : i1 to i32
    %c0_i32_563 = arith.constant 0 : i32
    %1809 = arith.cmpi ne, %1808, %c0_i32_563 : i32
    scf.if %1809 {
      %1810 = arith.extf %1727 : vector<8x128xbf16> to vector<8x128xf32>
      %c0_564 = arith.constant 0 : index
      %c0_565 = arith.constant 0 : index
      %c0_566 = arith.constant 0 : index
      %1811 = vector.load %arg7[%c0_564, %c0_565, %c0_566] : memref<2x8x128xf32, #tpu.memory_space<vmem>>, vector<1x8x128xf32>
      %1812 = vector.shape_cast %1811 : vector<1x8x128xf32> to vector<8x128xf32>
      %1813 = vector.shape_cast %1810 : vector<8x128xf32> to vector<1x8x128xf32>
      tpu.vector_store %arg7[%c0_564, %c0_565, %c0_566], %1813 {strides = array<i32>} : memref<2x8x128xf32, #tpu.memory_space<vmem>>, vector<1x8x128xf32>,
      %1814 = arith.extf %1783 : vector<8x128xbf16> to vector<8x128xf32>
      %c1_567 = arith.constant 1 : index
      %c0_568 = arith.constant 0 : index
      %c0_569 = arith.constant 0 : index
      %1815 = vector.load %arg7[%c1_567, %c0_568, %c0_569] : memref<2x8x128xf32, #tpu.memory_space<vmem>>, vector<1x8x128xf32>
      %1816 = vector.shape_cast %1815 : vector<1x8x128xf32> to vector<8x128xf32>
      %1817 = vector.shape_cast %1814 : vector<8x128xf32> to vector<1x8x128xf32>
      tpu.vector_store %arg7[%c1_567, %c0_568, %c0_569], %1817 {strides = array<i32>} : memref<2x8x128xf32, #tpu.memory_space<vmem>>, vector<1x8x128xf32>,
      %c0_570 = arith.constant 0 : index
      %c0_571 = arith.constant 0 : index
      %c0_572 = arith.constant 0 : index
      %1818 = vector.load %arg8[%c0_570, %c0_571, %c0_572] : memref<2x8x128xf32, #tpu.memory_space<vmem>>, vector<1x8x128xf32>
      %1819 = vector.shape_cast %1818 : vector<1x8x128xf32> to vector<8x128xf32>
      %1820 = vector.shape_cast %1730 : vector<8x128xf32> to vector<1x8x128xf32>
      tpu.vector_store %arg8[%c0_570, %c0_571, %c0_572], %1820 {strides = array<i32>} : memref<2x8x128xf32, #tpu.memory_space<vmem>>, vector<1x8x128xf32>,
      %c1_573 = arith.constant 1 : index
      %c0_574 = arith.constant 0 : index
      %c0_575 = arith.constant 0 : index
      %1821 = vector.load %arg8[%c1_573, %c0_574, %c0_575] : memref<2x8x128xf32, #tpu.memory_space<vmem>>, vector<1x8x128xf32>
      %1822 = vector.shape_cast %1821 : vector<1x8x128xf32> to vector<8x128xf32>
      %1823 = vector.shape_cast %1786 : vector<8x128xf32> to vector<1x8x128xf32>
      tpu.vector_store %arg8[%c1_573, %c0_574, %c0_575], %1823 {strides = array<i32>} : memref<2x8x128xf32, #tpu.memory_space<vmem>>, vector<1x8x128xf32>,
    } else {
    }
    return
  }
  func.func @transform_0(%arg0: i32) -> (i32, i32, i32, i32) {
    %c0_i32 = arith.constant 0 : i32
    %c0_i32_0 = arith.constant 0 : i32
    %c0_i32_1 = arith.constant 0 : i32
    %c0_i32_2 = arith.constant 0 : i32
    return %c0_i32, %arg0, %c0_i32_0, %c0_i32_1 : i32, i32, i32, i32
  }
  func.func @transform_1(%arg0: i32) -> (i32, i32, i32, i32) {
    %c0_i32 = arith.constant 0 : i32
    %0 = arith.subi %c0_i32, %arg0 : i32
    %c1_i32 = arith.constant 1 : i32
    %c0_i32_0 = arith.constant 0 : i32
    %c0_i32_1 = arith.constant 0 : i32
    %c0_i32_2 = arith.constant 0 : i32
    return %c1_i32, %0, %c0_i32_0, %c0_i32_1 : i32, i32, i32, i32
  }
  func.func @transform_2(%arg0: i32) -> (i32, i32) {
    %c0_i32 = arith.constant 0 : i32
    %c0_i32_0 = arith.constant 0 : i32
    %c0_i32_1 = arith.constant 0 : i32
    return %c0_i32, %c0_i32_0 : i32, i32
  }
  func.func @transform_3(%arg0: i32) -> (i32, i32, i32) {
    %c0_i32 = arith.constant 0 : i32
    %c0_i32_0 = arith.constant 0 : i32
    %c0_i32_1 = arith.constant 0 : i32
    %c0_i32_2 = arith.constant 0 : i32
    return %c0_i32, %c0_i32_0, %c0_i32_1 : i32, i32, i32
  }
  func.func @transform_4(%arg0: i32) -> (i32, i32, i32) {
    %c0_i32 = arith.constant 0 : i32
    %c0_i32_0 = arith.constant 0 : i32
    %c0_i32_1 = arith.constant 0 : i32
    return %arg0, %c0_i32, %c0_i32_0 : i32, i32, i32
  }
  func.func @transform_5(%arg0: i32) -> (i32, i32, i32) {
    %c0_i32 = arith.constant 0 : i32
    %0 = arith.subi %c0_i32, %arg0 : i32
    %c0_i32_0 = arith.constant 0 : i32
    %c0_i32_1 = arith.constant 0 : i32
    %c0_i32_2 = arith.constant 0 : i32
    return %0, %c0_i32_0, %c0_i32_1 : i32, i32, i32
  }
  func.func @transform_6(%arg0: i32) -> (i32, i32, i32) {
    %c0_i32 = arith.constant 0 : i32
    %c0_i32_0 = arith.constant 0 : i32
    %c0_i32_1 = arith.constant 0 : i32
    %c0_i32_2 = arith.constant 0 : i32
    return %c0_i32, %c0_i32_0, %c0_i32_1 : i32, i32, i32
  }
  func.func @transform_7(%arg0: i32) -> (i32, i32, i32) {
    %c0_i32 = arith.constant 0 : i32
    %c0_i32_0 = arith.constant 0 : i32
    %c0_i32_1 = arith.constant 0 : i32
    %c0_i32_2 = arith.constant 0 : i32
    return %c0_i32, %c0_i32_0, %c0_i32_1 : i32, i32, i32
  }
}

</mosaic_0001>

<llo_original>
// kernel: encoder_lstm_forward.2
$region0: #{encoder_lstm_forward.2}
  #allocation0 [shape = 'u32[]', space=smem, size = 0x4, offset = 0x4, fixed_abs, tag = 'smem constant byte address 0x4 - core index']
  #allocation1 [shape = 'u32[144,128]{1,0:T(1,128)}', space=vmem, size = 0x12000, scoped, tag = 'internal scratch']
  #allocation2 [shape = 'bf16[2,8,128]{2,1,0:T(8,128)(2,1)}', space=vmem, size = 0x1000, scoped, tag = 'scratch operand']
  #allocation3 [shape = 'f32[2,8,128]{2,1,0:T(8,128)}', space=vmem, size = 0x2000, scoped, tag = 'scratch operand']
  %s0 = inlined_call_operand.vmem [shape: bf16[2,16,8,512], index: 0, kind: input, shape index: {}, may-alias: {0,1}]
  %s1 = inlined_call_operand.vmem [shape: bf16[2,16,8,512], index: 1, kind: input, shape index: {}, may-alias: {0,1}]
  %s2 = inlined_call_operand.vmem [shape: s32[8,1], index: 2, kind: input, shape index: {}]
  %s3 = inlined_call_operand.vmem [shape: bf16[2,128,512], index: 3, kind: input, shape index: {}]
  %s4 = inlined_call_operand.vmem [shape: f32[16,8,128], index: 4, kind: output, shape index: {0}]
  %s5 = inlined_call_operand.vmem [shape: f32[16,8,128], index: 5, kind: output, shape index: {1}]
  %s6 = inlined_call_operand.vmem [shape: f32[2,8,128], index: 6, kind: output, shape index: {2}]
  %s7 = inlined_call_operand.vmem [shape: f32[2,8,128], index: 7, kind: output, shape index: {3}]
  %8 = xla_tuple %s4, %s5, %s6, %s7
  %s9 = sld [smem:[#allocation0]]
  $region58: #{encoder_lstm_forward.2} parent=0
    _
  %s11 = ssub.s32 1, %s9
  %s12 = scalar_select 0, %s11, %s9
  // Predicated region
  $region2: #{encoder_lstm_forward.2} parent=0 // pred_check
    _
  $region3: #{encoder_lstm_forward.2} parent=0 // pred_check_branch
    %14 = sbr.rel (0) target = $region5
  $region4: #{encoder_lstm_forward.2} parent=0 // pred_region
    _
  $region5: #{encoder_lstm_forward.2} parent=0 // pred_fallthru
    _
  // Predicated region
  $region6: #{encoder_lstm_forward.2} parent=0 // pred_check
    _
  $region7: #{encoder_lstm_forward.2} parent=0 // pred_check_branch
    %16 = sbr.rel (0) target = $region9
  $region8: #{encoder_lstm_forward.2} parent=0 // pred_region
    %s17 = ssub.s32 0, 0
    %s18 = smul.u32 16, %s17
    %p19 = scmp.lt.s32.totalorder %s18, 15
    %s20 = scalar_select %p19, %s18, 15
    %s21 = smul.addr %s20, 4
    %s22 = sadd.s32 %s21, 64
    %s23 = smul.addr %s22, 4
    %s24 = scalar_lea.vmem %s1, %s23
    %s25 = ssub.s32 0, 0
    %s26 = smul.u32 16, %s25
  $region9: #{encoder_lstm_forward.2} parent=0 // pred_fallthru
    _
  // Predicated region
  $region10: #{encoder_lstm_forward.2} parent=0 // pred_check
    _
  $region11: #{encoder_lstm_forward.2} parent=0 // pred_check_branch
    %28 = sbr.rel (0) target = $region13
  $region12: #{encoder_lstm_forward.2} parent=0 // pred_region
    _
  $region13: #{encoder_lstm_forward.2} parent=0 // pred_fallthru
    _
  // Predicated region
  $region14: #{encoder_lstm_forward.2} parent=0 // pred_check
    _
  $region15: #{encoder_lstm_forward.2} parent=0 // pred_check_branch
    %30 = sbr.rel (0) target = $region17
  $region16: #{encoder_lstm_forward.2} parent=0 // pred_region
    _
  $region17: #{encoder_lstm_forward.2} parent=0 // pred_fallthru
    _
  %s31 = ssub.s32 0, 0
  %s32 = smul.u32 16, %s31
  %p33 = scmp.lt.s32.totalorder %s32, 15
  %s34 = scalar_select %p33, %s32, 15
  %s35 = smul.addr %s34, 4
  %s36 = sadd.s32 %s35, 64
  %s37 = smul.addr %s36, 4
  %s38 = scalar_lea.vmem %s1, %s37
  %s39 = ssub.s32 0, 0
  %s40 = smul.u32 16, %s39
  %p41 = scmp.lt.s32.totalorder %s40, 15
  %s42 = scalar_select %p41, %s40, 15
  %s43 = smul.addr %s42, 8
  %s44 = scalar_lea.vmem %s5, %s43
  %s45 = ssub.s32 0, 0
  %s46 = smul.u32 16, %s45
  %p47 = scmp.lt.s32.totalorder %s46, 15
  %s48 = scalar_select %p47, %s46, 15
  %s49 = smul.addr %s48, 4
  %s50 = sadd.s32 %s49, 64
  %s51 = smul.addr %s50, 4
  %s52 = scalar_lea.vmem %s1, %s51
  %s53 = ssub.s32 0, 0
  %s54 = smul.u32 16, %s53
  %s55 = ssub.s32 0, 0
  %s56 = smul.u32 16, %s55
  %p57 = scmp.lt.s32.totalorder %s56, 15
  %s58 = scalar_select %p57, %s56, 15
  %s59 = smul.addr %s58, 8
  %s60 = scalar_lea.vmem %s5, %s59
  %s61 = ssub.s32 0, 0
  %s62 = smul.u32 16, %s61
  %p64 = scmp.eq.s32.totalorder 0, 0
  // Predicated region
  $region18: #{encoder_lstm_forward.2} parent=0 // pred_check
    %p65 = pneg %p64
  $region19: #{encoder_lstm_forward.2} parent=0 // pred_check_branch
    %67 = sbr.rel (%p65) target = $region21
  $region20: #{encoder_lstm_forward.2} parent=0 // pred_region
    %68 = vst [vmem:[#allocation2] sm:$0xf] 0
    %69 = vst [vmem:[#allocation2 + $0x4] sm:$0xf] 0
    %70 = vst [vmem:[#allocation3] sm:$0xff] 0.0
    %71 = vst [vmem:[#allocation3 + $0x8] sm:$0xff] 0.0
  $region21: #{encoder_lstm_forward.2} parent=0 // pred_fallthru
    _
  %v72 = vld [vmem:[%s3] sm:$0xff]
  %v73 = vld [vmem:[%s3 + $0x8] sm:$0xff]
  %v74 = vld [vmem:[%s3 + $0x10] sm:$0xff]
  %v75 = vld [vmem:[%s3 + $0x18] sm:$0xff]
  %v76 = vld [vmem:[%s3 + $0x20] sm:$0xff]
  %v77 = vld [vmem:[%s3 + $0x28] sm:$0xff]
  %v78 = vld [vmem:[%s3 + $0x30] sm:$0xff]
  %v79 = vld [vmem:[%s3 + $0x38] sm:$0xff]
  %v80 = vld [vmem:[%s3 + $0x40] sm:$0xff]
  %v81 = vld [vmem:[%s3 + $0x48] sm:$0xff]
  %v82 = vld [vmem:[%s3 + $0x50] sm:$0xff]
  %v83 = vld [vmem:[%s3 + $0x58] sm:$0xff]
  %v84 = vld [vmem:[%s3 + $0x60] sm:$0xff]
  %v85 = vld [vmem:[%s3 + $0x68] sm:$0xff]
  %v86 = vld [vmem:[%s3 + $0x70] sm:$0xff]
  %v87 = vld [vmem:[%s3 + $0x78] sm:$0xff]
  %v88 = vld [vmem:[%s3 + $0x80] sm:$0xff]
  %v89 = vld [vmem:[%s3 + $0x88] sm:$0xff]
  %v90 = vld [vmem:[%s3 + $0x90] sm:$0xff]
  %v91 = vld [vmem:[%s3 + $0x98] sm:$0xff]
  %v92 = vld [vmem:[%s3 + $0xa0] sm:$0xff]
  %v93 = vld [vmem:[%s3 + $0xa8] sm:$0xff]
  %v94 = vld [vmem:[%s3 + $0xb0] sm:$0xff]
  %v95 = vld [vmem:[%s3 + $0xb8] sm:$0xff]
  %v96 = vld [vmem:[%s3 + $0xc0] sm:$0xff]
  %v97 = vld [vmem:[%s3 + $0xc8] sm:$0xff]
  %v98 = vld [vmem:[%s3 + $0xd0] sm:$0xff]
  %v99 = vld [vmem:[%s3 + $0xd8] sm:$0xff]
  %v100 = vld [vmem:[%s3 + $0xe0] sm:$0xff]
  %v101 = vld [vmem:[%s3 + $0xe8] sm:$0xff]
  %v102 = vld [vmem:[%s3 + $0xf0] sm:$0xff]
  %v103 = vld [vmem:[%s3 + $0xf8] sm:$0xff]
  %s104 = scalar_lea.vmem %s3, 256
  %v105 = vld [vmem:[%s104] sm:$0xff]
  %v106 = vld [vmem:[%s104 + $0x8] sm:$0xff]
  %v107 = vld [vmem:[%s104 + $0x10] sm:$0xff]
  %v108 = vld [vmem:[%s104 + $0x18] sm:$0xff]
  %v109 = vld [vmem:[%s104 + $0x20] sm:$0xff]
  %v110 = vld [vmem:[%s104 + $0x28] sm:$0xff]
  %v111 = vld [vmem:[%s104 + $0x30] sm:$0xff]
  %v112 = vld [vmem:[%s104 + $0x38] sm:$0xff]
  %v113 = vld [vmem:[%s104 + $0x40] sm:$0xff]
  %v114 = vld [vmem:[%s104 + $0x48] sm:$0xff]
  %v115 = vld [vmem:[%s104 + $0x50] sm:$0xff]
  %v116 = vld [vmem:[%s104 + $0x58] sm:$0xff]
  %v117 = vld [vmem:[%s104 + $0x60] sm:$0xff]
  %v118 = vld [vmem:[%s104 + $0x68] sm:$0xff]
  %v119 = vld [vmem:[%s104 + $0x70] sm:$0xff]
  %v120 = vld [vmem:[%s104 + $0x78] sm:$0xff]
  %v121 = vld [vmem:[%s104 + $0x80] sm:$0xff]
  %v122 = vld [vmem:[%s104 + $0x88] sm:$0xff]
  %v123 = vld [vmem:[%s104 + $0x90] sm:$0xff]
  %v124 = vld [vmem:[%s104 + $0x98] sm:$0xff]
  %v125 = vld [vmem:[%s104 + $0xa0] sm:$0xff]
  %v126 = vld [vmem:[%s104 + $0xa8] sm:$0xff]
  %v127 = vld [vmem:[%s104 + $0xb0] sm:$0xff]
  %v128 = vld [vmem:[%s104 + $0xb8] sm:$0xff]
  %v129 = vld [vmem:[%s104 + $0xc0] sm:$0xff]
  %v130 = vld [vmem:[%s104 + $0xc8] sm:$0xff]
  %v131 = vld [vmem:[%s104 + $0xd0] sm:$0xff]
  %v132 = vld [vmem:[%s104 + $0xd8] sm:$0xff]
  %v133 = vld [vmem:[%s104 + $0xe0] sm:$0xff]
  %v134 = vld [vmem:[%s104 + $0xe8] sm:$0xff]
  %v135 = vld [vmem:[%s104 + $0xf0] sm:$0xff]
  %v136 = vld [vmem:[%s104 + $0xf8] sm:$0xff]
  %v137 = vld [vmem:[%s2] sm:$0xff]
  %s138 = smul.u32 0, 16
  %s139 = ssub.s32 0, 0
  %s140 = smul.u32 %s139, 16
  %v141 = vld [vmem:[#allocation2] sm:$0xf]
  %v142 = vld [vmem:[#allocation3] sm:$0xff]
  %s143 = scalar_lea.vmem [#allocation2], 4
  %v144 = vld [vmem:[%s143] sm:$0xf]
  %s145 = scalar_lea.vmem [#allocation3], 8
  %v146 = vld [vmem:[%s145] sm:$0xff]
  %v147 = vstv %s138
  %vm148 = vcmp.lt.s32.totalorder %v147, %v137
  %v149 = vld [vmem:[%s0] sm:$0xff]
  %v150 = vld [vmem:[%s0 + $0x8] sm:$0xff]
  %v151 = vunpack.c.l.bf16 %v149
  %v152 = vunpack.c.h.bf16 %v149
  %v153 = vunpack.c.l.bf16 %v150
  %v154 = vunpack.c.h.bf16 %v150
  %v187 = vunpack.c.l.b16 %v72
  %v188 = vunpack.c.h.b16 %v72
  %v189 = vunpack.c.l.b16 %v73
  %v190 = vunpack.c.h.b16 %v73
  %v191 = vunpack.c.l.b16 %v74
  %v192 = vunpack.c.h.b16 %v74
  %v193 = vunpack.c.l.b16 %v75
  %v194 = vunpack.c.h.b16 %v75
  %v195 = vunpack.c.l.b16 %v76
  %v196 = vunpack.c.h.b16 %v76
  %v197 = vunpack.c.l.b16 %v77
  %v198 = vunpack.c.h.b16 %v77
  %v199 = vunpack.c.l.b16 %v78
  %v200 = vunpack.c.h.b16 %v78
  %v201 = vunpack.c.l.b16 %v79
  %v202 = vunpack.c.h.b16 %v79
  %v203 = vunpack.c.l.b16 %v80
  %v204 = vunpack.c.h.b16 %v80
  %v205 = vunpack.c.l.b16 %v81
  %v206 = vunpack.c.h.b16 %v81
  %v207 = vunpack.c.l.b16 %v82
  %v208 = vunpack.c.h.b16 %v82
  %v209 = vunpack.c.l.b16 %v83
  %v210 = vunpack.c.h.b16 %v83
  %v211 = vunpack.c.l.b16 %v84
  %v212 = vunpack.c.h.b16 %v84
  %v213 = vunpack.c.l.b16 %v85
  %v214 = vunpack.c.h.b16 %v85
  %v215 = vunpack.c.l.b16 %v86
  %v216 = vunpack.c.h.b16 %v86
  %v217 = vunpack.c.l.b16 %v87
  %v218 = vunpack.c.h.b16 %v87
  %v219 = vunpack.c.l.b16 %v88
  %v220 = vunpack.c.h.b16 %v88
  %v221 = vunpack.c.l.b16 %v89
  %v222 = vunpack.c.h.b16 %v89
  %v223 = vunpack.c.l.b16 %v90
  %v224 = vunpack.c.h.b16 %v90
  %v225 = vunpack.c.l.b16 %v91
  %v226 = vunpack.c.h.b16 %v91
  %v227 = vunpack.c.l.b16 %v92
  %v228 = vunpack.c.h.b16 %v92
  %v229 = vunpack.c.l.b16 %v93
  %v230 = vunpack.c.h.b16 %v93
  %v231 = vunpack.c.l.b16 %v94
  %v232 = vunpack.c.h.b16 %v94
  %v233 = vunpack.c.l.b16 %v95
  %v234 = vunpack.c.h.b16 %v95
  %v235 = vunpack.c.l.b16 %v96
  %v236 = vunpack.c.h.b16 %v96
  %v237 = vunpack.c.l.b16 %v97
  %v238 = vunpack.c.h.b16 %v97
  %v239 = vunpack.c.l.b16 %v98
  %v240 = vunpack.c.h.b16 %v98
  %v241 = vunpack.c.l.b16 %v99
  %v242 = vunpack.c.h.b16 %v99
  %v243 = vunpack.c.l.b16 %v100
  %v244 = vunpack.c.h.b16 %v100
  %v245 = vunpack.c.l.b16 %v101
  %v246 = vunpack.c.h.b16 %v101
  %v247 = vunpack.c.l.b16 %v102
  %v248 = vunpack.c.h.b16 %v102
  %v249 = vunpack.c.l.b16 %v103
  %v250 = vunpack.c.h.b16 %v103
  %v251 = vpack.c.b16 %v191, %v187
  %v252 = vpack.c.b16 %v192, %v188
  %v253 = vpack.c.b16 %v193, %v189
  %v254 = vpack.c.b16 %v194, %v190
  %v255 = vpack.c.b16 %v199, %v195
  %v256 = vpack.c.b16 %v200, %v196
  %v257 = vpack.c.b16 %v201, %v197
  %v258 = vpack.c.b16 %v202, %v198
  %v259 = vpack.c.b16 %v207, %v203
  %v260 = vpack.c.b16 %v208, %v204
  %v261 = vpack.c.b16 %v209, %v205
  %v262 = vpack.c.b16 %v210, %v206
  %v263 = vpack.c.b16 %v215, %v211
  %v264 = vpack.c.b16 %v216, %v212
  %v265 = vpack.c.b16 %v217, %v213
  %v266 = vpack.c.b16 %v218, %v214
  %v267 = vpack.c.b16 %v223, %v219
  %v268 = vpack.c.b16 %v224, %v220
  %v269 = vpack.c.b16 %v225, %v221
  %v270 = vpack.c.b16 %v226, %v222
  %v271 = vpack.c.b16 %v231, %v227
  %v272 = vpack.c.b16 %v232, %v228
  %v273 = vpack.c.b16 %v233, %v229
  %v274 = vpack.c.b16 %v234, %v230
  %v275 = vpack.c.b16 %v239, %v235
  %v276 = vpack.c.b16 %v240, %v236
  %v277 = vpack.c.b16 %v241, %v237
  %v278 = vpack.c.b16 %v242, %v238
  %v279 = vpack.c.b16 %v247, %v243
  %v280 = vpack.c.b16 %v248, %v244
  %v281 = vpack.c.b16 %v249, %v245
  %v282 = vpack.c.b16 %v250, %v246
  %315 = vmatprep.subr.bf16.mxu0 %v252
  %316 = vmatpush1.bf16.msra.mxu0 %v251
  %317 = vmatprep.subr.bf16.mxu0 %v256
  %318 = vmatpush1.bf16.msra.mxu0 %v255
  %319 = vmatprep.subr.bf16.mxu0 %v260
  %320 = vmatpush1.bf16.msra.mxu0 %v259
  %321 = vmatprep.subr.bf16.mxu0 %v264
  %322 = vmatpush1.bf16.msra.mxu0 %v263
  %323 = vmatprep.subr.bf16.mxu0 %v268
  %324 = vmatpush1.bf16.msra.mxu0 %v267
  %325 = vmatprep.subr.bf16.mxu0 %v272
  %326 = vmatpush1.bf16.msra.mxu0 %v271
  %327 = vmatprep.subr.bf16.mxu0 %v276
  %328 = vmatpush1.bf16.msra.mxu0 %v275
  %329 = vmatprep.subr.bf16.mxu0 %v280
  %330 = vmatpush1.bf16.msra.mxu0 %v279
  %331 = vmatprep.subr.bf16.mxu0 0
  %332 = vmatpush1.bf16.msra.mxu0 0
  %333 = vmatprep.subr.bf16.mxu0 0
  %334 = vmatpush1.bf16.msra.mxu0 0
  %335 = vmatprep.subr.bf16.mxu0 0
  %336 = vmatpush1.bf16.msra.mxu0 0
  %337 = vmatprep.subr.bf16.mxu0 0
  %338 = vmatpush1.bf16.msra.mxu0 0
  %339 = vmatprep.subr.bf16.mxu0 0
  %340 = vmatpush1.bf16.msra.mxu0 0
  %341 = vmatprep.subr.bf16.mxu0 0
  %342 = vmatpush1.bf16.msra.mxu0 0
  %343 = vmatprep.subr.bf16.mxu0 0
  %344 = vmatpush1.bf16.msra.mxu0 0
  %345 = vmatprep.subr.bf16.mxu0 0
  %346 = vmatpush1.bf16.msra.mxu0 0
  %347 = vmatprep.mubr.bf16.mxu0 0
  %348 = vmatmul.mubr.bf16.gmra.mrb[0].mxu0 %v141
  %v349 = vpop.f32.mrb[0].mxu0
  %v350 = vadd.f32 0.0, %v349
  %v351 = vpop.f32.mrb[0].mxu0
  %v352 = vadd.f32 0.0, %v351
  %v353 = vpop.f32.mrb[0].mxu0
  %v354 = vpop.f32.mrb[0].mxu0
  %355 = vdwg.mxu0
  %356 = vmatprep.subr.bf16.mxu0 %v254
  %357 = vmatpush1.bf16.msra.mxu0 %v253
  %358 = vmatprep.subr.bf16.mxu0 %v258
  %359 = vmatpush1.bf16.msra.mxu0 %v257
  %360 = vmatprep.subr.bf16.mxu0 %v262
  %361 = vmatpush1.bf16.msra.mxu0 %v261
  %362 = vmatprep.subr.bf16.mxu0 %v266
  %363 = vmatpush1.bf16.msra.mxu0 %v265
  %364 = vmatprep.subr.bf16.mxu0 %v270
  %365 = vmatpush1.bf16.msra.mxu0 %v269
  %366 = vmatprep.subr.bf16.mxu0 %v274
  %367 = vmatpush1.bf16.msra.mxu0 %v273
  %368 = vmatprep.subr.bf16.mxu0 %v278
  %369 = vmatpush1.bf16.msra.mxu0 %v277
  %370 = vmatprep.subr.bf16.mxu0 %v282
  %371 = vmatpush1.bf16.msra.mxu0 %v281
  %372 = vmatprep.subr.bf16.mxu0 0
  %373 = vmatpush1.bf16.msra.mxu0 0
  %374 = vmatprep.subr.bf16.mxu0 0
  %375 = vmatpush1.bf16.msra.mxu0 0
  %376 = vmatprep.subr.bf16.mxu0 0
  %377 = vmatpush1.bf16.msra.mxu0 0
  %378 = vmatprep.subr.bf16.mxu0 0
  %379 = vmatpush1.bf16.msra.mxu0 0
  %380 = vmatprep.subr.bf16.mxu0 0
  %381 = vmatpush1.bf16.msra.mxu0 0
  %382 = vmatprep.subr.bf16.mxu0 0
  %383 = vmatpush1.bf16.msra.mxu0 0
  %384 = vmatprep.subr.bf16.mxu0 0
  %385 = vmatpush1.bf16.msra.mxu0 0
  %386 = vmatprep.subr.bf16.mxu0 0
  %387 = vmatpush1.bf16.msra.mxu0 0
  %388 = vmatprep.mubr.bf16.mxu0 0
  %389 = vmatmul.mubr.bf16.gmra.mrb[0].mxu0 %v141
  %v390 = vpop.f32.mrb[0].mxu0
  %v391 = vadd.f32 0.0, %v390
  %v392 = vpop.f32.mrb[0].mxu0
  %v393 = vadd.f32 0.0, %v392
  %v394 = vpop.f32.mrb[0].mxu0
  %v395 = vpop.f32.mrb[0].mxu0
  %396 = vdwg.mxu0
  %v397 = vadd.f32 %v151, %v350
  %v398 = vadd.f32 %v152, %v352
  %v399 = vadd.f32 %v153, %v391
  %v400 = vadd.f32 %v154, %v393
  %v401 = vmul.f32 %v397, 0.5
  %v402 = vtanh.pop %v401
  %v403 = vmul.f32 %v402, 0.5
  %v404 = vadd.f32 %v403, 0.5
  %v405 = vmul.f32 %v398, 0.5
  %v406 = vtanh.pop %v405
  %v407 = vmul.f32 %v406, 0.5
  %v408 = vadd.f32 %v407, 0.5
  %v409 = vtanh.pop %v399
  %v410 = vmul.f32 %v400, 0.5
  %v411 = vtanh.pop %v410
  %v412 = vmul.f32 %v411, 0.5
  %v413 = vadd.f32 %v412, 0.5
  %v414 = vmul.f32 %v408, %v142
  %v415 = vmul.f32 %v404, %v409
  %v416 = vadd.f32 %v414, %v415
  %v417 = vtanh.pop %v416
  %v418 = vmul.f32 %v413, %v417
  %v419 = vpack.c.bf16 %v418, %v418
  %v420 = vsel %vm148, 1, 0
  %421 = vset.pattern.permute.xlu0 0
  %422 = vperm.xlu0 %421, %v420
  %v423 = vpop.permute.xlu0 %422
  %vm424 = vcmp.eq.s32.totalorder %v423, 1
  %vm425 = vmpackc.low %vm424, %vm424
  %v426 = vsel %vm425, %v419, %v141
  %v427 = vsel %vm424, %v416, %v142
  %v428 = vsel %vm424, %v418, 0.0
  %429 = vst [vmem:[%s4] sm:$0xff] %v428
  %s430 = sadd.s32 %s140, 15
  %v431 = vstv %s430
  %vm432 = vcmp.lt.s32.totalorder %v431, %v137
  %s433 = scalar_lea.vmem %s52, 240
  %v434 = vld [vmem:[%s433] sm:$0xff]
  %v435 = vld [vmem:[%s433 + $0x8] sm:$0xff]
  %v436 = vunpack.c.l.bf16 %v434
  %v437 = vunpack.c.h.bf16 %v434
  %v438 = vunpack.c.l.bf16 %v435
  %v439 = vunpack.c.h.bf16 %v435
  %v472 = vunpack.c.l.b16 %v105
  %v473 = vunpack.c.h.b16 %v105
  %v474 = vunpack.c.l.b16 %v106
  %v475 = vunpack.c.h.b16 %v106
  %v476 = vunpack.c.l.b16 %v107
  %v477 = vunpack.c.h.b16 %v107
  %v478 = vunpack.c.l.b16 %v108
  %v479 = vunpack.c.h.b16 %v108
  %v480 = vunpack.c.l.b16 %v109
  %v481 = vunpack.c.h.b16 %v109
  %v482 = vunpack.c.l.b16 %v110
  %v483 = vunpack.c.h.b16 %v110
  %v484 = vunpack.c.l.b16 %v111
  %v485 = vunpack.c.h.b16 %v111
  %v486 = vunpack.c.l.b16 %v112
  %v487 = vunpack.c.h.b16 %v112
  %v488 = vunpack.c.l.b16 %v113
  %v489 = vunpack.c.h.b16 %v113
  %v490 = vunpack.c.l.b16 %v114
  %v491 = vunpack.c.h.b16 %v114
  %v492 = vunpack.c.l.b16 %v115
  %v493 = vunpack.c.h.b16 %v115
  %v494 = vunpack.c.l.b16 %v116
  %v495 = vunpack.c.h.b16 %v116
  %v496 = vunpack.c.l.b16 %v117
  %v497 = vunpack.c.h.b16 %v117
  %v498 = vunpack.c.l.b16 %v118
  %v499 = vunpack.c.h.b16 %v118
  %v500 = vunpack.c.l.b16 %v119
  %v501 = vunpack.c.h.b16 %v119
  %v502 = vunpack.c.l.b16 %v120
  %v503 = vunpack.c.h.b16 %v120
  %v504 = vunpack.c.l.b16 %v121
  %v505 = vunpack.c.h.b16 %v121
  %v506 = vunpack.c.l.b16 %v122
  %v507 = vunpack.c.h.b16 %v122
  %v508 = vunpack.c.l.b16 %v123
  %v509 = vunpack.c.h.b16 %v123
  %v510 = vunpack.c.l.b16 %v124
  %v511 = vunpack.c.h.b16 %v124
  %v512 = vunpack.c.l.b16 %v125
  %v513 = vunpack.c.h.b16 %v125
  %v514 = vunpack.c.l.b16 %v126
  %v515 = vunpack.c.h.b16 %v126
  %v516 = vunpack.c.l.b16 %v127
  %v517 = vunpack.c.h.b16 %v127
  %v518 = vunpack.c.l.b16 %v128
  %v519 = vunpack.c.h.b16 %v128
  %v520 = vunpack.c.l.b16 %v129
  %v521 = vunpack.c.h.b16 %v129
  %v522 = vunpack.c.l.b16 %v130
  %v523 = vunpack.c.h.b16 %v130
  %v524 = vunpack.c.l.b16 %v131
  %v525 = vunpack.c.h.b16 %v131
  %v526 = vunpack.c.l.b16 %v132
  %v527 = vunpack.c.h.b16 %v132
  %v528 = vunpack.c.l.b16 %v133
  %v529 = vunpack.c.h.b16 %v133
  %v530 = vunpack.c.l.b16 %v134
  %v531 = vunpack.c.h.b16 %v134
  %v532 = vunpack.c.l.b16 %v135
  %v533 = vunpack.c.h.b16 %v135
  %v534 = vunpack.c.l.b16 %v136
  %v535 = vunpack.c.h.b16 %v136
  %v536 = vpack.c.b16 %v476, %v472
  %v537 = vpack.c.b16 %v477, %v473
  %v538 = vpack.c.b16 %v478, %v474
  %v539 = vpack.c.b16 %v479, %v475
  %v540 = vpack.c.b16 %v484, %v480
  %v541 = vpack.c.b16 %v485, %v481
  %v542 = vpack.c.b16 %v486, %v482
  %v543 = vpack.c.b16 %v487, %v483
  %v544 = vpack.c.b16 %v492, %v488
  %v545 = vpack.c.b16 %v493, %v489
  %v546 = vpack.c.b16 %v494, %v490
  %v547 = vpack.c.b16 %v495, %v491
  %v548 = vpack.c.b16 %v500, %v496
  %v549 = vpack.c.b16 %v501, %v497
  %v550 = vpack.c.b16 %v502, %v498
  %v551 = vpack.c.b16 %v503, %v499
  %v552 = vpack.c.b16 %v508, %v504
  %v553 = vpack.c.b16 %v509, %v505
  %v554 = vpack.c.b16 %v510, %v506
  %v555 = vpack.c.b16 %v511, %v507
  %v556 = vpack.c.b16 %v516, %v512
  %v557 = vpack.c.b16 %v517, %v513
  %v558 = vpack.c.b16 %v518, %v514
  %v559 = vpack.c.b16 %v519, %v515
  %v560 = vpack.c.b16 %v524, %v520
  %v561 = vpack.c.b16 %v525, %v521
  %v562 = vpack.c.b16 %v526, %v522
  %v563 = vpack.c.b16 %v527, %v523
  %v564 = vpack.c.b16 %v532, %v528
  %v565 = vpack.c.b16 %v533, %v529
  %v566 = vpack.c.b16 %v534, %v530
  %v567 = vpack.c.b16 %v535, %v531
  %600 = vmatprep.subr.bf16.mxu0 %v537
  %601 = vmatpush1.bf16.msra.mxu0 %v536
  %602 = vmatprep.subr.bf16.mxu0 %v541
  %603 = vmatpush1.bf16.msra.mxu0 %v540
  %604 = vmatprep.subr.bf16.mxu0 %v545
  %605 = vmatpush1.bf16.msra.mxu0 %v544
  %606 = vmatprep.subr.bf16.mxu0 %v549
  %607 = vmatpush1.bf16.msra.mxu0 %v548
  %608 = vmatprep.subr.bf16.mxu0 %v553
  %609 = vmatpush1.bf16.msra.mxu0 %v552
  %610 = vmatprep.subr.bf16.mxu0 %v557
  %611 = vmatpush1.bf16.msra.mxu0 %v556
  %612 = vmatprep.subr.bf16.mxu0 %v561
  %613 = vmatpush1.bf16.msra.mxu0 %v560
  %614 = vmatprep.subr.bf16.mxu0 %v565
  %615 = vmatpush1.bf16.msra.mxu0 %v564
  %616 = vmatprep.subr.bf16.mxu0 0
  %617 = vmatpush1.bf16.msra.mxu0 0
  %618 = vmatprep.subr.bf16.mxu0 0
  %619 = vmatpush1.bf16.msra.mxu0 0
  %620 = vmatprep.subr.bf16.mxu0 0
  %621 = vmatpush1.bf16.msra.mxu0 0
  %622 = vmatprep.subr.bf16.mxu0 0
  %623 = vmatpush1.bf16.msra.mxu0 0
  %624 = vmatprep.subr.bf16.mxu0 0
  %625 = vmatpush1.bf16.msra.mxu0 0
  %626 = vmatprep.subr.bf16.mxu0 0
  %627 = vmatpush1.bf16.msra.mxu0 0
  %628 = vmatprep.subr.bf16.mxu0 0
  %629 = vmatpush1.bf16.msra.mxu0 0
  %630 = vmatprep.subr.bf16.mxu0 0
  %631 = vmatpush1.bf16.msra.mxu0 0
  %632 = vmatprep.mubr.bf16.mxu0 0
  %633 = vmatmul.mubr.bf16.gmra.mrb[0].mxu0 %v144
  %v634 = vpop.f32.mrb[0].mxu0
  %v635 = vadd.f32 0.0, %v634
  %v636 = vpop.f32.mrb[0].mxu0
  %v637 = vadd.f32 0.0, %v636
  %v638 = vpop.f32.mrb[0].mxu0
  %v639 = vpop.f32.mrb[0].mxu0
  %640 = vdwg.mxu0
  %641 = vmatprep.subr.bf16.mxu0 %v539
  %642 = vmatpush1.bf16.msra.mxu0 %v538
  %643 = vmatprep.subr.bf16.mxu0 %v543
  %644 = vmatpush1.bf16.msra.mxu0 %v542
  %645 = vmatprep.subr.bf16.mxu0 %v547
  %646 = vmatpush1.bf16.msra.mxu0 %v546
  %647 = vmatprep.subr.bf16.mxu0 %v551
  %648 = vmatpush1.bf16.msra.mxu0 %v550
  %649 = vmatprep.subr.bf16.mxu0 %v555
  %650 = vmatpush1.bf16.msra.mxu0 %v554
  %651 = vmatprep.subr.bf16.mxu0 %v559
  %652 = vmatpush1.bf16.msra.mxu0 %v558
  %653 = vmatprep.subr.bf16.mxu0 %v563
  %654 = vmatpush1.bf16.msra.mxu0 %v562
  %655 = vmatprep.subr.bf16.mxu0 %v567
  %656 = vmatpush1.bf16.msra.mxu0 %v566
  %657 = vmatprep.subr.bf16.mxu0 0
  %658 = vmatpush1.bf16.msra.mxu0 0
  %659 = vmatprep.subr.bf16.mxu0 0
  %660 = vmatpush1.bf16.msra.mxu0 0
  %661 = vmatprep.subr.bf16.mxu0 0
  %662 = vmatpush1.bf16.msra.mxu0 0
  %663 = vmatprep.subr.bf16.mxu0 0
  %664 = vmatpush1.bf16.msra.mxu0 0
  %665 = vmatprep.subr.bf16.mxu0 0
  %666 = vmatpush1.bf16.msra.mxu0 0
  %667 = vmatprep.subr.bf16.mxu0 0
  %668 = vmatpush1.bf16.msra.mxu0 0
  %669 = vmatprep.subr.bf16.mxu0 0
  %670 = vmatpush1.bf16.msra.mxu0 0
  %671 = vmatprep.subr.bf16.mxu0 0
  %672 = vmatpush1.bf16.msra.mxu0 0
  %673 = vmatprep.mubr.bf16.mxu0 0
  %674 = vmatmul.mubr.bf16.gmra.mrb[0].mxu0 %v144
  %v675 = vpop.f32.mrb[0].mxu0
  %v676 = vadd.f32 0.0, %v675
  %v677 = vpop.f32.mrb[0].mxu0
  %v678 = vadd.f32 0.0, %v677
  %v679 = vpop.f32.mrb[0].mxu0
  %v680 = vpop.f32.mrb[0].mxu0
  %681 = vdwg.mxu0
  %v682 = vadd.f32 %v436, %v635
  %v683 = vadd.f32 %v437, %v637
  %v684 = vadd.f32 %v438, %v676
  %v685 = vadd.f32 %v439, %v678
  %v686 = vmul.f32 %v682, 0.5
  %v687 = vtanh.pop %v686
  %v688 = vmul.f32 %v687, 0.5
  %v689 = vadd.f32 %v688, 0.5
  %v690 = vmul.f32 %v683, 0.5
  %v691 = vtanh.pop %v690
  %v692 = vmul.f32 %v691, 0.5
  %v693 = vadd.f32 %v692, 0.5
  %v694 = vtanh.pop %v684
  %v695 = vmul.f32 %v685, 0.5
  %v696 = vtanh.pop %v695
  %v697 = vmul.f32 %v696, 0.5
  %v698 = vadd.f32 %v697, 0.5
  %v699 = vmul.f32 %v693, %v146
  %v700 = vmul.f32 %v689, %v694
  %v701 = vadd.f32 %v699, %v700
  %v702 = vtanh.pop %v701
  %v703 = vmul.f32 %v698, %v702
  %v704 = vpack.c.bf16 %v703, %v703
  %v705 = vsel %vm432, 1, 0
  %706 = vset.pattern.permute.xlu0 0
  %707 = vperm.xlu0 %706, %v705
  %v708 = vpop.permute.xlu0 %707
  %vm709 = vcmp.eq.s32.totalorder %v708, 1
  %vm710 = vmpackc.low %vm709, %vm709
  %v711 = vsel %vm710, %v704, %v144
  %v712 = vsel %vm709, %v701, %v146
  %v713 = vsel %vm709, %v703, 0.0
  %s714 = scalar_lea.vmem %s60, 120
  %715 = vst [vmem:[%s714] sm:$0xff] %v713
  %s716 = sadd.s32 %s138, 1
  %v717 = vstv %s716
  %vm718 = vcmp.lt.s32.totalorder %v717, %v137
  %s719 = scalar_lea.vmem %s0, 16
  %v720 = vld [vmem:[%s719] sm:$0xff]
  %v721 = vld [vmem:[%s719 + $0x8] sm:$0xff]
  %v722 = vunpack.c.l.bf16 %v720
  %v723 = vunpack.c.h.bf16 %v720
  %v724 = vunpack.c.l.bf16 %v721
  %v725 = vunpack.c.h.bf16 %v721
  %726 = vmatprep.subr.bf16.mxu0 %v252
  %727 = vmatpush1.bf16.msra.mxu0 %v251
  %728 = vmatprep.subr.bf16.mxu0 %v256
  %729 = vmatpush1.bf16.msra.mxu0 %v255
  %730 = vmatprep.subr.bf16.mxu0 %v260
  %731 = vmatpush1.bf16.msra.mxu0 %v259
  %732 = vmatprep.subr.bf16.mxu0 %v264
  %733 = vmatpush1.bf16.msra.mxu0 %v263
  %734 = vmatprep.subr.bf16.mxu0 %v268
  %735 = vmatpush1.bf16.msra.mxu0 %v267
  %736 = vmatprep.subr.bf16.mxu0 %v272
  %737 = vmatpush1.bf16.msra.mxu0 %v271
  %738 = vmatprep.subr.bf16.mxu0 %v276
  %739 = vmatpush1.bf16.msra.mxu0 %v275
  %740 = vmatprep.subr.bf16.mxu0 %v280
  %741 = vmatpush1.bf16.msra.mxu0 %v279
  %742 = vmatprep.subr.bf16.mxu0 0
  %743 = vmatpush1.bf16.msra.mxu0 0
  %744 = vmatprep.subr.bf16.mxu0 0
  %745 = vmatpush1.bf16.msra.mxu0 0
  %746 = vmatprep.subr.bf16.mxu0 0
  %747 = vmatpush1.bf16.msra.mxu0 0
  %748 = vmatprep.subr.bf16.mxu0 0
  %749 = vmatpush1.bf16.msra.mxu0 0
  %750 = vmatprep.subr.bf16.mxu0 0
  %751 = vmatpush1.bf16.msra.mxu0 0
  %752 = vmatprep.subr.bf16.mxu0 0
  %753 = vmatpush1.bf16.msra.mxu0 0
  %754 = vmatprep.subr.bf16.mxu0 0
  %755 = vmatpush1.bf16.msra.mxu0 0
  %756 = vmatprep.subr.bf16.mxu0 0
  %757 = vmatpush1.bf16.msra.mxu0 0
  %758 = vmatprep.mubr.bf16.mxu0 0
  %759 = vmatmul.mubr.bf16.gmra.mrb[0].mxu0 %v426
  %v760 = vpop.f32.mrb[0].mxu0
  %v761 = vadd.f32 0.0, %v760
  %v762 = vpop.f32.mrb[0].mxu0
  %v763 = vadd.f32 0.0, %v762
  %v764 = vpop.f32.mrb[0].mxu0
  %v765 = vpop.f32.mrb[0].mxu0
  %766 = vdwg.mxu0
  %767 = vmatprep.subr.bf16.mxu0 %v254
  %768 = vmatpush1.bf16.msra.mxu0 %v253
  %769 = vmatprep.subr.bf16.mxu0 %v258
  %770 = vmatpush1.bf16.msra.mxu0 %v257
  %771 = vmatprep.subr.bf16.mxu0 %v262
  %772 = vmatpush1.bf16.msra.mxu0 %v261
  %773 = vmatprep.subr.bf16.mxu0 %v266
  %774 = vmatpush1.bf16.msra.mxu0 %v265
  %775 = vmatprep.subr.bf16.mxu0 %v270
  %776 = vmatpush1.bf16.msra.mxu0 %v269
  %777 = vmatprep.subr.bf16.mxu0 %v274
  %778 = vmatpush1.bf16.msra.mxu0 %v273
  %779 = vmatprep.subr.bf16.mxu0 %v278
  %780 = vmatpush1.bf16.msra.mxu0 %v277
  %781 = vmatprep.subr.bf16.mxu0 %v282
  %782 = vmatpush1.bf16.msra.mxu0 %v281
  %783 = vmatprep.subr.bf16.mxu0 0
  %784 = vmatpush1.bf16.msra.mxu0 0
  %785 = vmatprep.subr.bf16.mxu0 0
  %786 = vmatpush1.bf16.msra.mxu0 0
  %787 = vmatprep.subr.bf16.mxu0 0
  %788 = vmatpush1.bf16.msra.mxu0 0
  %789 = vmatprep.subr.bf16.mxu0 0
  %790 = vmatpush1.bf16.msra.mxu0 0
  %791 = vmatprep.subr.bf16.mxu0 0
  %792 = vmatpush1.bf16.msra.mxu0 0
  %793 = vmatprep.subr.bf16.mxu0 0
  %794 = vmatpush1.bf16.msra.mxu0 0
  %795 = vmatprep.subr.bf16.mxu0 0
  %796 = vmatpush1.bf16.msra.mxu0 0
  %797 = vmatprep.subr.bf16.mxu0 0
  %798 = vmatpush1.bf16.msra.mxu0 0
  %799 = vmatprep.mubr.bf16.mxu0 0
  %800 = vmatmul.mubr.bf16.gmra.mrb[0].mxu0 %v426
  %v801 = vpop.f32.mrb[0].mxu0
  %v802 = vadd.f32 0.0, %v801
  %v803 = vpop.f32.mrb[0].mxu0
  %v804 = vadd.f32 0.0, %v803
  %v805 = vpop.f32.mrb[0].mxu0
  %v806 = vpop.f32.mrb[0].mxu0
  %807 = vdwg.mxu0
  %v808 = vadd.f32 %v722, %v761
  %v809 = vadd.f32 %v723, %v763
  %v810 = vadd.f32 %v724, %v802
  %v811 = vadd.f32 %v725, %v804
  %v812 = vmul.f32 %v808, 0.5
  %v813 = vtanh.pop %v812
  %v814 = vmul.f32 %v813, 0.5
  %v815 = vadd.f32 %v814, 0.5
  %v816 = vmul.f32 %v809, 0.5
  %v817 = vtanh.pop %v816
  %v818 = vmul.f32 %v817, 0.5
  %v819 = vadd.f32 %v818, 0.5
  %v820 = vtanh.pop %v810
  %v821 = vmul.f32 %v811, 0.5
  %v822 = vtanh.pop %v821
  %v823 = vmul.f32 %v822, 0.5
  %v824 = vadd.f32 %v823, 0.5
  %v825 = vmul.f32 %v819, %v427
  %v826 = vmul.f32 %v815, %v820
  %v827 = vadd.f32 %v825, %v826
  %v828 = vtanh.pop %v827
  %v829 = vmul.f32 %v824, %v828
  %v830 = vpack.c.bf16 %v829, %v829
  %v831 = vsel %vm718, 1, 0
  %832 = vset.pattern.permute.xlu0 0
  %833 = vperm.xlu0 %832, %v831
  %v834 = vpop.permute.xlu0 %833
  %vm835 = vcmp.eq.s32.totalorder %v834, 1
  %vm836 = vmpackc.low %vm835, %vm835
  %v837 = vsel %vm836, %v830, %v426
  %v838 = vsel %vm835, %v827, %v427
  %v839 = vsel %vm835, %v829, 0.0
  %s840 = scalar_lea.vmem %s4, 8
  %841 = vst [vmem:[%s840] sm:$0xff] %v839
  %s842 = sadd.s32 %s140, 14
  %v843 = vstv %s842
  %vm844 = vcmp.lt.s32.totalorder %v843, %v137
  %s845 = scalar_lea.vmem %s52, 224
  %v846 = vld [vmem:[%s845] sm:$0xff]
  %v847 = vld [vmem:[%s845 + $0x8] sm:$0xff]
  %v848 = vunpack.c.l.bf16 %v846
  %v849 = vunpack.c.h.bf16 %v846
  %v850 = vunpack.c.l.bf16 %v847
  %v851 = vunpack.c.h.bf16 %v847
  %852 = vmatprep.subr.bf16.mxu0 %v537
  %853 = vmatpush1.bf16.msra.mxu0 %v536
  %854 = vmatprep.subr.bf16.mxu0 %v541
  %855 = vmatpush1.bf16.msra.mxu0 %v540
  %856 = vmatprep.subr.bf16.mxu0 %v545
  %857 = vmatpush1.bf16.msra.mxu0 %v544
  %858 = vmatprep.subr.bf16.mxu0 %v549
  %859 = vmatpush1.bf16.msra.mxu0 %v548
  %860 = vmatprep.subr.bf16.mxu0 %v553
  %861 = vmatpush1.bf16.msra.mxu0 %v552
  %862 = vmatprep.subr.bf16.mxu0 %v557
  %863 = vmatpush1.bf16.msra.mxu0 %v556
  %864 = vmatprep.subr.bf16.mxu0 %v561
  %865 = vmatpush1.bf16.msra.mxu0 %v560
  %866 = vmatprep.subr.bf16.mxu0 %v565
  %867 = vmatpush1.bf16.msra.mxu0 %v564
  %868 = vmatprep.subr.bf16.mxu0 0
  %869 = vmatpush1.bf16.msra.mxu0 0
  %870 = vmatprep.subr.bf16.mxu0 0
  %871 = vmatpush1.bf16.msra.mxu0 0
  %872 = vmatprep.subr.bf16.mxu0 0
  %873 = vmatpush1.bf16.msra.mxu0 0
  %874 = vmatprep.subr.bf16.mxu0 0
  %875 = vmatpush1.bf16.msra.mxu0 0
  %876 = vmatprep.subr.bf16.mxu0 0
  %877 = vmatpush1.bf16.msra.mxu0 0
  %878 = vmatprep.subr.bf16.mxu0 0
  %879 = vmatpush1.bf16.msra.mxu0 0
  %880 = vmatprep.subr.bf16.mxu0 0
  %881 = vmatpush1.bf16.msra.mxu0 0
  %882 = vmatprep.subr.bf16.mxu0 0
  %883 = vmatpush1.bf16.msra.mxu0 0
  %884 = vmatprep.mubr.bf16.mxu0 0
  %885 = vmatmul.mubr.bf16.gmra.mrb[0].mxu0 %v711
  %v886 = vpop.f32.mrb[0].mxu0
  %v887 = vadd.f32 0.0, %v886
  %v888 = vpop.f32.mrb[0].mxu0
  %v889 = vadd.f32 0.0, %v888
  %v890 = vpop.f32.mrb[0].mxu0
  %v891 = vpop.f32.mrb[0].mxu0
  %892 = vdwg.mxu0
  %893 = vmatprep.subr.bf16.mxu0 %v539
  %894 = vmatpush1.bf16.msra.mxu0 %v538
  %895 = vmatprep.subr.bf16.mxu0 %v543
  %896 = vmatpush1.bf16.msra.mxu0 %v542
  %897 = vmatprep.subr.bf16.mxu0 %v547
  %898 = vmatpush1.bf16.msra.mxu0 %v546
  %899 = vmatprep.subr.bf16.mxu0 %v551
  %900 = vmatpush1.bf16.msra.mxu0 %v550
  %901 = vmatprep.subr.bf16.mxu0 %v555
  %902 = vmatpush1.bf16.msra.mxu0 %v554
  %903 = vmatprep.subr.bf16.mxu0 %v559
  %904 = vmatpush1.bf16.msra.mxu0 %v558
  %905 = vmatprep.subr.bf16.mxu0 %v563
  %906 = vmatpush1.bf16.msra.mxu0 %v562
  %907 = vmatprep.subr.bf16.mxu0 %v567
  %908 = vmatpush1.bf16.msra.mxu0 %v566
  %909 = vmatprep.subr.bf16.mxu0 0
  %910 = vmatpush1.bf16.msra.mxu0 0
  %911 = vmatprep.subr.bf16.mxu0 0
  %912 = vmatpush1.bf16.msra.mxu0 0
  %913 = vmatprep.subr.bf16.mxu0 0
  %914 = vmatpush1.bf16.msra.mxu0 0
  %915 = vmatprep.subr.bf16.mxu0 0
  %916 = vmatpush1.bf16.msra.mxu0 0
  %917 = vmatprep.subr.bf16.mxu0 0
  %918 = vmatpush1.bf16.msra.mxu0 0
  %919 = vmatprep.subr.bf16.mxu0 0
  %920 = vmatpush1.bf16.msra.mxu0 0
  %921 = vmatprep.subr.bf16.mxu0 0
  %922 = vmatpush1.bf16.msra.mxu0 0
  %923 = vmatprep.subr.bf16.mxu0 0
  %924 = vmatpush1.bf16.msra.mxu0 0
  %925 = vmatprep.mubr.bf16.mxu0 0
  %926 = vmatmul.mubr.bf16.gmra.mrb[0].mxu0 %v711
  %v927 = vpop.f32.mrb[0].mxu0
  %v928 = vadd.f32 0.0, %v927
  %v929 = vpop.f32.mrb[0].mxu0
  %v930 = vadd.f32 0.0, %v929
  %v931 = vpop.f32.mrb[0].mxu0
  %v932 = vpop.f32.mrb[0].mxu0
  %933 = vdwg.mxu0
  %v934 = vadd.f32 %v848, %v887
  %v935 = vadd.f32 %v849, %v889
  %v936 = vadd.f32 %v850, %v928
  %v937 = vadd.f32 %v851, %v930
  %v938 = vmul.f32 %v934, 0.5
  %v939 = vtanh.pop %v938
  %v940 = vmul.f32 %v939, 0.5
  %v941 = vadd.f32 %v940, 0.5
  %v942 = vmul.f32 %v935, 0.5
  %v943 = vtanh.pop %v942
  %v944 = vmul.f32 %v943, 0.5
  %v945 = vadd.f32 %v944, 0.5
  %v946 = vtanh.pop %v936
  %v947 = vmul.f32 %v937, 0.5
  %v948 = vtanh.pop %v947
  %v949 = vmul.f32 %v948, 0.5
  %v950 = vadd.f32 %v949, 0.5
  %v951 = vmul.f32 %v945, %v712
  %v952 = vmul.f32 %v941, %v946
  %v953 = vadd.f32 %v951, %v952
  %v954 = vtanh.pop %v953
  %v955 = vmul.f32 %v950, %v954
  %v956 = vpack.c.bf16 %v955, %v955
  %v957 = vsel %vm844, 1, 0
  %958 = vset.pattern.permute.xlu0 0
  %959 = vperm.xlu0 %958, %v957
  %v960 = vpop.permute.xlu0 %959
  %vm961 = vcmp.eq.s32.totalorder %v960, 1
  %vm962 = vmpackc.low %vm961, %vm961
  %v963 = vsel %vm962, %v956, %v711
  %v964 = vsel %vm961, %v953, %v712
  %v965 = vsel %vm961, %v955, 0.0
  %s966 = scalar_lea.vmem %s60, 112
  %967 = vst [vmem:[%s966] sm:$0xff] %v965
  %s968 = sadd.s32 %s138, 2
  %v969 = vstv %s968
  %vm970 = vcmp.lt.s32.totalorder %v969, %v137
  %s971 = scalar_lea.vmem %s0, 32
  %v972 = vld [vmem:[%s971] sm:$0xff]
  %v973 = vld [vmem:[%s971 + $0x8] sm:$0xff]
  %v974 = vunpack.c.l.bf16 %v972
  %v975 = vunpack.c.h.bf16 %v972
  %v976 = vunpack.c.l.bf16 %v973
  %v977 = vunpack.c.h.bf16 %v973
  %978 = vmatprep.subr.bf16.mxu0 %v252
  %979 = vmatpush1.bf16.msra.mxu0 %v251
  %980 = vmatprep.subr.bf16.mxu0 %v256
  %981 = vmatpush1.bf16.msra.mxu0 %v255
  %982 = vmatprep.subr.bf16.mxu0 %v260
  %983 = vmatpush1.bf16.msra.mxu0 %v259
  %984 = vmatprep.subr.bf16.mxu0 %v264
  %985 = vmatpush1.bf16.msra.mxu0 %v263
  %986 = vmatprep.subr.bf16.mxu0 %v268
  %987 = vmatpush1.bf16.msra.mxu0 %v267
  %988 = vmatprep.subr.bf16.mxu0 %v272
  %989 = vmatpush1.bf16.msra.mxu0 %v271
  %990 = vmatprep.subr.bf16.mxu0 %v276
  %991 = vmatpush1.bf16.msra.mxu0 %v275
  %992 = vmatprep.subr.bf16.mxu0 %v280
  %993 = vmatpush1.bf16.msra.mxu0 %v279
  %994 = vmatprep.subr.bf16.mxu0 0
  %995 = vmatpush1.bf16.msra.mxu0 0
  %996 = vmatprep.subr.bf16.mxu0 0
  %997 = vmatpush1.bf16.msra.mxu0 0
  %998 = vmatprep.subr.bf16.mxu0 0
  %999 = vmatpush1.bf16.msra.mxu0 0
  %1000 = vmatprep.subr.bf16.mxu0 0
  %1001 = vmatpush1.bf16.msra.mxu0 0
  %1002 = vmatprep.subr.bf16.mxu0 0
  %1003 = vmatpush1.bf16.msra.mxu0 0
  %1004 = vmatprep.subr.bf16.mxu0 0
  %1005 = vmatpush1.bf16.msra.mxu0 0
  %1006 = vmatprep.subr.bf16.mxu0 0
  %1007 = vmatpush1.bf16.msra.mxu0 0
  %1008 = vmatprep.subr.bf16.mxu0 0
  %1009 = vmatpush1.bf16.msra.mxu0 0
  %1010 = vmatprep.mubr.bf16.mxu0 0
  %1011 = vmatmul.mubr.bf16.gmra.mrb[0].mxu0 %v837
  %v1012 = vpop.f32.mrb[0].mxu0
  %v1013 = vadd.f32 0.0, %v1012
  %v1014 = vpop.f32.mrb[0].mxu0
  %v1015 = vadd.f32 0.0, %v1014
  %v1016 = vpop.f32.mrb[0].mxu0
  %v1017 = vpop.f32.mrb[0].mxu0
  %1018 = vdwg.mxu0
  %1019 = vmatprep.subr.bf16.mxu0 %v254
  %1020 = vmatpush1.bf16.msra.mxu0 %v253
  %1021 = vmatprep.subr.bf16.mxu0 %v258
  %1022 = vmatpush1.bf16.msra.mxu0 %v257
  %1023 = vmatprep.subr.bf16.mxu0 %v262
  %1024 = vmatpush1.bf16.msra.mxu0 %v261
  %1025 = vmatprep.subr.bf16.mxu0 %v266
  %1026 = vmatpush1.bf16.msra.mxu0 %v265
  %1027 = vmatprep.subr.bf16.mxu0 %v270
  %1028 = vmatpush1.bf16.msra.mxu0 %v269
  %1029 = vmatprep.subr.bf16.mxu0 %v274
  %1030 = vmatpush1.bf16.msra.mxu0 %v273
  %1031 = vmatprep.subr.bf16.mxu0 %v278
  %1032 = vmatpush1.bf16.msra.mxu0 %v277
  %1033 = vmatprep.subr.bf16.mxu0 %v282
  %1034 = vmatpush1.bf16.msra.mxu0 %v281
  %1035 = vmatprep.subr.bf16.mxu0 0
  %1036 = vmatpush1.bf16.msra.mxu0 0
  %1037 = vmatprep.subr.bf16.mxu0 0
  %1038 = vmatpush1.bf16.msra.mxu0 0
  %1039 = vmatprep.subr.bf16.mxu0 0
  %1040 = vmatpush1.bf16.msra.mxu0 0
  %1041 = vmatprep.subr.bf16.mxu0 0
  %1042 = vmatpush1.bf16.msra.mxu0 0
  %1043 = vmatprep.subr.bf16.mxu0 0
  %1044 = vmatpush1.bf16.msra.mxu0 0
  %1045 = vmatprep.subr.bf16.mxu0 0
  %1046 = vmatpush1.bf16.msra.mxu0 0
  %1047 = vmatprep.subr.bf16.mxu0 0
  %1048 = vmatpush1.bf16.msra.mxu0 0
  %1049 = vmatprep.subr.bf16.mxu0 0
  %1050 = vmatpush1.bf16.msra.mxu0 0
  %1051 = vmatprep.mubr.bf16.mxu0 0
  %1052 = vmatmul.mubr.bf16.gmra.mrb[0].mxu0 %v837
  %v1053 = vpop.f32.mrb[0].mxu0
  %v1054 = vadd.f32 0.0, %v1053
  %v1055 = vpop.f32.mrb[0].mxu0
  %v1056 = vadd.f32 0.0, %v1055
  %v1057 = vpop.f32.mrb[0].mxu0
  %v1058 = vpop.f32.mrb[0].mxu0
  %1059 = vdwg.mxu0
  %v1060 = vadd.f32 %v974, %v1013
  %v1061 = vadd.f32 %v975, %v1015
  %v1062 = vadd.f32 %v976, %v1054
  %v1063 = vadd.f32 %v977, %v1056
  %v1064 = vmul.f32 %v1060, 0.5
  %v1065 = vtanh.pop %v1064
  %v1066 = vmul.f32 %v1065, 0.5
  %v1067 = vadd.f32 %v1066, 0.5
  %v1068 = vmul.f32 %v1061, 0.5
  %v1069 = vtanh.pop %v1068
  %v1070 = vmul.f32 %v1069, 0.5
  %v1071 = vadd.f32 %v1070, 0.5
  %v1072 = vtanh.pop %v1062
  %v1073 = vmul.f32 %v1063, 0.5
  %v1074 = vtanh.pop %v1073
  %v1075 = vmul.f32 %v1074, 0.5
  %v1076 = vadd.f32 %v1075, 0.5
  %v1077 = vmul.f32 %v1071, %v838
  %v1078 = vmul.f32 %v1067, %v1072
  %v1079 = vadd.f32 %v1077, %v1078
  %v1080 = vtanh.pop %v1079
  %v1081 = vmul.f32 %v1076, %v1080
  %v1082 = vpack.c.bf16 %v1081, %v1081
  %v1083 = vsel %vm970, 1, 0
  %1084 = vset.pattern.permute.xlu0 0
  %1085 = vperm.xlu0 %1084, %v1083
  %v1086 = vpop.permute.xlu0 %1085
  %vm1087 = vcmp.eq.s32.totalorder %v1086, 1
  %vm1088 = vmpackc.low %vm1087, %vm1087
  %v1089 = vsel %vm1088, %v1082, %v837
  %v1090 = vsel %vm1087, %v1079, %v838
  %v1091 = vsel %vm1087, %v1081, 0.0
  %s1092 = scalar_lea.vmem %s4, 16
  %1093 = vst [vmem:[%s1092] sm:$0xff] %v1091
  %s1094 = sadd.s32 %s140, 13
  %v1095 = vstv %s1094
  %vm1096 = vcmp.lt.s32.totalorder %v1095, %v137
  %s1097 = scalar_lea.vmem %s52, 208
  %v1098 = vld [vmem:[%s1097] sm:$0xff]
  %v1099 = vld [vmem:[%s1097 + $0x8] sm:$0xff]
  %v1100 = vunpack.c.l.bf16 %v1098
  %v1101 = vunpack.c.h.bf16 %v1098
  %v1102 = vunpack.c.l.bf16 %v1099
  %v1103 = vunpack.c.h.bf16 %v1099
  %1104 = vmatprep.subr.bf16.mxu0 %v537
  %1105 = vmatpush1.bf16.msra.mxu0 %v536
  %1106 = vmatprep.subr.bf16.mxu0 %v541
  %1107 = vmatpush1.bf16.msra.mxu0 %v540
  %1108 = vmatprep.subr.bf16.mxu0 %v545
  %1109 = vmatpush1.bf16.msra.mxu0 %v544
  %1110 = vmatprep.subr.bf16.mxu0 %v549
  %1111 = vmatpush1.bf16.msra.mxu0 %v548
  %1112 = vmatprep.subr.bf16.mxu0 %v553
  %1113 = vmatpush1.bf16.msra.mxu0 %v552
  %1114 = vmatprep.subr.bf16.mxu0 %v557
  %1115 = vmatpush1.bf16.msra.mxu0 %v556
  %1116 = vmatprep.subr.bf16.mxu0 %v561
  %1117 = vmatpush1.bf16.msra.mxu0 %v560
  %1118 = vmatprep.subr.bf16.mxu0 %v565
  %1119 = vmatpush1.bf16.msra.mxu0 %v564
  %1120 = vmatprep.subr.bf16.mxu0 0
  %1121 = vmatpush1.bf16.msra.mxu0 0
  %1122 = vmatprep.subr.bf16.mxu0 0
  %1123 = vmatpush1.bf16.msra.mxu0 0
  %1124 = vmatprep.subr.bf16.mxu0 0
  %1125 = vmatpush1.bf16.msra.mxu0 0
  %1126 = vmatprep.subr.bf16.mxu0 0
  %1127 = vmatpush1.bf16.msra.mxu0 0
  %1128 = vmatprep.subr.bf16.mxu0 0
  %1129 = vmatpush1.bf16.msra.mxu0 0
  %1130 = vmatprep.subr.bf16.mxu0 0
  %1131 = vmatpush1.bf16.msra.mxu0 0
  %1132 = vmatprep.subr.bf16.mxu0 0
  %1133 = vmatpush1.bf16.msra.mxu0 0
  %1134 = vmatprep.subr.bf16.mxu0 0
  %1135 = vmatpush1.bf16.msra.mxu0 0
  %1136 = vmatprep.mubr.bf16.mxu0 0
  %1137 = vmatmul.mubr.bf16.gmra.mrb[0].mxu0 %v963
  %v1138 = vpop.f32.mrb[0].mxu0
  %v1139 = vadd.f32 0.0, %v1138
  %v1140 = vpop.f32.mrb[0].mxu0
  %v1141 = vadd.f32 0.0, %v1140
  %v1142 = vpop.f32.mrb[0].mxu0
  %v1143 = vpop.f32.mrb[0].mxu0
  %1144 = vdwg.mxu0
  %1145 = vmatprep.subr.bf16.mxu0 %v539
  %1146 = vmatpush1.bf16.msra.mxu0 %v538
  %1147 = vmatprep.subr.bf16.mxu0 %v543
  %1148 = vmatpush1.bf16.msra.mxu0 %v542
  %1149 = vmatprep.subr.bf16.mxu0 %v547
  %1150 = vmatpush1.bf16.msra.mxu0 %v546
  %1151 = vmatprep.subr.bf16.mxu0 %v551
  %1152 = vmatpush1.bf16.msra.mxu0 %v550
  %1153 = vmatprep.subr.bf16.mxu0 %v555
  %1154 = vmatpush1.bf16.msra.mxu0 %v554
  %1155 = vmatprep.subr.bf16.mxu0 %v559
  %1156 = vmatpush1.bf16.msra.mxu0 %v558
  %1157 = vmatprep.subr.bf16.mxu0 %v563
  %1158 = vmatpush1.bf16.msra.mxu0 %v562
  %1159 = vmatprep.subr.bf16.mxu0 %v567
  %1160 = vmatpush1.bf16.msra.mxu0 %v566
  %1161 = vmatprep.subr.bf16.mxu0 0
  %1162 = vmatpush1.bf16.msra.mxu0 0
  %1163 = vmatprep.subr.bf16.mxu0 0
  %1164 = vmatpush1.bf16.msra.mxu0 0
  %1165 = vmatprep.subr.bf16.mxu0 0
  %1166 = vmatpush1.bf16.msra.mxu0 0
  %1167 = vmatprep.subr.bf16.mxu0 0
  %1168 = vmatpush1.bf16.msra.mxu0 0
  %1169 = vmatprep.subr.bf16.mxu0 0
  %1170 = vmatpush1.bf16.msra.mxu0 0
  %1171 = vmatprep.subr.bf16.mxu0 0
  %1172 = vmatpush1.bf16.msra.mxu0 0
  %1173 = vmatprep.subr.bf16.mxu0 0
  %1174 = vmatpush1.bf16.msra.mxu0 0
  %1175 = vmatprep.subr.bf16.mxu0 0
  %1176 = vmatpush1.bf16.msra.mxu0 0
  %1177 = vmatprep.mubr.bf16.mxu0 0
  %1178 = vmatmul.mubr.bf16.gmra.mrb[0].mxu0 %v963
  %v1179 = vpop.f32.mrb[0].mxu0
  %v1180 = vadd.f32 0.0, %v1179
  %v1181 = vpop.f32.mrb[0].mxu0
  %v1182 = vadd.f32 0.0, %v1181
  %v1183 = vpop.f32.mrb[0].mxu0
  %v1184 = vpop.f32.mrb[0].mxu0
  %1185 = vdwg.mxu0
  %v1186 = vadd.f32 %v1100, %v1139
  %v1187 = vadd.f32 %v1101, %v1141
  %v1188 = vadd.f32 %v1102, %v1180
  %v1189 = vadd.f32 %v1103, %v1182
  %v1190 = vmul.f32 %v1186, 0.5
  %v1191 = vtanh.pop %v1190
  %v1192 = vmul.f32 %v1191, 0.5
  %v1193 = vadd.f32 %v1192, 0.5
  %v1194 = vmul.f32 %v1187, 0.5
  %v1195 = vtanh.pop %v1194
  %v1196 = vmul.f32 %v1195, 0.5
  %v1197 = vadd.f32 %v1196, 0.5
  %v1198 = vtanh.pop %v1188
  %v1199 = vmul.f32 %v1189, 0.5
  %v1200 = vtanh.pop %v1199
  %v1201 = vmul.f32 %v1200, 0.5
  %v1202 = vadd.f32 %v1201, 0.5
  %v1203 = vmul.f32 %v1197, %v964
  %v1204 = vmul.f32 %v1193, %v1198
  %v1205 = vadd.f32 %v1203, %v1204
  %v1206 = vtanh.pop %v1205
  %v1207 = vmul.f32 %v1202, %v1206
  %v1208 = vpack.c.bf16 %v1207, %v1207
  %v1209 = vsel %vm1096, 1, 0
  %1210 = vset.pattern.permute.xlu0 0
  %1211 = vperm.xlu0 %1210, %v1209
  %v1212 = vpop.permute.xlu0 %1211
  %vm1213 = vcmp.eq.s32.totalorder %v1212, 1
  %vm1214 = vmpackc.low %vm1213, %vm1213
  %v1215 = vsel %vm1214, %v1208, %v963
  %v1216 = vsel %vm1213, %v1205, %v964
  %v1217 = vsel %vm1213, %v1207, 0.0
  %s1218 = scalar_lea.vmem %s60, 104
  %1219 = vst [vmem:[%s1218] sm:$0xff] %v1217
  %s1220 = sadd.s32 %s138, 3
  %v1221 = vstv %s1220
  %vm1222 = vcmp.lt.s32.totalorder %v1221, %v137
  %s1223 = scalar_lea.vmem %s0, 48
  %v1224 = vld [vmem:[%s1223] sm:$0xff]
  %v1225 = vld [vmem:[%s1223 + $0x8] sm:$0xff]
  %v1226 = vunpack.c.l.bf16 %v1224
  %v1227 = vunpack.c.h.bf16 %v1224
  %v1228 = vunpack.c.l.bf16 %v1225
  %v1229 = vunpack.c.h.bf16 %v1225
  %1230 = vmatprep.subr.bf16.mxu0 %v252
  %1231 = vmatpush1.bf16.msra.mxu0 %v251
  %1232 = vmatprep.subr.bf16.mxu0 %v256
  %1233 = vmatpush1.bf16.msra.mxu0 %v255
  %1234 = vmatprep.subr.bf16.mxu0 %v260
  %1235 = vmatpush1.bf16.msra.mxu0 %v259
  %1236 = vmatprep.subr.bf16.mxu0 %v264
  %1237 = vmatpush1.bf16.msra.mxu0 %v263
  %1238 = vmatprep.subr.bf16.mxu0 %v268
  %1239 = vmatpush1.bf16.msra.mxu0 %v267
  %1240 = vmatprep.subr.bf16.mxu0 %v272
  %1241 = vmatpush1.bf16.msra.mxu0 %v271
  %1242 = vmatprep.subr.bf16.mxu0 %v276
  %1243 = vmatpush1.bf16.msra.mxu0 %v275
  %1244 = vmatprep.subr.bf16.mxu0 %v280
  %1245 = vmatpush1.bf16.msra.mxu0 %v279
  %1246 = vmatprep.subr.bf16.mxu0 0
  %1247 = vmatpush1.bf16.msra.mxu0 0
  %1248 = vmatprep.subr.bf16.mxu0 0
  %1249 = vmatpush1.bf16.msra.mxu0 0
  %1250 = vmatprep.subr.bf16.mxu0 0
  %1251 = vmatpush1.bf16.msra.mxu0 0
  %1252 = vmatprep.subr.bf16.mxu0 0
  %1253 = vmatpush1.bf16.msra.mxu0 0
  %1254 = vmatprep.subr.bf16.mxu0 0
  %1255 = vmatpush1.bf16.msra.mxu0 0
  %1256 = vmatprep.subr.bf16.mxu0 0
  %1257 = vmatpush1.bf16.msra.mxu0 0
  %1258 = vmatprep.subr.bf16.mxu0 0
  %1259 = vmatpush1.bf16.msra.mxu0 0
  %1260 = vmatprep.subr.bf16.mxu0 0
  %1261 = vmatpush1.bf16.msra.mxu0 0
  %1262 = vmatprep.mubr.bf16.mxu0 0
  %1263 = vmatmul.mubr.bf16.gmra.mrb[0].mxu0 %v1089
  %v1264 = vpop.f32.mrb[0].mxu0
  %v1265 = vadd.f32 0.0, %v1264
  %v1266 = vpop.f32.mrb[0].mxu0
  %v1267 = vadd.f32 0.0, %v1266
  %v1268 = vpop.f32.mrb[0].mxu0
  %v1269 = vpop.f32.mrb[0].mxu0
  %1270 = vdwg.mxu0
  %1271 = vmatprep.subr.bf16.mxu0 %v254
  %1272 = vmatpush1.bf16.msra.mxu0 %v253
  %1273 = vmatprep.subr.bf16.mxu0 %v258
  %1274 = vmatpush1.bf16.msra.mxu0 %v257
  %1275 = vmatprep.subr.bf16.mxu0 %v262
  %1276 = vmatpush1.bf16.msra.mxu0 %v261
  %1277 = vmatprep.subr.bf16.mxu0 %v266
  %1278 = vmatpush1.bf16.msra.mxu0 %v265
  %1279 = vmatprep.subr.bf16.mxu0 %v270
  %1280 = vmatpush1.bf16.msra.mxu0 %v269
  %1281 = vmatprep.subr.bf16.mxu0 %v274
  %1282 = vmatpush1.bf16.msra.mxu0 %v273
  %1283 = vmatprep.subr.bf16.mxu0 %v278
  %1284 = vmatpush1.bf16.msra.mxu0 %v277
  %1285 = vmatprep.subr.bf16.mxu0 %v282
  %1286 = vmatpush1.bf16.msra.mxu0 %v281
  %1287 = vmatprep.subr.bf16.mxu0 0
  %1288 = vmatpush1.bf16.msra.mxu0 0
  %1289 = vmatprep.subr.bf16.mxu0 0
  %1290 = vmatpush1.bf16.msra.mxu0 0
  %1291 = vmatprep.subr.bf16.mxu0 0
  %1292 = vmatpush1.bf16.msra.mxu0 0
  %1293 = vmatprep.subr.bf16.mxu0 0
  %1294 = vmatpush1.bf16.msra.mxu0 0
  %1295 = vmatprep.subr.bf16.mxu0 0
  %1296 = vmatpush1.bf16.msra.mxu0 0
  %1297 = vmatprep.subr.bf16.mxu0 0
  %1298 = vmatpush1.bf16.msra.mxu0 0
  %1299 = vmatprep.subr.bf16.mxu0 0
  %1300 = vmatpush1.bf16.msra.mxu0 0
  %1301 = vmatprep.subr.bf16.mxu0 0
  %1302 = vmatpush1.bf16.msra.mxu0 0
  %1303 = vmatprep.mubr.bf16.mxu0 0
  %1304 = vmatmul.mubr.bf16.gmra.mrb[0].mxu0 %v1089
  %v1305 = vpop.f32.mrb[0].mxu0
  %v1306 = vadd.f32 0.0, %v1305
  %v1307 = vpop.f32.mrb[0].mxu0
  %v1308 = vadd.f32 0.0, %v1307
  %v1309 = vpop.f32.mrb[0].mxu0
  %v1310 = vpop.f32.mrb[0].mxu0
  %1311 = vdwg.mxu0
  %v1312 = vadd.f32 %v1226, %v1265
  %v1313 = vadd.f32 %v1227, %v1267
  %v1314 = vadd.f32 %v1228, %v1306
  %v1315 = vadd.f32 %v1229, %v1308
  %v1316 = vmul.f32 %v1312, 0.5
  %v1317 = vtanh.pop %v1316
  %v1318 = vmul.f32 %v1317, 0.5
  %v1319 = vadd.f32 %v1318, 0.5
  %v1320 = vmul.f32 %v1313, 0.5
  %v1321 = vtanh.pop %v1320
  %v1322 = vmul.f32 %v1321, 0.5
  %v1323 = vadd.f32 %v1322, 0.5
  %v1324 = vtanh.pop %v1314
  %v1325 = vmul.f32 %v1315, 0.5
  %v1326 = vtanh.pop %v1325
  %v1327 = vmul.f32 %v1326, 0.5
  %v1328 = vadd.f32 %v1327, 0.5
  %v1329 = vmul.f32 %v1323, %v1090
  %v1330 = vmul.f32 %v1319, %v1324
  %v1331 = vadd.f32 %v1329, %v1330
  %v1332 = vtanh.pop %v1331
  %v1333 = vmul.f32 %v1328, %v1332
  %v1334 = vpack.c.bf16 %v1333, %v1333
  %v1335 = vsel %vm1222, 1, 0
  %1336 = vset.pattern.permute.xlu0 0
  %1337 = vperm.xlu0 %1336, %v1335
  %v1338 = vpop.permute.xlu0 %1337
  %vm1339 = vcmp.eq.s32.totalorder %v1338, 1
  %vm1340 = vmpackc.low %vm1339, %vm1339
  %v1341 = vsel %vm1340, %v1334, %v1089
  %v1342 = vsel %vm1339, %v1331, %v1090
  %v1343 = vsel %vm1339, %v1333, 0.0
  %s1344 = scalar_lea.vmem %s4, 24
  %1345 = vst [vmem:[%s1344] sm:$0xff] %v1343
  %s1346 = sadd.s32 %s140, 12
  %v1347 = vstv %s1346
  %vm1348 = vcmp.lt.s32.totalorder %v1347, %v137
  %s1349 = scalar_lea.vmem %s52, 192
  %v1350 = vld [vmem:[%s1349] sm:$0xff]
  %v1351 = vld [vmem:[%s1349 + $0x8] sm:$0xff]
  %v1352 = vunpack.c.l.bf16 %v1350
  %v1353 = vunpack.c.h.bf16 %v1350
  %v1354 = vunpack.c.l.bf16 %v1351
  %v1355 = vunpack.c.h.bf16 %v1351
  %1356 = vmatprep.subr.bf16.mxu0 %v537
  %1357 = vmatpush1.bf16.msra.mxu0 %v536
  %1358 = vmatprep.subr.bf16.mxu0 %v541
  %1359 = vmatpush1.bf16.msra.mxu0 %v540
  %1360 = vmatprep.subr.bf16.mxu0 %v545
  %1361 = vmatpush1.bf16.msra.mxu0 %v544
  %1362 = vmatprep.subr.bf16.mxu0 %v549
  %1363 = vmatpush1.bf16.msra.mxu0 %v548
  %1364 = vmatprep.subr.bf16.mxu0 %v553
  %1365 = vmatpush1.bf16.msra.mxu0 %v552
  %1366 = vmatprep.subr.bf16.mxu0 %v557
  %1367 = vmatpush1.bf16.msra.mxu0 %v556
  %1368 = vmatprep.subr.bf16.mxu0 %v561
  %1369 = vmatpush1.bf16.msra.mxu0 %v560
  %1370 = vmatprep.subr.bf16.mxu0 %v565
  %1371 = vmatpush1.bf16.msra.mxu0 %v564
  %1372 = vmatprep.subr.bf16.mxu0 0
  %1373 = vmatpush1.bf16.msra.mxu0 0
  %1374 = vmatprep.subr.bf16.mxu0 0
  %1375 = vmatpush1.bf16.msra.mxu0 0
  %1376 = vmatprep.subr.bf16.mxu0 0
  %1377 = vmatpush1.bf16.msra.mxu0 0
  %1378 = vmatprep.subr.bf16.mxu0 0
  %1379 = vmatpush1.bf16.msra.mxu0 0
  %1380 = vmatprep.subr.bf16.mxu0 0
  %1381 = vmatpush1.bf16.msra.mxu0 0
  %1382 = vmatprep.subr.bf16.mxu0 0
  %1383 = vmatpush1.bf16.msra.mxu0 0
  %1384 = vmatprep.subr.bf16.mxu0 0
  %1385 = vmatpush1.bf16.msra.mxu0 0
  %1386 = vmatprep.subr.bf16.mxu0 0
  %1387 = vmatpush1.bf16.msra.mxu0 0
  %1388 = vmatprep.mubr.bf16.mxu0 0
  %1389 = vmatmul.mubr.bf16.gmra.mrb[0].mxu0 %v1215
  %v1390 = vpop.f32.mrb[0].mxu0
  %v1391 = vadd.f32 0.0, %v1390
  %v1392 = vpop.f32.mrb[0].mxu0
  %v1393 = vadd.f32 0.0, %v1392
  %v1394 = vpop.f32.mrb[0].mxu0
  %v1395 = vpop.f32.mrb[0].mxu0
  %1396 = vdwg.mxu0
  %1397 = vmatprep.subr.bf16.mxu0 %v539
  %1398 = vmatpush1.bf16.msra.mxu0 %v538
  %1399 = vmatprep.subr.bf16.mxu0 %v543
  %1400 = vmatpush1.bf16.msra.mxu0 %v542
  %1401 = vmatprep.subr.bf16.mxu0 %v547
  %1402 = vmatpush1.bf16.msra.mxu0 %v546
  %1403 = vmatprep.subr.bf16.mxu0 %v551
  %1404 = vmatpush1.bf16.msra.mxu0 %v550
  %1405 = vmatprep.subr.bf16.mxu0 %v555
  %1406 = vmatpush1.bf16.msra.mxu0 %v554
  %1407 = vmatprep.subr.bf16.mxu0 %v559
  %1408 = vmatpush1.bf16.msra.mxu0 %v558
  %1409 = vmatprep.subr.bf16.mxu0 %v563
  %1410 = vmatpush1.bf16.msra.mxu0 %v562
  %1411 = vmatprep.subr.bf16.mxu0 %v567
  %1412 = vmatpush1.bf16.msra.mxu0 %v566
  %1413 = vmatprep.subr.bf16.mxu0 0
  %1414 = vmatpush1.bf16.msra.mxu0 0
  %1415 = vmatprep.subr.bf16.mxu0 0
  %1416 = vmatpush1.bf16.msra.mxu0 0
  %1417 = vmatprep.subr.bf16.mxu0 0
  %1418 = vmatpush1.bf16.msra.mxu0 0
  %1419 = vmatprep.subr.bf16.mxu0 0
  %1420 = vmatpush1.bf16.msra.mxu0 0
  %1421 = vmatprep.subr.bf16.mxu0 0
  %1422 = vmatpush1.bf16.msra.mxu0 0
  %1423 = vmatprep.subr.bf16.mxu0 0
  %1424 = vmatpush1.bf16.msra.mxu0 0
  %1425 = vmatprep.subr.bf16.mxu0 0
  %1426 = vmatpush1.bf16.msra.mxu0 0
  %1427 = vmatprep.subr.bf16.mxu0 0
  %1428 = vmatpush1.bf16.msra.mxu0 0
  %1429 = vmatprep.mubr.bf16.mxu0 0
  %1430 = vmatmul.mubr.bf16.gmra.mrb[0].mxu0 %v1215
  %v1431 = vpop.f32.mrb[0].mxu0
  %v1432 = vadd.f32 0.0, %v1431
  %v1433 = vpop.f32.mrb[0].mxu0
  %v1434 = vadd.f32 0.0, %v1433
  %v1435 = vpop.f32.mrb[0].mxu0
  %v1436 = vpop.f32.mrb[0].mxu0
  %1437 = vdwg.mxu0
  %v1438 = vadd.f32 %v1352, %v1391
  %v1439 = vadd.f32 %v1353, %v1393
  %v1440 = vadd.f32 %v1354, %v1432
  %v1441 = vadd.f32 %v1355, %v1434
  %v1442 = vmul.f32 %v1438, 0.5
  %v1443 = vtanh.pop %v1442
  %v1444 = vmul.f32 %v1443, 0.5
  %v1445 = vadd.f32 %v1444, 0.5
  %v1446 = vmul.f32 %v1439, 0.5
  %v1447 = vtanh.pop %v1446
  %v1448 = vmul.f32 %v1447, 0.5
  %v1449 = vadd.f32 %v1448, 0.5
  %v1450 = vtanh.pop %v1440
  %v1451 = vmul.f32 %v1441, 0.5
  %v1452 = vtanh.pop %v1451
  %v1453 = vmul.f32 %v1452, 0.5
  %v1454 = vadd.f32 %v1453, 0.5
  %v1455 = vmul.f32 %v1449, %v1216
  %v1456 = vmul.f32 %v1445, %v1450
  %v1457 = vadd.f32 %v1455, %v1456
  %v1458 = vtanh.pop %v1457
  %v1459 = vmul.f32 %v1454, %v1458
  %v1460 = vpack.c.bf16 %v1459, %v1459
  %v1461 = vsel %vm1348, 1, 0
  %1462 = vset.pattern.permute.xlu0 0
  %1463 = vperm.xlu0 %1462, %v1461
  %v1464 = vpop.permute.xlu0 %1463
  %vm1465 = vcmp.eq.s32.totalorder %v1464, 1
  %vm1466 = vmpackc.low %vm1465, %vm1465
  %v1467 = vsel %vm1466, %v1460, %v1215
  %v1468 = vsel %vm1465, %v1457, %v1216
  %v1469 = vsel %vm1465, %v1459, 0.0
  %s1470 = scalar_lea.vmem %s60, 96
  %1471 = vst [vmem:[%s1470] sm:$0xff] %v1469
  %s1472 = sadd.s32 %s138, 4
  %v1473 = vstv %s1472
  %vm1474 = vcmp.lt.s32.totalorder %v1473, %v137
  %s1475 = scalar_lea.vmem %s0, 64
  %v1476 = vld [vmem:[%s1475] sm:$0xff]
  %v1477 = vld [vmem:[%s1475 + $0x8] sm:$0xff]
  %v1478 = vunpack.c.l.bf16 %v1476
  %v1479 = vunpack.c.h.bf16 %v1476
  %v1480 = vunpack.c.l.bf16 %v1477
  %v1481 = vunpack.c.h.bf16 %v1477
  %1482 = vmatprep.subr.bf16.mxu0 %v252
  %1483 = vmatpush1.bf16.msra.mxu0 %v251
  %1484 = vmatprep.subr.bf16.mxu0 %v256
  %1485 = vmatpush1.bf16.msra.mxu0 %v255
  %1486 = vmatprep.subr.bf16.mxu0 %v260
  %1487 = vmatpush1.bf16.msra.mxu0 %v259
  %1488 = vmatprep.subr.bf16.mxu0 %v264
  %1489 = vmatpush1.bf16.msra.mxu0 %v263
  %1490 = vmatprep.subr.bf16.mxu0 %v268
  %1491 = vmatpush1.bf16.msra.mxu0 %v267
  %1492 = vmatprep.subr.bf16.mxu0 %v272
  %1493 = vmatpush1.bf16.msra.mxu0 %v271
  %1494 = vmatprep.subr.bf16.mxu0 %v276
  %1495 = vmatpush1.bf16.msra.mxu0 %v275
  %1496 = vmatprep.subr.bf16.mxu0 %v280
  %1497 = vmatpush1.bf16.msra.mxu0 %v279
  %1498 = vmatprep.subr.bf16.mxu0 0
  %1499 = vmatpush1.bf16.msra.mxu0 0
  %1500 = vmatprep.subr.bf16.mxu0 0
  %1501 = vmatpush1.bf16.msra.mxu0 0
  %1502 = vmatprep.subr.bf16.mxu0 0
  %1503 = vmatpush1.bf16.msra.mxu0 0
  %1504 = vmatprep.subr.bf16.mxu0 0
  %1505 = vmatpush1.bf16.msra.mxu0 0
  %1506 = vmatprep.subr.bf16.mxu0 0
  %1507 = vmatpush1.bf16.msra.mxu0 0
  %1508 = vmatprep.subr.bf16.mxu0 0
  %1509 = vmatpush1.bf16.msra.mxu0 0
  %1510 = vmatprep.subr.bf16.mxu0 0
  %1511 = vmatpush1.bf16.msra.mxu0 0
  %1512 = vmatprep.subr.bf16.mxu0 0
  %1513 = vmatpush1.bf16.msra.mxu0 0
  %1514 = vmatprep.mubr.bf16.mxu0 0
  %1515 = vmatmul.mubr.bf16.gmra.mrb[0].mxu0 %v1341
  %v1516 = vpop.f32.mrb[0].mxu0
  %v1517 = vadd.f32 0.0, %v1516
  %v1518 = vpop.f32.mrb[0].mxu0
  %v1519 = vadd.f32 0.0, %v1518
  %v1520 = vpop.f32.mrb[0].mxu0
  %v1521 = vpop.f32.mrb[0].mxu0
  %1522 = vdwg.mxu0
  %1523 = vmatprep.subr.bf16.mxu0 %v254
  %1524 = vmatpush1.bf16.msra.mxu0 %v253
  %1525 = vmatprep.subr.bf16.mxu0 %v258
  %1526 = vmatpush1.bf16.msra.mxu0 %v257
  %1527 = vmatprep.subr.bf16.mxu0 %v262
  %1528 = vmatpush1.bf16.msra.mxu0 %v261
  %1529 = vmatprep.subr.bf16.mxu0 %v266
  %1530 = vmatpush1.bf16.msra.mxu0 %v265
  %1531 = vmatprep.subr.bf16.mxu0 %v270
  %1532 = vmatpush1.bf16.msra.mxu0 %v269
  %1533 = vmatprep.subr.bf16.mxu0 %v274
  %1534 = vmatpush1.bf16.msra.mxu0 %v273
  %1535 = vmatprep.subr.bf16.mxu0 %v278
  %1536 = vmatpush1.bf16.msra.mxu0 %v277
  %1537 = vmatprep.subr.bf16.mxu0 %v282
  %1538 = vmatpush1.bf16.msra.mxu0 %v281
  %1539 = vmatprep.subr.bf16.mxu0 0
  %1540 = vmatpush1.bf16.msra.mxu0 0
  %1541 = vmatprep.subr.bf16.mxu0 0
  %1542 = vmatpush1.bf16.msra.mxu0 0
  %1543 = vmatprep.subr.bf16.mxu0 0
  %1544 = vmatpush1.bf16.msra.mxu0 0
  %1545 = vmatprep.subr.bf16.mxu0 0
  %1546 = vmatpush1.bf16.msra.mxu0 0
  %1547 = vmatprep.subr.bf16.mxu0 0
  %1548 = vmatpush1.bf16.msra.mxu0 0
  %1549 = vmatprep.subr.bf16.mxu0 0
  %1550 = vmatpush1.bf16.msra.mxu0 0
  %1551 = vmatprep.subr.bf16.mxu0 0
  %1552 = vmatpush1.bf16.msra.mxu0 0
  %1553 = vmatprep.subr.bf16.mxu0 0
  %1554 = vmatpush1.bf16.msra.mxu0 0
  %1555 = vmatprep.mubr.bf16.mxu0 0
  %1556 = vmatmul.mubr.bf16.gmra.mrb[0].mxu0 %v1341
  %v1557 = vpop.f32.mrb[0].mxu0
  %v1558 = vadd.f32 0.0, %v1557
  %v1559 = vpop.f32.mrb[0].mxu0
  %v1560 = vadd.f32 0.0, %v1559
  %v1561 = vpop.f32.mrb[0].mxu0
  %v1562 = vpop.f32.mrb[0].mxu0
  %1563 = vdwg.mxu0
  %v1564 = vadd.f32 %v1478, %v1517
  %v1565 = vadd.f32 %v1479, %v1519
  %v1566 = vadd.f32 %v1480, %v1558
  %v1567 = vadd.f32 %v1481, %v1560
  %v1568 = vmul.f32 %v1564, 0.5
  %v1569 = vtanh.pop %v1568
  %v1570 = vmul.f32 %v1569, 0.5
  %v1571 = vadd.f32 %v1570, 0.5
  %v1572 = vmul.f32 %v1565, 0.5
  %v1573 = vtanh.pop %v1572
  %v1574 = vmul.f32 %v1573, 0.5
  %v1575 = vadd.f32 %v1574, 0.5
  %v1576 = vtanh.pop %v1566
  %v1577 = vmul.f32 %v1567, 0.5
  %v1578 = vtanh.pop %v1577
  %v1579 = vmul.f32 %v1578, 0.5
  %v1580 = vadd.f32 %v1579, 0.5
  %v1581 = vmul.f32 %v1575, %v1342
  %v1582 = vmul.f32 %v1571, %v1576
  %v1583 = vadd.f32 %v1581, %v1582
  %v1584 = vtanh.pop %v1583
  %v1585 = vmul.f32 %v1580, %v1584
  %v1586 = vpack.c.bf16 %v1585, %v1585
  %v1587 = vsel %vm1474, 1, 0
  %1588 = vset.pattern.permute.xlu0 0
  %1589 = vperm.xlu0 %1588, %v1587
  %v1590 = vpop.permute.xlu0 %1589
  %vm1591 = vcmp.eq.s32.totalorder %v1590, 1
  %vm1592 = vmpackc.low %vm1591, %vm1591
  %v1593 = vsel %vm1592, %v1586, %v1341
  %v1594 = vsel %vm1591, %v1583, %v1342
  %v1595 = vsel %vm1591, %v1585, 0.0
  %s1596 = scalar_lea.vmem %s4, 32
  %1597 = vst [vmem:[%s1596] sm:$0xff] %v1595
  %s1598 = sadd.s32 %s140, 11
  %v1599 = vstv %s1598
  %vm1600 = vcmp.lt.s32.totalorder %v1599, %v137
  %s1601 = scalar_lea.vmem %s52, 176
  %v1602 = vld [vmem:[%s1601] sm:$0xff]
  %v1603 = vld [vmem:[%s1601 + $0x8] sm:$0xff]
  %v1604 = vunpack.c.l.bf16 %v1602
  %v1605 = vunpack.c.h.bf16 %v1602
  %v1606 = vunpack.c.l.bf16 %v1603
  %v1607 = vunpack.c.h.bf16 %v1603
  %1608 = vmatprep.subr.bf16.mxu0 %v537
  %1609 = vmatpush1.bf16.msra.mxu0 %v536
  %1610 = vmatprep.subr.bf16.mxu0 %v541
  %1611 = vmatpush1.bf16.msra.mxu0 %v540
  %1612 = vmatprep.subr.bf16.mxu0 %v545
  %1613 = vmatpush1.bf16.msra.mxu0 %v544
  %1614 = vmatprep.subr.bf16.mxu0 %v549
  %1615 = vmatpush1.bf16.msra.mxu0 %v548
  %1616 = vmatprep.subr.bf16.mxu0 %v553
  %1617 = vmatpush1.bf16.msra.mxu0 %v552
  %1618 = vmatprep.subr.bf16.mxu0 %v557
  %1619 = vmatpush1.bf16.msra.mxu0 %v556
  %1620 = vmatprep.subr.bf16.mxu0 %v561
  %1621 = vmatpush1.bf16.msra.mxu0 %v560
  %1622 = vmatprep.subr.bf16.mxu0 %v565
  %1623 = vmatpush1.bf16.msra.mxu0 %v564
  %1624 = vmatprep.subr.bf16.mxu0 0
  %1625 = vmatpush1.bf16.msra.mxu0 0
  %1626 = vmatprep.subr.bf16.mxu0 0
  %1627 = vmatpush1.bf16.msra.mxu0 0
  %1628 = vmatprep.subr.bf16.mxu0 0
  %1629 = vmatpush1.bf16.msra.mxu0 0
  %1630 = vmatprep.subr.bf16.mxu0 0
  %1631 = vmatpush1.bf16.msra.mxu0 0
  %1632 = vmatprep.subr.bf16.mxu0 0
  %1633 = vmatpush1.bf16.msra.mxu0 0
  %1634 = vmatprep.subr.bf16.mxu0 0
  %1635 = vmatpush1.bf16.msra.mxu0 0
  %1636 = vmatprep.subr.bf16.mxu0 0
  %1637 = vmatpush1.bf16.msra.mxu0 0
  %1638 = vmatprep.subr.bf16.mxu0 0
  %1639 = vmatpush1.bf16.msra.mxu0 0
  %1640 = vmatprep.mubr.bf16.mxu0 0
  %1641 = vmatmul.mubr.bf16.gmra.mrb[0].mxu0 %v1467
  %v1642 = vpop.f32.mrb[0].mxu0
  %v1643 = vadd.f32 0.0, %v1642
  %v1644 = vpop.f32.mrb[0].mxu0
  %v1645 = vadd.f32 0.0, %v1644
  %v1646 = vpop.f32.mrb[0].mxu0
  %v1647 = vpop.f32.mrb[0].mxu0
  %1648 = vdwg.mxu0
  %1649 = vmatprep.subr.bf16.mxu0 %v539
  %1650 = vmatpush1.bf16.msra.mxu0 %v538
  %1651 = vmatprep.subr.bf16.mxu0 %v543
  %1652 = vmatpush1.bf16.msra.mxu0 %v542
  %1653 = vmatprep.subr.bf16.mxu0 %v547
  %1654 = vmatpush1.bf16.msra.mxu0 %v546
  %1655 = vmatprep.subr.bf16.mxu0 %v551
  %1656 = vmatpush1.bf16.msra.mxu0 %v550
  %1657 = vmatprep.subr.bf16.mxu0 %v555
  %1658 = vmatpush1.bf16.msra.mxu0 %v554
  %1659 = vmatprep.subr.bf16.mxu0 %v559
  %1660 = vmatpush1.bf16.msra.mxu0 %v558
  %1661 = vmatprep.subr.bf16.mxu0 %v563
  %1662 = vmatpush1.bf16.msra.mxu0 %v562
  %1663 = vmatprep.subr.bf16.mxu0 %v567
  %1664 = vmatpush1.bf16.msra.mxu0 %v566
  %1665 = vmatprep.subr.bf16.mxu0 0
  %1666 = vmatpush1.bf16.msra.mxu0 0
  %1667 = vmatprep.subr.bf16.mxu0 0
  %1668 = vmatpush1.bf16.msra.mxu0 0
  %1669 = vmatprep.subr.bf16.mxu0 0
  %1670 = vmatpush1.bf16.msra.mxu0 0
  %1671 = vmatprep.subr.bf16.mxu0 0
  %1672 = vmatpush1.bf16.msra.mxu0 0
  %1673 = vmatprep.subr.bf16.mxu0 0
  %1674 = vmatpush1.bf16.msra.mxu0 0
  %1675 = vmatprep.subr.bf16.mxu0 0
  %1676 = vmatpush1.bf16.msra.mxu0 0
  %1677 = vmatprep.subr.bf16.mxu0 0
  %1678 = vmatpush1.bf16.msra.mxu0 0
  %1679 = vmatprep.subr.bf16.mxu0 0
  %1680 = vmatpush1.bf16.msra.mxu0 0
  %1681 = vmatprep.mubr.bf16.mxu0 0
  %1682 = vmatmul.mubr.bf16.gmra.mrb[0].mxu0 %v1467
  %v1683 = vpop.f32.mrb[0].mxu0
  %v1684 = vadd.f32 0.0, %v1683
  %v1685 = vpop.f32.mrb[0].mxu0
  %v1686 = vadd.f32 0.0, %v1685
  %v1687 = vpop.f32.mrb[0].mxu0
  %v1688 = vpop.f32.mrb[0].mxu0
  %1689 = vdwg.mxu0
  %v1690 = vadd.f32 %v1604, %v1643
  %v1691 = vadd.f32 %v1605, %v1645
  %v1692 = vadd.f32 %v1606, %v1684
  %v1693 = vadd.f32 %v1607, %v1686
  %v1694 = vmul.f32 %v1690, 0.5
  %v1695 = vtanh.pop %v1694
  %v1696 = vmul.f32 %v1695, 0.5
  %v1697 = vadd.f32 %v1696, 0.5
  %v1698 = vmul.f32 %v1691, 0.5
  %v1699 = vtanh.pop %v1698
  %v1700 = vmul.f32 %v1699, 0.5
  %v1701 = vadd.f32 %v1700, 0.5
  %v1702 = vtanh.pop %v1692
  %v1703 = vmul.f32 %v1693, 0.5
  %v1704 = vtanh.pop %v1703
  %v1705 = vmul.f32 %v1704, 0.5
  %v1706 = vadd.f32 %v1705, 0.5
  %v1707 = vmul.f32 %v1701, %v1468
  %v1708 = vmul.f32 %v1697, %v1702
  %v1709 = vadd.f32 %v1707, %v1708
  %v1710 = vtanh.pop %v1709
  %v1711 = vmul.f32 %v1706, %v1710
  %v1712 = vpack.c.bf16 %v1711, %v1711
  %v1713 = vsel %vm1600, 1, 0
  %1714 = vset.pattern.permute.xlu0 0
  %1715 = vperm.xlu0 %1714, %v1713
  %v1716 = vpop.permute.xlu0 %1715
  %vm1717 = vcmp.eq.s32.totalorder %v1716, 1
  %vm1718 = vmpackc.low %vm1717, %vm1717
  %v1719 = vsel %vm1718, %v1712, %v1467
  %v1720 = vsel %vm1717, %v1709, %v1468
  %v1721 = vsel %vm1717, %v1711, 0.0
  %s1722 = scalar_lea.vmem %s60, 88
  %1723 = vst [vmem:[%s1722] sm:$0xff] %v1721
  %s1724 = sadd.s32 %s138, 5
  %v1725 = vstv %s1724
  %vm1726 = vcmp.lt.s32.totalorder %v1725, %v137
  %s1727 = scalar_lea.vmem %s0, 80
  %v1728 = vld [vmem:[%s1727] sm:$0xff]
  %v1729 = vld [vmem:[%s1727 + $0x8] sm:$0xff]
  %v1730 = vunpack.c.l.bf16 %v1728
  %v1731 = vunpack.c.h.bf16 %v1728
  %v1732 = vunpack.c.l.bf16 %v1729
  %v1733 = vunpack.c.h.bf16 %v1729
  %1734 = vmatprep.subr.bf16.mxu0 %v252
  %1735 = vmatpush1.bf16.msra.mxu0 %v251
  %1736 = vmatprep.subr.bf16.mxu0 %v256
  %1737 = vmatpush1.bf16.msra.mxu0 %v255
  %1738 = vmatprep.subr.bf16.mxu0 %v260
  %1739 = vmatpush1.bf16.msra.mxu0 %v259
  %1740 = vmatprep.subr.bf16.mxu0 %v264
  %1741 = vmatpush1.bf16.msra.mxu0 %v263
  %1742 = vmatprep.subr.bf16.mxu0 %v268
  %1743 = vmatpush1.bf16.msra.mxu0 %v267
  %1744 = vmatprep.subr.bf16.mxu0 %v272
  %1745 = vmatpush1.bf16.msra.mxu0 %v271
  %1746 = vmatprep.subr.bf16.mxu0 %v276
  %1747 = vmatpush1.bf16.msra.mxu0 %v275
  %1748 = vmatprep.subr.bf16.mxu0 %v280
  %1749 = vmatpush1.bf16.msra.mxu0 %v279
  %1750 = vmatprep.subr.bf16.mxu0 0
  %1751 = vmatpush1.bf16.msra.mxu0 0
  %1752 = vmatprep.subr.bf16.mxu0 0
  %1753 = vmatpush1.bf16.msra.mxu0 0
  %1754 = vmatprep.subr.bf16.mxu0 0
  %1755 = vmatpush1.bf16.msra.mxu0 0
  %1756 = vmatprep.subr.bf16.mxu0 0
  %1757 = vmatpush1.bf16.msra.mxu0 0
  %1758 = vmatprep.subr.bf16.mxu0 0
  %1759 = vmatpush1.bf16.msra.mxu0 0
  %1760 = vmatprep.subr.bf16.mxu0 0
  %1761 = vmatpush1.bf16.msra.mxu0 0
  %1762 = vmatprep.subr.bf16.mxu0 0
  %1763 = vmatpush1.bf16.msra.mxu0 0
  %1764 = vmatprep.subr.bf16.mxu0 0
  %1765 = vmatpush1.bf16.msra.mxu0 0
  %1766 = vmatprep.mubr.bf16.mxu0 0
  %1767 = vmatmul.mubr.bf16.gmra.mrb[0].mxu0 %v1593
  %v1768 = vpop.f32.mrb[0].mxu0
  %v1769 = vadd.f32 0.0, %v1768
  %v1770 = vpop.f32.mrb[0].mxu0
  %v1771 = vadd.f32 0.0, %v1770
  %v1772 = vpop.f32.mrb[0].mxu0
  %v1773 = vpop.f32.mrb[0].mxu0
  %1774 = vdwg.mxu0
  %1775 = vmatprep.subr.bf16.mxu0 %v254
  %1776 = vmatpush1.bf16.msra.mxu0 %v253
  %1777 = vmatprep.subr.bf16.mxu0 %v258
  %1778 = vmatpush1.bf16.msra.mxu0 %v257
  %1779 = vmatprep.subr.bf16.mxu0 %v262
  %1780 = vmatpush1.bf16.msra.mxu0 %v261
  %1781 = vmatprep.subr.bf16.mxu0 %v266
  %1782 = vmatpush1.bf16.msra.mxu0 %v265
  %1783 = vmatprep.subr.bf16.mxu0 %v270
  %1784 = vmatpush1.bf16.msra.mxu0 %v269
  %1785 = vmatprep.subr.bf16.mxu0 %v274
  %1786 = vmatpush1.bf16.msra.mxu0 %v273
  %1787 = vmatprep.subr.bf16.mxu0 %v278
  %1788 = vmatpush1.bf16.msra.mxu0 %v277
  %1789 = vmatprep.subr.bf16.mxu0 %v282
  %1790 = vmatpush1.bf16.msra.mxu0 %v281
  %1791 = vmatprep.subr.bf16.mxu0 0
  %1792 = vmatpush1.bf16.msra.mxu0 0
  %1793 = vmatprep.subr.bf16.mxu0 0
  %1794 = vmatpush1.bf16.msra.mxu0 0
  %1795 = vmatprep.subr.bf16.mxu0 0
  %1796 = vmatpush1.bf16.msra.mxu0 0
  %1797 = vmatprep.subr.bf16.mxu0 0
  %1798 = vmatpush1.bf16.msra.mxu0 0
  %1799 = vmatprep.subr.bf16.mxu0 0
  %1800 = vmatpush1.bf16.msra.mxu0 0
  %1801 = vmatprep.subr.bf16.mxu0 0
  %1802 = vmatpush1.bf16.msra.mxu0 0
  %1803 = vmatprep.subr.bf16.mxu0 0
  %1804 = vmatpush1.bf16.msra.mxu0 0
  %1805 = vmatprep.subr.bf16.mxu0 0
  %1806 = vmatpush1.bf16.msra.mxu0 0
  %1807 = vmatprep.mubr.bf16.mxu0 0
  %1808 = vmatmul.mubr.bf16.gmra.mrb[0].mxu0 %v1593
  %v1809 = vpop.f32.mrb[0].mxu0
  %v1810 = vadd.f32 0.0, %v1809
  %v1811 = vpop.f32.mrb[0].mxu0
  %v1812 = vadd.f32 0.0, %v1811
  %v1813 = vpop.f32.mrb[0].mxu0
  %v1814 = vpop.f32.mrb[0].mxu0
  %1815 = vdwg.mxu0
  %v1816 = vadd.f32 %v1730, %v1769
  %v1817 = vadd.f32 %v1731, %v1771
  %v1818 = vadd.f32 %v1732, %v1810
  %v1819 = vadd.f32 %v1733, %v1812
  %v1820 = vmul.f32 %v1816, 0.5
  %v1821 = vtanh.pop %v1820
  %v1822 = vmul.f32 %v1821, 0.5
  %v1823 = vadd.f32 %v1822, 0.5
  %v1824 = vmul.f32 %v1817, 0.5
  %v1825 = vtanh.pop %v1824
  %v1826 = vmul.f32 %v1825, 0.5
  %v1827 = vadd.f32 %v1826, 0.5
  %v1828 = vtanh.pop %v1818
  %v1829 = vmul.f32 %v1819, 0.5
  %v1830 = vtanh.pop %v1829
  %v1831 = vmul.f32 %v1830, 0.5
  %v1832 = vadd.f32 %v1831, 0.5
  %v1833 = vmul.f32 %v1827, %v1594
  %v1834 = vmul.f32 %v1823, %v1828
  %v1835 = vadd.f32 %v1833, %v1834
  %v1836 = vtanh.pop %v1835
  %v1837 = vmul.f32 %v1832, %v1836
  %v1838 = vpack.c.bf16 %v1837, %v1837
  %v1839 = vsel %vm1726, 1, 0
  %1840 = vset.pattern.permute.xlu0 0
  %1841 = vperm.xlu0 %1840, %v1839
  %v1842 = vpop.permute.xlu0 %1841
  %vm1843 = vcmp.eq.s32.totalorder %v1842, 1
  %vm1844 = vmpackc.low %vm1843, %vm1843
  %v1845 = vsel %vm1844, %v1838, %v1593
  %v1846 = vsel %vm1843, %v1835, %v1594
  %v1847 = vsel %vm1843, %v1837, 0.0
  %s1848 = scalar_lea.vmem %s4, 40
  %1849 = vst [vmem:[%s1848] sm:$0xff] %v1847
  %s1850 = sadd.s32 %s140, 10
  %v1851 = vstv %s1850
  %vm1852 = vcmp.lt.s32.totalorder %v1851, %v137
  %s1853 = scalar_lea.vmem %s52, 160
  %v1854 = vld [vmem:[%s1853] sm:$0xff]
  %v1855 = vld [vmem:[%s1853 + $0x8] sm:$0xff]
  %v1856 = vunpack.c.l.bf16 %v1854
  %v1857 = vunpack.c.h.bf16 %v1854
  %v1858 = vunpack.c.l.bf16 %v1855
  %v1859 = vunpack.c.h.bf16 %v1855
  %1860 = vmatprep.subr.bf16.mxu0 %v537
  %1861 = vmatpush1.bf16.msra.mxu0 %v536
  %1862 = vmatprep.subr.bf16.mxu0 %v541
  %1863 = vmatpush1.bf16.msra.mxu0 %v540
  %1864 = vmatprep.subr.bf16.mxu0 %v545
  %1865 = vmatpush1.bf16.msra.mxu0 %v544
  %1866 = vmatprep.subr.bf16.mxu0 %v549
  %1867 = vmatpush1.bf16.msra.mxu0 %v548
  %1868 = vmatprep.subr.bf16.mxu0 %v553
  %1869 = vmatpush1.bf16.msra.mxu0 %v552
  %1870 = vmatprep.subr.bf16.mxu0 %v557
  %1871 = vmatpush1.bf16.msra.mxu0 %v556
  %1872 = vmatprep.subr.bf16.mxu0 %v561
  %1873 = vmatpush1.bf16.msra.mxu0 %v560
  %1874 = vmatprep.subr.bf16.mxu0 %v565
  %1875 = vmatpush1.bf16.msra.mxu0 %v564
  %1876 = vmatprep.subr.bf16.mxu0 0
  %1877 = vmatpush1.bf16.msra.mxu0 0
  %1878 = vmatprep.subr.bf16.mxu0 0
  %1879 = vmatpush1.bf16.msra.mxu0 0
  %1880 = vmatprep.subr.bf16.mxu0 0
  %1881 = vmatpush1.bf16.msra.mxu0 0
  %1882 = vmatprep.subr.bf16.mxu0 0
  %1883 = vmatpush1.bf16.msra.mxu0 0
  %1884 = vmatprep.subr.bf16.mxu0 0
  %1885 = vmatpush1.bf16.msra.mxu0 0
  %1886 = vmatprep.subr.bf16.mxu0 0
  %1887 = vmatpush1.bf16.msra.mxu0 0
  %1888 = vmatprep.subr.bf16.mxu0 0
  %1889 = vmatpush1.bf16.msra.mxu0 0
  %1890 = vmatprep.subr.bf16.mxu0 0
  %1891 = vmatpush1.bf16.msra.mxu0 0
  %1892 = vmatprep.mubr.bf16.mxu0 0
  %1893 = vmatmul.mubr.bf16.gmra.mrb[0].mxu0 %v1719
  %v1894 = vpop.f32.mrb[0].mxu0
  %v1895 = vadd.f32 0.0, %v1894
  %v1896 = vpop.f32.mrb[0].mxu0
  %v1897 = vadd.f32 0.0, %v1896
  %v1898 = vpop.f32.mrb[0].mxu0
  %v1899 = vpop.f32.mrb[0].mxu0
  %1900 = vdwg.mxu0
  %1901 = vmatprep.subr.bf16.mxu0 %v539
  %1902 = vmatpush1.bf16.msra.mxu0 %v538
  %1903 = vmatprep.subr.bf16.mxu0 %v543
  %1904 = vmatpush1.bf16.msra.mxu0 %v542
  %1905 = vmatprep.subr.bf16.mxu0 %v547
  %1906 = vmatpush1.bf16.msra.mxu0 %v546
  %1907 = vmatprep.subr.bf16.mxu0 %v551
  %1908 = vmatpush1.bf16.msra.mxu0 %v550
  %1909 = vmatprep.subr.bf16.mxu0 %v555
  %1910 = vmatpush1.bf16.msra.mxu0 %v554
  %1911 = vmatprep.subr.bf16.mxu0 %v559
  %1912 = vmatpush1.bf16.msra.mxu0 %v558
  %1913 = vmatprep.subr.bf16.mxu0 %v563
  %1914 = vmatpush1.bf16.msra.mxu0 %v562
  %1915 = vmatprep.subr.bf16.mxu0 %v567
  %1916 = vmatpush1.bf16.msra.mxu0 %v566
  %1917 = vmatprep.subr.bf16.mxu0 0
  %1918 = vmatpush1.bf16.msra.mxu0 0
  %1919 = vmatprep.subr.bf16.mxu0 0
  %1920 = vmatpush1.bf16.msra.mxu0 0
  %1921 = vmatprep.subr.bf16.mxu0 0
  %1922 = vmatpush1.bf16.msra.mxu0 0
  %1923 = vmatprep.subr.bf16.mxu0 0
  %1924 = vmatpush1.bf16.msra.mxu0 0
  %1925 = vmatprep.subr.bf16.mxu0 0
  %1926 = vmatpush1.bf16.msra.mxu0 0
  %1927 = vmatprep.subr.bf16.mxu0 0
  %1928 = vmatpush1.bf16.msra.mxu0 0
  %1929 = vmatprep.subr.bf16.mxu0 0
  %1930 = vmatpush1.bf16.msra.mxu0 0
  %1931 = vmatprep.subr.bf16.mxu0 0
  %1932 = vmatpush1.bf16.msra.mxu0 0
  %1933 = vmatprep.mubr.bf16.mxu0 0
  %1934 = vmatmul.mubr.bf16.gmra.mrb[0].mxu0 %v1719
  %v1935 = vpop.f32.mrb[0].mxu0
  %v1936 = vadd.f32 0.0, %v1935
  %v1937 = vpop.f32.mrb[0].mxu0
  %v1938 = vadd.f32 0.0, %v1937
  %v1939 = vpop.f32.mrb[0].mxu0
  %v1940 = vpop.f32.mrb[0].mxu0
  %1941 = vdwg.mxu0
  %v1942 = vadd.f32 %v1856, %v1895
  %v1943 = vadd.f32 %v1857, %v1897
  %v1944 = vadd.f32 %v1858, %v1936
  %v1945 = vadd.f32 %v1859, %v1938
  %v1946 = vmul.f32 %v1942, 0.5
  %v1947 = vtanh.pop %v1946
  %v1948 = vmul.f32 %v1947, 0.5
  %v1949 = vadd.f32 %v1948, 0.5
  %v1950 = vmul.f32 %v1943, 0.5
  %v1951 = vtanh.pop %v1950
  %v1952 = vmul.f32 %v1951, 0.5
  %v1953 = vadd.f32 %v1952, 0.5
  %v1954 = vtanh.pop %v1944
  %v1955 = vmul.f32 %v1945, 0.5
  %v1956 = vtanh.pop %v1955
  %v1957 = vmul.f32 %v1956, 0.5
  %v1958 = vadd.f32 %v1957, 0.5
  %v1959 = vmul.f32 %v1953, %v1720
  %v1960 = vmul.f32 %v1949, %v1954
  %v1961 = vadd.f32 %v1959, %v1960
  %v1962 = vtanh.pop %v1961
  %v1963 = vmul.f32 %v1958, %v1962
  %v1964 = vpack.c.bf16 %v1963, %v1963
  %v1965 = vsel %vm1852, 1, 0
  %1966 = vset.pattern.permute.xlu0 0
  %1967 = vperm.xlu0 %1966, %v1965
  %v1968 = vpop.permute.xlu0 %1967
  %vm1969 = vcmp.eq.s32.totalorder %v1968, 1
  %vm1970 = vmpackc.low %vm1969, %vm1969
  %v1971 = vsel %vm1970, %v1964, %v1719
  %v1972 = vsel %vm1969, %v1961, %v1720
  %v1973 = vsel %vm1969, %v1963, 0.0
  %s1974 = scalar_lea.vmem %s60, 80
  %1975 = vst [vmem:[%s1974] sm:$0xff] %v1973
  %s1976 = sadd.s32 %s138, 6
  %v1977 = vstv %s1976
  %vm1978 = vcmp.lt.s32.totalorder %v1977, %v137
  %s1979 = scalar_lea.vmem %s0, 96
  %v1980 = vld [vmem:[%s1979] sm:$0xff]
  %v1981 = vld [vmem:[%s1979 + $0x8] sm:$0xff]
  %v1982 = vunpack.c.l.bf16 %v1980
  %v1983 = vunpack.c.h.bf16 %v1980
  %v1984 = vunpack.c.l.bf16 %v1981
  %v1985 = vunpack.c.h.bf16 %v1981
  %1986 = vmatprep.subr.bf16.mxu0 %v252
  %1987 = vmatpush1.bf16.msra.mxu0 %v251
  %1988 = vmatprep.subr.bf16.mxu0 %v256
  %1989 = vmatpush1.bf16.msra.mxu0 %v255
  %1990 = vmatprep.subr.bf16.mxu0 %v260
  %1991 = vmatpush1.bf16.msra.mxu0 %v259
  %1992 = vmatprep.subr.bf16.mxu0 %v264
  %1993 = vmatpush1.bf16.msra.mxu0 %v263
  %1994 = vmatprep.subr.bf16.mxu0 %v268
  %1995 = vmatpush1.bf16.msra.mxu0 %v267
  %1996 = vmatprep.subr.bf16.mxu0 %v272
  %1997 = vmatpush1.bf16.msra.mxu0 %v271
  %1998 = vmatprep.subr.bf16.mxu0 %v276
  %1999 = vmatpush1.bf16.msra.mxu0 %v275
  %2000 = vmatprep.subr.bf16.mxu0 %v280
  %2001 = vmatpush1.bf16.msra.mxu0 %v279
  %2002 = vmatprep.subr.bf16.mxu0 0
  %2003 = vmatpush1.bf16.msra.mxu0 0
  %2004 = vmatprep.subr.bf16.mxu0 0
  %2005 = vmatpush1.bf16.msra.mxu0 0
  %2006 = vmatprep.subr.bf16.mxu0 0
  %2007 = vmatpush1.bf16.msra.mxu0 0
  %2008 = vmatprep.subr.bf16.mxu0 0
  %2009 = vmatpush1.bf16.msra.mxu0 0
  %2010 = vmatprep.subr.bf16.mxu0 0
  %2011 = vmatpush1.bf16.msra.mxu0 0
  %2012 = vmatprep.subr.bf16.mxu0 0
  %2013 = vmatpush1.bf16.msra.mxu0 0
  %2014 = vmatprep.subr.bf16.mxu0 0
  %2015 = vmatpush1.bf16.msra.mxu0 0
  %2016 = vmatprep.subr.bf16.mxu0 0
  %2017 = vmatpush1.bf16.msra.mxu0 0
  %2018 = vmatprep.mubr.bf16.mxu0 0
  %2019 = vmatmul.mubr.bf16.gmra.mrb[0].mxu0 %v1845
  %v2020 = vpop.f32.mrb[0].mxu0
  %v2021 = vadd.f32 0.0, %v2020
  %v2022 = vpop.f32.mrb[0].mxu0
  %v2023 = vadd.f32 0.0, %v2022
  %v2024 = vpop.f32.mrb[0].mxu0
  %v2025 = vpop.f32.mrb[0].mxu0
  %2026 = vdwg.mxu0
  %2027 = vmatprep.subr.bf16.mxu0 %v254
  %2028 = vmatpush1.bf16.msra.mxu0 %v253
  %2029 = vmatprep.subr.bf16.mxu0 %v258
  %2030 = vmatpush1.bf16.msra.mxu0 %v257
  %2031 = vmatprep.subr.bf16.mxu0 %v262
  %2032 = vmatpush1.bf16.msra.mxu0 %v261
  %2033 = vmatprep.subr.bf16.mxu0 %v266
  %2034 = vmatpush1.bf16.msra.mxu0 %v265
  %2035 = vmatprep.subr.bf16.mxu0 %v270
  %2036 = vmatpush1.bf16.msra.mxu0 %v269
  %2037 = vmatprep.subr.bf16.mxu0 %v274
  %2038 = vmatpush1.bf16.msra.mxu0 %v273
  %2039 = vmatprep.subr.bf16.mxu0 %v278
  %2040 = vmatpush1.bf16.msra.mxu0 %v277
  %2041 = vmatprep.subr.bf16.mxu0 %v282
  %2042 = vmatpush1.bf16.msra.mxu0 %v281
  %2043 = vmatprep.subr.bf16.mxu0 0
  %2044 = vmatpush1.bf16.msra.mxu0 0
  %2045 = vmatprep.subr.bf16.mxu0 0
  %2046 = vmatpush1.bf16.msra.mxu0 0
  %2047 = vmatprep.subr.bf16.mxu0 0
  %2048 = vmatpush1.bf16.msra.mxu0 0
  %2049 = vmatprep.subr.bf16.mxu0 0
  %2050 = vmatpush1.bf16.msra.mxu0 0
  %2051 = vmatprep.subr.bf16.mxu0 0
  %2052 = vmatpush1.bf16.msra.mxu0 0
  %2053 = vmatprep.subr.bf16.mxu0 0
  %2054 = vmatpush1.bf16.msra.mxu0 0
  %2055 = vmatprep.subr.bf16.mxu0 0
  %2056 = vmatpush1.bf16.msra.mxu0 0
  %2057 = vmatprep.subr.bf16.mxu0 0
  %2058 = vmatpush1.bf16.msra.mxu0 0
  %2059 = vmatprep.mubr.bf16.mxu0 0
  %2060 = vmatmul.mubr.bf16.gmra.mrb[0].mxu0 %v1845
  %v2061 = vpop.f32.mrb[0].mxu0
  %v2062 = vadd.f32 0.0, %v2061
  %v2063 = vpop.f32.mrb[0].mxu0
  %v2064 = vadd.f32 0.0, %v2063
  %v2065 = vpop.f32.mrb[0].mxu0
  %v2066 = vpop.f32.mrb[0].mxu0
  %2067 = vdwg.mxu0
  %v2068 = vadd.f32 %v1982, %v2021
  %v2069 = vadd.f32 %v1983, %v2023
  %v2070 = vadd.f32 %v1984, %v2062
  %v2071 = vadd.f32 %v1985, %v2064
  %v2072 = vmul.f32 %v2068, 0.5
  %v2073 = vtanh.pop %v2072
  %v2074 = vmul.f32 %v2073, 0.5
  %v2075 = vadd.f32 %v2074, 0.5
  %v2076 = vmul.f32 %v2069, 0.5
  %v2077 = vtanh.pop %v2076
  %v2078 = vmul.f32 %v2077, 0.5
  %v2079 = vadd.f32 %v2078, 0.5
  %v2080 = vtanh.pop %v2070
  %v2081 = vmul.f32 %v2071, 0.5
  %v2082 = vtanh.pop %v2081
  %v2083 = vmul.f32 %v2082, 0.5
  %v2084 = vadd.f32 %v2083, 0.5
  %v2085 = vmul.f32 %v2079, %v1846
  %v2086 = vmul.f32 %v2075, %v2080
  %v2087 = vadd.f32 %v2085, %v2086
  %v2088 = vtanh.pop %v2087
  %v2089 = vmul.f32 %v2084, %v2088
  %v2090 = vpack.c.bf16 %v2089, %v2089
  %v2091 = vsel %vm1978, 1, 0
  %2092 = vset.pattern.permute.xlu0 0
  %2093 = vperm.xlu0 %2092, %v2091
  %v2094 = vpop.permute.xlu0 %2093
  %vm2095 = vcmp.eq.s32.totalorder %v2094, 1
  %vm2096 = vmpackc.low %vm2095, %vm2095
  %v2097 = vsel %vm2096, %v2090, %v1845
  %v2098 = vsel %vm2095, %v2087, %v1846
  %v2099 = vsel %vm2095, %v2089, 0.0
  %s2100 = scalar_lea.vmem %s4, 48
  %2101 = vst [vmem:[%s2100] sm:$0xff] %v2099
  %s2102 = sadd.s32 %s140, 9
  %v2103 = vstv %s2102
  %vm2104 = vcmp.lt.s32.totalorder %v2103, %v137
  %s2105 = scalar_lea.vmem %s52, 144
  %v2106 = vld [vmem:[%s2105] sm:$0xff]
  %v2107 = vld [vmem:[%s2105 + $0x8] sm:$0xff]
  %v2108 = vunpack.c.l.bf16 %v2106
  %v2109 = vunpack.c.h.bf16 %v2106
  %v2110 = vunpack.c.l.bf16 %v2107
  %v2111 = vunpack.c.h.bf16 %v2107
  %2112 = vmatprep.subr.bf16.mxu0 %v537
  %2113 = vmatpush1.bf16.msra.mxu0 %v536
  %2114 = vmatprep.subr.bf16.mxu0 %v541
  %2115 = vmatpush1.bf16.msra.mxu0 %v540
  %2116 = vmatprep.subr.bf16.mxu0 %v545
  %2117 = vmatpush1.bf16.msra.mxu0 %v544
  %2118 = vmatprep.subr.bf16.mxu0 %v549
  %2119 = vmatpush1.bf16.msra.mxu0 %v548
  %2120 = vmatprep.subr.bf16.mxu0 %v553
  %2121 = vmatpush1.bf16.msra.mxu0 %v552
  %2122 = vmatprep.subr.bf16.mxu0 %v557
  %2123 = vmatpush1.bf16.msra.mxu0 %v556
  %2124 = vmatprep.subr.bf16.mxu0 %v561
  %2125 = vmatpush1.bf16.msra.mxu0 %v560
  %2126 = vmatprep.subr.bf16.mxu0 %v565
  %2127 = vmatpush1.bf16.msra.mxu0 %v564
  %2128 = vmatprep.subr.bf16.mxu0 0
  %2129 = vmatpush1.bf16.msra.mxu0 0
  %2130 = vmatprep.subr.bf16.mxu0 0
  %2131 = vmatpush1.bf16.msra.mxu0 0
  %2132 = vmatprep.subr.bf16.mxu0 0
  %2133 = vmatpush1.bf16.msra.mxu0 0
  %2134 = vmatprep.subr.bf16.mxu0 0
  %2135 = vmatpush1.bf16.msra.mxu0 0
  %2136 = vmatprep.subr.bf16.mxu0 0
  %2137 = vmatpush1.bf16.msra.mxu0 0
  %2138 = vmatprep.subr.bf16.mxu0 0
  %2139 = vmatpush1.bf16.msra.mxu0 0
  %2140 = vmatprep.subr.bf16.mxu0 0
  %2141 = vmatpush1.bf16.msra.mxu0 0
  %2142 = vmatprep.subr.bf16.mxu0 0
  %2143 = vmatpush1.bf16.msra.mxu0 0
  %2144 = vmatprep.mubr.bf16.mxu0 0
  %2145 = vmatmul.mubr.bf16.gmra.mrb[0].mxu0 %v1971
  %v2146 = vpop.f32.mrb[0].mxu0
  %v2147 = vadd.f32 0.0, %v2146
  %v2148 = vpop.f32.mrb[0].mxu0
  %v2149 = vadd.f32 0.0, %v2148
  %v2150 = vpop.f32.mrb[0].mxu0
  %v2151 = vpop.f32.mrb[0].mxu0
  %2152 = vdwg.mxu0
  %2153 = vmatprep.subr.bf16.mxu0 %v539
  %2154 = vmatpush1.bf16.msra.mxu0 %v538
  %2155 = vmatprep.subr.bf16.mxu0 %v543
  %2156 = vmatpush1.bf16.msra.mxu0 %v542
  %2157 = vmatprep.subr.bf16.mxu0 %v547
  %2158 = vmatpush1.bf16.msra.mxu0 %v546
  %2159 = vmatprep.subr.bf16.mxu0 %v551
  %2160 = vmatpush1.bf16.msra.mxu0 %v550
  %2161 = vmatprep.subr.bf16.mxu0 %v555
  %2162 = vmatpush1.bf16.msra.mxu0 %v554
  %2163 = vmatprep.subr.bf16.mxu0 %v559
  %2164 = vmatpush1.bf16.msra.mxu0 %v558
  %2165 = vmatprep.subr.bf16.mxu0 %v563
  %2166 = vmatpush1.bf16.msra.mxu0 %v562
  %2167 = vmatprep.subr.bf16.mxu0 %v567
  %2168 = vmatpush1.bf16.msra.mxu0 %v566
  %2169 = vmatprep.subr.bf16.mxu0 0
  %2170 = vmatpush1.bf16.msra.mxu0 0
  %2171 = vmatprep.subr.bf16.mxu0 0
  %2172 = vmatpush1.bf16.msra.mxu0 0
  %2173 = vmatprep.subr.bf16.mxu0 0
  %2174 = vmatpush1.bf16.msra.mxu0 0
  %2175 = vmatprep.subr.bf16.mxu0 0
  %2176 = vmatpush1.bf16.msra.mxu0 0
  %2177 = vmatprep.subr.bf16.mxu0 0
  %2178 = vmatpush1.bf16.msra.mxu0 0
  %2179 = vmatprep.subr.bf16.mxu0 0
  %2180 = vmatpush1.bf16.msra.mxu0 0
  %2181 = vmatprep.subr.bf16.mxu0 0
  %2182 = vmatpush1.bf16.msra.mxu0 0
  %2183 = vmatprep.subr.bf16.mxu0 0
  %2184 = vmatpush1.bf16.msra.mxu0 0
  %2185 = vmatprep.mubr.bf16.mxu0 0
  %2186 = vmatmul.mubr.bf16.gmra.mrb[0].mxu0 %v1971
  %v2187 = vpop.f32.mrb[0].mxu0
  %v2188 = vadd.f32 0.0, %v2187
  %v2189 = vpop.f32.mrb[0].mxu0
  %v2190 = vadd.f32 0.0, %v2189
  %v2191 = vpop.f32.mrb[0].mxu0
  %v2192 = vpop.f32.mrb[0].mxu0
  %2193 = vdwg.mxu0
  %v2194 = vadd.f32 %v2108, %v2147
  %v2195 = vadd.f32 %v2109, %v2149
  %v2196 = vadd.f32 %v2110, %v2188
  %v2197 = vadd.f32 %v2111, %v2190
  %v2198 = vmul.f32 %v2194, 0.5
  %v2199 = vtanh.pop %v2198
  %v2200 = vmul.f32 %v2199, 0.5
  %v2201 = vadd.f32 %v2200, 0.5
  %v2202 = vmul.f32 %v2195, 0.5
  %v2203 = vtanh.pop %v2202
  %v2204 = vmul.f32 %v2203, 0.5
  %v2205 = vadd.f32 %v2204, 0.5
  %v2206 = vtanh.pop %v2196
  %v2207 = vmul.f32 %v2197, 0.5
  %v2208 = vtanh.pop %v2207
  %v2209 = vmul.f32 %v2208, 0.5
  %v2210 = vadd.f32 %v2209, 0.5
  %v2211 = vmul.f32 %v2205, %v1972
  %v2212 = vmul.f32 %v2201, %v2206
  %v2213 = vadd.f32 %v2211, %v2212
  %v2214 = vtanh.pop %v2213
  %v2215 = vmul.f32 %v2210, %v2214
  %v2216 = vpack.c.bf16 %v2215, %v2215
  %v2217 = vsel %vm2104, 1, 0
  %2218 = vset.pattern.permute.xlu0 0
  %2219 = vperm.xlu0 %2218, %v2217
  %v2220 = vpop.permute.xlu0 %2219
  %vm2221 = vcmp.eq.s32.totalorder %v2220, 1
  %vm2222 = vmpackc.low %vm2221, %vm2221
  %v2223 = vsel %vm2222, %v2216, %v1971
  %v2224 = vsel %vm2221, %v2213, %v1972
  %v2225 = vsel %vm2221, %v2215, 0.0
  %s2226 = scalar_lea.vmem %s60, 72
  %2227 = vst [vmem:[%s2226] sm:$0xff] %v2225
  %s2228 = sadd.s32 %s138, 7
  %v2229 = vstv %s2228
  %vm2230 = vcmp.lt.s32.totalorder %v2229, %v137
  %s2231 = scalar_lea.vmem %s0, 112
  %v2232 = vld [vmem:[%s2231] sm:$0xff]
  %v2233 = vld [vmem:[%s2231 + $0x8] sm:$0xff]
  %v2234 = vunpack.c.l.bf16 %v2232
  %v2235 = vunpack.c.h.bf16 %v2232
  %v2236 = vunpack.c.l.bf16 %v2233
  %v2237 = vunpack.c.h.bf16 %v2233
  %2238 = vmatprep.subr.bf16.mxu0 %v252
  %2239 = vmatpush1.bf16.msra.mxu0 %v251
  %2240 = vmatprep.subr.bf16.mxu0 %v256
  %2241 = vmatpush1.bf16.msra.mxu0 %v255
  %2242 = vmatprep.subr.bf16.mxu0 %v260
  %2243 = vmatpush1.bf16.msra.mxu0 %v259
  %2244 = vmatprep.subr.bf16.mxu0 %v264
  %2245 = vmatpush1.bf16.msra.mxu0 %v263
  %2246 = vmatprep.subr.bf16.mxu0 %v268
  %2247 = vmatpush1.bf16.msra.mxu0 %v267
  %2248 = vmatprep.subr.bf16.mxu0 %v272
  %2249 = vmatpush1.bf16.msra.mxu0 %v271
  %2250 = vmatprep.subr.bf16.mxu0 %v276
  %2251 = vmatpush1.bf16.msra.mxu0 %v275
  %2252 = vmatprep.subr.bf16.mxu0 %v280
  %2253 = vmatpush1.bf16.msra.mxu0 %v279
  %2254 = vmatprep.subr.bf16.mxu0 0
  %2255 = vmatpush1.bf16.msra.mxu0 0
  %2256 = vmatprep.subr.bf16.mxu0 0
  %2257 = vmatpush1.bf16.msra.mxu0 0
  %2258 = vmatprep.subr.bf16.mxu0 0
  %2259 = vmatpush1.bf16.msra.mxu0 0
  %2260 = vmatprep.subr.bf16.mxu0 0
  %2261 = vmatpush1.bf16.msra.mxu0 0
  %2262 = vmatprep.subr.bf16.mxu0 0
  %2263 = vmatpush1.bf16.msra.mxu0 0
  %2264 = vmatprep.subr.bf16.mxu0 0
  %2265 = vmatpush1.bf16.msra.mxu0 0
  %2266 = vmatprep.subr.bf16.mxu0 0
  %2267 = vmatpush1.bf16.msra.mxu0 0
  %2268 = vmatprep.subr.bf16.mxu0 0
  %2269 = vmatpush1.bf16.msra.mxu0 0
  %2270 = vmatprep.mubr.bf16.mxu0 0
  %2271 = vmatmul.mubr.bf16.gmra.mrb[0].mxu0 %v2097
  %v2272 = vpop.f32.mrb[0].mxu0
  %v2273 = vadd.f32 0.0, %v2272
  %v2274 = vpop.f32.mrb[0].mxu0
  %v2275 = vadd.f32 0.0, %v2274
  %v2276 = vpop.f32.mrb[0].mxu0
  %v2277 = vpop.f32.mrb[0].mxu0
  %2278 = vdwg.mxu0
  %2279 = vmatprep.subr.bf16.mxu0 %v254
  %2280 = vmatpush1.bf16.msra.mxu0 %v253
  %2281 = vmatprep.subr.bf16.mxu0 %v258
  %2282 = vmatpush1.bf16.msra.mxu0 %v257
  %2283 = vmatprep.subr.bf16.mxu0 %v262
  %2284 = vmatpush1.bf16.msra.mxu0 %v261
  %2285 = vmatprep.subr.bf16.mxu0 %v266
  %2286 = vmatpush1.bf16.msra.mxu0 %v265
  %2287 = vmatprep.subr.bf16.mxu0 %v270
  %2288 = vmatpush1.bf16.msra.mxu0 %v269
  %2289 = vmatprep.subr.bf16.mxu0 %v274
  %2290 = vmatpush1.bf16.msra.mxu0 %v273
  %2291 = vmatprep.subr.bf16.mxu0 %v278
  %2292 = vmatpush1.bf16.msra.mxu0 %v277
  %2293 = vmatprep.subr.bf16.mxu0 %v282
  %2294 = vmatpush1.bf16.msra.mxu0 %v281
  %2295 = vmatprep.subr.bf16.mxu0 0
  %2296 = vmatpush1.bf16.msra.mxu0 0
  %2297 = vmatprep.subr.bf16.mxu0 0
  %2298 = vmatpush1.bf16.msra.mxu0 0
  %2299 = vmatprep.subr.bf16.mxu0 0
  %2300 = vmatpush1.bf16.msra.mxu0 0
  %2301 = vmatprep.subr.bf16.mxu0 0
  %2302 = vmatpush1.bf16.msra.mxu0 0
  %2303 = vmatprep.subr.bf16.mxu0 0
  %2304 = vmatpush1.bf16.msra.mxu0 0
  %2305 = vmatprep.subr.bf16.mxu0 0
  %2306 = vmatpush1.bf16.msra.mxu0 0
  %2307 = vmatprep.subr.bf16.mxu0 0
  %2308 = vmatpush1.bf16.msra.mxu0 0
  %2309 = vmatprep.subr.bf16.mxu0 0
  %2310 = vmatpush1.bf16.msra.mxu0 0
  %2311 = vmatprep.mubr.bf16.mxu0 0
  %2312 = vmatmul.mubr.bf16.gmra.mrb[0].mxu0 %v2097
  %v2313 = vpop.f32.mrb[0].mxu0
  %v2314 = vadd.f32 0.0, %v2313
  %v2315 = vpop.f32.mrb[0].mxu0
  %v2316 = vadd.f32 0.0, %v2315
  %v2317 = vpop.f32.mrb[0].mxu0
  %v2318 = vpop.f32.mrb[0].mxu0
  %2319 = vdwg.mxu0
  %v2320 = vadd.f32 %v2234, %v2273
  %v2321 = vadd.f32 %v2235, %v2275
  %v2322 = vadd.f32 %v2236, %v2314
  %v2323 = vadd.f32 %v2237, %v2316
  %v2324 = vmul.f32 %v2320, 0.5
  %v2325 = vtanh.pop %v2324
  %v2326 = vmul.f32 %v2325, 0.5
  %v2327 = vadd.f32 %v2326, 0.5
  %v2328 = vmul.f32 %v2321, 0.5
  %v2329 = vtanh.pop %v2328
  %v2330 = vmul.f32 %v2329, 0.5
  %v2331 = vadd.f32 %v2330, 0.5
  %v2332 = vtanh.pop %v2322
  %v2333 = vmul.f32 %v2323, 0.5
  %v2334 = vtanh.pop %v2333
  %v2335 = vmul.f32 %v2334, 0.5
  %v2336 = vadd.f32 %v2335, 0.5
  %v2337 = vmul.f32 %v2331, %v2098
  %v2338 = vmul.f32 %v2327, %v2332
  %v2339 = vadd.f32 %v2337, %v2338
  %v2340 = vtanh.pop %v2339
  %v2341 = vmul.f32 %v2336, %v2340
  %v2342 = vpack.c.bf16 %v2341, %v2341
  %v2343 = vsel %vm2230, 1, 0
  %2344 = vset.pattern.permute.xlu0 0
  %2345 = vperm.xlu0 %2344, %v2343
  %v2346 = vpop.permute.xlu0 %2345
  %vm2347 = vcmp.eq.s32.totalorder %v2346, 1
  %vm2348 = vmpackc.low %vm2347, %vm2347
  %v2349 = vsel %vm2348, %v2342, %v2097
  %v2350 = vsel %vm2347, %v2339, %v2098
  %v2351 = vsel %vm2347, %v2341, 0.0
  %s2352 = scalar_lea.vmem %s4, 56
  %2353 = vst [vmem:[%s2352] sm:$0xff] %v2351
  %s2354 = sadd.s32 %s140, 8
  %v2355 = vstv %s2354
  %vm2356 = vcmp.lt.s32.totalorder %v2355, %v137
  %s2357 = scalar_lea.vmem %s52, 128
  %v2358 = vld [vmem:[%s2357] sm:$0xff]
  %v2359 = vld [vmem:[%s2357 + $0x8] sm:$0xff]
  %v2360 = vunpack.c.l.bf16 %v2358
  %v2361 = vunpack.c.h.bf16 %v2358
  %v2362 = vunpack.c.l.bf16 %v2359
  %v2363 = vunpack.c.h.bf16 %v2359
  %2364 = vmatprep.subr.bf16.mxu0 %v537
  %2365 = vmatpush1.bf16.msra.mxu0 %v536
  %2366 = vmatprep.subr.bf16.mxu0 %v541
  %2367 = vmatpush1.bf16.msra.mxu0 %v540
  %2368 = vmatprep.subr.bf16.mxu0 %v545
  %2369 = vmatpush1.bf16.msra.mxu0 %v544
  %2370 = vmatprep.subr.bf16.mxu0 %v549
  %2371 = vmatpush1.bf16.msra.mxu0 %v548
  %2372 = vmatprep.subr.bf16.mxu0 %v553
  %2373 = vmatpush1.bf16.msra.mxu0 %v552
  %2374 = vmatprep.subr.bf16.mxu0 %v557
  %2375 = vmatpush1.bf16.msra.mxu0 %v556
  %2376 = vmatprep.subr.bf16.mxu0 %v561
  %2377 = vmatpush1.bf16.msra.mxu0 %v560
  %2378 = vmatprep.subr.bf16.mxu0 %v565
  %2379 = vmatpush1.bf16.msra.mxu0 %v564
  %2380 = vmatprep.subr.bf16.mxu0 0
  %2381 = vmatpush1.bf16.msra.mxu0 0
  %2382 = vmatprep.subr.bf16.mxu0 0
  %2383 = vmatpush1.bf16.msra.mxu0 0
  %2384 = vmatprep.subr.bf16.mxu0 0
  %2385 = vmatpush1.bf16.msra.mxu0 0
  %2386 = vmatprep.subr.bf16.mxu0 0
  %2387 = vmatpush1.bf16.msra.mxu0 0
  %2388 = vmatprep.subr.bf16.mxu0 0
  %2389 = vmatpush1.bf16.msra.mxu0 0
  %2390 = vmatprep.subr.bf16.mxu0 0
  %2391 = vmatpush1.bf16.msra.mxu0 0
  %2392 = vmatprep.subr.bf16.mxu0 0
  %2393 = vmatpush1.bf16.msra.mxu0 0
  %2394 = vmatprep.subr.bf16.mxu0 0
  %2395 = vmatpush1.bf16.msra.mxu0 0
  %2396 = vmatprep.mubr.bf16.mxu0 0
  %2397 = vmatmul.mubr.bf16.gmra.mrb[0].mxu0 %v2223
  %v2398 = vpop.f32.mrb[0].mxu0
  %v2399 = vadd.f32 0.0, %v2398
  %v2400 = vpop.f32.mrb[0].mxu0
  %v2401 = vadd.f32 0.0, %v2400
  %v2402 = vpop.f32.mrb[0].mxu0
  %v2403 = vpop.f32.mrb[0].mxu0
  %2404 = vdwg.mxu0
  %2405 = vmatprep.subr.bf16.mxu0 %v539
  %2406 = vmatpush1.bf16.msra.mxu0 %v538
  %2407 = vmatprep.subr.bf16.mxu0 %v543
  %2408 = vmatpush1.bf16.msra.mxu0 %v542
  %2409 = vmatprep.subr.bf16.mxu0 %v547
  %2410 = vmatpush1.bf16.msra.mxu0 %v546
  %2411 = vmatprep.subr.bf16.mxu0 %v551
  %2412 = vmatpush1.bf16.msra.mxu0 %v550
  %2413 = vmatprep.subr.bf16.mxu0 %v555
  %2414 = vmatpush1.bf16.msra.mxu0 %v554
  %2415 = vmatprep.subr.bf16.mxu0 %v559
  %2416 = vmatpush1.bf16.msra.mxu0 %v558
  %2417 = vmatprep.subr.bf16.mxu0 %v563
  %2418 = vmatpush1.bf16.msra.mxu0 %v562
  %2419 = vmatprep.subr.bf16.mxu0 %v567
  %2420 = vmatpush1.bf16.msra.mxu0 %v566
  %2421 = vmatprep.subr.bf16.mxu0 0
  %2422 = vmatpush1.bf16.msra.mxu0 0
  %2423 = vmatprep.subr.bf16.mxu0 0
  %2424 = vmatpush1.bf16.msra.mxu0 0
  %2425 = vmatprep.subr.bf16.mxu0 0
  %2426 = vmatpush1.bf16.msra.mxu0 0
  %2427 = vmatprep.subr.bf16.mxu0 0
  %2428 = vmatpush1.bf16.msra.mxu0 0
  %2429 = vmatprep.subr.bf16.mxu0 0
  %2430 = vmatpush1.bf16.msra.mxu0 0
  %2431 = vmatprep.subr.bf16.mxu0 0
  %2432 = vmatpush1.bf16.msra.mxu0 0
  %2433 = vmatprep.subr.bf16.mxu0 0
  %2434 = vmatpush1.bf16.msra.mxu0 0
  %2435 = vmatprep.subr.bf16.mxu0 0
  %2436 = vmatpush1.bf16.msra.mxu0 0
  %2437 = vmatprep.mubr.bf16.mxu0 0
  %2438 = vmatmul.mubr.bf16.gmra.mrb[0].mxu0 %v2223
  %v2439 = vpop.f32.mrb[0].mxu0
  %v2440 = vadd.f32 0.0, %v2439
  %v2441 = vpop.f32.mrb[0].mxu0
  %v2442 = vadd.f32 0.0, %v2441
  %v2443 = vpop.f32.mrb[0].mxu0
  %v2444 = vpop.f32.mrb[0].mxu0
  %2445 = vdwg.mxu0
  %v2446 = vadd.f32 %v2360, %v2399
  %v2447 = vadd.f32 %v2361, %v2401
  %v2448 = vadd.f32 %v2362, %v2440
  %v2449 = vadd.f32 %v2363, %v2442
  %v2450 = vmul.f32 %v2446, 0.5
  %v2451 = vtanh.pop %v2450
  %v2452 = vmul.f32 %v2451, 0.5
  %v2453 = vadd.f32 %v2452, 0.5
  %v2454 = vmul.f32 %v2447, 0.5
  %v2455 = vtanh.pop %v2454
  %v2456 = vmul.f32 %v2455, 0.5
  %v2457 = vadd.f32 %v2456, 0.5
  %v2458 = vtanh.pop %v2448
  %v2459 = vmul.f32 %v2449, 0.5
  %v2460 = vtanh.pop %v2459
  %v2461 = vmul.f32 %v2460, 0.5
  %v2462 = vadd.f32 %v2461, 0.5
  %v2463 = vmul.f32 %v2457, %v2224
  %v2464 = vmul.f32 %v2453, %v2458
  %v2465 = vadd.f32 %v2463, %v2464
  %v2466 = vtanh.pop %v2465
  %v2467 = vmul.f32 %v2462, %v2466
  %v2468 = vpack.c.bf16 %v2467, %v2467
  %v2469 = vsel %vm2356, 1, 0
  %2470 = vset.pattern.permute.xlu0 0
  %2471 = vperm.xlu0 %2470, %v2469
  %v2472 = vpop.permute.xlu0 %2471
  %vm2473 = vcmp.eq.s32.totalorder %v2472, 1
  %vm2474 = vmpackc.low %vm2473, %vm2473
  %v2475 = vsel %vm2474, %v2468, %v2223
  %v2476 = vsel %vm2473, %v2465, %v2224
  %v2477 = vsel %vm2473, %v2467, 0.0
  %s2478 = scalar_lea.vmem %s60, 64
  %2479 = vst [vmem:[%s2478] sm:$0xff] %v2477
  %s2480 = sadd.s32 %s138, 8
  %v2481 = vstv %s2480
  %vm2482 = vcmp.lt.s32.totalorder %v2481, %v137
  %s2483 = scalar_lea.vmem %s0, 128
  %v2484 = vld [vmem:[%s2483] sm:$0xff]
  %v2485 = vld [vmem:[%s2483 + $0x8] sm:$0xff]
  %v2486 = vunpack.c.l.bf16 %v2484
  %v2487 = vunpack.c.h.bf16 %v2484
  %v2488 = vunpack.c.l.bf16 %v2485
  %v2489 = vunpack.c.h.bf16 %v2485
  %2490 = vmatprep.subr.bf16.mxu0 %v252
  %2491 = vmatpush1.bf16.msra.mxu0 %v251
  %2492 = vmatprep.subr.bf16.mxu0 %v256
  %2493 = vmatpush1.bf16.msra.mxu0 %v255
  %2494 = vmatprep.subr.bf16.mxu0 %v260
  %2495 = vmatpush1.bf16.msra.mxu0 %v259
  %2496 = vmatprep.subr.bf16.mxu0 %v264
  %2497 = vmatpush1.bf16.msra.mxu0 %v263
  %2498 = vmatprep.subr.bf16.mxu0 %v268
  %2499 = vmatpush1.bf16.msra.mxu0 %v267
  %2500 = vmatprep.subr.bf16.mxu0 %v272
  %2501 = vmatpush1.bf16.msra.mxu0 %v271
  %2502 = vmatprep.subr.bf16.mxu0 %v276
  %2503 = vmatpush1.bf16.msra.mxu0 %v275
  %2504 = vmatprep.subr.bf16.mxu0 %v280
  %2505 = vmatpush1.bf16.msra.mxu0 %v279
  %2506 = vmatprep.subr.bf16.mxu0 0
  %2507 = vmatpush1.bf16.msra.mxu0 0
  %2508 = vmatprep.subr.bf16.mxu0 0
  %2509 = vmatpush1.bf16.msra.mxu0 0
  %2510 = vmatprep.subr.bf16.mxu0 0
  %2511 = vmatpush1.bf16.msra.mxu0 0
  %2512 = vmatprep.subr.bf16.mxu0 0
  %2513 = vmatpush1.bf16.msra.mxu0 0
  %2514 = vmatprep.subr.bf16.mxu0 0
  %2515 = vmatpush1.bf16.msra.mxu0 0
  %2516 = vmatprep.subr.bf16.mxu0 0
  %2517 = vmatpush1.bf16.msra.mxu0 0
  %2518 = vmatprep.subr.bf16.mxu0 0
  %2519 = vmatpush1.bf16.msra.mxu0 0
  %2520 = vmatprep.subr.bf16.mxu0 0
  %2521 = vmatpush1.bf16.msra.mxu0 0
  %2522 = vmatprep.mubr.bf16.mxu0 0
  %2523 = vmatmul.mubr.bf16.gmra.mrb[0].mxu0 %v2349
  %v2524 = vpop.f32.mrb[0].mxu0
  %v2525 = vadd.f32 0.0, %v2524
  %v2526 = vpop.f32.mrb[0].mxu0
  %v2527 = vadd.f32 0.0, %v2526
  %v2528 = vpop.f32.mrb[0].mxu0
  %v2529 = vpop.f32.mrb[0].mxu0
  %2530 = vdwg.mxu0
  %2531 = vmatprep.subr.bf16.mxu0 %v254
  %2532 = vmatpush1.bf16.msra.mxu0 %v253
  %2533 = vmatprep.subr.bf16.mxu0 %v258
  %2534 = vmatpush1.bf16.msra.mxu0 %v257
  %2535 = vmatprep.subr.bf16.mxu0 %v262
  %2536 = vmatpush1.bf16.msra.mxu0 %v261
  %2537 = vmatprep.subr.bf16.mxu0 %v266
  %2538 = vmatpush1.bf16.msra.mxu0 %v265
  %2539 = vmatprep.subr.bf16.mxu0 %v270
  %2540 = vmatpush1.bf16.msra.mxu0 %v269
  %2541 = vmatprep.subr.bf16.mxu0 %v274
  %2542 = vmatpush1.bf16.msra.mxu0 %v273
  %2543 = vmatprep.subr.bf16.mxu0 %v278
  %2544 = vmatpush1.bf16.msra.mxu0 %v277
  %2545 = vmatprep.subr.bf16.mxu0 %v282
  %2546 = vmatpush1.bf16.msra.mxu0 %v281
  %2547 = vmatprep.subr.bf16.mxu0 0
  %2548 = vmatpush1.bf16.msra.mxu0 0
  %2549 = vmatprep.subr.bf16.mxu0 0
  %2550 = vmatpush1.bf16.msra.mxu0 0
  %2551 = vmatprep.subr.bf16.mxu0 0
  %2552 = vmatpush1.bf16.msra.mxu0 0
  %2553 = vmatprep.subr.bf16.mxu0 0
  %2554 = vmatpush1.bf16.msra.mxu0 0
  %2555 = vmatprep.subr.bf16.mxu0 0
  %2556 = vmatpush1.bf16.msra.mxu0 0
  %2557 = vmatprep.subr.bf16.mxu0 0
  %2558 = vmatpush1.bf16.msra.mxu0 0
  %2559 = vmatprep.subr.bf16.mxu0 0
  %2560 = vmatpush1.bf16.msra.mxu0 0
  %2561 = vmatprep.subr.bf16.mxu0 0
  %2562 = vmatpush1.bf16.msra.mxu0 0
  %2563 = vmatprep.mubr.bf16.mxu0 0
  %2564 = vmatmul.mubr.bf16.gmra.mrb[0].mxu0 %v2349
  %v2565 = vpop.f32.mrb[0].mxu0
  %v2566 = vadd.f32 0.0, %v2565
  %v2567 = vpop.f32.mrb[0].mxu0
  %v2568 = vadd.f32 0.0, %v2567
  %v2569 = vpop.f32.mrb[0].mxu0
  %v2570 = vpop.f32.mrb[0].mxu0
  %2571 = vdwg.mxu0
  %v2572 = vadd.f32 %v2486, %v2525
  %v2573 = vadd.f32 %v2487, %v2527
  %v2574 = vadd.f32 %v2488, %v2566
  %v2575 = vadd.f32 %v2489, %v2568
  %v2576 = vmul.f32 %v2572, 0.5
  %v2577 = vtanh.pop %v2576
  %v2578 = vmul.f32 %v2577, 0.5
  %v2579 = vadd.f32 %v2578, 0.5
  %v2580 = vmul.f32 %v2573, 0.5
  %v2581 = vtanh.pop %v2580
  %v2582 = vmul.f32 %v2581, 0.5
  %v2583 = vadd.f32 %v2582, 0.5
  %v2584 = vtanh.pop %v2574
  %v2585 = vmul.f32 %v2575, 0.5
  %v2586 = vtanh.pop %v2585
  %v2587 = vmul.f32 %v2586, 0.5
  %v2588 = vadd.f32 %v2587, 0.5
  %v2589 = vmul.f32 %v2583, %v2350
  %v2590 = vmul.f32 %v2579, %v2584
  %v2591 = vadd.f32 %v2589, %v2590
  %v2592 = vtanh.pop %v2591
  %v2593 = vmul.f32 %v2588, %v2592
  %v2594 = vpack.c.bf16 %v2593, %v2593
  %v2595 = vsel %vm2482, 1, 0
  %2596 = vset.pattern.permute.xlu0 0
  %2597 = vperm.xlu0 %2596, %v2595
  %v2598 = vpop.permute.xlu0 %2597
  %vm2599 = vcmp.eq.s32.totalorder %v2598, 1
  %vm2600 = vmpackc.low %vm2599, %vm2599
  %v2601 = vsel %vm2600, %v2594, %v2349
  %v2602 = vsel %vm2599, %v2591, %v2350
  %v2603 = vsel %vm2599, %v2593, 0.0
  %s2604 = scalar_lea.vmem %s4, 64
  %2605 = vst [vmem:[%s2604] sm:$0xff] %v2603
  %s2606 = sadd.s32 %s140, 7
  %v2607 = vstv %s2606
  %vm2608 = vcmp.lt.s32.totalorder %v2607, %v137
  %s2609 = scalar_lea.vmem %s52, 112
  %v2610 = vld [vmem:[%s2609] sm:$0xff]
  %v2611 = vld [vmem:[%s2609 + $0x8] sm:$0xff]
  %v2612 = vunpack.c.l.bf16 %v2610
  %v2613 = vunpack.c.h.bf16 %v2610
  %v2614 = vunpack.c.l.bf16 %v2611
  %v2615 = vunpack.c.h.bf16 %v2611
  %2616 = vmatprep.subr.bf16.mxu0 %v537
  %2617 = vmatpush1.bf16.msra.mxu0 %v536
  %2618 = vmatprep.subr.bf16.mxu0 %v541
  %2619 = vmatpush1.bf16.msra.mxu0 %v540
  %2620 = vmatprep.subr.bf16.mxu0 %v545
  %2621 = vmatpush1.bf16.msra.mxu0 %v544
  %2622 = vmatprep.subr.bf16.mxu0 %v549
  %2623 = vmatpush1.bf16.msra.mxu0 %v548
  %2624 = vmatprep.subr.bf16.mxu0 %v553
  %2625 = vmatpush1.bf16.msra.mxu0 %v552
  %2626 = vmatprep.subr.bf16.mxu0 %v557
  %2627 = vmatpush1.bf16.msra.mxu0 %v556
  %2628 = vmatprep.subr.bf16.mxu0 %v561
  %2629 = vmatpush1.bf16.msra.mxu0 %v560
  %2630 = vmatprep.subr.bf16.mxu0 %v565
  %2631 = vmatpush1.bf16.msra.mxu0 %v564
  %2632 = vmatprep.subr.bf16.mxu0 0
  %2633 = vmatpush1.bf16.msra.mxu0 0
  %2634 = vmatprep.subr.bf16.mxu0 0
  %2635 = vmatpush1.bf16.msra.mxu0 0
  %2636 = vmatprep.subr.bf16.mxu0 0
  %2637 = vmatpush1.bf16.msra.mxu0 0
  %2638 = vmatprep.subr.bf16.mxu0 0
  %2639 = vmatpush1.bf16.msra.mxu0 0
  %2640 = vmatprep.subr.bf16.mxu0 0
  %2641 = vmatpush1.bf16.msra.mxu0 0
  %2642 = vmatprep.subr.bf16.mxu0 0
  %2643 = vmatpush1.bf16.msra.mxu0 0
  %2644 = vmatprep.subr.bf16.mxu0 0
  %2645 = vmatpush1.bf16.msra.mxu0 0
  %2646 = vmatprep.subr.bf16.mxu0 0
  %2647 = vmatpush1.bf16.msra.mxu0 0
  %2648 = vmatprep.mubr.bf16.mxu0 0
  %2649 = vmatmul.mubr.bf16.gmra.mrb[0].mxu0 %v2475
  %v2650 = vpop.f32.mrb[0].mxu0
  %v2651 = vadd.f32 0.0, %v2650
  %v2652 = vpop.f32.mrb[0].mxu0
  %v2653 = vadd.f32 0.0, %v2652
  %v2654 = vpop.f32.mrb[0].mxu0
  %v2655 = vpop.f32.mrb[0].mxu0
  %2656 = vdwg.mxu0
  %2657 = vmatprep.subr.bf16.mxu0 %v539
  %2658 = vmatpush1.bf16.msra.mxu0 %v538
  %2659 = vmatprep.subr.bf16.mxu0 %v543
  %2660 = vmatpush1.bf16.msra.mxu0 %v542
  %2661 = vmatprep.subr.bf16.mxu0 %v547
  %2662 = vmatpush1.bf16.msra.mxu0 %v546
  %2663 = vmatprep.subr.bf16.mxu0 %v551
  %2664 = vmatpush1.bf16.msra.mxu0 %v550
  %2665 = vmatprep.subr.bf16.mxu0 %v555
  %2666 = vmatpush1.bf16.msra.mxu0 %v554
  %2667 = vmatprep.subr.bf16.mxu0 %v559
  %2668 = vmatpush1.bf16.msra.mxu0 %v558
  %2669 = vmatprep.subr.bf16.mxu0 %v563
  %2670 = vmatpush1.bf16.msra.mxu0 %v562
  %2671 = vmatprep.subr.bf16.mxu0 %v567
  %2672 = vmatpush1.bf16.msra.mxu0 %v566
  %2673 = vmatprep.subr.bf16.mxu0 0
  %2674 = vmatpush1.bf16.msra.mxu0 0
  %2675 = vmatprep.subr.bf16.mxu0 0
  %2676 = vmatpush1.bf16.msra.mxu0 0
  %2677 = vmatprep.subr.bf16.mxu0 0
  %2678 = vmatpush1.bf16.msra.mxu0 0
  %2679 = vmatprep.subr.bf16.mxu0 0
  %2680 = vmatpush1.bf16.msra.mxu0 0
  %2681 = vmatprep.subr.bf16.mxu0 0
  %2682 = vmatpush1.bf16.msra.mxu0 0
  %2683 = vmatprep.subr.bf16.mxu0 0
  %2684 = vmatpush1.bf16.msra.mxu0 0
  %2685 = vmatprep.subr.bf16.mxu0 0
  %2686 = vmatpush1.bf16.msra.mxu0 0
  %2687 = vmatprep.subr.bf16.mxu0 0
  %2688 = vmatpush1.bf16.msra.mxu0 0
  %2689 = vmatprep.mubr.bf16.mxu0 0
  %2690 = vmatmul.mubr.bf16.gmra.mrb[0].mxu0 %v2475
  %v2691 = vpop.f32.mrb[0].mxu0
  %v2692 = vadd.f32 0.0, %v2691
  %v2693 = vpop.f32.mrb[0].mxu0
  %v2694 = vadd.f32 0.0, %v2693
  %v2695 = vpop.f32.mrb[0].mxu0
  %v2696 = vpop.f32.mrb[0].mxu0
  %2697 = vdwg.mxu0
  %v2698 = vadd.f32 %v2612, %v2651
  %v2699 = vadd.f32 %v2613, %v2653
  %v2700 = vadd.f32 %v2614, %v2692
  %v2701 = vadd.f32 %v2615, %v2694
  %v2702 = vmul.f32 %v2698, 0.5
  %v2703 = vtanh.pop %v2702
  %v2704 = vmul.f32 %v2703, 0.5
  %v2705 = vadd.f32 %v2704, 0.5
  %v2706 = vmul.f32 %v2699, 0.5
  %v2707 = vtanh.pop %v2706
  %v2708 = vmul.f32 %v2707, 0.5
  %v2709 = vadd.f32 %v2708, 0.5
  %v2710 = vtanh.pop %v2700
  %v2711 = vmul.f32 %v2701, 0.5
  %v2712 = vtanh.pop %v2711
  %v2713 = vmul.f32 %v2712, 0.5
  %v2714 = vadd.f32 %v2713, 0.5
  %v2715 = vmul.f32 %v2709, %v2476
  %v2716 = vmul.f32 %v2705, %v2710
  %v2717 = vadd.f32 %v2715, %v2716
  %v2718 = vtanh.pop %v2717
  %v2719 = vmul.f32 %v2714, %v2718
  %v2720 = vpack.c.bf16 %v2719, %v2719
  %v2721 = vsel %vm2608, 1, 0
  %2722 = vset.pattern.permute.xlu0 0
  %2723 = vperm.xlu0 %2722, %v2721
  %v2724 = vpop.permute.xlu0 %2723
  %vm2725 = vcmp.eq.s32.totalorder %v2724, 1
  %vm2726 = vmpackc.low %vm2725, %vm2725
  %v2727 = vsel %vm2726, %v2720, %v2475
  %v2728 = vsel %vm2725, %v2717, %v2476
  %v2729 = vsel %vm2725, %v2719, 0.0
  %s2730 = scalar_lea.vmem %s60, 56
  %2731 = vst [vmem:[%s2730] sm:$0xff] %v2729
  %s2732 = sadd.s32 %s138, 9
  %v2733 = vstv %s2732
  %vm2734 = vcmp.lt.s32.totalorder %v2733, %v137
  %s2735 = scalar_lea.vmem %s0, 144
  %v2736 = vld [vmem:[%s2735] sm:$0xff]
  %v2737 = vld [vmem:[%s2735 + $0x8] sm:$0xff]
  %v2738 = vunpack.c.l.bf16 %v2736
  %v2739 = vunpack.c.h.bf16 %v2736
  %v2740 = vunpack.c.l.bf16 %v2737
  %v2741 = vunpack.c.h.bf16 %v2737
  %2742 = vmatprep.subr.bf16.mxu0 %v252
  %2743 = vmatpush1.bf16.msra.mxu0 %v251
  %2744 = vmatprep.subr.bf16.mxu0 %v256
  %2745 = vmatpush1.bf16.msra.mxu0 %v255
  %2746 = vmatprep.subr.bf16.mxu0 %v260
  %2747 = vmatpush1.bf16.msra.mxu0 %v259
  %2748 = vmatprep.subr.bf16.mxu0 %v264
  %2749 = vmatpush1.bf16.msra.mxu0 %v263
  %2750 = vmatprep.subr.bf16.mxu0 %v268
  %2751 = vmatpush1.bf16.msra.mxu0 %v267
  %2752 = vmatprep.subr.bf16.mxu0 %v272
  %2753 = vmatpush1.bf16.msra.mxu0 %v271
  %2754 = vmatprep.subr.bf16.mxu0 %v276
  %2755 = vmatpush1.bf16.msra.mxu0 %v275
  %2756 = vmatprep.subr.bf16.mxu0 %v280
  %2757 = vmatpush1.bf16.msra.mxu0 %v279
  %2758 = vmatprep.subr.bf16.mxu0 0
  %2759 = vmatpush1.bf16.msra.mxu0 0
  %2760 = vmatprep.subr.bf16.mxu0 0
  %2761 = vmatpush1.bf16.msra.mxu0 0
  %2762 = vmatprep.subr.bf16.mxu0 0
  %2763 = vmatpush1.bf16.msra.mxu0 0
  %2764 = vmatprep.subr.bf16.mxu0 0
  %2765 = vmatpush1.bf16.msra.mxu0 0
  %2766 = vmatprep.subr.bf16.mxu0 0
  %2767 = vmatpush1.bf16.msra.mxu0 0
  %2768 = vmatprep.subr.bf16.mxu0 0
  %2769 = vmatpush1.bf16.msra.mxu0 0
  %2770 = vmatprep.subr.bf16.mxu0 0
  %2771 = vmatpush1.bf16.msra.mxu0 0
  %2772 = vmatprep.subr.bf16.mxu0 0
  %2773 = vmatpush1.bf16.msra.mxu0 0
  %2774 = vmatprep.mubr.bf16.mxu0 0
  %2775 = vmatmul.mubr.bf16.gmra.mrb[0].mxu0 %v2601
  %v2776 = vpop.f32.mrb[0].mxu0
  %v2777 = vadd.f32 0.0, %v2776
  %v2778 = vpop.f32.mrb[0].mxu0
  %v2779 = vadd.f32 0.0, %v2778
  %v2780 = vpop.f32.mrb[0].mxu0
  %v2781 = vpop.f32.mrb[0].mxu0
  %2782 = vdwg.mxu0
  %2783 = vmatprep.subr.bf16.mxu0 %v254
  %2784 = vmatpush1.bf16.msra.mxu0 %v253
  %2785 = vmatprep.subr.bf16.mxu0 %v258
  %2786 = vmatpush1.bf16.msra.mxu0 %v257
  %2787 = vmatprep.subr.bf16.mxu0 %v262
  %2788 = vmatpush1.bf16.msra.mxu0 %v261
  %2789 = vmatprep.subr.bf16.mxu0 %v266
  %2790 = vmatpush1.bf16.msra.mxu0 %v265
  %2791 = vmatprep.subr.bf16.mxu0 %v270
  %2792 = vmatpush1.bf16.msra.mxu0 %v269
  %2793 = vmatprep.subr.bf16.mxu0 %v274
  %2794 = vmatpush1.bf16.msra.mxu0 %v273
  %2795 = vmatprep.subr.bf16.mxu0 %v278
  %2796 = vmatpush1.bf16.msra.mxu0 %v277
  %2797 = vmatprep.subr.bf16.mxu0 %v282
  %2798 = vmatpush1.bf16.msra.mxu0 %v281
  %2799 = vmatprep.subr.bf16.mxu0 0
  %2800 = vmatpush1.bf16.msra.mxu0 0
  %2801 = vmatprep.subr.bf16.mxu0 0
  %2802 = vmatpush1.bf16.msra.mxu0 0
  %2803 = vmatprep.subr.bf16.mxu0 0
  %2804 = vmatpush1.bf16.msra.mxu0 0
  %2805 = vmatprep.subr.bf16.mxu0 0
  %2806 = vmatpush1.bf16.msra.mxu0 0
  %2807 = vmatprep.subr.bf16.mxu0 0
  %2808 = vmatpush1.bf16.msra.mxu0 0
  %2809 = vmatprep.subr.bf16.mxu0 0
  %2810 = vmatpush1.bf16.msra.mxu0 0
  %2811 = vmatprep.subr.bf16.mxu0 0
  %2812 = vmatpush1.bf16.msra.mxu0 0
  %2813 = vmatprep.subr.bf16.mxu0 0
  %2814 = vmatpush1.bf16.msra.mxu0 0
  %2815 = vmatprep.mubr.bf16.mxu0 0
  %2816 = vmatmul.mubr.bf16.gmra.mrb[0].mxu0 %v2601
  %v2817 = vpop.f32.mrb[0].mxu0
  %v2818 = vadd.f32 0.0, %v2817
  %v2819 = vpop.f32.mrb[0].mxu0
  %v2820 = vadd.f32 0.0, %v2819
  %v2821 = vpop.f32.mrb[0].mxu0
  %v2822 = vpop.f32.mrb[0].mxu0
  %2823 = vdwg.mxu0
  %v2824 = vadd.f32 %v2738, %v2777
  %v2825 = vadd.f32 %v2739, %v2779
  %v2826 = vadd.f32 %v2740, %v2818
  %v2827 = vadd.f32 %v2741, %v2820
  %v2828 = vmul.f32 %v2824, 0.5
  %v2829 = vtanh.pop %v2828
  %v2830 = vmul.f32 %v2829, 0.5
  %v2831 = vadd.f32 %v2830, 0.5
  %v2832 = vmul.f32 %v2825, 0.5
  %v2833 = vtanh.pop %v2832
  %v2834 = vmul.f32 %v2833, 0.5
  %v2835 = vadd.f32 %v2834, 0.5
  %v2836 = vtanh.pop %v2826
  %v2837 = vmul.f32 %v2827, 0.5
  %v2838 = vtanh.pop %v2837
  %v2839 = vmul.f32 %v2838, 0.5
  %v2840 = vadd.f32 %v2839, 0.5
  %v2841 = vmul.f32 %v2835, %v2602
  %v2842 = vmul.f32 %v2831, %v2836
  %v2843 = vadd.f32 %v2841, %v2842
  %v2844 = vtanh.pop %v2843
  %v2845 = vmul.f32 %v2840, %v2844
  %v2846 = vpack.c.bf16 %v2845, %v2845
  %v2847 = vsel %vm2734, 1, 0
  %2848 = vset.pattern.permute.xlu0 0
  %2849 = vperm.xlu0 %2848, %v2847
  %v2850 = vpop.permute.xlu0 %2849
  %vm2851 = vcmp.eq.s32.totalorder %v2850, 1
  %vm2852 = vmpackc.low %vm2851, %vm2851
  %v2853 = vsel %vm2852, %v2846, %v2601
  %v2854 = vsel %vm2851, %v2843, %v2602
  %v2855 = vsel %vm2851, %v2845, 0.0
  %s2856 = scalar_lea.vmem %s4, 72
  %2857 = vst [vmem:[%s2856] sm:$0xff] %v2855
  %s2858 = sadd.s32 %s140, 6
  %v2859 = vstv %s2858
  %vm2860 = vcmp.lt.s32.totalorder %v2859, %v137
  %s2861 = scalar_lea.vmem %s52, 96
  %v2862 = vld [vmem:[%s2861] sm:$0xff]
  %v2863 = vld [vmem:[%s2861 + $0x8] sm:$0xff]
  %v2864 = vunpack.c.l.bf16 %v2862
  %v2865 = vunpack.c.h.bf16 %v2862
  %v2866 = vunpack.c.l.bf16 %v2863
  %v2867 = vunpack.c.h.bf16 %v2863
  %2868 = vmatprep.subr.bf16.mxu0 %v537
  %2869 = vmatpush1.bf16.msra.mxu0 %v536
  %2870 = vmatprep.subr.bf16.mxu0 %v541
  %2871 = vmatpush1.bf16.msra.mxu0 %v540
  %2872 = vmatprep.subr.bf16.mxu0 %v545
  %2873 = vmatpush1.bf16.msra.mxu0 %v544
  %2874 = vmatprep.subr.bf16.mxu0 %v549
  %2875 = vmatpush1.bf16.msra.mxu0 %v548
  %2876 = vmatprep.subr.bf16.mxu0 %v553
  %2877 = vmatpush1.bf16.msra.mxu0 %v552
  %2878 = vmatprep.subr.bf16.mxu0 %v557
  %2879 = vmatpush1.bf16.msra.mxu0 %v556
  %2880 = vmatprep.subr.bf16.mxu0 %v561
  %2881 = vmatpush1.bf16.msra.mxu0 %v560
  %2882 = vmatprep.subr.bf16.mxu0 %v565
  %2883 = vmatpush1.bf16.msra.mxu0 %v564
  %2884 = vmatprep.subr.bf16.mxu0 0
  %2885 = vmatpush1.bf16.msra.mxu0 0
  %2886 = vmatprep.subr.bf16.mxu0 0
  %2887 = vmatpush1.bf16.msra.mxu0 0
  %2888 = vmatprep.subr.bf16.mxu0 0
  %2889 = vmatpush1.bf16.msra.mxu0 0
  %2890 = vmatprep.subr.bf16.mxu0 0
  %2891 = vmatpush1.bf16.msra.mxu0 0
  %2892 = vmatprep.subr.bf16.mxu0 0
  %2893 = vmatpush1.bf16.msra.mxu0 0
  %2894 = vmatprep.subr.bf16.mxu0 0
  %2895 = vmatpush1.bf16.msra.mxu0 0
  %2896 = vmatprep.subr.bf16.mxu0 0
  %2897 = vmatpush1.bf16.msra.mxu0 0
  %2898 = vmatprep.subr.bf16.mxu0 0
  %2899 = vmatpush1.bf16.msra.mxu0 0
  %2900 = vmatprep.mubr.bf16.mxu0 0
  %2901 = vmatmul.mubr.bf16.gmra.mrb[0].mxu0 %v2727
  %v2902 = vpop.f32.mrb[0].mxu0
  %v2903 = vadd.f32 0.0, %v2902
  %v2904 = vpop.f32.mrb[0].mxu0
  %v2905 = vadd.f32 0.0, %v2904
  %v2906 = vpop.f32.mrb[0].mxu0
  %v2907 = vpop.f32.mrb[0].mxu0
  %2908 = vdwg.mxu0
  %2909 = vmatprep.subr.bf16.mxu0 %v539
  %2910 = vmatpush1.bf16.msra.mxu0 %v538
  %2911 = vmatprep.subr.bf16.mxu0 %v543
  %2912 = vmatpush1.bf16.msra.mxu0 %v542
  %2913 = vmatprep.subr.bf16.mxu0 %v547
  %2914 = vmatpush1.bf16.msra.mxu0 %v546
  %2915 = vmatprep.subr.bf16.mxu0 %v551
  %2916 = vmatpush1.bf16.msra.mxu0 %v550
  %2917 = vmatprep.subr.bf16.mxu0 %v555
  %2918 = vmatpush1.bf16.msra.mxu0 %v554
  %2919 = vmatprep.subr.bf16.mxu0 %v559
  %2920 = vmatpush1.bf16.msra.mxu0 %v558
  %2921 = vmatprep.subr.bf16.mxu0 %v563
  %2922 = vmatpush1.bf16.msra.mxu0 %v562
  %2923 = vmatprep.subr.bf16.mxu0 %v567
  %2924 = vmatpush1.bf16.msra.mxu0 %v566
  %2925 = vmatprep.subr.bf16.mxu0 0
  %2926 = vmatpush1.bf16.msra.mxu0 0
  %2927 = vmatprep.subr.bf16.mxu0 0
  %2928 = vmatpush1.bf16.msra.mxu0 0
  %2929 = vmatprep.subr.bf16.mxu0 0
  %2930 = vmatpush1.bf16.msra.mxu0 0
  %2931 = vmatprep.subr.bf16.mxu0 0
  %2932 = vmatpush1.bf16.msra.mxu0 0
  %2933 = vmatprep.subr.bf16.mxu0 0
  %2934 = vmatpush1.bf16.msra.mxu0 0
  %2935 = vmatprep.subr.bf16.mxu0 0
  %2936 = vmatpush1.bf16.msra.mxu0 0
  %2937 = vmatprep.subr.bf16.mxu0 0
  %2938 = vmatpush1.bf16.msra.mxu0 0
  %2939 = vmatprep.subr.bf16.mxu0 0
  %2940 = vmatpush1.bf16.msra.mxu0 0
  %2941 = vmatprep.mubr.bf16.mxu0 0
  %2942 = vmatmul.mubr.bf16.gmra.mrb[0].mxu0 %v2727
  %v2943 = vpop.f32.mrb[0].mxu0
  %v2944 = vadd.f32 0.0, %v2943
  %v2945 = vpop.f32.mrb[0].mxu0
  %v2946 = vadd.f32 0.0, %v2945
  %v2947 = vpop.f32.mrb[0].mxu0
  %v2948 = vpop.f32.mrb[0].mxu0
  %2949 = vdwg.mxu0
  %v2950 = vadd.f32 %v2864, %v2903
  %v2951 = vadd.f32 %v2865, %v2905
  %v2952 = vadd.f32 %v2866, %v2944
  %v2953 = vadd.f32 %v2867, %v2946
  %v2954 = vmul.f32 %v2950, 0.5
  %v2955 = vtanh.pop %v2954
  %v2956 = vmul.f32 %v2955, 0.5
  %v2957 = vadd.f32 %v2956, 0.5
  %v2958 = vmul.f32 %v2951, 0.5
  %v2959 = vtanh.pop %v2958
  %v2960 = vmul.f32 %v2959, 0.5
  %v2961 = vadd.f32 %v2960, 0.5
  %v2962 = vtanh.pop %v2952
  %v2963 = vmul.f32 %v2953, 0.5
  %v2964 = vtanh.pop %v2963
  %v2965 = vmul.f32 %v2964, 0.5
  %v2966 = vadd.f32 %v2965, 0.5
  %v2967 = vmul.f32 %v2961, %v2728
  %v2968 = vmul.f32 %v2957, %v2962
  %v2969 = vadd.f32 %v2967, %v2968
  %v2970 = vtanh.pop %v2969
  %v2971 = vmul.f32 %v2966, %v2970
  %v2972 = vpack.c.bf16 %v2971, %v2971
  %v2973 = vsel %vm2860, 1, 0
  %2974 = vset.pattern.permute.xlu0 0
  %2975 = vperm.xlu0 %2974, %v2973
  %v2976 = vpop.permute.xlu0 %2975
  %vm2977 = vcmp.eq.s32.totalorder %v2976, 1
  %vm2978 = vmpackc.low %vm2977, %vm2977
  %v2979 = vsel %vm2978, %v2972, %v2727
  %v2980 = vsel %vm2977, %v2969, %v2728
  %v2981 = vsel %vm2977, %v2971, 0.0
  %s2982 = scalar_lea.vmem %s60, 48
  %2983 = vst [vmem:[%s2982] sm:$0xff] %v2981
  %s2984 = sadd.s32 %s138, 10
  %v2985 = vstv %s2984
  %vm2986 = vcmp.lt.s32.totalorder %v2985, %v137
  %s2987 = scalar_lea.vmem %s0, 160
  %v2988 = vld [vmem:[%s2987] sm:$0xff]
  %v2989 = vld [vmem:[%s2987 + $0x8] sm:$0xff]
  %v2990 = vunpack.c.l.bf16 %v2988
  %v2991 = vunpack.c.h.bf16 %v2988
  %v2992 = vunpack.c.l.bf16 %v2989
  %v2993 = vunpack.c.h.bf16 %v2989
  %2994 = vmatprep.subr.bf16.mxu0 %v252
  %2995 = vmatpush1.bf16.msra.mxu0 %v251
  %2996 = vmatprep.subr.bf16.mxu0 %v256
  %2997 = vmatpush1.bf16.msra.mxu0 %v255
  %2998 = vmatprep.subr.bf16.mxu0 %v260
  %2999 = vmatpush1.bf16.msra.mxu0 %v259
  %3000 = vmatprep.subr.bf16.mxu0 %v264
  %3001 = vmatpush1.bf16.msra.mxu0 %v263
  %3002 = vmatprep.subr.bf16.mxu0 %v268
  %3003 = vmatpush1.bf16.msra.mxu0 %v267
  %3004 = vmatprep.subr.bf16.mxu0 %v272
  %3005 = vmatpush1.bf16.msra.mxu0 %v271
  %3006 = vmatprep.subr.bf16.mxu0 %v276
  %3007 = vmatpush1.bf16.msra.mxu0 %v275
  %3008 = vmatprep.subr.bf16.mxu0 %v280
  %3009 = vmatpush1.bf16.msra.mxu0 %v279
  %3010 = vmatprep.subr.bf16.mxu0 0
  %3011 = vmatpush1.bf16.msra.mxu0 0
  %3012 = vmatprep.subr.bf16.mxu0 0
  %3013 = vmatpush1.bf16.msra.mxu0 0
  %3014 = vmatprep.subr.bf16.mxu0 0
  %3015 = vmatpush1.bf16.msra.mxu0 0
  %3016 = vmatprep.subr.bf16.mxu0 0
  %3017 = vmatpush1.bf16.msra.mxu0 0
  %3018 = vmatprep.subr.bf16.mxu0 0
  %3019 = vmatpush1.bf16.msra.mxu0 0
  %3020 = vmatprep.subr.bf16.mxu0 0
  %3021 = vmatpush1.bf16.msra.mxu0 0
  %3022 = vmatprep.subr.bf16.mxu0 0
  %3023 = vmatpush1.bf16.msra.mxu0 0
  %3024 = vmatprep.subr.bf16.mxu0 0
  %3025 = vmatpush1.bf16.msra.mxu0 0
  %3026 = vmatprep.mubr.bf16.mxu0 0
  %3027 = vmatmul.mubr.bf16.gmra.mrb[0].mxu0 %v2853
  %v3028 = vpop.f32.mrb[0].mxu0
  %v3029 = vadd.f32 0.0, %v3028
  %v3030 = vpop.f32.mrb[0].mxu0
  %v3031 = vadd.f32 0.0, %v3030
  %v3032 = vpop.f32.mrb[0].mxu0
  %v3033 = vpop.f32.mrb[0].mxu0
  %3034 = vdwg.mxu0
  %3035 = vmatprep.subr.bf16.mxu0 %v254
  %3036 = vmatpush1.bf16.msra.mxu0 %v253
  %3037 = vmatprep.subr.bf16.mxu0 %v258
  %3038 = vmatpush1.bf16.msra.mxu0 %v257
  %3039 = vmatprep.subr.bf16.mxu0 %v262
  %3040 = vmatpush1.bf16.msra.mxu0 %v261
  %3041 = vmatprep.subr.bf16.mxu0 %v266
  %3042 = vmatpush1.bf16.msra.mxu0 %v265
  %3043 = vmatprep.subr.bf16.mxu0 %v270
  %3044 = vmatpush1.bf16.msra.mxu0 %v269
  %3045 = vmatprep.subr.bf16.mxu0 %v274
  %3046 = vmatpush1.bf16.msra.mxu0 %v273
  %3047 = vmatprep.subr.bf16.mxu0 %v278
  %3048 = vmatpush1.bf16.msra.mxu0 %v277
  %3049 = vmatprep.subr.bf16.mxu0 %v282
  %3050 = vmatpush1.bf16.msra.mxu0 %v281
  %3051 = vmatprep.subr.bf16.mxu0 0
  %3052 = vmatpush1.bf16.msra.mxu0 0
  %3053 = vmatprep.subr.bf16.mxu0 0
  %3054 = vmatpush1.bf16.msra.mxu0 0
  %3055 = vmatprep.subr.bf16.mxu0 0
  %3056 = vmatpush1.bf16.msra.mxu0 0
  %3057 = vmatprep.subr.bf16.mxu0 0
  %3058 = vmatpush1.bf16.msra.mxu0 0
  %3059 = vmatprep.subr.bf16.mxu0 0
  %3060 = vmatpush1.bf16.msra.mxu0 0
  %3061 = vmatprep.subr.bf16.mxu0 0
  %3062 = vmatpush1.bf16.msra.mxu0 0
  %3063 = vmatprep.subr.bf16.mxu0 0
  %3064 = vmatpush1.bf16.msra.mxu0 0
  %3065 = vmatprep.subr.bf16.mxu0 0
  %3066 = vmatpush1.bf16.msra.mxu0 0
  %3067 = vmatprep.mubr.bf16.mxu0 0
  %3068 = vmatmul.mubr.bf16.gmra.mrb[0].mxu0 %v2853
  %v3069 = vpop.f32.mrb[0].mxu0
  %v3070 = vadd.f32 0.0, %v3069
  %v3071 = vpop.f32.mrb[0].mxu0
  %v3072 = vadd.f32 0.0, %v3071
  %v3073 = vpop.f32.mrb[0].mxu0
  %v3074 = vpop.f32.mrb[0].mxu0
  %3075 = vdwg.mxu0
  %v3076 = vadd.f32 %v2990, %v3029
  %v3077 = vadd.f32 %v2991, %v3031
  %v3078 = vadd.f32 %v2992, %v3070
  %v3079 = vadd.f32 %v2993, %v3072
  %v3080 = vmul.f32 %v3076, 0.5
  %v3081 = vtanh.pop %v3080
  %v3082 = vmul.f32 %v3081, 0.5
  %v3083 = vadd.f32 %v3082, 0.5
  %v3084 = vmul.f32 %v3077, 0.5
  %v3085 = vtanh.pop %v3084
  %v3086 = vmul.f32 %v3085, 0.5
  %v3087 = vadd.f32 %v3086, 0.5
  %v3088 = vtanh.pop %v3078
  %v3089 = vmul.f32 %v3079, 0.5
  %v3090 = vtanh.pop %v3089
  %v3091 = vmul.f32 %v3090, 0.5
  %v3092 = vadd.f32 %v3091, 0.5
  %v3093 = vmul.f32 %v3087, %v2854
  %v3094 = vmul.f32 %v3083, %v3088
  %v3095 = vadd.f32 %v3093, %v3094
  %v3096 = vtanh.pop %v3095
  %v3097 = vmul.f32 %v3092, %v3096
  %v3098 = vpack.c.bf16 %v3097, %v3097
  %v3099 = vsel %vm2986, 1, 0
  %3100 = vset.pattern.permute.xlu0 0
  %3101 = vperm.xlu0 %3100, %v3099
  %v3102 = vpop.permute.xlu0 %3101
  %vm3103 = vcmp.eq.s32.totalorder %v3102, 1
  %vm3104 = vmpackc.low %vm3103, %vm3103
  %v3105 = vsel %vm3104, %v3098, %v2853
  %v3106 = vsel %vm3103, %v3095, %v2854
  %v3107 = vsel %vm3103, %v3097, 0.0
  %s3108 = scalar_lea.vmem %s4, 80
  %3109 = vst [vmem:[%s3108] sm:$0xff] %v3107
  %s3110 = sadd.s32 %s140, 5
  %v3111 = vstv %s3110
  %vm3112 = vcmp.lt.s32.totalorder %v3111, %v137
  %s3113 = scalar_lea.vmem %s52, 80
  %v3114 = vld [vmem:[%s3113] sm:$0xff]
  %v3115 = vld [vmem:[%s3113 + $0x8] sm:$0xff]
  %v3116 = vunpack.c.l.bf16 %v3114
  %v3117 = vunpack.c.h.bf16 %v3114
  %v3118 = vunpack.c.l.bf16 %v3115
  %v3119 = vunpack.c.h.bf16 %v3115
  %3120 = vmatprep.subr.bf16.mxu0 %v537
  %3121 = vmatpush1.bf16.msra.mxu0 %v536
  %3122 = vmatprep.subr.bf16.mxu0 %v541
  %3123 = vmatpush1.bf16.msra.mxu0 %v540
  %3124 = vmatprep.subr.bf16.mxu0 %v545
  %3125 = vmatpush1.bf16.msra.mxu0 %v544
  %3126 = vmatprep.subr.bf16.mxu0 %v549
  %3127 = vmatpush1.bf16.msra.mxu0 %v548
  %3128 = vmatprep.subr.bf16.mxu0 %v553
  %3129 = vmatpush1.bf16.msra.mxu0 %v552
  %3130 = vmatprep.subr.bf16.mxu0 %v557
  %3131 = vmatpush1.bf16.msra.mxu0 %v556
  %3132 = vmatprep.subr.bf16.mxu0 %v561
  %3133 = vmatpush1.bf16.msra.mxu0 %v560
  %3134 = vmatprep.subr.bf16.mxu0 %v565
  %3135 = vmatpush1.bf16.msra.mxu0 %v564
  %3136 = vmatprep.subr.bf16.mxu0 0
  %3137 = vmatpush1.bf16.msra.mxu0 0
  %3138 = vmatprep.subr.bf16.mxu0 0
  %3139 = vmatpush1.bf16.msra.mxu0 0
  %3140 = vmatprep.subr.bf16.mxu0 0
  %3141 = vmatpush1.bf16.msra.mxu0 0
  %3142 = vmatprep.subr.bf16.mxu0 0
  %3143 = vmatpush1.bf16.msra.mxu0 0
  %3144 = vmatprep.subr.bf16.mxu0 0
  %3145 = vmatpush1.bf16.msra.mxu0 0
  %3146 = vmatprep.subr.bf16.mxu0 0
  %3147 = vmatpush1.bf16.msra.mxu0 0
  %3148 = vmatprep.subr.bf16.mxu0 0
  %3149 = vmatpush1.bf16.msra.mxu0 0
  %3150 = vmatprep.subr.bf16.mxu0 0
  %3151 = vmatpush1.bf16.msra.mxu0 0
  %3152 = vmatprep.mubr.bf16.mxu0 0
  %3153 = vmatmul.mubr.bf16.gmra.mrb[0].mxu0 %v2979
  %v3154 = vpop.f32.mrb[0].mxu0
  %v3155 = vadd.f32 0.0, %v3154
  %v3156 = vpop.f32.mrb[0].mxu0
  %v3157 = vadd.f32 0.0, %v3156
  %v3158 = vpop.f32.mrb[0].mxu0
  %v3159 = vpop.f32.mrb[0].mxu0
  %3160 = vdwg.mxu0
  %3161 = vmatprep.subr.bf16.mxu0 %v539
  %3162 = vmatpush1.bf16.msra.mxu0 %v538
  %3163 = vmatprep.subr.bf16.mxu0 %v543
  %3164 = vmatpush1.bf16.msra.mxu0 %v542
  %3165 = vmatprep.subr.bf16.mxu0 %v547
  %3166 = vmatpush1.bf16.msra.mxu0 %v546
  %3167 = vmatprep.subr.bf16.mxu0 %v551
  %3168 = vmatpush1.bf16.msra.mxu0 %v550
  %3169 = vmatprep.subr.bf16.mxu0 %v555
  %3170 = vmatpush1.bf16.msra.mxu0 %v554
  %3171 = vmatprep.subr.bf16.mxu0 %v559
  %3172 = vmatpush1.bf16.msra.mxu0 %v558
  %3173 = vmatprep.subr.bf16.mxu0 %v563
  %3174 = vmatpush1.bf16.msra.mxu0 %v562
  %3175 = vmatprep.subr.bf16.mxu0 %v567
  %3176 = vmatpush1.bf16.msra.mxu0 %v566
  %3177 = vmatprep.subr.bf16.mxu0 0
  %3178 = vmatpush1.bf16.msra.mxu0 0
  %3179 = vmatprep.subr.bf16.mxu0 0
  %3180 = vmatpush1.bf16.msra.mxu0 0
  %3181 = vmatprep.subr.bf16.mxu0 0
  %3182 = vmatpush1.bf16.msra.mxu0 0
  %3183 = vmatprep.subr.bf16.mxu0 0
  %3184 = vmatpush1.bf16.msra.mxu0 0
  %3185 = vmatprep.subr.bf16.mxu0 0
  %3186 = vmatpush1.bf16.msra.mxu0 0
  %3187 = vmatprep.subr.bf16.mxu0 0
  %3188 = vmatpush1.bf16.msra.mxu0 0
  %3189 = vmatprep.subr.bf16.mxu0 0
  %3190 = vmatpush1.bf16.msra.mxu0 0
  %3191 = vmatprep.subr.bf16.mxu0 0
  %3192 = vmatpush1.bf16.msra.mxu0 0
  %3193 = vmatprep.mubr.bf16.mxu0 0
  %3194 = vmatmul.mubr.bf16.gmra.mrb[0].mxu0 %v2979
  %v3195 = vpop.f32.mrb[0].mxu0
  %v3196 = vadd.f32 0.0, %v3195
  %v3197 = vpop.f32.mrb[0].mxu0
  %v3198 = vadd.f32 0.0, %v3197
  %v3199 = vpop.f32.mrb[0].mxu0
  %v3200 = vpop.f32.mrb[0].mxu0
  %3201 = vdwg.mxu0
  %v3202 = vadd.f32 %v3116, %v3155
  %v3203 = vadd.f32 %v3117, %v3157
  %v3204 = vadd.f32 %v3118, %v3196
  %v3205 = vadd.f32 %v3119, %v3198
  %v3206 = vmul.f32 %v3202, 0.5
  %v3207 = vtanh.pop %v3206
  %v3208 = vmul.f32 %v3207, 0.5
  %v3209 = vadd.f32 %v3208, 0.5
  %v3210 = vmul.f32 %v3203, 0.5
  %v3211 = vtanh.pop %v3210
  %v3212 = vmul.f32 %v3211, 0.5
  %v3213 = vadd.f32 %v3212, 0.5
  %v3214 = vtanh.pop %v3204
  %v3215 = vmul.f32 %v3205, 0.5
  %v3216 = vtanh.pop %v3215
  %v3217 = vmul.f32 %v3216, 0.5
  %v3218 = vadd.f32 %v3217, 0.5
  %v3219 = vmul.f32 %v3213, %v2980
  %v3220 = vmul.f32 %v3209, %v3214
  %v3221 = vadd.f32 %v3219, %v3220
  %v3222 = vtanh.pop %v3221
  %v3223 = vmul.f32 %v3218, %v3222
  %v3224 = vpack.c.bf16 %v3223, %v3223
  %v3225 = vsel %vm3112, 1, 0
  %3226 = vset.pattern.permute.xlu0 0
  %3227 = vperm.xlu0 %3226, %v3225
  %v3228 = vpop.permute.xlu0 %3227
  %vm3229 = vcmp.eq.s32.totalorder %v3228, 1
  %vm3230 = vmpackc.low %vm3229, %vm3229
  %v3231 = vsel %vm3230, %v3224, %v2979
  %v3232 = vsel %vm3229, %v3221, %v2980
  %v3233 = vsel %vm3229, %v3223, 0.0
  %s3234 = scalar_lea.vmem %s60, 40
  %3235 = vst [vmem:[%s3234] sm:$0xff] %v3233
  %s3236 = sadd.s32 %s138, 11
  %v3237 = vstv %s3236
  %vm3238 = vcmp.lt.s32.totalorder %v3237, %v137
  %s3239 = scalar_lea.vmem %s0, 176
  %v3240 = vld [vmem:[%s3239] sm:$0xff]
  %v3241 = vld [vmem:[%s3239 + $0x8] sm:$0xff]
  %v3242 = vunpack.c.l.bf16 %v3240
  %v3243 = vunpack.c.h.bf16 %v3240
  %v3244 = vunpack.c.l.bf16 %v3241
  %v3245 = vunpack.c.h.bf16 %v3241
  %3246 = vmatprep.subr.bf16.mxu0 %v252
  %3247 = vmatpush1.bf16.msra.mxu0 %v251
  %3248 = vmatprep.subr.bf16.mxu0 %v256
  %3249 = vmatpush1.bf16.msra.mxu0 %v255
  %3250 = vmatprep.subr.bf16.mxu0 %v260
  %3251 = vmatpush1.bf16.msra.mxu0 %v259
  %3252 = vmatprep.subr.bf16.mxu0 %v264
  %3253 = vmatpush1.bf16.msra.mxu0 %v263
  %3254 = vmatprep.subr.bf16.mxu0 %v268
  %3255 = vmatpush1.bf16.msra.mxu0 %v267
  %3256 = vmatprep.subr.bf16.mxu0 %v272
  %3257 = vmatpush1.bf16.msra.mxu0 %v271
  %3258 = vmatprep.subr.bf16.mxu0 %v276
  %3259 = vmatpush1.bf16.msra.mxu0 %v275
  %3260 = vmatprep.subr.bf16.mxu0 %v280
  %3261 = vmatpush1.bf16.msra.mxu0 %v279
  %3262 = vmatprep.subr.bf16.mxu0 0
  %3263 = vmatpush1.bf16.msra.mxu0 0
  %3264 = vmatprep.subr.bf16.mxu0 0
  %3265 = vmatpush1.bf16.msra.mxu0 0
  %3266 = vmatprep.subr.bf16.mxu0 0
  %3267 = vmatpush1.bf16.msra.mxu0 0
  %3268 = vmatprep.subr.bf16.mxu0 0
  %3269 = vmatpush1.bf16.msra.mxu0 0
  %3270 = vmatprep.subr.bf16.mxu0 0
  %3271 = vmatpush1.bf16.msra.mxu0 0
  %3272 = vmatprep.subr.bf16.mxu0 0
  %3273 = vmatpush1.bf16.msra.mxu0 0
  %3274 = vmatprep.subr.bf16.mxu0 0
  %3275 = vmatpush1.bf16.msra.mxu0 0
  %3276 = vmatprep.subr.bf16.mxu0 0
  %3277 = vmatpush1.bf16.msra.mxu0 0
  %3278 = vmatprep.mubr.bf16.mxu0 0
  %3279 = vmatmul.mubr.bf16.gmra.mrb[0].mxu0 %v3105
  %v3280 = vpop.f32.mrb[0].mxu0
  %v3281 = vadd.f32 0.0, %v3280
  %v3282 = vpop.f32.mrb[0].mxu0
  %v3283 = vadd.f32 0.0, %v3282
  %v3284 = vpop.f32.mrb[0].mxu0
  %v3285 = vpop.f32.mrb[0].mxu0
  %3286 = vdwg.mxu0
  %3287 = vmatprep.subr.bf16.mxu0 %v254
  %3288 = vmatpush1.bf16.msra.mxu0 %v253
  %3289 = vmatprep.subr.bf16.mxu0 %v258
  %3290 = vmatpush1.bf16.msra.mxu0 %v257
  %3291 = vmatprep.subr.bf16.mxu0 %v262
  %3292 = vmatpush1.bf16.msra.mxu0 %v261
  %3293 = vmatprep.subr.bf16.mxu0 %v266
  %3294 = vmatpush1.bf16.msra.mxu0 %v265
  %3295 = vmatprep.subr.bf16.mxu0 %v270
  %3296 = vmatpush1.bf16.msra.mxu0 %v269
  %3297 = vmatprep.subr.bf16.mxu0 %v274
  %3298 = vmatpush1.bf16.msra.mxu0 %v273
  %3299 = vmatprep.subr.bf16.mxu0 %v278
  %3300 = vmatpush1.bf16.msra.mxu0 %v277
  %3301 = vmatprep.subr.bf16.mxu0 %v282
  %3302 = vmatpush1.bf16.msra.mxu0 %v281
  %3303 = vmatprep.subr.bf16.mxu0 0
  %3304 = vmatpush1.bf16.msra.mxu0 0
  %3305 = vmatprep.subr.bf16.mxu0 0
  %3306 = vmatpush1.bf16.msra.mxu0 0
  %3307 = vmatprep.subr.bf16.mxu0 0
  %3308 = vmatpush1.bf16.msra.mxu0 0
  %3309 = vmatprep.subr.bf16.mxu0 0
  %3310 = vmatpush1.bf16.msra.mxu0 0
  %3311 = vmatprep.subr.bf16.mxu0 0
  %3312 = vmatpush1.bf16.msra.mxu0 0
  %3313 = vmatprep.subr.bf16.mxu0 0
  %3314 = vmatpush1.bf16.msra.mxu0 0
  %3315 = vmatprep.subr.bf16.mxu0 0
  %3316 = vmatpush1.bf16.msra.mxu0 0
  %3317 = vmatprep.subr.bf16.mxu0 0
  %3318 = vmatpush1.bf16.msra.mxu0 0
  %3319 = vmatprep.mubr.bf16.mxu0 0
  %3320 = vmatmul.mubr.bf16.gmra.mrb[0].mxu0 %v3105
  %v3321 = vpop.f32.mrb[0].mxu0
  %v3322 = vadd.f32 0.0, %v3321
  %v3323 = vpop.f32.mrb[0].mxu0
  %v3324 = vadd.f32 0.0, %v3323
  %v3325 = vpop.f32.mrb[0].mxu0
  %v3326 = vpop.f32.mrb[0].mxu0
  %3327 = vdwg.mxu0
  %v3328 = vadd.f32 %v3242, %v3281
  %v3329 = vadd.f32 %v3243, %v3283
  %v3330 = vadd.f32 %v3244, %v3322
  %v3331 = vadd.f32 %v3245, %v3324
  %v3332 = vmul.f32 %v3328, 0.5
  %v3333 = vtanh.pop %v3332
  %v3334 = vmul.f32 %v3333, 0.5
  %v3335 = vadd.f32 %v3334, 0.5
  %v3336 = vmul.f32 %v3329, 0.5
  %v3337 = vtanh.pop %v3336
  %v3338 = vmul.f32 %v3337, 0.5
  %v3339 = vadd.f32 %v3338, 0.5
  %v3340 = vtanh.pop %v3330
  %v3341 = vmul.f32 %v3331, 0.5
  %v3342 = vtanh.pop %v3341
  %v3343 = vmul.f32 %v3342, 0.5
  %v3344 = vadd.f32 %v3343, 0.5
  %v3345 = vmul.f32 %v3339, %v3106
  %v3346 = vmul.f32 %v3335, %v3340
  %v3347 = vadd.f32 %v3345, %v3346
  %v3348 = vtanh.pop %v3347
  %v3349 = vmul.f32 %v3344, %v3348
  %v3350 = vpack.c.bf16 %v3349, %v3349
  %v3351 = vsel %vm3238, 1, 0
  %3352 = vset.pattern.permute.xlu0 0
  %3353 = vperm.xlu0 %3352, %v3351
  %v3354 = vpop.permute.xlu0 %3353
  %vm3355 = vcmp.eq.s32.totalorder %v3354, 1
  %vm3356 = vmpackc.low %vm3355, %vm3355
  %v3357 = vsel %vm3356, %v3350, %v3105
  %v3358 = vsel %vm3355, %v3347, %v3106
  %v3359 = vsel %vm3355, %v3349, 0.0
  %s3360 = scalar_lea.vmem %s4, 88
  %3361 = vst [vmem:[%s3360] sm:$0xff] %v3359
  %s3362 = sadd.s32 %s140, 4
  %v3363 = vstv %s3362
  %vm3364 = vcmp.lt.s32.totalorder %v3363, %v137
  %s3365 = scalar_lea.vmem %s52, 64
  %v3366 = vld [vmem:[%s3365] sm:$0xff]
  %v3367 = vld [vmem:[%s3365 + $0x8] sm:$0xff]
  %v3368 = vunpack.c.l.bf16 %v3366
  %v3369 = vunpack.c.h.bf16 %v3366
  %v3370 = vunpack.c.l.bf16 %v3367
  %v3371 = vunpack.c.h.bf16 %v3367
  %3372 = vmatprep.subr.bf16.mxu0 %v537
  %3373 = vmatpush1.bf16.msra.mxu0 %v536
  %3374 = vmatprep.subr.bf16.mxu0 %v541
  %3375 = vmatpush1.bf16.msra.mxu0 %v540
  %3376 = vmatprep.subr.bf16.mxu0 %v545
  %3377 = vmatpush1.bf16.msra.mxu0 %v544
  %3378 = vmatprep.subr.bf16.mxu0 %v549
  %3379 = vmatpush1.bf16.msra.mxu0 %v548
  %3380 = vmatprep.subr.bf16.mxu0 %v553
  %3381 = vmatpush1.bf16.msra.mxu0 %v552
  %3382 = vmatprep.subr.bf16.mxu0 %v557
  %3383 = vmatpush1.bf16.msra.mxu0 %v556
  %3384 = vmatprep.subr.bf16.mxu0 %v561
  %3385 = vmatpush1.bf16.msra.mxu0 %v560
  %3386 = vmatprep.subr.bf16.mxu0 %v565
  %3387 = vmatpush1.bf16.msra.mxu0 %v564
  %3388 = vmatprep.subr.bf16.mxu0 0
  %3389 = vmatpush1.bf16.msra.mxu0 0
  %3390 = vmatprep.subr.bf16.mxu0 0
  %3391 = vmatpush1.bf16.msra.mxu0 0
  %3392 = vmatprep.subr.bf16.mxu0 0
  %3393 = vmatpush1.bf16.msra.mxu0 0
  %3394 = vmatprep.subr.bf16.mxu0 0
  %3395 = vmatpush1.bf16.msra.mxu0 0
  %3396 = vmatprep.subr.bf16.mxu0 0
  %3397 = vmatpush1.bf16.msra.mxu0 0
  %3398 = vmatprep.subr.bf16.mxu0 0
  %3399 = vmatpush1.bf16.msra.mxu0 0
  %3400 = vmatprep.subr.bf16.mxu0 0
  %3401 = vmatpush1.bf16.msra.mxu0 0
  %3402 = vmatprep.subr.bf16.mxu0 0
  %3403 = vmatpush1.bf16.msra.mxu0 0
  %3404 = vmatprep.mubr.bf16.mxu0 0
  %3405 = vmatmul.mubr.bf16.gmra.mrb[0].mxu0 %v3231
  %v3406 = vpop.f32.mrb[0].mxu0
  %v3407 = vadd.f32 0.0, %v3406
  %v3408 = vpop.f32.mrb[0].mxu0
  %v3409 = vadd.f32 0.0, %v3408
  %v3410 = vpop.f32.mrb[0].mxu0
  %v3411 = vpop.f32.mrb[0].mxu0
  %3412 = vdwg.mxu0
  %3413 = vmatprep.subr.bf16.mxu0 %v539
  %3414 = vmatpush1.bf16.msra.mxu0 %v538
  %3415 = vmatprep.subr.bf16.mxu0 %v543
  %3416 = vmatpush1.bf16.msra.mxu0 %v542
  %3417 = vmatprep.subr.bf16.mxu0 %v547
  %3418 = vmatpush1.bf16.msra.mxu0 %v546
  %3419 = vmatprep.subr.bf16.mxu0 %v551
  %3420 = vmatpush1.bf16.msra.mxu0 %v550
  %3421 = vmatprep.subr.bf16.mxu0 %v555
  %3422 = vmatpush1.bf16.msra.mxu0 %v554
  %3423 = vmatprep.subr.bf16.mxu0 %v559
  %3424 = vmatpush1.bf16.msra.mxu0 %v558
  %3425 = vmatprep.subr.bf16.mxu0 %v563
  %3426 = vmatpush1.bf16.msra.mxu0 %v562
  %3427 = vmatprep.subr.bf16.mxu0 %v567
  %3428 = vmatpush1.bf16.msra.mxu0 %v566
  %3429 = vmatprep.subr.bf16.mxu0 0
  %3430 = vmatpush1.bf16.msra.mxu0 0
  %3431 = vmatprep.subr.bf16.mxu0 0
  %3432 = vmatpush1.bf16.msra.mxu0 0
  %3433 = vmatprep.subr.bf16.mxu0 0
  %3434 = vmatpush1.bf16.msra.mxu0 0
  %3435 = vmatprep.subr.bf16.mxu0 0
  %3436 = vmatpush1.bf16.msra.mxu0 0
  %3437 = vmatprep.subr.bf16.mxu0 0
  %3438 = vmatpush1.bf16.msra.mxu0 0
  %3439 = vmatprep.subr.bf16.mxu0 0
  %3440 = vmatpush1.bf16.msra.mxu0 0
  %3441 = vmatprep.subr.bf16.mxu0 0
  %3442 = vmatpush1.bf16.msra.mxu0 0
  %3443 = vmatprep.subr.bf16.mxu0 0
  %3444 = vmatpush1.bf16.msra.mxu0 0
  %3445 = vmatprep.mubr.bf16.mxu0 0
  %3446 = vmatmul.mubr.bf16.gmra.mrb[0].mxu0 %v3231
  %v3447 = vpop.f32.mrb[0].mxu0
  %v3448 = vadd.f32 0.0, %v3447
  %v3449 = vpop.f32.mrb[0].mxu0
  %v3450 = vadd.f32 0.0, %v3449
  %v3451 = vpop.f32.mrb[0].mxu0
  %v3452 = vpop.f32.mrb[0].mxu0
  %3453 = vdwg.mxu0
  %v3454 = vadd.f32 %v3368, %v3407
  %v3455 = vadd.f32 %v3369, %v3409
  %v3456 = vadd.f32 %v3370, %v3448
  %v3457 = vadd.f32 %v3371, %v3450
  %v3458 = vmul.f32 %v3454, 0.5
  %v3459 = vtanh.pop %v3458
  %v3460 = vmul.f32 %v3459, 0.5
  %v3461 = vadd.f32 %v3460, 0.5
  %v3462 = vmul.f32 %v3455, 0.5
  %v3463 = vtanh.pop %v3462
  %v3464 = vmul.f32 %v3463, 0.5
  %v3465 = vadd.f32 %v3464, 0.5
  %v3466 = vtanh.pop %v3456
  %v3467 = vmul.f32 %v3457, 0.5
  %v3468 = vtanh.pop %v3467
  %v3469 = vmul.f32 %v3468, 0.5
  %v3470 = vadd.f32 %v3469, 0.5
  %v3471 = vmul.f32 %v3465, %v3232
  %v3472 = vmul.f32 %v3461, %v3466
  %v3473 = vadd.f32 %v3471, %v3472
  %v3474 = vtanh.pop %v3473
  %v3475 = vmul.f32 %v3470, %v3474
  %v3476 = vpack.c.bf16 %v3475, %v3475
  %v3477 = vsel %vm3364, 1, 0
  %3478 = vset.pattern.permute.xlu0 0
  %3479 = vperm.xlu0 %3478, %v3477
  %v3480 = vpop.permute.xlu0 %3479
  %vm3481 = vcmp.eq.s32.totalorder %v3480, 1
  %vm3482 = vmpackc.low %vm3481, %vm3481
  %v3483 = vsel %vm3482, %v3476, %v3231
  %v3484 = vsel %vm3481, %v3473, %v3232
  %v3485 = vsel %vm3481, %v3475, 0.0
  %s3486 = scalar_lea.vmem %s60, 32
  %3487 = vst [vmem:[%s3486] sm:$0xff] %v3485
  %s3488 = sadd.s32 %s138, 12
  %v3489 = vstv %s3488
  %vm3490 = vcmp.lt.s32.totalorder %v3489, %v137
  %s3491 = scalar_lea.vmem %s0, 192
  %v3492 = vld [vmem:[%s3491] sm:$0xff]
  %v3493 = vld [vmem:[%s3491 + $0x8] sm:$0xff]
  %v3494 = vunpack.c.l.bf16 %v3492
  %v3495 = vunpack.c.h.bf16 %v3492
  %v3496 = vunpack.c.l.bf16 %v3493
  %v3497 = vunpack.c.h.bf16 %v3493
  %3498 = vmatprep.subr.bf16.mxu0 %v252
  %3499 = vmatpush1.bf16.msra.mxu0 %v251
  %3500 = vmatprep.subr.bf16.mxu0 %v256
  %3501 = vmatpush1.bf16.msra.mxu0 %v255
  %3502 = vmatprep.subr.bf16.mxu0 %v260
  %3503 = vmatpush1.bf16.msra.mxu0 %v259
  %3504 = vmatprep.subr.bf16.mxu0 %v264
  %3505 = vmatpush1.bf16.msra.mxu0 %v263
  %3506 = vmatprep.subr.bf16.mxu0 %v268
  %3507 = vmatpush1.bf16.msra.mxu0 %v267
  %3508 = vmatprep.subr.bf16.mxu0 %v272
  %3509 = vmatpush1.bf16.msra.mxu0 %v271
  %3510 = vmatprep.subr.bf16.mxu0 %v276
  %3511 = vmatpush1.bf16.msra.mxu0 %v275
  %3512 = vmatprep.subr.bf16.mxu0 %v280
  %3513 = vmatpush1.bf16.msra.mxu0 %v279
  %3514 = vmatprep.subr.bf16.mxu0 0
  %3515 = vmatpush1.bf16.msra.mxu0 0
  %3516 = vmatprep.subr.bf16.mxu0 0
  %3517 = vmatpush1.bf16.msra.mxu0 0
  %3518 = vmatprep.subr.bf16.mxu0 0
  %3519 = vmatpush1.bf16.msra.mxu0 0
  %3520 = vmatprep.subr.bf16.mxu0 0
  %3521 = vmatpush1.bf16.msra.mxu0 0
  %3522 = vmatprep.subr.bf16.mxu0 0
  %3523 = vmatpush1.bf16.msra.mxu0 0
  %3524 = vmatprep.subr.bf16.mxu0 0
  %3525 = vmatpush1.bf16.msra.mxu0 0
  %3526 = vmatprep.subr.bf16.mxu0 0
  %3527 = vmatpush1.bf16.msra.mxu0 0
  %3528 = vmatprep.subr.bf16.mxu0 0
  %3529 = vmatpush1.bf16.msra.mxu0 0
  %3530 = vmatprep.mubr.bf16.mxu0 0
  %3531 = vmatmul.mubr.bf16.gmra.mrb[0].mxu0 %v3357
  %v3532 = vpop.f32.mrb[0].mxu0
  %v3533 = vadd.f32 0.0, %v3532
  %v3534 = vpop.f32.mrb[0].mxu0
  %v3535 = vadd.f32 0.0, %v3534
  %v3536 = vpop.f32.mrb[0].mxu0
  %v3537 = vpop.f32.mrb[0].mxu0
  %3538 = vdwg.mxu0
  %3539 = vmatprep.subr.bf16.mxu0 %v254
  %3540 = vmatpush1.bf16.msra.mxu0 %v253
  %3541 = vmatprep.subr.bf16.mxu0 %v258
  %3542 = vmatpush1.bf16.msra.mxu0 %v257
  %3543 = vmatprep.subr.bf16.mxu0 %v262
  %3544 = vmatpush1.bf16.msra.mxu0 %v261
  %3545 = vmatprep.subr.bf16.mxu0 %v266
  %3546 = vmatpush1.bf16.msra.mxu0 %v265
  %3547 = vmatprep.subr.bf16.mxu0 %v270
  %3548 = vmatpush1.bf16.msra.mxu0 %v269
  %3549 = vmatprep.subr.bf16.mxu0 %v274
  %3550 = vmatpush1.bf16.msra.mxu0 %v273
  %3551 = vmatprep.subr.bf16.mxu0 %v278
  %3552 = vmatpush1.bf16.msra.mxu0 %v277
  %3553 = vmatprep.subr.bf16.mxu0 %v282
  %3554 = vmatpush1.bf16.msra.mxu0 %v281
  %3555 = vmatprep.subr.bf16.mxu0 0
  %3556 = vmatpush1.bf16.msra.mxu0 0
  %3557 = vmatprep.subr.bf16.mxu0 0
  %3558 = vmatpush1.bf16.msra.mxu0 0
  %3559 = vmatprep.subr.bf16.mxu0 0
  %3560 = vmatpush1.bf16.msra.mxu0 0
  %3561 = vmatprep.subr.bf16.mxu0 0
  %3562 = vmatpush1.bf16.msra.mxu0 0
  %3563 = vmatprep.subr.bf16.mxu0 0
  %3564 = vmatpush1.bf16.msra.mxu0 0
  %3565 = vmatprep.subr.bf16.mxu0 0
  %3566 = vmatpush1.bf16.msra.mxu0 0
  %3567 = vmatprep.subr.bf16.mxu0 0
  %3568 = vmatpush1.bf16.msra.mxu0 0
  %3569 = vmatprep.subr.bf16.mxu0 0
  %3570 = vmatpush1.bf16.msra.mxu0 0
  %3571 = vmatprep.mubr.bf16.mxu0 0
  %3572 = vmatmul.mubr.bf16.gmra.mrb[0].mxu0 %v3357
  %v3573 = vpop.f32.mrb[0].mxu0
  %v3574 = vadd.f32 0.0, %v3573
  %v3575 = vpop.f32.mrb[0].mxu0
  %v3576 = vadd.f32 0.0, %v3575
  %v3577 = vpop.f32.mrb[0].mxu0
  %v3578 = vpop.f32.mrb[0].mxu0
  %3579 = vdwg.mxu0
  %v3580 = vadd.f32 %v3494, %v3533
  %v3581 = vadd.f32 %v3495, %v3535
  %v3582 = vadd.f32 %v3496, %v3574
  %v3583 = vadd.f32 %v3497, %v3576
  %v3584 = vmul.f32 %v3580, 0.5
  %v3585 = vtanh.pop %v3584
  %v3586 = vmul.f32 %v3585, 0.5
  %v3587 = vadd.f32 %v3586, 0.5
  %v3588 = vmul.f32 %v3581, 0.5
  %v3589 = vtanh.pop %v3588
  %v3590 = vmul.f32 %v3589, 0.5
  %v3591 = vadd.f32 %v3590, 0.5
  %v3592 = vtanh.pop %v3582
  %v3593 = vmul.f32 %v3583, 0.5
  %v3594 = vtanh.pop %v3593
  %v3595 = vmul.f32 %v3594, 0.5
  %v3596 = vadd.f32 %v3595, 0.5
  %v3597 = vmul.f32 %v3591, %v3358
  %v3598 = vmul.f32 %v3587, %v3592
  %v3599 = vadd.f32 %v3597, %v3598
  %v3600 = vtanh.pop %v3599
  %v3601 = vmul.f32 %v3596, %v3600
  %v3602 = vpack.c.bf16 %v3601, %v3601
  %v3603 = vsel %vm3490, 1, 0
  %3604 = vset.pattern.permute.xlu0 0
  %3605 = vperm.xlu0 %3604, %v3603
  %v3606 = vpop.permute.xlu0 %3605
  %vm3607 = vcmp.eq.s32.totalorder %v3606, 1
  %vm3608 = vmpackc.low %vm3607, %vm3607
  %v3609 = vsel %vm3608, %v3602, %v3357
  %v3610 = vsel %vm3607, %v3599, %v3358
  %v3611 = vsel %vm3607, %v3601, 0.0
  %s3612 = scalar_lea.vmem %s4, 96
  %3613 = vst [vmem:[%s3612] sm:$0xff] %v3611
  %s3614 = sadd.s32 %s140, 3
  %v3615 = vstv %s3614
  %vm3616 = vcmp.lt.s32.totalorder %v3615, %v137
  %s3617 = scalar_lea.vmem %s52, 48
  %v3618 = vld [vmem:[%s3617] sm:$0xff]
  %v3619 = vld [vmem:[%s3617 + $0x8] sm:$0xff]
  %v3620 = vunpack.c.l.bf16 %v3618
  %v3621 = vunpack.c.h.bf16 %v3618
  %v3622 = vunpack.c.l.bf16 %v3619
  %v3623 = vunpack.c.h.bf16 %v3619
  %3624 = vmatprep.subr.bf16.mxu0 %v537
  %3625 = vmatpush1.bf16.msra.mxu0 %v536
  %3626 = vmatprep.subr.bf16.mxu0 %v541
  %3627 = vmatpush1.bf16.msra.mxu0 %v540
  %3628 = vmatprep.subr.bf16.mxu0 %v545
  %3629 = vmatpush1.bf16.msra.mxu0 %v544
  %3630 = vmatprep.subr.bf16.mxu0 %v549
  %3631 = vmatpush1.bf16.msra.mxu0 %v548
  %3632 = vmatprep.subr.bf16.mxu0 %v553
  %3633 = vmatpush1.bf16.msra.mxu0 %v552
  %3634 = vmatprep.subr.bf16.mxu0 %v557
  %3635 = vmatpush1.bf16.msra.mxu0 %v556
  %3636 = vmatprep.subr.bf16.mxu0 %v561
  %3637 = vmatpush1.bf16.msra.mxu0 %v560
  %3638 = vmatprep.subr.bf16.mxu0 %v565
  %3639 = vmatpush1.bf16.msra.mxu0 %v564
  %3640 = vmatprep.subr.bf16.mxu0 0
  %3641 = vmatpush1.bf16.msra.mxu0 0
  %3642 = vmatprep.subr.bf16.mxu0 0
  %3643 = vmatpush1.bf16.msra.mxu0 0
  %3644 = vmatprep.subr.bf16.mxu0 0
  %3645 = vmatpush1.bf16.msra.mxu0 0
  %3646 = vmatprep.subr.bf16.mxu0 0
  %3647 = vmatpush1.bf16.msra.mxu0 0
  %3648 = vmatprep.subr.bf16.mxu0 0
  %3649 = vmatpush1.bf16.msra.mxu0 0
  %3650 = vmatprep.subr.bf16.mxu0 0
  %3651 = vmatpush1.bf16.msra.mxu0 0
  %3652 = vmatprep.subr.bf16.mxu0 0
  %3653 = vmatpush1.bf16.msra.mxu0 0
  %3654 = vmatprep.subr.bf16.mxu0 0
  %3655 = vmatpush1.bf16.msra.mxu0 0
  %3656 = vmatprep.mubr.bf16.mxu0 0
  %3657 = vmatmul.mubr.bf16.gmra.mrb[0].mxu0 %v3483
  %v3658 = vpop.f32.mrb[0].mxu0
  %v3659 = vadd.f32 0.0, %v3658
  %v3660 = vpop.f32.mrb[0].mxu0
  %v3661 = vadd.f32 0.0, %v3660
  %v3662 = vpop.f32.mrb[0].mxu0
  %v3663 = vpop.f32.mrb[0].mxu0
  %3664 = vdwg.mxu0
  %3665 = vmatprep.subr.bf16.mxu0 %v539
  %3666 = vmatpush1.bf16.msra.mxu0 %v538
  %3667 = vmatprep.subr.bf16.mxu0 %v543
  %3668 = vmatpush1.bf16.msra.mxu0 %v542
  %3669 = vmatprep.subr.bf16.mxu0 %v547
  %3670 = vmatpush1.bf16.msra.mxu0 %v546
  %3671 = vmatprep.subr.bf16.mxu0 %v551
  %3672 = vmatpush1.bf16.msra.mxu0 %v550
  %3673 = vmatprep.subr.bf16.mxu0 %v555
  %3674 = vmatpush1.bf16.msra.mxu0 %v554
  %3675 = vmatprep.subr.bf16.mxu0 %v559
  %3676 = vmatpush1.bf16.msra.mxu0 %v558
  %3677 = vmatprep.subr.bf16.mxu0 %v563
  %3678 = vmatpush1.bf16.msra.mxu0 %v562
  %3679 = vmatprep.subr.bf16.mxu0 %v567
  %3680 = vmatpush1.bf16.msra.mxu0 %v566
  %3681 = vmatprep.subr.bf16.mxu0 0
  %3682 = vmatpush1.bf16.msra.mxu0 0
  %3683 = vmatprep.subr.bf16.mxu0 0
  %3684 = vmatpush1.bf16.msra.mxu0 0
  %3685 = vmatprep.subr.bf16.mxu0 0
  %3686 = vmatpush1.bf16.msra.mxu0 0
  %3687 = vmatprep.subr.bf16.mxu0 0
  %3688 = vmatpush1.bf16.msra.mxu0 0
  %3689 = vmatprep.subr.bf16.mxu0 0
  %3690 = vmatpush1.bf16.msra.mxu0 0
  %3691 = vmatprep.subr.bf16.mxu0 0
  %3692 = vmatpush1.bf16.msra.mxu0 0
  %3693 = vmatprep.subr.bf16.mxu0 0
  %3694 = vmatpush1.bf16.msra.mxu0 0
  %3695 = vmatprep.subr.bf16.mxu0 0
  %3696 = vmatpush1.bf16.msra.mxu0 0
  %3697 = vmatprep.mubr.bf16.mxu0 0
  %3698 = vmatmul.mubr.bf16.gmra.mrb[0].mxu0 %v3483
  %v3699 = vpop.f32.mrb[0].mxu0
  %v3700 = vadd.f32 0.0, %v3699
  %v3701 = vpop.f32.mrb[0].mxu0
  %v3702 = vadd.f32 0.0, %v3701
  %v3703 = vpop.f32.mrb[0].mxu0
  %v3704 = vpop.f32.mrb[0].mxu0
  %3705 = vdwg.mxu0
  %v3706 = vadd.f32 %v3620, %v3659
  %v3707 = vadd.f32 %v3621, %v3661
  %v3708 = vadd.f32 %v3622, %v3700
  %v3709 = vadd.f32 %v3623, %v3702
  %v3710 = vmul.f32 %v3706, 0.5
  %v3711 = vtanh.pop %v3710
  %v3712 = vmul.f32 %v3711, 0.5
  %v3713 = vadd.f32 %v3712, 0.5
  %v3714 = vmul.f32 %v3707, 0.5
  %v3715 = vtanh.pop %v3714
  %v3716 = vmul.f32 %v3715, 0.5
  %v3717 = vadd.f32 %v3716, 0.5
  %v3718 = vtanh.pop %v3708
  %v3719 = vmul.f32 %v3709, 0.5
  %v3720 = vtanh.pop %v3719
  %v3721 = vmul.f32 %v3720, 0.5
  %v3722 = vadd.f32 %v3721, 0.5
  %v3723 = vmul.f32 %v3717, %v3484
  %v3724 = vmul.f32 %v3713, %v3718
  %v3725 = vadd.f32 %v3723, %v3724
  %v3726 = vtanh.pop %v3725
  %v3727 = vmul.f32 %v3722, %v3726
  %v3728 = vpack.c.bf16 %v3727, %v3727
  %v3729 = vsel %vm3616, 1, 0
  %3730 = vset.pattern.permute.xlu0 0
  %3731 = vperm.xlu0 %3730, %v3729
  %v3732 = vpop.permute.xlu0 %3731
  %vm3733 = vcmp.eq.s32.totalorder %v3732, 1
  %vm3734 = vmpackc.low %vm3733, %vm3733
  %v3735 = vsel %vm3734, %v3728, %v3483
  %v3736 = vsel %vm3733, %v3725, %v3484
  %v3737 = vsel %vm3733, %v3727, 0.0
  %s3738 = scalar_lea.vmem %s60, 24
  %3739 = vst [vmem:[%s3738] sm:$0xff] %v3737
  %s3740 = sadd.s32 %s138, 13
  %v3741 = vstv %s3740
  %vm3742 = vcmp.lt.s32.totalorder %v3741, %v137
  %s3743 = scalar_lea.vmem %s0, 208
  %v3744 = vld [vmem:[%s3743] sm:$0xff]
  %v3745 = vld [vmem:[%s3743 + $0x8] sm:$0xff]
  %v3746 = vunpack.c.l.bf16 %v3744
  %v3747 = vunpack.c.h.bf16 %v3744
  %v3748 = vunpack.c.l.bf16 %v3745
  %v3749 = vunpack.c.h.bf16 %v3745
  %3750 = vmatprep.subr.bf16.mxu0 %v252
  %3751 = vmatpush1.bf16.msra.mxu0 %v251
  %3752 = vmatprep.subr.bf16.mxu0 %v256
  %3753 = vmatpush1.bf16.msra.mxu0 %v255
  %3754 = vmatprep.subr.bf16.mxu0 %v260
  %3755 = vmatpush1.bf16.msra.mxu0 %v259
  %3756 = vmatprep.subr.bf16.mxu0 %v264
  %3757 = vmatpush1.bf16.msra.mxu0 %v263
  %3758 = vmatprep.subr.bf16.mxu0 %v268
  %3759 = vmatpush1.bf16.msra.mxu0 %v267
  %3760 = vmatprep.subr.bf16.mxu0 %v272
  %3761 = vmatpush1.bf16.msra.mxu0 %v271
  %3762 = vmatprep.subr.bf16.mxu0 %v276
  %3763 = vmatpush1.bf16.msra.mxu0 %v275
  %3764 = vmatprep.subr.bf16.mxu0 %v280
  %3765 = vmatpush1.bf16.msra.mxu0 %v279
  %3766 = vmatprep.subr.bf16.mxu0 0
  %3767 = vmatpush1.bf16.msra.mxu0 0
  %3768 = vmatprep.subr.bf16.mxu0 0
  %3769 = vmatpush1.bf16.msra.mxu0 0
  %3770 = vmatprep.subr.bf16.mxu0 0
  %3771 = vmatpush1.bf16.msra.mxu0 0
  %3772 = vmatprep.subr.bf16.mxu0 0
  %3773 = vmatpush1.bf16.msra.mxu0 0
  %3774 = vmatprep.subr.bf16.mxu0 0
  %3775 = vmatpush1.bf16.msra.mxu0 0
  %3776 = vmatprep.subr.bf16.mxu0 0
  %3777 = vmatpush1.bf16.msra.mxu0 0
  %3778 = vmatprep.subr.bf16.mxu0 0
  %3779 = vmatpush1.bf16.msra.mxu0 0
  %3780 = vmatprep.subr.bf16.mxu0 0
  %3781 = vmatpush1.bf16.msra.mxu0 0
  %3782 = vmatprep.mubr.bf16.mxu0 0
  %3783 = vmatmul.mubr.bf16.gmra.mrb[0].mxu0 %v3609
  %v3784 = vpop.f32.mrb[0].mxu0
  %v3785 = vadd.f32 0.0, %v3784
  %v3786 = vpop.f32.mrb[0].mxu0
  %v3787 = vadd.f32 0.0, %v3786
  %v3788 = vpop.f32.mrb[0].mxu0
  %v3789 = vpop.f32.mrb[0].mxu0
  %3790 = vdwg.mxu0
  %3791 = vmatprep.subr.bf16.mxu0 %v254
  %3792 = vmatpush1.bf16.msra.mxu0 %v253
  %3793 = vmatprep.subr.bf16.mxu0 %v258
  %3794 = vmatpush1.bf16.msra.mxu0 %v257
  %3795 = vmatprep.subr.bf16.mxu0 %v262
  %3796 = vmatpush1.bf16.msra.mxu0 %v261
  %3797 = vmatprep.subr.bf16.mxu0 %v266
  %3798 = vmatpush1.bf16.msra.mxu0 %v265
  %3799 = vmatprep.subr.bf16.mxu0 %v270
  %3800 = vmatpush1.bf16.msra.mxu0 %v269
  %3801 = vmatprep.subr.bf16.mxu0 %v274
  %3802 = vmatpush1.bf16.msra.mxu0 %v273
  %3803 = vmatprep.subr.bf16.mxu0 %v278
  %3804 = vmatpush1.bf16.msra.mxu0 %v277
  %3805 = vmatprep.subr.bf16.mxu0 %v282
  %3806 = vmatpush1.bf16.msra.mxu0 %v281
  %3807 = vmatprep.subr.bf16.mxu0 0
  %3808 = vmatpush1.bf16.msra.mxu0 0
  %3809 = vmatprep.subr.bf16.mxu0 0
  %3810 = vmatpush1.bf16.msra.mxu0 0
  %3811 = vmatprep.subr.bf16.mxu0 0
  %3812 = vmatpush1.bf16.msra.mxu0 0
  %3813 = vmatprep.subr.bf16.mxu0 0
  %3814 = vmatpush1.bf16.msra.mxu0 0
  %3815 = vmatprep.subr.bf16.mxu0 0
  %3816 = vmatpush1.bf16.msra.mxu0 0
  %3817 = vmatprep.subr.bf16.mxu0 0
  %3818 = vmatpush1.bf16.msra.mxu0 0
  %3819 = vmatprep.subr.bf16.mxu0 0
  %3820 = vmatpush1.bf16.msra.mxu0 0
  %3821 = vmatprep.subr.bf16.mxu0 0
  %3822 = vmatpush1.bf16.msra.mxu0 0
  %3823 = vmatprep.mubr.bf16.mxu0 0
  %3824 = vmatmul.mubr.bf16.gmra.mrb[0].mxu0 %v3609
  %v3825 = vpop.f32.mrb[0].mxu0
  %v3826 = vadd.f32 0.0, %v3825
  %v3827 = vpop.f32.mrb[0].mxu0
  %v3828 = vadd.f32 0.0, %v3827
  %v3829 = vpop.f32.mrb[0].mxu0
  %v3830 = vpop.f32.mrb[0].mxu0
  %3831 = vdwg.mxu0
  %v3832 = vadd.f32 %v3746, %v3785
  %v3833 = vadd.f32 %v3747, %v3787
  %v3834 = vadd.f32 %v3748, %v3826
  %v3835 = vadd.f32 %v3749, %v3828
  %v3836 = vmul.f32 %v3832, 0.5
  %v3837 = vtanh.pop %v3836
  %v3838 = vmul.f32 %v3837, 0.5
  %v3839 = vadd.f32 %v3838, 0.5
  %v3840 = vmul.f32 %v3833, 0.5
  %v3841 = vtanh.pop %v3840
  %v3842 = vmul.f32 %v3841, 0.5
  %v3843 = vadd.f32 %v3842, 0.5
  %v3844 = vtanh.pop %v3834
  %v3845 = vmul.f32 %v3835, 0.5
  %v3846 = vtanh.pop %v3845
  %v3847 = vmul.f32 %v3846, 0.5
  %v3848 = vadd.f32 %v3847, 0.5
  %v3849 = vmul.f32 %v3843, %v3610
  %v3850 = vmul.f32 %v3839, %v3844
  %v3851 = vadd.f32 %v3849, %v3850
  %v3852 = vtanh.pop %v3851
  %v3853 = vmul.f32 %v3848, %v3852
  %v3854 = vpack.c.bf16 %v3853, %v3853
  %v3855 = vsel %vm3742, 1, 0
  %3856 = vset.pattern.permute.xlu0 0
  %3857 = vperm.xlu0 %3856, %v3855
  %v3858 = vpop.permute.xlu0 %3857
  %vm3859 = vcmp.eq.s32.totalorder %v3858, 1
  %vm3860 = vmpackc.low %vm3859, %vm3859
  %v3861 = vsel %vm3860, %v3854, %v3609
  %v3862 = vsel %vm3859, %v3851, %v3610
  %v3863 = vsel %vm3859, %v3853, 0.0
  %s3864 = scalar_lea.vmem %s4, 104
  %3865 = vst [vmem:[%s3864] sm:$0xff] %v3863
  %s3866 = sadd.s32 %s140, 2
  %v3867 = vstv %s3866
  %vm3868 = vcmp.lt.s32.totalorder %v3867, %v137
  %s3869 = scalar_lea.vmem %s52, 32
  %v3870 = vld [vmem:[%s3869] sm:$0xff]
  %v3871 = vld [vmem:[%s3869 + $0x8] sm:$0xff]
  %v3872 = vunpack.c.l.bf16 %v3870
  %v3873 = vunpack.c.h.bf16 %v3870
  %v3874 = vunpack.c.l.bf16 %v3871
  %v3875 = vunpack.c.h.bf16 %v3871
  %3876 = vmatprep.subr.bf16.mxu0 %v537
  %3877 = vmatpush1.bf16.msra.mxu0 %v536
  %3878 = vmatprep.subr.bf16.mxu0 %v541
  %3879 = vmatpush1.bf16.msra.mxu0 %v540
  %3880 = vmatprep.subr.bf16.mxu0 %v545
  %3881 = vmatpush1.bf16.msra.mxu0 %v544
  %3882 = vmatprep.subr.bf16.mxu0 %v549
  %3883 = vmatpush1.bf16.msra.mxu0 %v548
  %3884 = vmatprep.subr.bf16.mxu0 %v553
  %3885 = vmatpush1.bf16.msra.mxu0 %v552
  %3886 = vmatprep.subr.bf16.mxu0 %v557
  %3887 = vmatpush1.bf16.msra.mxu0 %v556
  %3888 = vmatprep.subr.bf16.mxu0 %v561
  %3889 = vmatpush1.bf16.msra.mxu0 %v560
  %3890 = vmatprep.subr.bf16.mxu0 %v565
  %3891 = vmatpush1.bf16.msra.mxu0 %v564
  %3892 = vmatprep.subr.bf16.mxu0 0
  %3893 = vmatpush1.bf16.msra.mxu0 0
  %3894 = vmatprep.subr.bf16.mxu0 0
  %3895 = vmatpush1.bf16.msra.mxu0 0
  %3896 = vmatprep.subr.bf16.mxu0 0
  %3897 = vmatpush1.bf16.msra.mxu0 0
  %3898 = vmatprep.subr.bf16.mxu0 0
  %3899 = vmatpush1.bf16.msra.mxu0 0
  %3900 = vmatprep.subr.bf16.mxu0 0
  %3901 = vmatpush1.bf16.msra.mxu0 0
  %3902 = vmatprep.subr.bf16.mxu0 0
  %3903 = vmatpush1.bf16.msra.mxu0 0
  %3904 = vmatprep.subr.bf16.mxu0 0
  %3905 = vmatpush1.bf16.msra.mxu0 0
  %3906 = vmatprep.subr.bf16.mxu0 0
  %3907 = vmatpush1.bf16.msra.mxu0 0
  %3908 = vmatprep.mubr.bf16.mxu0 0
  %3909 = vmatmul.mubr.bf16.gmra.mrb[0].mxu0 %v3735
  %v3910 = vpop.f32.mrb[0].mxu0
  %v3911 = vadd.f32 0.0, %v3910
  %v3912 = vpop.f32.mrb[0].mxu0
  %v3913 = vadd.f32 0.0, %v3912
  %v3914 = vpop.f32.mrb[0].mxu0
  %v3915 = vpop.f32.mrb[0].mxu0
  %3916 = vdwg.mxu0
  %3917 = vmatprep.subr.bf16.mxu0 %v539
  %3918 = vmatpush1.bf16.msra.mxu0 %v538
  %3919 = vmatprep.subr.bf16.mxu0 %v543
  %3920 = vmatpush1.bf16.msra.mxu0 %v542
  %3921 = vmatprep.subr.bf16.mxu0 %v547
  %3922 = vmatpush1.bf16.msra.mxu0 %v546
  %3923 = vmatprep.subr.bf16.mxu0 %v551
  %3924 = vmatpush1.bf16.msra.mxu0 %v550
  %3925 = vmatprep.subr.bf16.mxu0 %v555
  %3926 = vmatpush1.bf16.msra.mxu0 %v554
  %3927 = vmatprep.subr.bf16.mxu0 %v559
  %3928 = vmatpush1.bf16.msra.mxu0 %v558
  %3929 = vmatprep.subr.bf16.mxu0 %v563
  %3930 = vmatpush1.bf16.msra.mxu0 %v562
  %3931 = vmatprep.subr.bf16.mxu0 %v567
  %3932 = vmatpush1.bf16.msra.mxu0 %v566
  %3933 = vmatprep.subr.bf16.mxu0 0
  %3934 = vmatpush1.bf16.msra.mxu0 0
  %3935 = vmatprep.subr.bf16.mxu0 0
  %3936 = vmatpush1.bf16.msra.mxu0 0
  %3937 = vmatprep.subr.bf16.mxu0 0
  %3938 = vmatpush1.bf16.msra.mxu0 0
  %3939 = vmatprep.subr.bf16.mxu0 0
  %3940 = vmatpush1.bf16.msra.mxu0 0
  %3941 = vmatprep.subr.bf16.mxu0 0
  %3942 = vmatpush1.bf16.msra.mxu0 0
  %3943 = vmatprep.subr.bf16.mxu0 0
  %3944 = vmatpush1.bf16.msra.mxu0 0
  %3945 = vmatprep.subr.bf16.mxu0 0
  %3946 = vmatpush1.bf16.msra.mxu0 0
  %3947 = vmatprep.subr.bf16.mxu0 0
  %3948 = vmatpush1.bf16.msra.mxu0 0
  %3949 = vmatprep.mubr.bf16.mxu0 0
  %3950 = vmatmul.mubr.bf16.gmra.mrb[0].mxu0 %v3735
  %v3951 = vpop.f32.mrb[0].mxu0
  %v3952 = vadd.f32 0.0, %v3951
  %v3953 = vpop.f32.mrb[0].mxu0
  %v3954 = vadd.f32 0.0, %v3953
  %v3955 = vpop.f32.mrb[0].mxu0
  %v3956 = vpop.f32.mrb[0].mxu0
  %3957 = vdwg.mxu0
  %v3958 = vadd.f32 %v3872, %v3911
  %v3959 = vadd.f32 %v3873, %v3913
  %v3960 = vadd.f32 %v3874, %v3952
  %v3961 = vadd.f32 %v3875, %v3954
  %v3962 = vmul.f32 %v3958, 0.5
  %v3963 = vtanh.pop %v3962
  %v3964 = vmul.f32 %v3963, 0.5
  %v3965 = vadd.f32 %v3964, 0.5
  %v3966 = vmul.f32 %v3959, 0.5
  %v3967 = vtanh.pop %v3966
  %v3968 = vmul.f32 %v3967, 0.5
  %v3969 = vadd.f32 %v3968, 0.5
  %v3970 = vtanh.pop %v3960
  %v3971 = vmul.f32 %v3961, 0.5
  %v3972 = vtanh.pop %v3971
  %v3973 = vmul.f32 %v3972, 0.5
  %v3974 = vadd.f32 %v3973, 0.5
  %v3975 = vmul.f32 %v3969, %v3736
  %v3976 = vmul.f32 %v3965, %v3970
  %v3977 = vadd.f32 %v3975, %v3976
  %v3978 = vtanh.pop %v3977
  %v3979 = vmul.f32 %v3974, %v3978
  %v3980 = vpack.c.bf16 %v3979, %v3979
  %v3981 = vsel %vm3868, 1, 0
  %3982 = vset.pattern.permute.xlu0 0
  %3983 = vperm.xlu0 %3982, %v3981
  %v3984 = vpop.permute.xlu0 %3983
  %vm3985 = vcmp.eq.s32.totalorder %v3984, 1
  %vm3986 = vmpackc.low %vm3985, %vm3985
  %v3987 = vsel %vm3986, %v3980, %v3735
  %v3988 = vsel %vm3985, %v3977, %v3736
  %v3989 = vsel %vm3985, %v3979, 0.0
  %s3990 = scalar_lea.vmem %s60, 16
  %3991 = vst [vmem:[%s3990] sm:$0xff] %v3989
  %s3992 = sadd.s32 %s138, 14
  %v3993 = vstv %s3992
  %vm3994 = vcmp.lt.s32.totalorder %v3993, %v137
  %s3995 = scalar_lea.vmem %s0, 224
  %v3996 = vld [vmem:[%s3995] sm:$0xff]
  %v3997 = vld [vmem:[%s3995 + $0x8] sm:$0xff]
  %v3998 = vunpack.c.l.bf16 %v3996
  %v3999 = vunpack.c.h.bf16 %v3996
  %v4000 = vunpack.c.l.bf16 %v3997
  %v4001 = vunpack.c.h.bf16 %v3997
  %4002 = vmatprep.subr.bf16.mxu0 %v252
  %4003 = vmatpush1.bf16.msra.mxu0 %v251
  %4004 = vmatprep.subr.bf16.mxu0 %v256
  %4005 = vmatpush1.bf16.msra.mxu0 %v255
  %4006 = vmatprep.subr.bf16.mxu0 %v260
  %4007 = vmatpush1.bf16.msra.mxu0 %v259
  %4008 = vmatprep.subr.bf16.mxu0 %v264
  %4009 = vmatpush1.bf16.msra.mxu0 %v263
  %4010 = vmatprep.subr.bf16.mxu0 %v268
  %4011 = vmatpush1.bf16.msra.mxu0 %v267
  %4012 = vmatprep.subr.bf16.mxu0 %v272
  %4013 = vmatpush1.bf16.msra.mxu0 %v271
  %4014 = vmatprep.subr.bf16.mxu0 %v276
  %4015 = vmatpush1.bf16.msra.mxu0 %v275
  %4016 = vmatprep.subr.bf16.mxu0 %v280
  %4017 = vmatpush1.bf16.msra.mxu0 %v279
  %4018 = vmatprep.subr.bf16.mxu0 0
  %4019 = vmatpush1.bf16.msra.mxu0 0
  %4020 = vmatprep.subr.bf16.mxu0 0
  %4021 = vmatpush1.bf16.msra.mxu0 0
  %4022 = vmatprep.subr.bf16.mxu0 0
  %4023 = vmatpush1.bf16.msra.mxu0 0
  %4024 = vmatprep.subr.bf16.mxu0 0
  %4025 = vmatpush1.bf16.msra.mxu0 0
  %4026 = vmatprep.subr.bf16.mxu0 0
  %4027 = vmatpush1.bf16.msra.mxu0 0
  %4028 = vmatprep.subr.bf16.mxu0 0
  %4029 = vmatpush1.bf16.msra.mxu0 0
  %4030 = vmatprep.subr.bf16.mxu0 0
  %4031 = vmatpush1.bf16.msra.mxu0 0
  %4032 = vmatprep.subr.bf16.mxu0 0
  %4033 = vmatpush1.bf16.msra.mxu0 0
  %4034 = vmatprep.mubr.bf16.mxu0 0
  %4035 = vmatmul.mubr.bf16.gmra.mrb[0].mxu0 %v3861
  %v4036 = vpop.f32.mrb[0].mxu0
  %v4037 = vadd.f32 0.0, %v4036
  %v4038 = vpop.f32.mrb[0].mxu0
  %v4039 = vadd.f32 0.0, %v4038
  %v4040 = vpop.f32.mrb[0].mxu0
  %v4041 = vpop.f32.mrb[0].mxu0
  %4042 = vdwg.mxu0
  %4043 = vmatprep.subr.bf16.mxu0 %v254
  %4044 = vmatpush1.bf16.msra.mxu0 %v253
  %4045 = vmatprep.subr.bf16.mxu0 %v258
  %4046 = vmatpush1.bf16.msra.mxu0 %v257
  %4047 = vmatprep.subr.bf16.mxu0 %v262
  %4048 = vmatpush1.bf16.msra.mxu0 %v261
  %4049 = vmatprep.subr.bf16.mxu0 %v266
  %4050 = vmatpush1.bf16.msra.mxu0 %v265
  %4051 = vmatprep.subr.bf16.mxu0 %v270
  %4052 = vmatpush1.bf16.msra.mxu0 %v269
  %4053 = vmatprep.subr.bf16.mxu0 %v274
  %4054 = vmatpush1.bf16.msra.mxu0 %v273
  %4055 = vmatprep.subr.bf16.mxu0 %v278
  %4056 = vmatpush1.bf16.msra.mxu0 %v277
  %4057 = vmatprep.subr.bf16.mxu0 %v282
  %4058 = vmatpush1.bf16.msra.mxu0 %v281
  %4059 = vmatprep.subr.bf16.mxu0 0
  %4060 = vmatpush1.bf16.msra.mxu0 0
  %4061 = vmatprep.subr.bf16.mxu0 0
  %4062 = vmatpush1.bf16.msra.mxu0 0
  %4063 = vmatprep.subr.bf16.mxu0 0
  %4064 = vmatpush1.bf16.msra.mxu0 0
  %4065 = vmatprep.subr.bf16.mxu0 0
  %4066 = vmatpush1.bf16.msra.mxu0 0
  %4067 = vmatprep.subr.bf16.mxu0 0
  %4068 = vmatpush1.bf16.msra.mxu0 0
  %4069 = vmatprep.subr.bf16.mxu0 0
  %4070 = vmatpush1.bf16.msra.mxu0 0
  %4071 = vmatprep.subr.bf16.mxu0 0
  %4072 = vmatpush1.bf16.msra.mxu0 0
  %4073 = vmatprep.subr.bf16.mxu0 0
  %4074 = vmatpush1.bf16.msra.mxu0 0
  %4075 = vmatprep.mubr.bf16.mxu0 0
  %4076 = vmatmul.mubr.bf16.gmra.mrb[0].mxu0 %v3861
  %v4077 = vpop.f32.mrb[0].mxu0
  %v4078 = vadd.f32 0.0, %v4077
  %v4079 = vpop.f32.mrb[0].mxu0
  %v4080 = vadd.f32 0.0, %v4079
  %v4081 = vpop.f32.mrb[0].mxu0
  %v4082 = vpop.f32.mrb[0].mxu0
  %4083 = vdwg.mxu0
  %v4084 = vadd.f32 %v3998, %v4037
  %v4085 = vadd.f32 %v3999, %v4039
  %v4086 = vadd.f32 %v4000, %v4078
  %v4087 = vadd.f32 %v4001, %v4080
  %v4088 = vmul.f32 %v4084, 0.5
  %v4089 = vtanh.pop %v4088
  %v4090 = vmul.f32 %v4089, 0.5
  %v4091 = vadd.f32 %v4090, 0.5
  %v4092 = vmul.f32 %v4085, 0.5
  %v4093 = vtanh.pop %v4092
  %v4094 = vmul.f32 %v4093, 0.5
  %v4095 = vadd.f32 %v4094, 0.5
  %v4096 = vtanh.pop %v4086
  %v4097 = vmul.f32 %v4087, 0.5
  %v4098 = vtanh.pop %v4097
  %v4099 = vmul.f32 %v4098, 0.5
  %v4100 = vadd.f32 %v4099, 0.5
  %v4101 = vmul.f32 %v4095, %v3862
  %v4102 = vmul.f32 %v4091, %v4096
  %v4103 = vadd.f32 %v4101, %v4102
  %v4104 = vtanh.pop %v4103
  %v4105 = vmul.f32 %v4100, %v4104
  %v4106 = vpack.c.bf16 %v4105, %v4105
  %v4107 = vsel %vm3994, 1, 0
  %4108 = vset.pattern.permute.xlu0 0
  %4109 = vperm.xlu0 %4108, %v4107
  %v4110 = vpop.permute.xlu0 %4109
  %vm4111 = vcmp.eq.s32.totalorder %v4110, 1
  %vm4112 = vmpackc.low %vm4111, %vm4111
  %v4113 = vsel %vm4112, %v4106, %v3861
  %v4114 = vsel %vm4111, %v4103, %v3862
  %v4115 = vsel %vm4111, %v4105, 0.0
  %s4116 = scalar_lea.vmem %s4, 112
  %4117 = vst [vmem:[%s4116] sm:$0xff] %v4115
  %s4118 = sadd.s32 %s140, 1
  %v4119 = vstv %s4118
  %vm4120 = vcmp.lt.s32.totalorder %v4119, %v137
  %s4121 = scalar_lea.vmem %s52, 16
  %v4122 = vld [vmem:[%s4121] sm:$0xff]
  %v4123 = vld [vmem:[%s4121 + $0x8] sm:$0xff]
  %v4124 = vunpack.c.l.bf16 %v4122
  %v4125 = vunpack.c.h.bf16 %v4122
  %v4126 = vunpack.c.l.bf16 %v4123
  %v4127 = vunpack.c.h.bf16 %v4123
  %4128 = vmatprep.subr.bf16.mxu0 %v537
  %4129 = vmatpush1.bf16.msra.mxu0 %v536
  %4130 = vmatprep.subr.bf16.mxu0 %v541
  %4131 = vmatpush1.bf16.msra.mxu0 %v540
  %4132 = vmatprep.subr.bf16.mxu0 %v545
  %4133 = vmatpush1.bf16.msra.mxu0 %v544
  %4134 = vmatprep.subr.bf16.mxu0 %v549
  %4135 = vmatpush1.bf16.msra.mxu0 %v548
  %4136 = vmatprep.subr.bf16.mxu0 %v553
  %4137 = vmatpush1.bf16.msra.mxu0 %v552
  %4138 = vmatprep.subr.bf16.mxu0 %v557
  %4139 = vmatpush1.bf16.msra.mxu0 %v556
  %4140 = vmatprep.subr.bf16.mxu0 %v561
  %4141 = vmatpush1.bf16.msra.mxu0 %v560
  %4142 = vmatprep.subr.bf16.mxu0 %v565
  %4143 = vmatpush1.bf16.msra.mxu0 %v564
  %4144 = vmatprep.subr.bf16.mxu0 0
  %4145 = vmatpush1.bf16.msra.mxu0 0
  %4146 = vmatprep.subr.bf16.mxu0 0
  %4147 = vmatpush1.bf16.msra.mxu0 0
  %4148 = vmatprep.subr.bf16.mxu0 0
  %4149 = vmatpush1.bf16.msra.mxu0 0
  %4150 = vmatprep.subr.bf16.mxu0 0
  %4151 = vmatpush1.bf16.msra.mxu0 0
  %4152 = vmatprep.subr.bf16.mxu0 0
  %4153 = vmatpush1.bf16.msra.mxu0 0
  %4154 = vmatprep.subr.bf16.mxu0 0
  %4155 = vmatpush1.bf16.msra.mxu0 0
  %4156 = vmatprep.subr.bf16.mxu0 0
  %4157 = vmatpush1.bf16.msra.mxu0 0
  %4158 = vmatprep.subr.bf16.mxu0 0
  %4159 = vmatpush1.bf16.msra.mxu0 0
  %4160 = vmatprep.mubr.bf16.mxu0 0
  %4161 = vmatmul.mubr.bf16.gmra.mrb[0].mxu0 %v3987
  %v4162 = vpop.f32.mrb[0].mxu0
  %v4163 = vadd.f32 0.0, %v4162
  %v4164 = vpop.f32.mrb[0].mxu0
  %v4165 = vadd.f32 0.0, %v4164
  %v4166 = vpop.f32.mrb[0].mxu0
  %v4167 = vpop.f32.mrb[0].mxu0
  %4168 = vdwg.mxu0
  %4169 = vmatprep.subr.bf16.mxu0 %v539
  %4170 = vmatpush1.bf16.msra.mxu0 %v538
  %4171 = vmatprep.subr.bf16.mxu0 %v543
  %4172 = vmatpush1.bf16.msra.mxu0 %v542
  %4173 = vmatprep.subr.bf16.mxu0 %v547
  %4174 = vmatpush1.bf16.msra.mxu0 %v546
  %4175 = vmatprep.subr.bf16.mxu0 %v551
  %4176 = vmatpush1.bf16.msra.mxu0 %v550
  %4177 = vmatprep.subr.bf16.mxu0 %v555
  %4178 = vmatpush1.bf16.msra.mxu0 %v554
  %4179 = vmatprep.subr.bf16.mxu0 %v559
  %4180 = vmatpush1.bf16.msra.mxu0 %v558
  %4181 = vmatprep.subr.bf16.mxu0 %v563
  %4182 = vmatpush1.bf16.msra.mxu0 %v562
  %4183 = vmatprep.subr.bf16.mxu0 %v567
  %4184 = vmatpush1.bf16.msra.mxu0 %v566
  %4185 = vmatprep.subr.bf16.mxu0 0
  %4186 = vmatpush1.bf16.msra.mxu0 0
  %4187 = vmatprep.subr.bf16.mxu0 0
  %4188 = vmatpush1.bf16.msra.mxu0 0
  %4189 = vmatprep.subr.bf16.mxu0 0
  %4190 = vmatpush1.bf16.msra.mxu0 0
  %4191 = vmatprep.subr.bf16.mxu0 0
  %4192 = vmatpush1.bf16.msra.mxu0 0
  %4193 = vmatprep.subr.bf16.mxu0 0
  %4194 = vmatpush1.bf16.msra.mxu0 0
  %4195 = vmatprep.subr.bf16.mxu0 0
  %4196 = vmatpush1.bf16.msra.mxu0 0
  %4197 = vmatprep.subr.bf16.mxu0 0
  %4198 = vmatpush1.bf16.msra.mxu0 0
  %4199 = vmatprep.subr.bf16.mxu0 0
  %4200 = vmatpush1.bf16.msra.mxu0 0
  %4201 = vmatprep.mubr.bf16.mxu0 0
  %4202 = vmatmul.mubr.bf16.gmra.mrb[0].mxu0 %v3987
  %v4203 = vpop.f32.mrb[0].mxu0
  %v4204 = vadd.f32 0.0, %v4203
  %v4205 = vpop.f32.mrb[0].mxu0
  %v4206 = vadd.f32 0.0, %v4205
  %v4207 = vpop.f32.mrb[0].mxu0
  %v4208 = vpop.f32.mrb[0].mxu0
  %4209 = vdwg.mxu0
  %v4210 = vadd.f32 %v4124, %v4163
  %v4211 = vadd.f32 %v4125, %v4165
  %v4212 = vadd.f32 %v4126, %v4204
  %v4213 = vadd.f32 %v4127, %v4206
  %v4214 = vmul.f32 %v4210, 0.5
  %v4215 = vtanh.pop %v4214
  %v4216 = vmul.f32 %v4215, 0.5
  %v4217 = vadd.f32 %v4216, 0.5
  %v4218 = vmul.f32 %v4211, 0.5
  %v4219 = vtanh.pop %v4218
  %v4220 = vmul.f32 %v4219, 0.5
  %v4221 = vadd.f32 %v4220, 0.5
  %v4222 = vtanh.pop %v4212
  %v4223 = vmul.f32 %v4213, 0.5
  %v4224 = vtanh.pop %v4223
  %v4225 = vmul.f32 %v4224, 0.5
  %v4226 = vadd.f32 %v4225, 0.5
  %v4227 = vmul.f32 %v4221, %v3988
  %v4228 = vmul.f32 %v4217, %v4222
  %v4229 = vadd.f32 %v4227, %v4228
  %v4230 = vtanh.pop %v4229
  %v4231 = vmul.f32 %v4226, %v4230
  %v4232 = vpack.c.bf16 %v4231, %v4231
  %v4233 = vsel %vm4120, 1, 0
  %4234 = vset.pattern.permute.xlu0 0
  %4235 = vperm.xlu0 %4234, %v4233
  %v4236 = vpop.permute.xlu0 %4235
  %vm4237 = vcmp.eq.s32.totalorder %v4236, 1
  %vm4238 = vmpackc.low %vm4237, %vm4237
  %v4239 = vsel %vm4238, %v4232, %v3987
  %v4240 = vsel %vm4237, %v4229, %v3988
  %v4241 = vsel %vm4237, %v4231, 0.0
  %s4242 = scalar_lea.vmem %s60, 8
  %4243 = vst [vmem:[%s4242] sm:$0xff] %v4241
  %s4244 = sadd.s32 %s138, 15
  %v4245 = vstv %s4244
  %vm4246 = vcmp.lt.s32.totalorder %v4245, %v137
  %s4247 = scalar_lea.vmem %s0, 240
  %v4248 = vld [vmem:[%s4247] sm:$0xff]
  %v4249 = vld [vmem:[%s4247 + $0x8] sm:$0xff]
  %v4250 = vunpack.c.l.bf16 %v4248
  %v4251 = vunpack.c.h.bf16 %v4248
  %v4252 = vunpack.c.l.bf16 %v4249
  %v4253 = vunpack.c.h.bf16 %v4249
  %4254 = vmatprep.subr.bf16.mxu0 %v252
  %4255 = vmatpush1.bf16.msra.mxu0 %v251
  %4256 = vmatprep.subr.bf16.mxu0 %v256
  %4257 = vmatpush1.bf16.msra.mxu0 %v255
  %4258 = vmatprep.subr.bf16.mxu0 %v260
  %4259 = vmatpush1.bf16.msra.mxu0 %v259
  %4260 = vmatprep.subr.bf16.mxu0 %v264
  %4261 = vmatpush1.bf16.msra.mxu0 %v263
  %4262 = vmatprep.subr.bf16.mxu0 %v268
  %4263 = vmatpush1.bf16.msra.mxu0 %v267
  %4264 = vmatprep.subr.bf16.mxu0 %v272
  %4265 = vmatpush1.bf16.msra.mxu0 %v271
  %4266 = vmatprep.subr.bf16.mxu0 %v276
  %4267 = vmatpush1.bf16.msra.mxu0 %v275
  %4268 = vmatprep.subr.bf16.mxu0 %v280
  %4269 = vmatpush1.bf16.msra.mxu0 %v279
  %4270 = vmatprep.subr.bf16.mxu0 0
  %4271 = vmatpush1.bf16.msra.mxu0 0
  %4272 = vmatprep.subr.bf16.mxu0 0
  %4273 = vmatpush1.bf16.msra.mxu0 0
  %4274 = vmatprep.subr.bf16.mxu0 0
  %4275 = vmatpush1.bf16.msra.mxu0 0
  %4276 = vmatprep.subr.bf16.mxu0 0
  %4277 = vmatpush1.bf16.msra.mxu0 0
  %4278 = vmatprep.subr.bf16.mxu0 0
  %4279 = vmatpush1.bf16.msra.mxu0 0
  %4280 = vmatprep.subr.bf16.mxu0 0
  %4281 = vmatpush1.bf16.msra.mxu0 0
  %4282 = vmatprep.subr.bf16.mxu0 0
  %4283 = vmatpush1.bf16.msra.mxu0 0
  %4284 = vmatprep.subr.bf16.mxu0 0
  %4285 = vmatpush1.bf16.msra.mxu0 0
  %4286 = vmatprep.mubr.bf16.mxu0 0
  %4287 = vmatmul.mubr.bf16.gmra.mrb[0].mxu0 %v4113
  %v4288 = vpop.f32.mrb[0].mxu0
  %v4289 = vadd.f32 0.0, %v4288
  %v4290 = vpop.f32.mrb[0].mxu0
  %v4291 = vadd.f32 0.0, %v4290
  %v4292 = vpop.f32.mrb[0].mxu0
  %v4293 = vpop.f32.mrb[0].mxu0
  %4294 = vdwg.mxu0
  %4295 = vmatprep.subr.bf16.mxu0 %v254
  %4296 = vmatpush1.bf16.msra.mxu0 %v253
  %4297 = vmatprep.subr.bf16.mxu0 %v258
  %4298 = vmatpush1.bf16.msra.mxu0 %v257
  %4299 = vmatprep.subr.bf16.mxu0 %v262
  %4300 = vmatpush1.bf16.msra.mxu0 %v261
  %4301 = vmatprep.subr.bf16.mxu0 %v266
  %4302 = vmatpush1.bf16.msra.mxu0 %v265
  %4303 = vmatprep.subr.bf16.mxu0 %v270
  %4304 = vmatpush1.bf16.msra.mxu0 %v269
  %4305 = vmatprep.subr.bf16.mxu0 %v274
  %4306 = vmatpush1.bf16.msra.mxu0 %v273
  %4307 = vmatprep.subr.bf16.mxu0 %v278
  %4308 = vmatpush1.bf16.msra.mxu0 %v277
  %4309 = vmatprep.subr.bf16.mxu0 %v282
  %4310 = vmatpush1.bf16.msra.mxu0 %v281
  %4311 = vmatprep.subr.bf16.mxu0 0
  %4312 = vmatpush1.bf16.msra.mxu0 0
  %4313 = vmatprep.subr.bf16.mxu0 0
  %4314 = vmatpush1.bf16.msra.mxu0 0
  %4315 = vmatprep.subr.bf16.mxu0 0
  %4316 = vmatpush1.bf16.msra.mxu0 0
  %4317 = vmatprep.subr.bf16.mxu0 0
  %4318 = vmatpush1.bf16.msra.mxu0 0
  %4319 = vmatprep.subr.bf16.mxu0 0
  %4320 = vmatpush1.bf16.msra.mxu0 0
  %4321 = vmatprep.subr.bf16.mxu0 0
  %4322 = vmatpush1.bf16.msra.mxu0 0
  %4323 = vmatprep.subr.bf16.mxu0 0
  %4324 = vmatpush1.bf16.msra.mxu0 0
  %4325 = vmatprep.subr.bf16.mxu0 0
  %4326 = vmatpush1.bf16.msra.mxu0 0
  %4327 = vmatprep.mubr.bf16.mxu0 0
  %4328 = vmatmul.mubr.bf16.gmra.mrb[0].mxu0 %v4113
  %v4329 = vpop.f32.mrb[0].mxu0
  %v4330 = vadd.f32 0.0, %v4329
  %v4331 = vpop.f32.mrb[0].mxu0
  %v4332 = vadd.f32 0.0, %v4331
  %v4333 = vpop.f32.mrb[0].mxu0
  %v4334 = vpop.f32.mrb[0].mxu0
  %4335 = vdwg.mxu0
  %v4336 = vadd.f32 %v4250, %v4289
  %v4337 = vadd.f32 %v4251, %v4291
  %v4338 = vadd.f32 %v4252, %v4330
  %v4339 = vadd.f32 %v4253, %v4332
  %v4340 = vmul.f32 %v4336, 0.5
  %v4341 = vtanh.pop %v4340
  %v4342 = vmul.f32 %v4341, 0.5
  %v4343 = vadd.f32 %v4342, 0.5
  %v4344 = vmul.f32 %v4337, 0.5
  %v4345 = vtanh.pop %v4344
  %v4346 = vmul.f32 %v4345, 0.5
  %v4347 = vadd.f32 %v4346, 0.5
  %v4348 = vtanh.pop %v4338
  %v4349 = vmul.f32 %v4339, 0.5
  %v4350 = vtanh.pop %v4349
  %v4351 = vmul.f32 %v4350, 0.5
  %v4352 = vadd.f32 %v4351, 0.5
  %v4353 = vmul.f32 %v4347, %v4114
  %v4354 = vmul.f32 %v4343, %v4348
  %v4355 = vadd.f32 %v4353, %v4354
  %v4356 = vtanh.pop %v4355
  %v4357 = vmul.f32 %v4352, %v4356
  %v4358 = vpack.c.bf16 %v4357, %v4357
  %v4359 = vsel %vm4246, 1, 0
  %4360 = vset.pattern.permute.xlu0 0
  %4361 = vperm.xlu0 %4360, %v4359
  %v4362 = vpop.permute.xlu0 %4361
  %vm4363 = vcmp.eq.s32.totalorder %v4362, 1
  %vm4364 = vmpackc.low %vm4363, %vm4363
  %v4365 = vsel %vm4364, %v4358, %v4113
  %v4366 = vsel %vm4363, %v4355, %v4114
  %v4367 = vsel %vm4363, %v4357, 0.0
  %s4368 = scalar_lea.vmem %s4, 120
  %4369 = vst [vmem:[%s4368] sm:$0xff] %v4367
  %v4370 = vstv %s140
  %vm4371 = vcmp.lt.s32.totalorder %v4370, %v137
  %v4372 = vld [vmem:[%s52] sm:$0xff]
  %v4373 = vld [vmem:[%s52 + $0x8] sm:$0xff]
  %v4374 = vunpack.c.l.bf16 %v4372
  %v4375 = vunpack.c.h.bf16 %v4372
  %v4376 = vunpack.c.l.bf16 %v4373
  %v4377 = vunpack.c.h.bf16 %v4373
  %4378 = vmatprep.subr.bf16.mxu0 %v537
  %4379 = vmatpush1.bf16.msra.mxu0 %v536
  %4380 = vmatprep.subr.bf16.mxu0 %v541
  %4381 = vmatpush1.bf16.msra.mxu0 %v540
  %4382 = vmatprep.subr.bf16.mxu0 %v545
  %4383 = vmatpush1.bf16.msra.mxu0 %v544
  %4384 = vmatprep.subr.bf16.mxu0 %v549
  %4385 = vmatpush1.bf16.msra.mxu0 %v548
  %4386 = vmatprep.subr.bf16.mxu0 %v553
  %4387 = vmatpush1.bf16.msra.mxu0 %v552
  %4388 = vmatprep.subr.bf16.mxu0 %v557
  %4389 = vmatpush1.bf16.msra.mxu0 %v556
  %4390 = vmatprep.subr.bf16.mxu0 %v561
  %4391 = vmatpush1.bf16.msra.mxu0 %v560
  %4392 = vmatprep.subr.bf16.mxu0 %v565
  %4393 = vmatpush1.bf16.msra.mxu0 %v564
  %4394 = vmatprep.subr.bf16.mxu0 0
  %4395 = vmatpush1.bf16.msra.mxu0 0
  %4396 = vmatprep.subr.bf16.mxu0 0
  %4397 = vmatpush1.bf16.msra.mxu0 0
  %4398 = vmatprep.subr.bf16.mxu0 0
  %4399 = vmatpush1.bf16.msra.mxu0 0
  %4400 = vmatprep.subr.bf16.mxu0 0
  %4401 = vmatpush1.bf16.msra.mxu0 0
  %4402 = vmatprep.subr.bf16.mxu0 0
  %4403 = vmatpush1.bf16.msra.mxu0 0
  %4404 = vmatprep.subr.bf16.mxu0 0
  %4405 = vmatpush1.bf16.msra.mxu0 0
  %4406 = vmatprep.subr.bf16.mxu0 0
  %4407 = vmatpush1.bf16.msra.mxu0 0
  %4408 = vmatprep.subr.bf16.mxu0 0
  %4409 = vmatpush1.bf16.msra.mxu0 0
  %4410 = vmatprep.mubr.bf16.mxu0 0
  %4411 = vmatmul.mubr.bf16.gmra.mrb[0].mxu0 %v4239
  %v4412 = vpop.f32.mrb[0].mxu0
  %v4413 = vadd.f32 0.0, %v4412
  %v4414 = vpop.f32.mrb[0].mxu0
  %v4415 = vadd.f32 0.0, %v4414
  %v4416 = vpop.f32.mrb[0].mxu0
  %v4417 = vpop.f32.mrb[0].mxu0
  %4418 = vdwg.mxu0
  %4419 = vmatprep.subr.bf16.mxu0 %v539
  %4420 = vmatpush1.bf16.msra.mxu0 %v538
  %4421 = vmatprep.subr.bf16.mxu0 %v543
  %4422 = vmatpush1.bf16.msra.mxu0 %v542
  %4423 = vmatprep.subr.bf16.mxu0 %v547
  %4424 = vmatpush1.bf16.msra.mxu0 %v546
  %4425 = vmatprep.subr.bf16.mxu0 %v551
  %4426 = vmatpush1.bf16.msra.mxu0 %v550
  %4427 = vmatprep.subr.bf16.mxu0 %v555
  %4428 = vmatpush1.bf16.msra.mxu0 %v554
  %4429 = vmatprep.subr.bf16.mxu0 %v559
  %4430 = vmatpush1.bf16.msra.mxu0 %v558
  %4431 = vmatprep.subr.bf16.mxu0 %v563
  %4432 = vmatpush1.bf16.msra.mxu0 %v562
  %4433 = vmatprep.subr.bf16.mxu0 %v567
  %4434 = vmatpush1.bf16.msra.mxu0 %v566
  %4435 = vmatprep.subr.bf16.mxu0 0
  %4436 = vmatpush1.bf16.msra.mxu0 0
  %4437 = vmatprep.subr.bf16.mxu0 0
  %4438 = vmatpush1.bf16.msra.mxu0 0
  %4439 = vmatprep.subr.bf16.mxu0 0
  %4440 = vmatpush1.bf16.msra.mxu0 0
  %4441 = vmatprep.subr.bf16.mxu0 0
  %4442 = vmatpush1.bf16.msra.mxu0 0
  %4443 = vmatprep.subr.bf16.mxu0 0
  %4444 = vmatpush1.bf16.msra.mxu0 0
  %4445 = vmatprep.subr.bf16.mxu0 0
  %4446 = vmatpush1.bf16.msra.mxu0 0
  %4447 = vmatprep.subr.bf16.mxu0 0
  %4448 = vmatpush1.bf16.msra.mxu0 0
  %4449 = vmatprep.subr.bf16.mxu0 0
  %4450 = vmatpush1.bf16.msra.mxu0 0
  %4451 = vmatprep.mubr.bf16.mxu0 0
  %4452 = vmatmul.mubr.bf16.gmra.mrb[0].mxu0 %v4239
  %v4453 = vpop.f32.mrb[0].mxu0
  %v4454 = vadd.f32 0.0, %v4453
  %v4455 = vpop.f32.mrb[0].mxu0
  %v4456 = vadd.f32 0.0, %v4455
  %v4457 = vpop.f32.mrb[0].mxu0
  %v4458 = vpop.f32.mrb[0].mxu0
  %4459 = vdwg.mxu0
  %v4460 = vadd.f32 %v4374, %v4413
  %v4461 = vadd.f32 %v4375, %v4415
  %v4462 = vadd.f32 %v4376, %v4454
  %v4463 = vadd.f32 %v4377, %v4456
  %v4464 = vmul.f32 %v4460, 0.5
  %v4465 = vtanh.pop %v4464
  %v4466 = vmul.f32 %v4465, 0.5
  %v4467 = vadd.f32 %v4466, 0.5
  %v4468 = vmul.f32 %v4461, 0.5
  %v4469 = vtanh.pop %v4468
  %v4470 = vmul.f32 %v4469, 0.5
  %v4471 = vadd.f32 %v4470, 0.5
  %v4472 = vtanh.pop %v4462
  %v4473 = vmul.f32 %v4463, 0.5
  %v4474 = vtanh.pop %v4473
  %v4475 = vmul.f32 %v4474, 0.5
  %v4476 = vadd.f32 %v4475, 0.5
  %v4477 = vmul.f32 %v4471, %v4240
  %v4478 = vmul.f32 %v4467, %v4472
  %v4479 = vadd.f32 %v4477, %v4478
  %v4480 = vtanh.pop %v4479
  %v4481 = vmul.f32 %v4476, %v4480
  %v4482 = vpack.c.bf16 %v4481, %v4481
  %v4483 = vsel %vm4371, 1, 0
  %4484 = vset.pattern.permute.xlu0 0
  %4485 = vperm.xlu0 %4484, %v4483
  %v4486 = vpop.permute.xlu0 %4485
  %vm4487 = vcmp.eq.s32.totalorder %v4486, 1
  %vm4488 = vmpackc.low %vm4487, %vm4487
  %v4489 = vsel %vm4488, %v4482, %v4239
  %v4490 = vsel %vm4487, %v4479, %v4240
  %v4491 = vsel %vm4487, %v4481, 0.0
  %4492 = vst [vmem:[%s60] sm:$0xff] %v4491
  %4493 = vst [vmem:[#allocation2] sm:$0xf] %v4365
  %4494 = vst [vmem:[#allocation3] sm:$0xff] %v4366
  %4495 = vst [vmem:[%s143] sm:$0xf] %v4489
  %4496 = vst [vmem:[%s145] sm:$0xff] %v4490
  // Predicated region
  $region22: #{encoder_lstm_forward.2} parent=0 // pred_check
    %p4497 = pneg %p64
  $region23: #{encoder_lstm_forward.2} parent=0 // pred_check_branch
    %4499 = sbr.rel (%p4497) target = $region25
  $region24: #{encoder_lstm_forward.2} parent=0 // pred_region
    %v4500 = vunpack.c.l.bf16 %v4365
    %4501 = vst [vmem:[%s6] sm:$0xff] %v4500
    %v4502 = vunpack.c.l.bf16 %v4489
    %s4503 = scalar_lea.vmem %s6, 8
    %4504 = vst [vmem:[%s4503] sm:$0xff] %v4502
    %4505 = vst [vmem:[%s7] sm:$0xff] %v4366
    %s4506 = scalar_lea.vmem %s7, 8
    %4507 = vst [vmem:[%s4506] sm:$0xff] %v4490
  $region25: #{encoder_lstm_forward.2} parent=0 // pred_fallthru
    _
  %s4508 = ssub.s32 0, 0
  %s4509 = smul.u32 16, %s4508
  %p4510 = scmp.lt.s32.totalorder %s4509, 15
  %s4511 = scalar_select %p4510, %s4509, 15
  %s4512 = smul.addr %s4511, 8
  %s4513 = scalar_lea.vmem %s5, %s4512
  // Predicated region
  $region26: #{encoder_lstm_forward.2} parent=0 // pred_check
    _
  $region27: #{encoder_lstm_forward.2} parent=0 // pred_check_branch
    %4515 = sbr.rel (0) target = $region29
  $region28: #{encoder_lstm_forward.2} parent=0 // pred_region
    _
  $region29: #{encoder_lstm_forward.2} parent=0 // pred_fallthru
    _
  // Predicated region
  $region30: #{encoder_lstm_forward.2} parent=0 // pred_check
    _
  $region31: #{encoder_lstm_forward.2} parent=0 // pred_check_branch
    %4517 = sbr.rel (0) target = $region33
  $region32: #{encoder_lstm_forward.2} parent=0 // pred_region
    %s4518 = ssub.s32 0, 0
    %s4519 = smul.u32 16, %s4518
  $region33: #{encoder_lstm_forward.2} parent=0 // pred_fallthru
    _
  // Predicated region
  $region34: #{encoder_lstm_forward.2} parent=0 // pred_check
    _
  $region35: #{encoder_lstm_forward.2} parent=0 // pred_check_branch
    %4521 = sbr.rel (0) target = $region37
  $region36: #{encoder_lstm_forward.2} parent=0 // pred_region
    _
  $region37: #{encoder_lstm_forward.2} parent=0 // pred_fallthru
    _
  // Predicated region
  $region38: #{encoder_lstm_forward.2} parent=0 // pred_check
    _
  $region39: #{encoder_lstm_forward.2} parent=0 // pred_check_branch
    %4523 = sbr.rel (0) target = $region41
  $region40: #{encoder_lstm_forward.2} parent=0 // pred_region
    _
  $region41: #{encoder_lstm_forward.2} parent=0 // pred_fallthru
    _
  // Predicated region
  $region42: #{encoder_lstm_forward.2} parent=0 // pred_check
    _
  $region43: #{encoder_lstm_forward.2} parent=0 // pred_check_branch
    %4525 = sbr.rel (0) target = $region45
  $region44: #{encoder_lstm_forward.2} parent=0 // pred_region
    _
  $region45: #{encoder_lstm_forward.2} parent=0 // pred_fallthru
    _
  // Predicated region
  $region46: #{encoder_lstm_forward.2} parent=0 // pred_check
    _
  $region47: #{encoder_lstm_forward.2} parent=0 // pred_check_branch
    %4527 = sbr.rel (0) target = $region49
  $region48: #{encoder_lstm_forward.2} parent=0 // pred_region
    %s4528 = ssub.s32 0, 0
    %s4529 = smul.u32 16, %s4528
    %p4530 = scmp.lt.s32.totalorder %s4529, 15
    %s4531 = scalar_select %p4530, %s4529, 15
    %s4532 = smul.addr %s4531, 8
    %s4533 = scalar_lea.vmem %s5, %s4532
  $region49: #{encoder_lstm_forward.2} parent=0 // pred_fallthru
    _
  // Predicated region
  $region50: #{encoder_lstm_forward.2} parent=0 // pred_check
    _
  $region51: #{encoder_lstm_forward.2} parent=0 // pred_check_branch
    %4535 = sbr.rel (0) target = $region53
  $region52: #{encoder_lstm_forward.2} parent=0 // pred_region
    _
  $region53: #{encoder_lstm_forward.2} parent=0 // pred_fallthru
    _
  // Predicated region
  $region54: #{encoder_lstm_forward.2} parent=0 // pred_check
    _
  $region55: #{encoder_lstm_forward.2} parent=0 // pred_check_branch
    %4537 = sbr.rel (0) target = $region57
  $region56: #{encoder_lstm_forward.2} parent=0 // pred_region
    _
  $region57: #{encoder_lstm_forward.2} parent=0 // pred_fallthru
    _

</llo_original>
